<compile_context>
chip_gen: v7x
topology: tpu7x:2x2x1
jax: 0.10.0
libtpu: 0.0.40
codegen_flags: <defaults>
</compile_context>

<pallas_src>
import functools
import math

import jax
import jax.numpy as jnp
from jax.experimental import pallas as pl
from jax.experimental.pallas import tpu as pltpu


# --------------------------------------------------------------------------- helpers


def _layernorm(x, g_ref, b_ref, eps=1e-5):
    mu = jnp.mean(x, axis=-1, keepdims=True)
    xc = x - mu
    var = jnp.mean(xc * xc, axis=-1, keepdims=True)
    return xc * jax.lax.rsqrt(var + eps) * g_ref[...] + b_ref[...]


def _mha(xq, xkv, wq, bq, wk, bk, wv, bv, wo, bo, *, nhead):
    """torch.nn.MultiheadAttention (batch_first, no mask, eval) for one batch row.

    Weight refs are pre-split per head on the host:
      wq/wk/wv : (nhead, D, hd) bf16     bq/bk/bv : (nhead, 1, hd) f32
      wo       : (nhead, hd, D) bf16     bo       : (1, D)        f32
    Per-head q/k/v are computed directly from the per-head weight slabs (no lane
    slicing of activations); concat-heads + out_proj is folded into per-head
    (hd, D) matmuls accumulated into `out` (algebraically identical).
    """
    hd = wo.shape[1]
    inv_sqrt_hd = 1.0 / math.sqrt(hd)
    xq_b = xq.astype(jnp.bfloat16)
    xkv_b = xkv.astype(jnp.bfloat16)

    out = bo[...]                                  # (1, D) broadcasts over sequence
    for h in range(nhead):                         # static unroll, nhead is tiny
        qh = jnp.dot(xq_b, wq[h], preferred_element_type=jnp.float32) + bq[h]
        kh = jnp.dot(xkv_b, wk[h], preferred_element_type=jnp.float32) + bk[h]
        vh = jnp.dot(xkv_b, wv[h], preferred_element_type=jnp.float32) + bv[h]
        # scores stay f32 (tiny SxS matmul; keeps softmax accurate)
        s = jax.lax.dot_general(qh, kh, (((1,), (1,)), ((), ())),
                                preferred_element_type=jnp.float32) * inv_sqrt_hd
        s = s - jnp.max(s, axis=-1, keepdims=True)
        e = jnp.exp(s)
        p = e * pl.reciprocal(jnp.sum(e, axis=-1, keepdims=True), approx=True)
        oh = jnp.dot(p.astype(jnp.bfloat16), vh.astype(jnp.bfloat16),
                     preferred_element_type=jnp.float32)               # (Sq, hd)
        out = out + jnp.dot(oh.astype(jnp.bfloat16), wo[h],
                            preferred_element_type=jnp.float32)
    return out


def _ffn(x, w1, b1, w2, b2):
    h = jnp.maximum(
        jnp.dot(x.astype(jnp.bfloat16), w1[...],
                preferred_element_type=jnp.float32) + b1[...], 0.0)
    return jnp.dot(h.astype(jnp.bfloat16), w2[...],
                   preferred_element_type=jnp.float32) + b2[...]


# --------------------------------------------------------------------------- kernel


def _fused_kernel(*refs, nhead, in_scale):
    (src_ref, tgt_ref, pe_ref, w_in, b_in) = refs[0:5]
    enc_sa = refs[5:13]
    enc_ln1 = refs[13:15]
    enc_ffn = refs[15:19]
    enc_ln2 = refs[19:21]
    dec_sa = refs[21:29]
    dec_ln1 = refs[29:31]
    dec_ca = refs[31:39]
    dec_ln2 = refs[39:41]
    dec_ffn = refs[41:45]
    dec_ln3 = refs[45:47]
    w_out, b_out = refs[47:49]
    o_ref = refs[49]

    # ----------------- encoder: input proj + pos-enc + 1 encoder layer -----------
    x = jnp.dot((src_ref[...] * in_scale).astype(jnp.bfloat16), w_in[...],
                preferred_element_type=jnp.float32) + b_in[...] + pe_ref[...]
    sa = _mha(x, x, *enc_sa, nhead=nhead)
    x = _layernorm(x + sa, *enc_ln1)
    ff = _ffn(x, *enc_ffn)
    memory = _layernorm(x + ff, *enc_ln2)          # stays on-chip, no HBM round-trip

    # ----------------- decoder: input proj + 1 decoder layer + output head -------
    y = jnp.dot((tgt_ref[...] * in_scale).astype(jnp.bfloat16), w_in[...],
                preferred_element_type=jnp.float32) + b_in[...]
    sa = _mha(y, y, *dec_sa, nhead=nhead)
    y = _layernorm(y + sa, *dec_ln1)
    ca = _mha(y, memory, *dec_ca, nhead=nhead)
    y = _layernorm(y + ca, *dec_ln2)
    ff = _ffn(y, *dec_ffn)
    y = _layernorm(y + ff, *dec_ln3)
    z = jnp.dot(y.astype(jnp.bfloat16), w_out[...],
                preferred_element_type=jnp.float32) + b_out[...]
    # numerically-stable sigmoid via tanh (EUP), avoids exp overflow
    o_ref[...] = (0.5 * (jnp.tanh(0.5 * z) + 1.0)).astype(o_ref.dtype)


# --------------------------------------------------------------------------- wrapper


def transformer_basic_v2_forward(src, tgt, params, pe, *, nhead):
    """src/tgt: (B, S, F) float32. Returns sigmoid output (B, S, F) float32."""
    B, S, F = src.shape
    D = params["w_in"].shape[1]
    hd = D // nhead
    in_scale = math.sqrt(F)
    bf16 = jnp.bfloat16

    # ---- host-side weight prep (bf16 cast + per-head split; done once, free) ----
    def qkv_split(w, b):
        w_h = w.reshape(w.shape[0], nhead, hd).transpose(1, 0, 2).astype(bf16)
        b_h = b.reshape(1, nhead, hd).transpose(1, 0, 2)        # stays f32
        return w_h, b_h

    def out_split(w):
        return w.reshape(nhead, hd, D).astype(bf16)

    def attn_ops(prefix):
        wq, bq = qkv_split(params[prefix + "_wq"], params[prefix + "_bq"])
        wk, bk = qkv_split(params[prefix + "_wk"], params[prefix + "_bk"])
        wv, bv = qkv_split(params[prefix + "_wv"], params[prefix + "_bv"])
        wo = out_split(params[prefix + "_wo"])
        bo = params[prefix + "_bo"]
        return (wq, bq, wk, bk, wv, bv, wo, bo)

    ops = (
        src, tgt, pe,
        params["w_in"].astype(bf16), params["b_in"],
        *attn_ops("enc"),
        params["enc_ln1_g"], params["enc_ln1_b"],
        params["enc_w1"].astype(bf16), params["enc_b1"],
        params["enc_w2"].astype(bf16), params["enc_b2"],
        params["enc_ln2_g"], params["enc_ln2_b"],
        *attn_ops("dec_sa"),
        params["dec_ln1_g"], params["dec_ln1_b"],
        *attn_ops("dec_ca"),
        params["dec_ln2_g"], params["dec_ln2_b"],
        params["dec_w1"].astype(bf16), params["dec_b1"],
        params["dec_w2"].astype(bf16), params["dec_b2"],
        params["dec_ln3_g"], params["dec_ln3_b"],
        params["w_out"].astype(bf16), params["b_out"],
    )

    def bat_spec(arr):  # one batch row per grid step (batch dim squeezed in-kernel)
        nd = arr.ndim
        return pl.BlockSpec((None,) + arr.shape[1:],
                            lambda b, _nd=nd: (b,) + (0,) * (_nd - 1))

    def rep_spec(arr):  # constant block index -> VMEM-resident across the grid
        nd = arr.ndim
        return pl.BlockSpec(arr.shape, lambda b, _nd=nd: (0,) * _nd)

    in_specs = [bat_spec(src), bat_spec(tgt)] + [rep_spec(o) for o in ops[2:]]

    out = pl.pallas_call(
        functools.partial(_fused_kernel, nhead=nhead, in_scale=in_scale),
        out_shape=jax.ShapeDtypeStruct((B, S, F), jnp.float32),
        grid_spec=pltpu.PrefetchScalarGridSpec(
            num_scalar_prefetch=0,
            grid=(B,),
            in_specs=in_specs,
            out_specs=pl.BlockSpec((None, S, F), lambda b: (b, 0, 0)),
        ),
        compiler_params=pltpu.CompilerParams(
            dimension_semantics=("parallel",),    # v7x: one batch row per TensorCore
        ),
    )(*ops)
    return out


# --------------------------------------------------------------------------- params / PE


def positional_encoding(max_len, d_model):
    pos = jnp.arange(max_len, dtype=jnp.float32)[:, None]
    div = jnp.exp(jnp.arange(0, d_model, 2, dtype=jnp.float32)
                  * (-math.log(10000.0) / d_model))
    pe = jnp.zeros((max_len, d_model), jnp.float32)
    pe = pe.at[:, 0::2].set(jnp.sin(pos * div))
    pe = pe.at[:, 1::2].set(jnp.cos(pos * div))
    return pe


def init_params(key, feats, d_model, dim_ff):
    def linear(k, fi, fo):
        kw, kb = jax.random.split(k)
        lim = 1.0 / math.sqrt(fi)
        w = jax.random.uniform(kw, (fi, fo), jnp.float32, -lim, lim)
        b = jax.random.uniform(kb, (1, fo), jnp.float32, -lim, lim)
        return w, b

    def ln_params(k):
        kg, kb = jax.random.split(k)
        g = jax.random.uniform(kg, (1, d_model), jnp.float32, 0.8, 1.2)
        b = jax.random.uniform(kb, (1, d_model), jnp.float32, -0.1, 0.1)
        return g, b

    keys = iter(jax.random.split(key, 32))
    p = {}
    p["w_in"], p["b_in"] = linear(next(keys), feats, d_model)
    # encoder layer
    p["enc_wq"], p["enc_bq"] = linear(next(keys), d_model, d_model)
    p["enc_wk"], p["enc_bk"] = linear(next(keys), d_model, d_model)
    p["enc_wv"], p["enc_bv"] = linear(next(keys), d_model, d_model)
    p["enc_wo"], p["enc_bo"] = linear(next(keys), d_model, d_model)
    p["enc_ln1_g"], p["enc_ln1_b"] = ln_params(next(keys))
    p["enc_w1"], p["enc_b1"] = linear(next(keys), d_model, dim_ff)
    p["enc_w2"], p["enc_b2"] = linear(next(keys), dim_ff, d_model)
    p["enc_ln2_g"], p["enc_ln2_b"] = ln_params(next(keys))
    # decoder layer: self-attn
    p["dec_sa_wq"], p["dec_sa_bq"] = linear(next(keys), d_model, d_model)
    p["dec_sa_wk"], p["dec_sa_bk"] = linear(next(keys), d_model, d_model)
    p["dec_sa_wv"], p["dec_sa_bv"] = linear(next(keys), d_model, d_model)
    p["dec_sa_wo"], p["dec_sa_bo"] = linear(next(keys), d_model, d_model)
    p["dec_ln1_g"], p["dec_ln1_b"] = ln_params(next(keys))
    # decoder layer: cross-attn
    p["dec_ca_wq"], p["dec_ca_bq"] = linear(next(keys), d_model, d_model)
    p["dec_ca_wk"], p["dec_ca_bk"] = linear(next(keys), d_model, d_model)
    p["dec_ca_wv"], p["dec_ca_bv"] = linear(next(keys), d_model, d_model)
    p["dec_ca_wo"], p["dec_ca_bo"] = linear(next(keys), d_model, d_model)
    p["dec_ln2_g"], p["dec_ln2_b"] = ln_params(next(keys))
    # decoder layer: FFN
    p["dec_w1"], p["dec_b1"] = linear(next(keys), d_model, dim_ff)
    p["dec_w2"], p["dec_b2"] = linear(next(keys), dim_ff, d_model)
    p["dec_ln3_g"], p["dec_ln3_b"] = ln_params(next(keys))
    # output layer
    p["w_out"], p["b_out"] = linear(next(keys), d_model, feats)
    return p


# --------------------------------------------------------------------------- reference


def reference_forward(src, tgt, p, pe, nhead):
    F = src.shape[-1]
    sc = math.sqrt(F)

    def mha(xq, xkv, wq, bq, wk, bk, wv, bv, wo, bo):
        q = xq @ wq + bq
        k = xkv @ wk + bk
        v = xkv @ wv + bv
        B, Sq, D = q.shape
        Sk = k.shape[1]
        hd = D // nhead
        qh = q.reshape(B, Sq, nhead, hd)
        kh = k.reshape(B, Sk, nhead, hd)
        vh = v.reshape(B, Sk, nhead, hd)
        s = jnp.einsum("bqhd,bkhd->bhqk", qh, kh) / math.sqrt(hd)
        a = jax.nn.softmax(s, axis=-1)
        o = jnp.einsum("bhqk,bkhd->bqhd", a, vh).reshape(B, Sq, D)
        return o @ wo + bo

    def ln(x, g, b, eps=1e-5):
        mu = x.mean(-1, keepdims=True)
        var = ((x - mu) ** 2).mean(-1, keepdims=True)
        return (x - mu) / jnp.sqrt(var + eps) * g + b

    # encoder
    x = (src * sc) @ p["w_in"] + p["b_in"] + pe
    x = ln(x + mha(x, x, p["enc_wq"], p["enc_bq"], p["enc_wk"], p["enc_bk"],
                   p["enc_wv"], p["enc_bv"], p["enc_wo"], p["enc_bo"]),
           p["enc_ln1_g"], p["enc_ln1_b"])
    ff = jnp.maximum(x @ p["enc_w1"] + p["enc_b1"], 0.0) @ p["enc_w2"] + p["enc_b2"]
    memory = ln(x + ff, p["enc_ln2_g"], p["enc_ln2_b"])
    # decoder
    x = (tgt * sc) @ p["w_in"] + p["b_in"]
    x = ln(x + mha(x, x, p["dec_sa_wq"], p["dec_sa_bq"], p["dec_sa_wk"], p["dec_sa_bk"],
                   p["dec_sa_wv"], p["dec_sa_bv"], p["dec_sa_wo"], p["dec_sa_bo"]),
           p["dec_ln1_g"], p["dec_ln1_b"])
    x = ln(x + mha(x, memory, p["dec_ca_wq"], p["dec_ca_bq"], p["dec_ca_wk"], p["dec_ca_bk"],
                   p["dec_ca_wv"], p["dec_ca_bv"], p["dec_ca_wo"], p["dec_ca_bo"]),
           p["dec_ln2_g"], p["dec_ln2_b"])
    ff = jnp.maximum(x @ p["dec_w1"] + p["dec_b1"], 0.0) @ p["dec_w2"] + p["dec_b2"]
    x = ln(x + ff, p["dec_ln3_g"], p["dec_ln3_b"])
    return jax.nn.sigmoid(x @ p["w_out"] + p["b_out"])


# --------------------------------------------------------------------------- main


if __name__ == "__main__":
    feats, window = 4, 8              # n_feats=4, n_window=8
    batch = 2
    nhead = feats                     # nhead = feats (as in the module)
    d_model = 16 * feats              # scale = 16 -> d_model = 64
    dim_ff = 256

    key = jax.random.PRNGKey(0)
    k_src, k_tgt, k_p = jax.random.split(key, 3)
    src = jax.random.normal(k_src, (batch, window, feats), jnp.float32)
    tgt = jax.random.normal(k_tgt, (batch, window, feats), jnp.float32)
    params = init_params(k_p, feats, d_model, dim_ff)
    pe = positional_encoding(window, d_model)

    out = transformer_basic_v2_forward(src, tgt, params, pe, nhead=nhead)
    out = jax.block_until_ready(out)

    ref = reference_forward(src, tgt, params, pe, nhead)
    assert out.shape == (batch, window, feats)
    # tolerance loosened vs f32 reference because kernel matmuls use bf16 operands
    # (f32 accumulation); structural bugs would produce O(0.1+) errors.
    assert jnp.allclose(out, ref, atol=3e-2, rtol=3e-2), \
        f"max abs err = {float(jnp.max(jnp.abs(out - ref)))}"

    print("KERNEL_OK")
</pallas_src>

<mosaic_0001>
module attributes {stable_mosaic.version = 11 : i64} {
  func.func @_fused_kernel(%arg0: i32, %arg1: memref<1x8x4xf32, #tpu.memory_space<vmem>>, %arg2: memref<1x8x4xf32, #tpu.memory_space<vmem>>, %arg3: memref<8x64xf32, #tpu.memory_space<vmem>>, %arg4: memref<4x64xbf16, #tpu.memory_space<vmem>>, %arg5: memref<1x64xf32, #tpu.memory_space<vmem>>, %arg6: memref<4x64x16xbf16, #tpu.memory_space<vmem>>, %arg7: memref<4x1x16xf32, #tpu.memory_space<vmem>>, %arg8: memref<4x64x16xbf16, #tpu.memory_space<vmem>>, %arg9: memref<4x1x16xf32, #tpu.memory_space<vmem>>, %arg10: memref<4x64x16xbf16, #tpu.memory_space<vmem>>, %arg11: memref<4x1x16xf32, #tpu.memory_space<vmem>>, %arg12: memref<4x16x64xbf16, #tpu.memory_space<vmem>>, %arg13: memref<1x64xf32, #tpu.memory_space<vmem>>, %arg14: memref<1x64xf32, #tpu.memory_space<vmem>>, %arg15: memref<1x64xf32, #tpu.memory_space<vmem>>, %arg16: memref<64x256xbf16, #tpu.memory_space<vmem>>, %arg17: memref<1x256xf32, #tpu.memory_space<vmem>>, %arg18: memref<256x64xbf16, #tpu.memory_space<vmem>>, %arg19: memref<1x64xf32, #tpu.memory_space<vmem>>, %arg20: memref<1x64xf32, #tpu.memory_space<vmem>>, %arg21: memref<1x64xf32, #tpu.memory_space<vmem>>, %arg22: memref<4x64x16xbf16, #tpu.memory_space<vmem>>, %arg23: memref<4x1x16xf32, #tpu.memory_space<vmem>>, %arg24: memref<4x64x16xbf16, #tpu.memory_space<vmem>>, %arg25: memref<4x1x16xf32, #tpu.memory_space<vmem>>, %arg26: memref<4x64x16xbf16, #tpu.memory_space<vmem>>, %arg27: memref<4x1x16xf32, #tpu.memory_space<vmem>>, %arg28: memref<4x16x64xbf16, #tpu.memory_space<vmem>>, %arg29: memref<1x64xf32, #tpu.memory_space<vmem>>, %arg30: memref<1x64xf32, #tpu.memory_space<vmem>>, %arg31: memref<1x64xf32, #tpu.memory_space<vmem>>, %arg32: memref<4x64x16xbf16, #tpu.memory_space<vmem>>, %arg33: memref<4x1x16xf32, #tpu.memory_space<vmem>>, %arg34: memref<4x64x16xbf16, #tpu.memory_space<vmem>>, %arg35: memref<4x1x16xf32, #tpu.memory_space<vmem>>, %arg36: memref<4x64x16xbf16, #tpu.memory_space<vmem>>, %arg37: memref<4x1x16xf32, #tpu.memory_space<vmem>>, %arg38: memref<4x16x64xbf16, #tpu.memory_space<vmem>>, %arg39: memref<1x64xf32, #tpu.memory_space<vmem>>, %arg40: memref<1x64xf32, #tpu.memory_space<vmem>>, %arg41: memref<1x64xf32, #tpu.memory_space<vmem>>, %arg42: memref<64x256xbf16, #tpu.memory_space<vmem>>, %arg43: memref<1x256xf32, #tpu.memory_space<vmem>>, %arg44: memref<256x64xbf16, #tpu.memory_space<vmem>>, %arg45: memref<1x64xf32, #tpu.memory_space<vmem>>, %arg46: memref<1x64xf32, #tpu.memory_space<vmem>>, %arg47: memref<1x64xf32, #tpu.memory_space<vmem>>, %arg48: memref<64x4xbf16, #tpu.memory_space<vmem>>, %arg49: memref<1x4xf32, #tpu.memory_space<vmem>>, %arg50: memref<1x8x4xf32, #tpu.memory_space<vmem>>) attributes {dimension_semantics = [#tpu.dimension_semantics<parallel>], iteration_bounds = array<i64: 2>, scalar_prefetch = 0 : i64, scratch_operands = 0 : i64, tpu.core_type = #tpu.core_type<tc>, window_params = [{transform_indices = @transform_0, window_bounds = array<i64: 1, 8, 4>}, {transform_indices = @transform_1, window_bounds = array<i64: 1, 8, 4>}, {pipeline_mode = #tpu.pipeline_mode<synchronous>, transform_indices = @transform_2, window_bounds = array<i64: 8, 64>}, {pipeline_mode = #tpu.pipeline_mode<synchronous>, transform_indices = @transform_3, window_bounds = array<i64: 4, 64>}, {pipeline_mode = #tpu.pipeline_mode<synchronous>, transform_indices = @transform_4, window_bounds = array<i64: 1, 64>}, {pipeline_mode = #tpu.pipeline_mode<synchronous>, transform_indices = @transform_5, window_bounds = array<i64: 4, 64, 16>}, {pipeline_mode = #tpu.pipeline_mode<synchronous>, transform_indices = @transform_6, window_bounds = array<i64: 4, 1, 16>}, {pipeline_mode = #tpu.pipeline_mode<synchronous>, transform_indices = @transform_7, window_bounds = array<i64: 4, 64, 16>}, {pipeline_mode = #tpu.pipeline_mode<synchronous>, transform_indices = @transform_8, window_bounds = array<i64: 4, 1, 16>}, {pipeline_mode = #tpu.pipeline_mode<synchronous>, transform_indices = @transform_9, window_bounds = array<i64: 4, 64, 16>}, {pipeline_mode = #tpu.pipeline_mode<synchronous>, transform_indices = @transform_10, window_bounds = array<i64: 4, 1, 16>}, {pipeline_mode = #tpu.pipeline_mode<synchronous>, transform_indices = @transform_11, window_bounds = array<i64: 4, 16, 64>}, {pipeline_mode = #tpu.pipeline_mode<synchronous>, transform_indices = @transform_12, window_bounds = array<i64: 1, 64>}, {pipeline_mode = #tpu.pipeline_mode<synchronous>, transform_indices = @transform_13, window_bounds = array<i64: 1, 64>}, {pipeline_mode = #tpu.pipeline_mode<synchronous>, transform_indices = @transform_14, window_bounds = array<i64: 1, 64>}, {pipeline_mode = #tpu.pipeline_mode<synchronous>, transform_indices = @transform_15, window_bounds = array<i64: 64, 256>}, {pipeline_mode = #tpu.pipeline_mode<synchronous>, transform_indices = @transform_16, window_bounds = array<i64: 1, 256>}, {pipeline_mode = #tpu.pipeline_mode<synchronous>, transform_indices = @transform_17, window_bounds = array<i64: 256, 64>}, {pipeline_mode = #tpu.pipeline_mode<synchronous>, transform_indices = @transform_18, window_bounds = array<i64: 1, 64>}, {pipeline_mode = #tpu.pipeline_mode<synchronous>, transform_indices = @transform_19, window_bounds = array<i64: 1, 64>}, {pipeline_mode = #tpu.pipeline_mode<synchronous>, transform_indices = @transform_20, window_bounds = array<i64: 1, 64>}, {pipeline_mode = #tpu.pipeline_mode<synchronous>, transform_indices = @transform_21, window_bounds = array<i64: 4, 64, 16>}, {pipeline_mode = #tpu.pipeline_mode<synchronous>, transform_indices = @transform_22, window_bounds = array<i64: 4, 1, 16>}, {pipeline_mode = #tpu.pipeline_mode<synchronous>, transform_indices = @transform_23, window_bounds = array<i64: 4, 64, 16>}, {pipeline_mode = #tpu.pipeline_mode<synchronous>, transform_indices = @transform_24, window_bounds = array<i64: 4, 1, 16>}, {pipeline_mode = #tpu.pipeline_mode<synchronous>, transform_indices = @transform_25, window_bounds = array<i64: 4, 64, 16>}, {pipeline_mode = #tpu.pipeline_mode<synchronous>, transform_indices = @transform_26, window_bounds = array<i64: 4, 1, 16>}, {pipeline_mode = #tpu.pipeline_mode<synchronous>, transform_indices = @transform_27, window_bounds = array<i64: 4, 16, 64>}, {pipeline_mode = #tpu.pipeline_mode<synchronous>, transform_indices = @transform_28, window_bounds = array<i64: 1, 64>}, {pipeline_mode = #tpu.pipeline_mode<synchronous>, transform_indices = @transform_29, window_bounds = array<i64: 1, 64>}, {pipeline_mode = #tpu.pipeline_mode<synchronous>, transform_indices = @transform_30, window_bounds = array<i64: 1, 64>}, {pipeline_mode = #tpu.pipeline_mode<synchronous>, transform_indices = @transform_31, window_bounds = array<i64: 4, 64, 16>}, {pipeline_mode = #tpu.pipeline_mode<synchronous>, transform_indices = @transform_32, window_bounds = array<i64: 4, 1, 16>}, {pipeline_mode = #tpu.pipeline_mode<synchronous>, transform_indices = @transform_33, window_bounds = array<i64: 4, 64, 16>}, {pipeline_mode = #tpu.pipeline_mode<synchronous>, transform_indices = @transform_34, window_bounds = array<i64: 4, 1, 16>}, {pipeline_mode = #tpu.pipeline_mode<synchronous>, transform_indices = @transform_35, window_bounds = array<i64: 4, 64, 16>}, {pipeline_mode = #tpu.pipeline_mode<synchronous>, transform_indices = @transform_36, window_bounds = array<i64: 4, 1, 16>}, {pipeline_mode = #tpu.pipeline_mode<synchronous>, transform_indices = @transform_37, window_bounds = array<i64: 4, 16, 64>}, {pipeline_mode = #tpu.pipeline_mode<synchronous>, transform_indices = @transform_38, window_bounds = array<i64: 1, 64>}, {pipeline_mode = #tpu.pipeline_mode<synchronous>, transform_indices = @transform_39, window_bounds = array<i64: 1, 64>}, {pipeline_mode = #tpu.pipeline_mode<synchronous>, transform_indices = @transform_40, window_bounds = array<i64: 1, 64>}, {pipeline_mode = #tpu.pipeline_mode<synchronous>, transform_indices = @transform_41, window_bounds = array<i64: 64, 256>}, {pipeline_mode = #tpu.pipeline_mode<synchronous>, transform_indices = @transform_42, window_bounds = array<i64: 1, 256>}, {pipeline_mode = #tpu.pipeline_mode<synchronous>, transform_indices = @transform_43, window_bounds = array<i64: 256, 64>}, {pipeline_mode = #tpu.pipeline_mode<synchronous>, transform_indices = @transform_44, window_bounds = array<i64: 1, 64>}, {pipeline_mode = #tpu.pipeline_mode<synchronous>, transform_indices = @transform_45, window_bounds = array<i64: 1, 64>}, {pipeline_mode = #tpu.pipeline_mode<synchronous>, transform_indices = @transform_46, window_bounds = array<i64: 1, 64>}, {pipeline_mode = #tpu.pipeline_mode<synchronous>, transform_indices = @transform_47, window_bounds = array<i64: 64, 4>}, {pipeline_mode = #tpu.pipeline_mode<synchronous>, transform_indices = @transform_48, window_bounds = array<i64: 1, 4>}, {transform_indices = @transform_49, window_bounds = array<i64: 1, 8, 4>}]} {
    %c0 = arith.constant 0 : index
    %c0_0 = arith.constant 0 : index
    %c0_1 = arith.constant 0 : index
    %0 = vector.load %arg1[%c0, %c0_0, %c0_1] : memref<1x8x4xf32, #tpu.memory_space<vmem>>, vector<1x8x4xf32>
    %1 = vector.shape_cast %0 : vector<1x8x4xf32> to vector<8x4xf32>
    %cst = arith.constant 2.000000e+00 : f32
    %2 = vector.broadcast %cst : f32 to vector<8x4xf32>
    %3 = arith.mulf %1, %2 : vector<8x4xf32>
    %4 = arith.truncf %3 : vector<8x4xf32> to vector<8x4xbf16>
    %c0_2 = arith.constant 0 : index
    %c0_3 = arith.constant 0 : index
    %5 = vector.load %arg4[%c0_2, %c0_3] : memref<4x64xbf16, #tpu.memory_space<vmem>>, vector<4x64xbf16>
    %cst_4 = arith.constant dense<0.000000e+00> : vector<8x64xf32>
    %6 = tpu.matmul %4, %5, %cst_4 {dimension_numbers = #tpu.dot_dimension_numbers<[1], [0], [0], [1], [0, 0, 1, 1], [], []>} : vector<8x4xbf16>, vector<4x64xbf16>, vector<8x64xf32> -> vector<8x64xf32>
    %c0_5 = arith.constant 0 : index
    %c0_6 = arith.constant 0 : index
    %7 = vector.load %arg5[%c0_5, %c0_6] : memref<1x64xf32, #tpu.memory_space<vmem>>, vector<1x64xf32>
    %8 = vector.broadcast %7 : vector<1x64xf32> to vector<8x64xf32>
    %9 = arith.addf %6, %8 : vector<8x64xf32>
    %c0_7 = arith.constant 0 : index
    %c0_8 = arith.constant 0 : index
    %10 = vector.load %arg3[%c0_7, %c0_8] : memref<8x64xf32, #tpu.memory_space<vmem>>, vector<8x64xf32>
    %11 = arith.addf %9, %10 : vector<8x64xf32>
    %12 = arith.truncf %11 : vector<8x64xf32> to vector<8x64xbf16>
    %13 = arith.truncf %11 : vector<8x64xf32> to vector<8x64xbf16>
    %c0_9 = arith.constant 0 : index
    %c0_10 = arith.constant 0 : index
    %14 = vector.load %arg13[%c0_9, %c0_10] : memref<1x64xf32, #tpu.memory_space<vmem>>, vector<1x64xf32>
    %c0_11 = arith.constant 0 : index
    %c0_12 = arith.constant 0 : index
    %c0_13 = arith.constant 0 : index
    %15 = vector.load %arg6[%c0_11, %c0_12, %c0_13] : memref<4x64x16xbf16, #tpu.memory_space<vmem>>, vector<1x64x16xbf16>
    %16 = vector.shape_cast %15 : vector<1x64x16xbf16> to vector<64x16xbf16>
    %cst_14 = arith.constant dense<0.000000e+00> : vector<8x16xf32>
    %17 = tpu.matmul %12, %16, %cst_14 {dimension_numbers = #tpu.dot_dimension_numbers<[1], [0], [0], [1], [0, 0, 1, 1], [], []>} : vector<8x64xbf16>, vector<64x16xbf16>, vector<8x16xf32> -> vector<8x16xf32>
    %c0_15 = arith.constant 0 : index
    %c0_16 = arith.constant 0 : index
    %c0_17 = arith.constant 0 : index
    %18 = vector.load %arg7[%c0_15, %c0_16, %c0_17] : memref<4x1x16xf32, #tpu.memory_space<vmem>>, vector<1x1x16xf32>
    %19 = vector.shape_cast %18 : vector<1x1x16xf32> to vector<1x16xf32>
    %20 = vector.broadcast %19 : vector<1x16xf32> to vector<8x16xf32>
    %21 = arith.addf %17, %20 : vector<8x16xf32>
    %c0_18 = arith.constant 0 : index
    %c0_19 = arith.constant 0 : index
    %c0_20 = arith.constant 0 : index
    %22 = vector.load %arg8[%c0_18, %c0_19, %c0_20] : memref<4x64x16xbf16, #tpu.memory_space<vmem>>, vector<1x64x16xbf16>
    %23 = vector.shape_cast %22 : vector<1x64x16xbf16> to vector<64x16xbf16>
    %cst_21 = arith.constant dense<0.000000e+00> : vector<8x16xf32>
    %24 = tpu.matmul %13, %23, %cst_21 {dimension_numbers = #tpu.dot_dimension_numbers<[1], [0], [0], [1], [0, 0, 1, 1], [], []>} : vector<8x64xbf16>, vector<64x16xbf16>, vector<8x16xf32> -> vector<8x16xf32>
    %c0_22 = arith.constant 0 : index
    %c0_23 = arith.constant 0 : index
    %c0_24 = arith.constant 0 : index
    %25 = vector.load %arg9[%c0_22, %c0_23, %c0_24] : memref<4x1x16xf32, #tpu.memory_space<vmem>>, vector<1x1x16xf32>
    %26 = vector.shape_cast %25 : vector<1x1x16xf32> to vector<1x16xf32>
    %27 = vector.broadcast %26 : vector<1x16xf32> to vector<8x16xf32>
    %28 = arith.addf %24, %27 : vector<8x16xf32>
    %c0_25 = arith.constant 0 : index
    %c0_26 = arith.constant 0 : index
    %c0_27 = arith.constant 0 : index
    %29 = vector.load %arg10[%c0_25, %c0_26, %c0_27] : memref<4x64x16xbf16, #tpu.memory_space<vmem>>, vector<1x64x16xbf16>
    %30 = vector.shape_cast %29 : vector<1x64x16xbf16> to vector<64x16xbf16>
    %cst_28 = arith.constant dense<0.000000e+00> : vector<8x16xf32>
    %31 = tpu.matmul %13, %30, %cst_28 {dimension_numbers = #tpu.dot_dimension_numbers<[1], [0], [0], [1], [0, 0, 1, 1], [], []>} : vector<8x64xbf16>, vector<64x16xbf16>, vector<8x16xf32> -> vector<8x16xf32>
    %c0_29 = arith.constant 0 : index
    %c0_30 = arith.constant 0 : index
    %c0_31 = arith.constant 0 : index
    %32 = vector.load %arg11[%c0_29, %c0_30, %c0_31] : memref<4x1x16xf32, #tpu.memory_space<vmem>>, vector<1x1x16xf32>
    %33 = vector.shape_cast %32 : vector<1x1x16xf32> to vector<1x16xf32>
    %34 = vector.broadcast %33 : vector<1x16xf32> to vector<8x16xf32>
    %35 = arith.addf %31, %34 : vector<8x16xf32>
    %cst_32 = arith.constant dense<0.000000e+00> : vector<8x8xf32>
    %36 = tpu.matmul %21, %28, %cst_32 {dimension_numbers = #tpu.dot_dimension_numbers<[1], [1], [0], [0], [0, 0, 1, 0], [], []>} : vector<8x16xf32>, vector<8x16xf32>, vector<8x8xf32> -> vector<8x8xf32>
    %cst_33 = arith.constant 2.500000e-01 : f32
    %37 = vector.broadcast %cst_33 : f32 to vector<8x8xf32>
    %38 = arith.mulf %36, %37 : vector<8x8xf32>
    %cst_34 = arith.constant dense<0xFF800000> : vector<8xf32>
    %39 = vector.multi_reduction <maximumf>, %38, %cst_34 [1] : vector<8x8xf32> to vector<8xf32>
    %40 = vector.shape_cast %39 : vector<8xf32> to vector<8x1xf32>
    %41 = vector.broadcast %40 : vector<8x1xf32> to vector<8x8xf32>
    %42 = arith.subf %38, %41 : vector<8x8xf32>
    %43 = math.exp %42 : vector<8x8xf32>
    %cst_35 = arith.constant dense<0.000000e+00> : vector<8xf32>
    %44 = vector.multi_reduction <add>, %43, %cst_35 [1] : vector<8x8xf32> to vector<8xf32>
    %45 = vector.shape_cast %44 : vector<8xf32> to vector<8x1xf32>
    %46 = tpu.reciprocal %45 {approx = true} : vector<8x1xf32> -> vector<8x1xf32>
    %47 = vector.broadcast %46 : vector<8x1xf32> to vector<8x8xf32>
    %48 = arith.mulf %43, %47 : vector<8x8xf32>
    %49 = arith.truncf %48 : vector<8x8xf32> to vector<8x8xbf16>
    %50 = arith.truncf %35 : vector<8x16xf32> to vector<8x16xbf16>
    %cst_36 = arith.constant dense<0.000000e+00> : vector<8x16xf32>
    %51 = tpu.matmul %49, %50, %cst_36 {dimension_numbers = #tpu.dot_dimension_numbers<[1], [0], [0], [1], [0, 0, 1, 1], [], []>} : vector<8x8xbf16>, vector<8x16xbf16>, vector<8x16xf32> -> vector<8x16xf32>
    %52 = arith.truncf %51 : vector<8x16xf32> to vector<8x16xbf16>
    %c0_37 = arith.constant 0 : index
    %c0_38 = arith.constant 0 : index
    %c0_39 = arith.constant 0 : index
    %53 = vector.load %arg12[%c0_37, %c0_38, %c0_39] : memref<4x16x64xbf16, #tpu.memory_space<vmem>>, vector<1x16x64xbf16>
    %54 = vector.shape_cast %53 : vector<1x16x64xbf16> to vector<16x64xbf16>
    %cst_40 = arith.constant dense<0.000000e+00> : vector<8x64xf32>
    %55 = tpu.matmul %52, %54, %cst_40 {dimension_numbers = #tpu.dot_dimension_numbers<[1], [0], [0], [1], [0, 0, 1, 1], [], []>} : vector<8x16xbf16>, vector<16x64xbf16>, vector<8x64xf32> -> vector<8x64xf32>
    %56 = vector.broadcast %14 : vector<1x64xf32> to vector<8x64xf32>
    %57 = arith.addf %56, %55 : vector<8x64xf32>
    %c1 = arith.constant 1 : index
    %c0_41 = arith.constant 0 : index
    %c0_42 = arith.constant 0 : index
    %58 = vector.load %arg6[%c1, %c0_41, %c0_42] : memref<4x64x16xbf16, #tpu.memory_space<vmem>>, vector<1x64x16xbf16>
    %59 = vector.shape_cast %58 : vector<1x64x16xbf16> to vector<64x16xbf16>
    %cst_43 = arith.constant dense<0.000000e+00> : vector<8x16xf32>
    %60 = tpu.matmul %12, %59, %cst_43 {dimension_numbers = #tpu.dot_dimension_numbers<[1], [0], [0], [1], [0, 0, 1, 1], [], []>} : vector<8x64xbf16>, vector<64x16xbf16>, vector<8x16xf32> -> vector<8x16xf32>
    %c1_44 = arith.constant 1 : index
    %c0_45 = arith.constant 0 : index
    %c0_46 = arith.constant 0 : index
    %61 = vector.load %arg7[%c1_44, %c0_45, %c0_46] : memref<4x1x16xf32, #tpu.memory_space<vmem>>, vector<1x1x16xf32>
    %62 = vector.shape_cast %61 : vector<1x1x16xf32> to vector<1x16xf32>
    %63 = vector.broadcast %62 : vector<1x16xf32> to vector<8x16xf32>
    %64 = arith.addf %60, %63 : vector<8x16xf32>
    %c1_47 = arith.constant 1 : index
    %c0_48 = arith.constant 0 : index
    %c0_49 = arith.constant 0 : index
    %65 = vector.load %arg8[%c1_47, %c0_48, %c0_49] : memref<4x64x16xbf16, #tpu.memory_space<vmem>>, vector<1x64x16xbf16>
    %66 = vector.shape_cast %65 : vector<1x64x16xbf16> to vector<64x16xbf16>
    %cst_50 = arith.constant dense<0.000000e+00> : vector<8x16xf32>
    %67 = tpu.matmul %13, %66, %cst_50 {dimension_numbers = #tpu.dot_dimension_numbers<[1], [0], [0], [1], [0, 0, 1, 1], [], []>} : vector<8x64xbf16>, vector<64x16xbf16>, vector<8x16xf32> -> vector<8x16xf32>
    %c1_51 = arith.constant 1 : index
    %c0_52 = arith.constant 0 : index
    %c0_53 = arith.constant 0 : index
    %68 = vector.load %arg9[%c1_51, %c0_52, %c0_53] : memref<4x1x16xf32, #tpu.memory_space<vmem>>, vector<1x1x16xf32>
    %69 = vector.shape_cast %68 : vector<1x1x16xf32> to vector<1x16xf32>
    %70 = vector.broadcast %69 : vector<1x16xf32> to vector<8x16xf32>
    %71 = arith.addf %67, %70 : vector<8x16xf32>
    %c1_54 = arith.constant 1 : index
    %c0_55 = arith.constant 0 : index
    %c0_56 = arith.constant 0 : index
    %72 = vector.load %arg10[%c1_54, %c0_55, %c0_56] : memref<4x64x16xbf16, #tpu.memory_space<vmem>>, vector<1x64x16xbf16>
    %73 = vector.shape_cast %72 : vector<1x64x16xbf16> to vector<64x16xbf16>
    %cst_57 = arith.constant dense<0.000000e+00> : vector<8x16xf32>
    %74 = tpu.matmul %13, %73, %cst_57 {dimension_numbers = #tpu.dot_dimension_numbers<[1], [0], [0], [1], [0, 0, 1, 1], [], []>} : vector<8x64xbf16>, vector<64x16xbf16>, vector<8x16xf32> -> vector<8x16xf32>
    %c1_58 = arith.constant 1 : index
    %c0_59 = arith.constant 0 : index
    %c0_60 = arith.constant 0 : index
    %75 = vector.load %arg11[%c1_58, %c0_59, %c0_60] : memref<4x1x16xf32, #tpu.memory_space<vmem>>, vector<1x1x16xf32>
    %76 = vector.shape_cast %75 : vector<1x1x16xf32> to vector<1x16xf32>
    %77 = vector.broadcast %76 : vector<1x16xf32> to vector<8x16xf32>
    %78 = arith.addf %74, %77 : vector<8x16xf32>
    %cst_61 = arith.constant dense<0.000000e+00> : vector<8x8xf32>
    %79 = tpu.matmul %64, %71, %cst_61 {dimension_numbers = #tpu.dot_dimension_numbers<[1], [1], [0], [0], [0, 0, 1, 0], [], []>} : vector<8x16xf32>, vector<8x16xf32>, vector<8x8xf32> -> vector<8x8xf32>
    %cst_62 = arith.constant 2.500000e-01 : f32
    %80 = vector.broadcast %cst_62 : f32 to vector<8x8xf32>
    %81 = arith.mulf %79, %80 : vector<8x8xf32>
    %cst_63 = arith.constant dense<0xFF800000> : vector<8xf32>
    %82 = vector.multi_reduction <maximumf>, %81, %cst_63 [1] : vector<8x8xf32> to vector<8xf32>
    %83 = vector.shape_cast %82 : vector<8xf32> to vector<8x1xf32>
    %84 = vector.broadcast %83 : vector<8x1xf32> to vector<8x8xf32>
    %85 = arith.subf %81, %84 : vector<8x8xf32>
    %86 = math.exp %85 : vector<8x8xf32>
    %cst_64 = arith.constant dense<0.000000e+00> : vector<8xf32>
    %87 = vector.multi_reduction <add>, %86, %cst_64 [1] : vector<8x8xf32> to vector<8xf32>
    %88 = vector.shape_cast %87 : vector<8xf32> to vector<8x1xf32>
    %89 = tpu.reciprocal %88 {approx = true} : vector<8x1xf32> -> vector<8x1xf32>
    %90 = vector.broadcast %89 : vector<8x1xf32> to vector<8x8xf32>
    %91 = arith.mulf %86, %90 : vector<8x8xf32>
    %92 = arith.truncf %91 : vector<8x8xf32> to vector<8x8xbf16>
    %93 = arith.truncf %78 : vector<8x16xf32> to vector<8x16xbf16>
    %cst_65 = arith.constant dense<0.000000e+00> : vector<8x16xf32>
    %94 = tpu.matmul %92, %93, %cst_65 {dimension_numbers = #tpu.dot_dimension_numbers<[1], [0], [0], [1], [0, 0, 1, 1], [], []>} : vector<8x8xbf16>, vector<8x16xbf16>, vector<8x16xf32> -> vector<8x16xf32>
    %95 = arith.truncf %94 : vector<8x16xf32> to vector<8x16xbf16>
    %c1_66 = arith.constant 1 : index
    %c0_67 = arith.constant 0 : index
    %c0_68 = arith.constant 0 : index
    %96 = vector.load %arg12[%c1_66, %c0_67, %c0_68] : memref<4x16x64xbf16, #tpu.memory_space<vmem>>, vector<1x16x64xbf16>
    %97 = vector.shape_cast %96 : vector<1x16x64xbf16> to vector<16x64xbf16>
    %cst_69 = arith.constant dense<0.000000e+00> : vector<8x64xf32>
    %98 = tpu.matmul %95, %97, %cst_69 {dimension_numbers = #tpu.dot_dimension_numbers<[1], [0], [0], [1], [0, 0, 1, 1], [], []>} : vector<8x16xbf16>, vector<16x64xbf16>, vector<8x64xf32> -> vector<8x64xf32>
    %99 = arith.addf %57, %98 : vector<8x64xf32>
    %c2 = arith.constant 2 : index
    %c0_70 = arith.constant 0 : index
    %c0_71 = arith.constant 0 : index
    %100 = vector.load %arg6[%c2, %c0_70, %c0_71] : memref<4x64x16xbf16, #tpu.memory_space<vmem>>, vector<1x64x16xbf16>
    %101 = vector.shape_cast %100 : vector<1x64x16xbf16> to vector<64x16xbf16>
    %cst_72 = arith.constant dense<0.000000e+00> : vector<8x16xf32>
    %102 = tpu.matmul %12, %101, %cst_72 {dimension_numbers = #tpu.dot_dimension_numbers<[1], [0], [0], [1], [0, 0, 1, 1], [], []>} : vector<8x64xbf16>, vector<64x16xbf16>, vector<8x16xf32> -> vector<8x16xf32>
    %c2_73 = arith.constant 2 : index
    %c0_74 = arith.constant 0 : index
    %c0_75 = arith.constant 0 : index
    %103 = vector.load %arg7[%c2_73, %c0_74, %c0_75] : memref<4x1x16xf32, #tpu.memory_space<vmem>>, vector<1x1x16xf32>
    %104 = vector.shape_cast %103 : vector<1x1x16xf32> to vector<1x16xf32>
    %105 = vector.broadcast %104 : vector<1x16xf32> to vector<8x16xf32>
    %106 = arith.addf %102, %105 : vector<8x16xf32>
    %c2_76 = arith.constant 2 : index
    %c0_77 = arith.constant 0 : index
    %c0_78 = arith.constant 0 : index
    %107 = vector.load %arg8[%c2_76, %c0_77, %c0_78] : memref<4x64x16xbf16, #tpu.memory_space<vmem>>, vector<1x64x16xbf16>
    %108 = vector.shape_cast %107 : vector<1x64x16xbf16> to vector<64x16xbf16>
    %cst_79 = arith.constant dense<0.000000e+00> : vector<8x16xf32>
    %109 = tpu.matmul %13, %108, %cst_79 {dimension_numbers = #tpu.dot_dimension_numbers<[1], [0], [0], [1], [0, 0, 1, 1], [], []>} : vector<8x64xbf16>, vector<64x16xbf16>, vector<8x16xf32> -> vector<8x16xf32>
    %c2_80 = arith.constant 2 : index
    %c0_81 = arith.constant 0 : index
    %c0_82 = arith.constant 0 : index
    %110 = vector.load %arg9[%c2_80, %c0_81, %c0_82] : memref<4x1x16xf32, #tpu.memory_space<vmem>>, vector<1x1x16xf32>
    %111 = vector.shape_cast %110 : vector<1x1x16xf32> to vector<1x16xf32>
    %112 = vector.broadcast %111 : vector<1x16xf32> to vector<8x16xf32>
    %113 = arith.addf %109, %112 : vector<8x16xf32>
    %c2_83 = arith.constant 2 : index
    %c0_84 = arith.constant 0 : index
    %c0_85 = arith.constant 0 : index
    %114 = vector.load %arg10[%c2_83, %c0_84, %c0_85] : memref<4x64x16xbf16, #tpu.memory_space<vmem>>, vector<1x64x16xbf16>
    %115 = vector.shape_cast %114 : vector<1x64x16xbf16> to vector<64x16xbf16>
    %cst_86 = arith.constant dense<0.000000e+00> : vector<8x16xf32>
    %116 = tpu.matmul %13, %115, %cst_86 {dimension_numbers = #tpu.dot_dimension_numbers<[1], [0], [0], [1], [0, 0, 1, 1], [], []>} : vector<8x64xbf16>, vector<64x16xbf16>, vector<8x16xf32> -> vector<8x16xf32>
    %c2_87 = arith.constant 2 : index
    %c0_88 = arith.constant 0 : index
    %c0_89 = arith.constant 0 : index
    %117 = vector.load %arg11[%c2_87, %c0_88, %c0_89] : memref<4x1x16xf32, #tpu.memory_space<vmem>>, vector<1x1x16xf32>
    %118 = vector.shape_cast %117 : vector<1x1x16xf32> to vector<1x16xf32>
    %119 = vector.broadcast %118 : vector<1x16xf32> to vector<8x16xf32>
    %120 = arith.addf %116, %119 : vector<8x16xf32>
    %cst_90 = arith.constant dense<0.000000e+00> : vector<8x8xf32>
    %121 = tpu.matmul %106, %113, %cst_90 {dimension_numbers = #tpu.dot_dimension_numbers<[1], [1], [0], [0], [0, 0, 1, 0], [], []>} : vector<8x16xf32>, vector<8x16xf32>, vector<8x8xf32> -> vector<8x8xf32>
    %cst_91 = arith.constant 2.500000e-01 : f32
    %122 = vector.broadcast %cst_91 : f32 to vector<8x8xf32>
    %123 = arith.mulf %121, %122 : vector<8x8xf32>
    %cst_92 = arith.constant dense<0xFF800000> : vector<8xf32>
    %124 = vector.multi_reduction <maximumf>, %123, %cst_92 [1] : vector<8x8xf32> to vector<8xf32>
    %125 = vector.shape_cast %124 : vector<8xf32> to vector<8x1xf32>
    %126 = vector.broadcast %125 : vector<8x1xf32> to vector<8x8xf32>
    %127 = arith.subf %123, %126 : vector<8x8xf32>
    %128 = math.exp %127 : vector<8x8xf32>
    %cst_93 = arith.constant dense<0.000000e+00> : vector<8xf32>
    %129 = vector.multi_reduction <add>, %128, %cst_93 [1] : vector<8x8xf32> to vector<8xf32>
    %130 = vector.shape_cast %129 : vector<8xf32> to vector<8x1xf32>
    %131 = tpu.reciprocal %130 {approx = true} : vector<8x1xf32> -> vector<8x1xf32>
    %132 = vector.broadcast %131 : vector<8x1xf32> to vector<8x8xf32>
    %133 = arith.mulf %128, %132 : vector<8x8xf32>
    %134 = arith.truncf %133 : vector<8x8xf32> to vector<8x8xbf16>
    %135 = arith.truncf %120 : vector<8x16xf32> to vector<8x16xbf16>
    %cst_94 = arith.constant dense<0.000000e+00> : vector<8x16xf32>
    %136 = tpu.matmul %134, %135, %cst_94 {dimension_numbers = #tpu.dot_dimension_numbers<[1], [0], [0], [1], [0, 0, 1, 1], [], []>} : vector<8x8xbf16>, vector<8x16xbf16>, vector<8x16xf32> -> vector<8x16xf32>
    %137 = arith.truncf %136 : vector<8x16xf32> to vector<8x16xbf16>
    %c2_95 = arith.constant 2 : index
    %c0_96 = arith.constant 0 : index
    %c0_97 = arith.constant 0 : index
    %138 = vector.load %arg12[%c2_95, %c0_96, %c0_97] : memref<4x16x64xbf16, #tpu.memory_space<vmem>>, vector<1x16x64xbf16>
    %139 = vector.shape_cast %138 : vector<1x16x64xbf16> to vector<16x64xbf16>
    %cst_98 = arith.constant dense<0.000000e+00> : vector<8x64xf32>
    %140 = tpu.matmul %137, %139, %cst_98 {dimension_numbers = #tpu.dot_dimension_numbers<[1], [0], [0], [1], [0, 0, 1, 1], [], []>} : vector<8x16xbf16>, vector<16x64xbf16>, vector<8x64xf32> -> vector<8x64xf32>
    %141 = arith.addf %99, %140 : vector<8x64xf32>
    %c3 = arith.constant 3 : index
    %c0_99 = arith.constant 0 : index
    %c0_100 = arith.constant 0 : index
    %142 = vector.load %arg6[%c3, %c0_99, %c0_100] : memref<4x64x16xbf16, #tpu.memory_space<vmem>>, vector<1x64x16xbf16>
    %143 = vector.shape_cast %142 : vector<1x64x16xbf16> to vector<64x16xbf16>
    %cst_101 = arith.constant dense<0.000000e+00> : vector<8x16xf32>
    %144 = tpu.matmul %12, %143, %cst_101 {dimension_numbers = #tpu.dot_dimension_numbers<[1], [0], [0], [1], [0, 0, 1, 1], [], []>} : vector<8x64xbf16>, vector<64x16xbf16>, vector<8x16xf32> -> vector<8x16xf32>
    %c3_102 = arith.constant 3 : index
    %c0_103 = arith.constant 0 : index
    %c0_104 = arith.constant 0 : index
    %145 = vector.load %arg7[%c3_102, %c0_103, %c0_104] : memref<4x1x16xf32, #tpu.memory_space<vmem>>, vector<1x1x16xf32>
    %146 = vector.shape_cast %145 : vector<1x1x16xf32> to vector<1x16xf32>
    %147 = vector.broadcast %146 : vector<1x16xf32> to vector<8x16xf32>
    %148 = arith.addf %144, %147 : vector<8x16xf32>
    %c3_105 = arith.constant 3 : index
    %c0_106 = arith.constant 0 : index
    %c0_107 = arith.constant 0 : index
    %149 = vector.load %arg8[%c3_105, %c0_106, %c0_107] : memref<4x64x16xbf16, #tpu.memory_space<vmem>>, vector<1x64x16xbf16>
    %150 = vector.shape_cast %149 : vector<1x64x16xbf16> to vector<64x16xbf16>
    %cst_108 = arith.constant dense<0.000000e+00> : vector<8x16xf32>
    %151 = tpu.matmul %13, %150, %cst_108 {dimension_numbers = #tpu.dot_dimension_numbers<[1], [0], [0], [1], [0, 0, 1, 1], [], []>} : vector<8x64xbf16>, vector<64x16xbf16>, vector<8x16xf32> -> vector<8x16xf32>
    %c3_109 = arith.constant 3 : index
    %c0_110 = arith.constant 0 : index
    %c0_111 = arith.constant 0 : index
    %152 = vector.load %arg9[%c3_109, %c0_110, %c0_111] : memref<4x1x16xf32, #tpu.memory_space<vmem>>, vector<1x1x16xf32>
    %153 = vector.shape_cast %152 : vector<1x1x16xf32> to vector<1x16xf32>
    %154 = vector.broadcast %153 : vector<1x16xf32> to vector<8x16xf32>
    %155 = arith.addf %151, %154 : vector<8x16xf32>
    %c3_112 = arith.constant 3 : index
    %c0_113 = arith.constant 0 : index
    %c0_114 = arith.constant 0 : index
    %156 = vector.load %arg10[%c3_112, %c0_113, %c0_114] : memref<4x64x16xbf16, #tpu.memory_space<vmem>>, vector<1x64x16xbf16>
    %157 = vector.shape_cast %156 : vector<1x64x16xbf16> to vector<64x16xbf16>
    %cst_115 = arith.constant dense<0.000000e+00> : vector<8x16xf32>
    %158 = tpu.matmul %13, %157, %cst_115 {dimension_numbers = #tpu.dot_dimension_numbers<[1], [0], [0], [1], [0, 0, 1, 1], [], []>} : vector<8x64xbf16>, vector<64x16xbf16>, vector<8x16xf32> -> vector<8x16xf32>
    %c3_116 = arith.constant 3 : index
    %c0_117 = arith.constant 0 : index
    %c0_118 = arith.constant 0 : index
    %159 = vector.load %arg11[%c3_116, %c0_117, %c0_118] : memref<4x1x16xf32, #tpu.memory_space<vmem>>, vector<1x1x16xf32>
    %160 = vector.shape_cast %159 : vector<1x1x16xf32> to vector<1x16xf32>
    %161 = vector.broadcast %160 : vector<1x16xf32> to vector<8x16xf32>
    %162 = arith.addf %158, %161 : vector<8x16xf32>
    %cst_119 = arith.constant dense<0.000000e+00> : vector<8x8xf32>
    %163 = tpu.matmul %148, %155, %cst_119 {dimension_numbers = #tpu.dot_dimension_numbers<[1], [1], [0], [0], [0, 0, 1, 0], [], []>} : vector<8x16xf32>, vector<8x16xf32>, vector<8x8xf32> -> vector<8x8xf32>
    %cst_120 = arith.constant 2.500000e-01 : f32
    %164 = vector.broadcast %cst_120 : f32 to vector<8x8xf32>
    %165 = arith.mulf %163, %164 : vector<8x8xf32>
    %cst_121 = arith.constant dense<0xFF800000> : vector<8xf32>
    %166 = vector.multi_reduction <maximumf>, %165, %cst_121 [1] : vector<8x8xf32> to vector<8xf32>
    %167 = vector.shape_cast %166 : vector<8xf32> to vector<8x1xf32>
    %168 = vector.broadcast %167 : vector<8x1xf32> to vector<8x8xf32>
    %169 = arith.subf %165, %168 : vector<8x8xf32>
    %170 = math.exp %169 : vector<8x8xf32>
    %cst_122 = arith.constant dense<0.000000e+00> : vector<8xf32>
    %171 = vector.multi_reduction <add>, %170, %cst_122 [1] : vector<8x8xf32> to vector<8xf32>
    %172 = vector.shape_cast %171 : vector<8xf32> to vector<8x1xf32>
    %173 = tpu.reciprocal %172 {approx = true} : vector<8x1xf32> -> vector<8x1xf32>
    %174 = vector.broadcast %173 : vector<8x1xf32> to vector<8x8xf32>
    %175 = arith.mulf %170, %174 : vector<8x8xf32>
    %176 = arith.truncf %175 : vector<8x8xf32> to vector<8x8xbf16>
    %177 = arith.truncf %162 : vector<8x16xf32> to vector<8x16xbf16>
    %cst_123 = arith.constant dense<0.000000e+00> : vector<8x16xf32>
    %178 = tpu.matmul %176, %177, %cst_123 {dimension_numbers = #tpu.dot_dimension_numbers<[1], [0], [0], [1], [0, 0, 1, 1], [], []>} : vector<8x8xbf16>, vector<8x16xbf16>, vector<8x16xf32> -> vector<8x16xf32>
    %179 = arith.truncf %178 : vector<8x16xf32> to vector<8x16xbf16>
    %c3_124 = arith.constant 3 : index
    %c0_125 = arith.constant 0 : index
    %c0_126 = arith.constant 0 : index
    %180 = vector.load %arg12[%c3_124, %c0_125, %c0_126] : memref<4x16x64xbf16, #tpu.memory_space<vmem>>, vector<1x16x64xbf16>
    %181 = vector.shape_cast %180 : vector<1x16x64xbf16> to vector<16x64xbf16>
    %cst_127 = arith.constant dense<0.000000e+00> : vector<8x64xf32>
    %182 = tpu.matmul %179, %181, %cst_127 {dimension_numbers = #tpu.dot_dimension_numbers<[1], [0], [0], [1], [0, 0, 1, 1], [], []>} : vector<8x16xbf16>, vector<16x64xbf16>, vector<8x64xf32> -> vector<8x64xf32>
    %183 = arith.addf %141, %182 : vector<8x64xf32>
    %184 = arith.addf %11, %183 : vector<8x64xf32>
    %cst_128 = arith.constant dense<0.000000e+00> : vector<8xf32>
    %185 = vector.multi_reduction <add>, %184, %cst_128 [1] : vector<8x64xf32> to vector<8xf32>
    %186 = vector.shape_cast %185 : vector<8xf32> to vector<8x1xf32>
    %cst_129 = arith.constant 6.400000e+01 : f32
    %187 = vector.broadcast %cst_129 : f32 to vector<8x1xf32>
    %188 = arith.divf %186, %187 : vector<8x1xf32>
    %189 = vector.broadcast %188 : vector<8x1xf32> to vector<8x64xf32>
    %190 = arith.subf %184, %189 : vector<8x64xf32>
    %191 = arith.mulf %190, %190 : vector<8x64xf32>
    %cst_130 = arith.constant dense<0.000000e+00> : vector<8xf32>
    %192 = vector.multi_reduction <add>, %191, %cst_130 [1] : vector<8x64xf32> to vector<8xf32>
    %193 = vector.shape_cast %192 : vector<8xf32> to vector<8x1xf32>
    %cst_131 = arith.constant 6.400000e+01 : f32
    %194 = vector.broadcast %cst_131 : f32 to vector<8x1xf32>
    %195 = arith.divf %193, %194 : vector<8x1xf32>
    %cst_132 = arith.constant 9.99999974E-6 : f32
    %196 = vector.broadcast %cst_132 : f32 to vector<8x1xf32>
    %197 = arith.addf %195, %196 : vector<8x1xf32>
    %198 = math.rsqrt %197 : vector<8x1xf32>
    %199 = vector.broadcast %198 : vector<8x1xf32> to vector<8x64xf32>
    %200 = arith.mulf %190, %199 : vector<8x64xf32>
    %c0_133 = arith.constant 0 : index
    %c0_134 = arith.constant 0 : index
    %201 = vector.load %arg14[%c0_133, %c0_134] : memref<1x64xf32, #tpu.memory_space<vmem>>, vector<1x64xf32>
    %202 = vector.broadcast %201 : vector<1x64xf32> to vector<8x64xf32>
    %203 = arith.mulf %200, %202 : vector<8x64xf32>
    %c0_135 = arith.constant 0 : index
    %c0_136 = arith.constant 0 : index
    %204 = vector.load %arg15[%c0_135, %c0_136] : memref<1x64xf32, #tpu.memory_space<vmem>>, vector<1x64xf32>
    %205 = vector.broadcast %204 : vector<1x64xf32> to vector<8x64xf32>
    %206 = arith.addf %203, %205 : vector<8x64xf32>
    %207 = arith.truncf %206 : vector<8x64xf32> to vector<8x64xbf16>
    %c0_137 = arith.constant 0 : index
    %c0_138 = arith.constant 0 : index
    %208 = vector.load %arg16[%c0_137, %c0_138] : memref<64x256xbf16, #tpu.memory_space<vmem>>, vector<64x256xbf16>
    %cst_139 = arith.constant dense<0.000000e+00> : vector<8x256xf32>
    %209 = tpu.matmul %207, %208, %cst_139 {dimension_numbers = #tpu.dot_dimension_numbers<[1], [0], [0], [1], [0, 0, 1, 1], [], []>} : vector<8x64xbf16>, vector<64x256xbf16>, vector<8x256xf32> -> vector<8x256xf32>
    %c0_140 = arith.constant 0 : index
    %c0_141 = arith.constant 0 : index
    %210 = vector.load %arg17[%c0_140, %c0_141] : memref<1x256xf32, #tpu.memory_space<vmem>>, vector<1x256xf32>
    %211 = vector.broadcast %210 : vector<1x256xf32> to vector<8x256xf32>
    %212 = arith.addf %209, %211 : vector<8x256xf32>
    %cst_142 = arith.constant 0.000000e+00 : f32
    %213 = vector.broadcast %cst_142 : f32 to vector<8x256xf32>
    %214 = arith.maximumf %212, %213 : vector<8x256xf32>
    %215 = arith.truncf %214 : vector<8x256xf32> to vector<8x256xbf16>
    %c0_143 = arith.constant 0 : index
    %c0_144 = arith.constant 0 : index
    %216 = vector.load %arg18[%c0_143, %c0_144] : memref<256x64xbf16, #tpu.memory_space<vmem>>, vector<256x64xbf16>
    %cst_145 = arith.constant dense<0.000000e+00> : vector<8x64xf32>
    %217 = tpu.matmul %215, %216, %cst_145 {dimension_numbers = #tpu.dot_dimension_numbers<[1], [0], [0], [1], [0, 0, 1, 1], [], []>} : vector<8x256xbf16>, vector<256x64xbf16>, vector<8x64xf32> -> vector<8x64xf32>
    %c0_146 = arith.constant 0 : index
    %c0_147 = arith.constant 0 : index
    %218 = vector.load %arg19[%c0_146, %c0_147] : memref<1x64xf32, #tpu.memory_space<vmem>>, vector<1x64xf32>
    %219 = vector.broadcast %218 : vector<1x64xf32> to vector<8x64xf32>
    %220 = arith.addf %217, %219 : vector<8x64xf32>
    %221 = arith.addf %206, %220 : vector<8x64xf32>
    %cst_148 = arith.constant dense<0.000000e+00> : vector<8xf32>
    %222 = vector.multi_reduction <add>, %221, %cst_148 [1] : vector<8x64xf32> to vector<8xf32>
    %223 = vector.shape_cast %222 : vector<8xf32> to vector<8x1xf32>
    %cst_149 = arith.constant 6.400000e+01 : f32
    %224 = vector.broadcast %cst_149 : f32 to vector<8x1xf32>
    %225 = arith.divf %223, %224 : vector<8x1xf32>
    %226 = vector.broadcast %225 : vector<8x1xf32> to vector<8x64xf32>
    %227 = arith.subf %221, %226 : vector<8x64xf32>
    %228 = arith.mulf %227, %227 : vector<8x64xf32>
    %cst_150 = arith.constant dense<0.000000e+00> : vector<8xf32>
    %229 = vector.multi_reduction <add>, %228, %cst_150 [1] : vector<8x64xf32> to vector<8xf32>
    %230 = vector.shape_cast %229 : vector<8xf32> to vector<8x1xf32>
    %cst_151 = arith.constant 6.400000e+01 : f32
    %231 = vector.broadcast %cst_151 : f32 to vector<8x1xf32>
    %232 = arith.divf %230, %231 : vector<8x1xf32>
    %cst_152 = arith.constant 9.99999974E-6 : f32
    %233 = vector.broadcast %cst_152 : f32 to vector<8x1xf32>
    %234 = arith.addf %232, %233 : vector<8x1xf32>
    %235 = math.rsqrt %234 : vector<8x1xf32>
    %236 = vector.broadcast %235 : vector<8x1xf32> to vector<8x64xf32>
    %237 = arith.mulf %227, %236 : vector<8x64xf32>
    %c0_153 = arith.constant 0 : index
    %c0_154 = arith.constant 0 : index
    %238 = vector.load %arg20[%c0_153, %c0_154] : memref<1x64xf32, #tpu.memory_space<vmem>>, vector<1x64xf32>
    %239 = vector.broadcast %238 : vector<1x64xf32> to vector<8x64xf32>
    %240 = arith.mulf %237, %239 : vector<8x64xf32>
    %c0_155 = arith.constant 0 : index
    %c0_156 = arith.constant 0 : index
    %241 = vector.load %arg21[%c0_155, %c0_156] : memref<1x64xf32, #tpu.memory_space<vmem>>, vector<1x64xf32>
    %242 = vector.broadcast %241 : vector<1x64xf32> to vector<8x64xf32>
    %243 = arith.addf %240, %242 : vector<8x64xf32>
    %c0_157 = arith.constant 0 : index
    %c0_158 = arith.constant 0 : index
    %c0_159 = arith.constant 0 : index
    %244 = vector.load %arg2[%c0_157, %c0_158, %c0_159] : memref<1x8x4xf32, #tpu.memory_space<vmem>>, vector<1x8x4xf32>
    %245 = vector.shape_cast %244 : vector<1x8x4xf32> to vector<8x4xf32>
    %cst_160 = arith.constant 2.000000e+00 : f32
    %246 = vector.broadcast %cst_160 : f32 to vector<8x4xf32>
    %247 = arith.mulf %245, %246 : vector<8x4xf32>
    %248 = arith.truncf %247 : vector<8x4xf32> to vector<8x4xbf16>
    %c0_161 = arith.constant 0 : index
    %c0_162 = arith.constant 0 : index
    %249 = vector.load %arg4[%c0_161, %c0_162] : memref<4x64xbf16, #tpu.memory_space<vmem>>, vector<4x64xbf16>
    %cst_163 = arith.constant dense<0.000000e+00> : vector<8x64xf32>
    %250 = tpu.matmul %248, %249, %cst_163 {dimension_numbers = #tpu.dot_dimension_numbers<[1], [0], [0], [1], [0, 0, 1, 1], [], []>} : vector<8x4xbf16>, vector<4x64xbf16>, vector<8x64xf32> -> vector<8x64xf32>
    %c0_164 = arith.constant 0 : index
    %c0_165 = arith.constant 0 : index
    %251 = vector.load %arg5[%c0_164, %c0_165] : memref<1x64xf32, #tpu.memory_space<vmem>>, vector<1x64xf32>
    %252 = vector.broadcast %251 : vector<1x64xf32> to vector<8x64xf32>
    %253 = arith.addf %250, %252 : vector<8x64xf32>
    %254 = arith.truncf %253 : vector<8x64xf32> to vector<8x64xbf16>
    %255 = arith.truncf %253 : vector<8x64xf32> to vector<8x64xbf16>
    %c0_166 = arith.constant 0 : index
    %c0_167 = arith.constant 0 : index
    %256 = vector.load %arg29[%c0_166, %c0_167] : memref<1x64xf32, #tpu.memory_space<vmem>>, vector<1x64xf32>
    %c0_168 = arith.constant 0 : index
    %c0_169 = arith.constant 0 : index
    %c0_170 = arith.constant 0 : index
    %257 = vector.load %arg22[%c0_168, %c0_169, %c0_170] : memref<4x64x16xbf16, #tpu.memory_space<vmem>>, vector<1x64x16xbf16>
    %258 = vector.shape_cast %257 : vector<1x64x16xbf16> to vector<64x16xbf16>
    %cst_171 = arith.constant dense<0.000000e+00> : vector<8x16xf32>
    %259 = tpu.matmul %254, %258, %cst_171 {dimension_numbers = #tpu.dot_dimension_numbers<[1], [0], [0], [1], [0, 0, 1, 1], [], []>} : vector<8x64xbf16>, vector<64x16xbf16>, vector<8x16xf32> -> vector<8x16xf32>
    %c0_172 = arith.constant 0 : index
    %c0_173 = arith.constant 0 : index
    %c0_174 = arith.constant 0 : index
    %260 = vector.load %arg23[%c0_172, %c0_173, %c0_174] : memref<4x1x16xf32, #tpu.memory_space<vmem>>, vector<1x1x16xf32>
    %261 = vector.shape_cast %260 : vector<1x1x16xf32> to vector<1x16xf32>
    %262 = vector.broadcast %261 : vector<1x16xf32> to vector<8x16xf32>
    %263 = arith.addf %259, %262 : vector<8x16xf32>
    %c0_175 = arith.constant 0 : index
    %c0_176 = arith.constant 0 : index
    %c0_177 = arith.constant 0 : index
    %264 = vector.load %arg24[%c0_175, %c0_176, %c0_177] : memref<4x64x16xbf16, #tpu.memory_space<vmem>>, vector<1x64x16xbf16>
    %265 = vector.shape_cast %264 : vector<1x64x16xbf16> to vector<64x16xbf16>
    %cst_178 = arith.constant dense<0.000000e+00> : vector<8x16xf32>
    %266 = tpu.matmul %255, %265, %cst_178 {dimension_numbers = #tpu.dot_dimension_numbers<[1], [0], [0], [1], [0, 0, 1, 1], [], []>} : vector<8x64xbf16>, vector<64x16xbf16>, vector<8x16xf32> -> vector<8x16xf32>
    %c0_179 = arith.constant 0 : index
    %c0_180 = arith.constant 0 : index
    %c0_181 = arith.constant 0 : index
    %267 = vector.load %arg25[%c0_179, %c0_180, %c0_181] : memref<4x1x16xf32, #tpu.memory_space<vmem>>, vector<1x1x16xf32>
    %268 = vector.shape_cast %267 : vector<1x1x16xf32> to vector<1x16xf32>
    %269 = vector.broadcast %268 : vector<1x16xf32> to vector<8x16xf32>
    %270 = arith.addf %266, %269 : vector<8x16xf32>
    %c0_182 = arith.constant 0 : index
    %c0_183 = arith.constant 0 : index
    %c0_184 = arith.constant 0 : index
    %271 = vector.load %arg26[%c0_182, %c0_183, %c0_184] : memref<4x64x16xbf16, #tpu.memory_space<vmem>>, vector<1x64x16xbf16>
    %272 = vector.shape_cast %271 : vector<1x64x16xbf16> to vector<64x16xbf16>
    %cst_185 = arith.constant dense<0.000000e+00> : vector<8x16xf32>
    %273 = tpu.matmul %255, %272, %cst_185 {dimension_numbers = #tpu.dot_dimension_numbers<[1], [0], [0], [1], [0, 0, 1, 1], [], []>} : vector<8x64xbf16>, vector<64x16xbf16>, vector<8x16xf32> -> vector<8x16xf32>
    %c0_186 = arith.constant 0 : index
    %c0_187 = arith.constant 0 : index
    %c0_188 = arith.constant 0 : index
    %274 = vector.load %arg27[%c0_186, %c0_187, %c0_188] : memref<4x1x16xf32, #tpu.memory_space<vmem>>, vector<1x1x16xf32>
    %275 = vector.shape_cast %274 : vector<1x1x16xf32> to vector<1x16xf32>
    %276 = vector.broadcast %275 : vector<1x16xf32> to vector<8x16xf32>
    %277 = arith.addf %273, %276 : vector<8x16xf32>
    %cst_189 = arith.constant dense<0.000000e+00> : vector<8x8xf32>
    %278 = tpu.matmul %263, %270, %cst_189 {dimension_numbers = #tpu.dot_dimension_numbers<[1], [1], [0], [0], [0, 0, 1, 0], [], []>} : vector<8x16xf32>, vector<8x16xf32>, vector<8x8xf32> -> vector<8x8xf32>
    %cst_190 = arith.constant 2.500000e-01 : f32
    %279 = vector.broadcast %cst_190 : f32 to vector<8x8xf32>
    %280 = arith.mulf %278, %279 : vector<8x8xf32>
    %cst_191 = arith.constant dense<0xFF800000> : vector<8xf32>
    %281 = vector.multi_reduction <maximumf>, %280, %cst_191 [1] : vector<8x8xf32> to vector<8xf32>
    %282 = vector.shape_cast %281 : vector<8xf32> to vector<8x1xf32>
    %283 = vector.broadcast %282 : vector<8x1xf32> to vector<8x8xf32>
    %284 = arith.subf %280, %283 : vector<8x8xf32>
    %285 = math.exp %284 : vector<8x8xf32>
    %cst_192 = arith.constant dense<0.000000e+00> : vector<8xf32>
    %286 = vector.multi_reduction <add>, %285, %cst_192 [1] : vector<8x8xf32> to vector<8xf32>
    %287 = vector.shape_cast %286 : vector<8xf32> to vector<8x1xf32>
    %288 = tpu.reciprocal %287 {approx = true} : vector<8x1xf32> -> vector<8x1xf32>
    %289 = vector.broadcast %288 : vector<8x1xf32> to vector<8x8xf32>
    %290 = arith.mulf %285, %289 : vector<8x8xf32>
    %291 = arith.truncf %290 : vector<8x8xf32> to vector<8x8xbf16>
    %292 = arith.truncf %277 : vector<8x16xf32> to vector<8x16xbf16>
    %cst_193 = arith.constant dense<0.000000e+00> : vector<8x16xf32>
    %293 = tpu.matmul %291, %292, %cst_193 {dimension_numbers = #tpu.dot_dimension_numbers<[1], [0], [0], [1], [0, 0, 1, 1], [], []>} : vector<8x8xbf16>, vector<8x16xbf16>, vector<8x16xf32> -> vector<8x16xf32>
    %294 = arith.truncf %293 : vector<8x16xf32> to vector<8x16xbf16>
    %c0_194 = arith.constant 0 : index
    %c0_195 = arith.constant 0 : index
    %c0_196 = arith.constant 0 : index
    %295 = vector.load %arg28[%c0_194, %c0_195, %c0_196] : memref<4x16x64xbf16, #tpu.memory_space<vmem>>, vector<1x16x64xbf16>
    %296 = vector.shape_cast %295 : vector<1x16x64xbf16> to vector<16x64xbf16>
    %cst_197 = arith.constant dense<0.000000e+00> : vector<8x64xf32>
    %297 = tpu.matmul %294, %296, %cst_197 {dimension_numbers = #tpu.dot_dimension_numbers<[1], [0], [0], [1], [0, 0, 1, 1], [], []>} : vector<8x16xbf16>, vector<16x64xbf16>, vector<8x64xf32> -> vector<8x64xf32>
    %298 = vector.broadcast %256 : vector<1x64xf32> to vector<8x64xf32>
    %299 = arith.addf %298, %297 : vector<8x64xf32>
    %c1_198 = arith.constant 1 : index
    %c0_199 = arith.constant 0 : index
    %c0_200 = arith.constant 0 : index
    %300 = vector.load %arg22[%c1_198, %c0_199, %c0_200] : memref<4x64x16xbf16, #tpu.memory_space<vmem>>, vector<1x64x16xbf16>
    %301 = vector.shape_cast %300 : vector<1x64x16xbf16> to vector<64x16xbf16>
    %cst_201 = arith.constant dense<0.000000e+00> : vector<8x16xf32>
    %302 = tpu.matmul %254, %301, %cst_201 {dimension_numbers = #tpu.dot_dimension_numbers<[1], [0], [0], [1], [0, 0, 1, 1], [], []>} : vector<8x64xbf16>, vector<64x16xbf16>, vector<8x16xf32> -> vector<8x16xf32>
    %c1_202 = arith.constant 1 : index
    %c0_203 = arith.constant 0 : index
    %c0_204 = arith.constant 0 : index
    %303 = vector.load %arg23[%c1_202, %c0_203, %c0_204] : memref<4x1x16xf32, #tpu.memory_space<vmem>>, vector<1x1x16xf32>
    %304 = vector.shape_cast %303 : vector<1x1x16xf32> to vector<1x16xf32>
    %305 = vector.broadcast %304 : vector<1x16xf32> to vector<8x16xf32>
    %306 = arith.addf %302, %305 : vector<8x16xf32>
    %c1_205 = arith.constant 1 : index
    %c0_206 = arith.constant 0 : index
    %c0_207 = arith.constant 0 : index
    %307 = vector.load %arg24[%c1_205, %c0_206, %c0_207] : memref<4x64x16xbf16, #tpu.memory_space<vmem>>, vector<1x64x16xbf16>
    %308 = vector.shape_cast %307 : vector<1x64x16xbf16> to vector<64x16xbf16>
    %cst_208 = arith.constant dense<0.000000e+00> : vector<8x16xf32>
    %309 = tpu.matmul %255, %308, %cst_208 {dimension_numbers = #tpu.dot_dimension_numbers<[1], [0], [0], [1], [0, 0, 1, 1], [], []>} : vector<8x64xbf16>, vector<64x16xbf16>, vector<8x16xf32> -> vector<8x16xf32>
    %c1_209 = arith.constant 1 : index
    %c0_210 = arith.constant 0 : index
    %c0_211 = arith.constant 0 : index
    %310 = vector.load %arg25[%c1_209, %c0_210, %c0_211] : memref<4x1x16xf32, #tpu.memory_space<vmem>>, vector<1x1x16xf32>
    %311 = vector.shape_cast %310 : vector<1x1x16xf32> to vector<1x16xf32>
    %312 = vector.broadcast %311 : vector<1x16xf32> to vector<8x16xf32>
    %313 = arith.addf %309, %312 : vector<8x16xf32>
    %c1_212 = arith.constant 1 : index
    %c0_213 = arith.constant 0 : index
    %c0_214 = arith.constant 0 : index
    %314 = vector.load %arg26[%c1_212, %c0_213, %c0_214] : memref<4x64x16xbf16, #tpu.memory_space<vmem>>, vector<1x64x16xbf16>
    %315 = vector.shape_cast %314 : vector<1x64x16xbf16> to vector<64x16xbf16>
    %cst_215 = arith.constant dense<0.000000e+00> : vector<8x16xf32>
    %316 = tpu.matmul %255, %315, %cst_215 {dimension_numbers = #tpu.dot_dimension_numbers<[1], [0], [0], [1], [0, 0, 1, 1], [], []>} : vector<8x64xbf16>, vector<64x16xbf16>, vector<8x16xf32> -> vector<8x16xf32>
    %c1_216 = arith.constant 1 : index
    %c0_217 = arith.constant 0 : index
    %c0_218 = arith.constant 0 : index
    %317 = vector.load %arg27[%c1_216, %c0_217, %c0_218] : memref<4x1x16xf32, #tpu.memory_space<vmem>>, vector<1x1x16xf32>
    %318 = vector.shape_cast %317 : vector<1x1x16xf32> to vector<1x16xf32>
    %319 = vector.broadcast %318 : vector<1x16xf32> to vector<8x16xf32>
    %320 = arith.addf %316, %319 : vector<8x16xf32>
    %cst_219 = arith.constant dense<0.000000e+00> : vector<8x8xf32>
    %321 = tpu.matmul %306, %313, %cst_219 {dimension_numbers = #tpu.dot_dimension_numbers<[1], [1], [0], [0], [0, 0, 1, 0], [], []>} : vector<8x16xf32>, vector<8x16xf32>, vector<8x8xf32> -> vector<8x8xf32>
    %cst_220 = arith.constant 2.500000e-01 : f32
    %322 = vector.broadcast %cst_220 : f32 to vector<8x8xf32>
    %323 = arith.mulf %321, %322 : vector<8x8xf32>
    %cst_221 = arith.constant dense<0xFF800000> : vector<8xf32>
    %324 = vector.multi_reduction <maximumf>, %323, %cst_221 [1] : vector<8x8xf32> to vector<8xf32>
    %325 = vector.shape_cast %324 : vector<8xf32> to vector<8x1xf32>
    %326 = vector.broadcast %325 : vector<8x1xf32> to vector<8x8xf32>
    %327 = arith.subf %323, %326 : vector<8x8xf32>
    %328 = math.exp %327 : vector<8x8xf32>
    %cst_222 = arith.constant dense<0.000000e+00> : vector<8xf32>
    %329 = vector.multi_reduction <add>, %328, %cst_222 [1] : vector<8x8xf32> to vector<8xf32>
    %330 = vector.shape_cast %329 : vector<8xf32> to vector<8x1xf32>
    %331 = tpu.reciprocal %330 {approx = true} : vector<8x1xf32> -> vector<8x1xf32>
    %332 = vector.broadcast %331 : vector<8x1xf32> to vector<8x8xf32>
    %333 = arith.mulf %328, %332 : vector<8x8xf32>
    %334 = arith.truncf %333 : vector<8x8xf32> to vector<8x8xbf16>
    %335 = arith.truncf %320 : vector<8x16xf32> to vector<8x16xbf16>
    %cst_223 = arith.constant dense<0.000000e+00> : vector<8x16xf32>
    %336 = tpu.matmul %334, %335, %cst_223 {dimension_numbers = #tpu.dot_dimension_numbers<[1], [0], [0], [1], [0, 0, 1, 1], [], []>} : vector<8x8xbf16>, vector<8x16xbf16>, vector<8x16xf32> -> vector<8x16xf32>
    %337 = arith.truncf %336 : vector<8x16xf32> to vector<8x16xbf16>
    %c1_224 = arith.constant 1 : index
    %c0_225 = arith.constant 0 : index
    %c0_226 = arith.constant 0 : index
    %338 = vector.load %arg28[%c1_224, %c0_225, %c0_226] : memref<4x16x64xbf16, #tpu.memory_space<vmem>>, vector<1x16x64xbf16>
    %339 = vector.shape_cast %338 : vector<1x16x64xbf16> to vector<16x64xbf16>
    %cst_227 = arith.constant dense<0.000000e+00> : vector<8x64xf32>
    %340 = tpu.matmul %337, %339, %cst_227 {dimension_numbers = #tpu.dot_dimension_numbers<[1], [0], [0], [1], [0, 0, 1, 1], [], []>} : vector<8x16xbf16>, vector<16x64xbf16>, vector<8x64xf32> -> vector<8x64xf32>
    %341 = arith.addf %299, %340 : vector<8x64xf32>
    %c2_228 = arith.constant 2 : index
    %c0_229 = arith.constant 0 : index
    %c0_230 = arith.constant 0 : index
    %342 = vector.load %arg22[%c2_228, %c0_229, %c0_230] : memref<4x64x16xbf16, #tpu.memory_space<vmem>>, vector<1x64x16xbf16>
    %343 = vector.shape_cast %342 : vector<1x64x16xbf16> to vector<64x16xbf16>
    %cst_231 = arith.constant dense<0.000000e+00> : vector<8x16xf32>
    %344 = tpu.matmul %254, %343, %cst_231 {dimension_numbers = #tpu.dot_dimension_numbers<[1], [0], [0], [1], [0, 0, 1, 1], [], []>} : vector<8x64xbf16>, vector<64x16xbf16>, vector<8x16xf32> -> vector<8x16xf32>
    %c2_232 = arith.constant 2 : index
    %c0_233 = arith.constant 0 : index
    %c0_234 = arith.constant 0 : index
    %345 = vector.load %arg23[%c2_232, %c0_233, %c0_234] : memref<4x1x16xf32, #tpu.memory_space<vmem>>, vector<1x1x16xf32>
    %346 = vector.shape_cast %345 : vector<1x1x16xf32> to vector<1x16xf32>
    %347 = vector.broadcast %346 : vector<1x16xf32> to vector<8x16xf32>
    %348 = arith.addf %344, %347 : vector<8x16xf32>
    %c2_235 = arith.constant 2 : index
    %c0_236 = arith.constant 0 : index
    %c0_237 = arith.constant 0 : index
    %349 = vector.load %arg24[%c2_235, %c0_236, %c0_237] : memref<4x64x16xbf16, #tpu.memory_space<vmem>>, vector<1x64x16xbf16>
    %350 = vector.shape_cast %349 : vector<1x64x16xbf16> to vector<64x16xbf16>
    %cst_238 = arith.constant dense<0.000000e+00> : vector<8x16xf32>
    %351 = tpu.matmul %255, %350, %cst_238 {dimension_numbers = #tpu.dot_dimension_numbers<[1], [0], [0], [1], [0, 0, 1, 1], [], []>} : vector<8x64xbf16>, vector<64x16xbf16>, vector<8x16xf32> -> vector<8x16xf32>
    %c2_239 = arith.constant 2 : index
    %c0_240 = arith.constant 0 : index
    %c0_241 = arith.constant 0 : index
    %352 = vector.load %arg25[%c2_239, %c0_240, %c0_241] : memref<4x1x16xf32, #tpu.memory_space<vmem>>, vector<1x1x16xf32>
    %353 = vector.shape_cast %352 : vector<1x1x16xf32> to vector<1x16xf32>
    %354 = vector.broadcast %353 : vector<1x16xf32> to vector<8x16xf32>
    %355 = arith.addf %351, %354 : vector<8x16xf32>
    %c2_242 = arith.constant 2 : index
    %c0_243 = arith.constant 0 : index
    %c0_244 = arith.constant 0 : index
    %356 = vector.load %arg26[%c2_242, %c0_243, %c0_244] : memref<4x64x16xbf16, #tpu.memory_space<vmem>>, vector<1x64x16xbf16>
    %357 = vector.shape_cast %356 : vector<1x64x16xbf16> to vector<64x16xbf16>
    %cst_245 = arith.constant dense<0.000000e+00> : vector<8x16xf32>
    %358 = tpu.matmul %255, %357, %cst_245 {dimension_numbers = #tpu.dot_dimension_numbers<[1], [0], [0], [1], [0, 0, 1, 1], [], []>} : vector<8x64xbf16>, vector<64x16xbf16>, vector<8x16xf32> -> vector<8x16xf32>
    %c2_246 = arith.constant 2 : index
    %c0_247 = arith.constant 0 : index
    %c0_248 = arith.constant 0 : index
    %359 = vector.load %arg27[%c2_246, %c0_247, %c0_248] : memref<4x1x16xf32, #tpu.memory_space<vmem>>, vector<1x1x16xf32>
    %360 = vector.shape_cast %359 : vector<1x1x16xf32> to vector<1x16xf32>
    %361 = vector.broadcast %360 : vector<1x16xf32> to vector<8x16xf32>
    %362 = arith.addf %358, %361 : vector<8x16xf32>
    %cst_249 = arith.constant dense<0.000000e+00> : vector<8x8xf32>
    %363 = tpu.matmul %348, %355, %cst_249 {dimension_numbers = #tpu.dot_dimension_numbers<[1], [1], [0], [0], [0, 0, 1, 0], [], []>} : vector<8x16xf32>, vector<8x16xf32>, vector<8x8xf32> -> vector<8x8xf32>
    %cst_250 = arith.constant 2.500000e-01 : f32
    %364 = vector.broadcast %cst_250 : f32 to vector<8x8xf32>
    %365 = arith.mulf %363, %364 : vector<8x8xf32>
    %cst_251 = arith.constant dense<0xFF800000> : vector<8xf32>
    %366 = vector.multi_reduction <maximumf>, %365, %cst_251 [1] : vector<8x8xf32> to vector<8xf32>
    %367 = vector.shape_cast %366 : vector<8xf32> to vector<8x1xf32>
    %368 = vector.broadcast %367 : vector<8x1xf32> to vector<8x8xf32>
    %369 = arith.subf %365, %368 : vector<8x8xf32>
    %370 = math.exp %369 : vector<8x8xf32>
    %cst_252 = arith.constant dense<0.000000e+00> : vector<8xf32>
    %371 = vector.multi_reduction <add>, %370, %cst_252 [1] : vector<8x8xf32> to vector<8xf32>
    %372 = vector.shape_cast %371 : vector<8xf32> to vector<8x1xf32>
    %373 = tpu.reciprocal %372 {approx = true} : vector<8x1xf32> -> vector<8x1xf32>
    %374 = vector.broadcast %373 : vector<8x1xf32> to vector<8x8xf32>
    %375 = arith.mulf %370, %374 : vector<8x8xf32>
    %376 = arith.truncf %375 : vector<8x8xf32> to vector<8x8xbf16>
    %377 = arith.truncf %362 : vector<8x16xf32> to vector<8x16xbf16>
    %cst_253 = arith.constant dense<0.000000e+00> : vector<8x16xf32>
    %378 = tpu.matmul %376, %377, %cst_253 {dimension_numbers = #tpu.dot_dimension_numbers<[1], [0], [0], [1], [0, 0, 1, 1], [], []>} : vector<8x8xbf16>, vector<8x16xbf16>, vector<8x16xf32> -> vector<8x16xf32>
    %379 = arith.truncf %378 : vector<8x16xf32> to vector<8x16xbf16>
    %c2_254 = arith.constant 2 : index
    %c0_255 = arith.constant 0 : index
    %c0_256 = arith.constant 0 : index
    %380 = vector.load %arg28[%c2_254, %c0_255, %c0_256] : memref<4x16x64xbf16, #tpu.memory_space<vmem>>, vector<1x16x64xbf16>
    %381 = vector.shape_cast %380 : vector<1x16x64xbf16> to vector<16x64xbf16>
    %cst_257 = arith.constant dense<0.000000e+00> : vector<8x64xf32>
    %382 = tpu.matmul %379, %381, %cst_257 {dimension_numbers = #tpu.dot_dimension_numbers<[1], [0], [0], [1], [0, 0, 1, 1], [], []>} : vector<8x16xbf16>, vector<16x64xbf16>, vector<8x64xf32> -> vector<8x64xf32>
    %383 = arith.addf %341, %382 : vector<8x64xf32>
    %c3_258 = arith.constant 3 : index
    %c0_259 = arith.constant 0 : index
    %c0_260 = arith.constant 0 : index
    %384 = vector.load %arg22[%c3_258, %c0_259, %c0_260] : memref<4x64x16xbf16, #tpu.memory_space<vmem>>, vector<1x64x16xbf16>
    %385 = vector.shape_cast %384 : vector<1x64x16xbf16> to vector<64x16xbf16>
    %cst_261 = arith.constant dense<0.000000e+00> : vector<8x16xf32>
    %386 = tpu.matmul %254, %385, %cst_261 {dimension_numbers = #tpu.dot_dimension_numbers<[1], [0], [0], [1], [0, 0, 1, 1], [], []>} : vector<8x64xbf16>, vector<64x16xbf16>, vector<8x16xf32> -> vector<8x16xf32>
    %c3_262 = arith.constant 3 : index
    %c0_263 = arith.constant 0 : index
    %c0_264 = arith.constant 0 : index
    %387 = vector.load %arg23[%c3_262, %c0_263, %c0_264] : memref<4x1x16xf32, #tpu.memory_space<vmem>>, vector<1x1x16xf32>
    %388 = vector.shape_cast %387 : vector<1x1x16xf32> to vector<1x16xf32>
    %389 = vector.broadcast %388 : vector<1x16xf32> to vector<8x16xf32>
    %390 = arith.addf %386, %389 : vector<8x16xf32>
    %c3_265 = arith.constant 3 : index
    %c0_266 = arith.constant 0 : index
    %c0_267 = arith.constant 0 : index
    %391 = vector.load %arg24[%c3_265, %c0_266, %c0_267] : memref<4x64x16xbf16, #tpu.memory_space<vmem>>, vector<1x64x16xbf16>
    %392 = vector.shape_cast %391 : vector<1x64x16xbf16> to vector<64x16xbf16>
    %cst_268 = arith.constant dense<0.000000e+00> : vector<8x16xf32>
    %393 = tpu.matmul %255, %392, %cst_268 {dimension_numbers = #tpu.dot_dimension_numbers<[1], [0], [0], [1], [0, 0, 1, 1], [], []>} : vector<8x64xbf16>, vector<64x16xbf16>, vector<8x16xf32> -> vector<8x16xf32>
    %c3_269 = arith.constant 3 : index
    %c0_270 = arith.constant 0 : index
    %c0_271 = arith.constant 0 : index
    %394 = vector.load %arg25[%c3_269, %c0_270, %c0_271] : memref<4x1x16xf32, #tpu.memory_space<vmem>>, vector<1x1x16xf32>
    %395 = vector.shape_cast %394 : vector<1x1x16xf32> to vector<1x16xf32>
    %396 = vector.broadcast %395 : vector<1x16xf32> to vector<8x16xf32>
    %397 = arith.addf %393, %396 : vector<8x16xf32>
    %c3_272 = arith.constant 3 : index
    %c0_273 = arith.constant 0 : index
    %c0_274 = arith.constant 0 : index
    %398 = vector.load %arg26[%c3_272, %c0_273, %c0_274] : memref<4x64x16xbf16, #tpu.memory_space<vmem>>, vector<1x64x16xbf16>
    %399 = vector.shape_cast %398 : vector<1x64x16xbf16> to vector<64x16xbf16>
    %cst_275 = arith.constant dense<0.000000e+00> : vector<8x16xf32>
    %400 = tpu.matmul %255, %399, %cst_275 {dimension_numbers = #tpu.dot_dimension_numbers<[1], [0], [0], [1], [0, 0, 1, 1], [], []>} : vector<8x64xbf16>, vector<64x16xbf16>, vector<8x16xf32> -> vector<8x16xf32>
    %c3_276 = arith.constant 3 : index
    %c0_277 = arith.constant 0 : index
    %c0_278 = arith.constant 0 : index
    %401 = vector.load %arg27[%c3_276, %c0_277, %c0_278] : memref<4x1x16xf32, #tpu.memory_space<vmem>>, vector<1x1x16xf32>
    %402 = vector.shape_cast %401 : vector<1x1x16xf32> to vector<1x16xf32>
    %403 = vector.broadcast %402 : vector<1x16xf32> to vector<8x16xf32>
    %404 = arith.addf %400, %403 : vector<8x16xf32>
    %cst_279 = arith.constant dense<0.000000e+00> : vector<8x8xf32>
    %405 = tpu.matmul %390, %397, %cst_279 {dimension_numbers = #tpu.dot_dimension_numbers<[1], [1], [0], [0], [0, 0, 1, 0], [], []>} : vector<8x16xf32>, vector<8x16xf32>, vector<8x8xf32> -> vector<8x8xf32>
    %cst_280 = arith.constant 2.500000e-01 : f32
    %406 = vector.broadcast %cst_280 : f32 to vector<8x8xf32>
    %407 = arith.mulf %405, %406 : vector<8x8xf32>
    %cst_281 = arith.constant dense<0xFF800000> : vector<8xf32>
    %408 = vector.multi_reduction <maximumf>, %407, %cst_281 [1] : vector<8x8xf32> to vector<8xf32>
    %409 = vector.shape_cast %408 : vector<8xf32> to vector<8x1xf32>
    %410 = vector.broadcast %409 : vector<8x1xf32> to vector<8x8xf32>
    %411 = arith.subf %407, %410 : vector<8x8xf32>
    %412 = math.exp %411 : vector<8x8xf32>
    %cst_282 = arith.constant dense<0.000000e+00> : vector<8xf32>
    %413 = vector.multi_reduction <add>, %412, %cst_282 [1] : vector<8x8xf32> to vector<8xf32>
    %414 = vector.shape_cast %413 : vector<8xf32> to vector<8x1xf32>
    %415 = tpu.reciprocal %414 {approx = true} : vector<8x1xf32> -> vector<8x1xf32>
    %416 = vector.broadcast %415 : vector<8x1xf32> to vector<8x8xf32>
    %417 = arith.mulf %412, %416 : vector<8x8xf32>
    %418 = arith.truncf %417 : vector<8x8xf32> to vector<8x8xbf16>
    %419 = arith.truncf %404 : vector<8x16xf32> to vector<8x16xbf16>
    %cst_283 = arith.constant dense<0.000000e+00> : vector<8x16xf32>
    %420 = tpu.matmul %418, %419, %cst_283 {dimension_numbers = #tpu.dot_dimension_numbers<[1], [0], [0], [1], [0, 0, 1, 1], [], []>} : vector<8x8xbf16>, vector<8x16xbf16>, vector<8x16xf32> -> vector<8x16xf32>
    %421 = arith.truncf %420 : vector<8x16xf32> to vector<8x16xbf16>
    %c3_284 = arith.constant 3 : index
    %c0_285 = arith.constant 0 : index
    %c0_286 = arith.constant 0 : index
    %422 = vector.load %arg28[%c3_284, %c0_285, %c0_286] : memref<4x16x64xbf16, #tpu.memory_space<vmem>>, vector<1x16x64xbf16>
    %423 = vector.shape_cast %422 : vector<1x16x64xbf16> to vector<16x64xbf16>
    %cst_287 = arith.constant dense<0.000000e+00> : vector<8x64xf32>
    %424 = tpu.matmul %421, %423, %cst_287 {dimension_numbers = #tpu.dot_dimension_numbers<[1], [0], [0], [1], [0, 0, 1, 1], [], []>} : vector<8x16xbf16>, vector<16x64xbf16>, vector<8x64xf32> -> vector<8x64xf32>
    %425 = arith.addf %383, %424 : vector<8x64xf32>
    %426 = arith.addf %253, %425 : vector<8x64xf32>
    %cst_288 = arith.constant dense<0.000000e+00> : vector<8xf32>
    %427 = vector.multi_reduction <add>, %426, %cst_288 [1] : vector<8x64xf32> to vector<8xf32>
    %428 = vector.shape_cast %427 : vector<8xf32> to vector<8x1xf32>
    %cst_289 = arith.constant 6.400000e+01 : f32
    %429 = vector.broadcast %cst_289 : f32 to vector<8x1xf32>
    %430 = arith.divf %428, %429 : vector<8x1xf32>
    %431 = vector.broadcast %430 : vector<8x1xf32> to vector<8x64xf32>
    %432 = arith.subf %426, %431 : vector<8x64xf32>
    %433 = arith.mulf %432, %432 : vector<8x64xf32>
    %cst_290 = arith.constant dense<0.000000e+00> : vector<8xf32>
    %434 = vector.multi_reduction <add>, %433, %cst_290 [1] : vector<8x64xf32> to vector<8xf32>
    %435 = vector.shape_cast %434 : vector<8xf32> to vector<8x1xf32>
    %cst_291 = arith.constant 6.400000e+01 : f32
    %436 = vector.broadcast %cst_291 : f32 to vector<8x1xf32>
    %437 = arith.divf %435, %436 : vector<8x1xf32>
    %cst_292 = arith.constant 9.99999974E-6 : f32
    %438 = vector.broadcast %cst_292 : f32 to vector<8x1xf32>
    %439 = arith.addf %437, %438 : vector<8x1xf32>
    %440 = math.rsqrt %439 : vector<8x1xf32>
    %441 = vector.broadcast %440 : vector<8x1xf32> to vector<8x64xf32>
    %442 = arith.mulf %432, %441 : vector<8x64xf32>
    %c0_293 = arith.constant 0 : index
    %c0_294 = arith.constant 0 : index
    %443 = vector.load %arg30[%c0_293, %c0_294] : memref<1x64xf32, #tpu.memory_space<vmem>>, vector<1x64xf32>
    %444 = vector.broadcast %443 : vector<1x64xf32> to vector<8x64xf32>
    %445 = arith.mulf %442, %444 : vector<8x64xf32>
    %c0_295 = arith.constant 0 : index
    %c0_296 = arith.constant 0 : index
    %446 = vector.load %arg31[%c0_295, %c0_296] : memref<1x64xf32, #tpu.memory_space<vmem>>, vector<1x64xf32>
    %447 = vector.broadcast %446 : vector<1x64xf32> to vector<8x64xf32>
    %448 = arith.addf %445, %447 : vector<8x64xf32>
    %449 = arith.truncf %448 : vector<8x64xf32> to vector<8x64xbf16>
    %450 = arith.truncf %243 : vector<8x64xf32> to vector<8x64xbf16>
    %c0_297 = arith.constant 0 : index
    %c0_298 = arith.constant 0 : index
    %451 = vector.load %arg39[%c0_297, %c0_298] : memref<1x64xf32, #tpu.memory_space<vmem>>, vector<1x64xf32>
    %c0_299 = arith.constant 0 : index
    %c0_300 = arith.constant 0 : index
    %c0_301 = arith.constant 0 : index
    %452 = vector.load %arg32[%c0_299, %c0_300, %c0_301] : memref<4x64x16xbf16, #tpu.memory_space<vmem>>, vector<1x64x16xbf16>
    %453 = vector.shape_cast %452 : vector<1x64x16xbf16> to vector<64x16xbf16>
    %cst_302 = arith.constant dense<0.000000e+00> : vector<8x16xf32>
    %454 = tpu.matmul %449, %453, %cst_302 {dimension_numbers = #tpu.dot_dimension_numbers<[1], [0], [0], [1], [0, 0, 1, 1], [], []>} : vector<8x64xbf16>, vector<64x16xbf16>, vector<8x16xf32> -> vector<8x16xf32>
    %c0_303 = arith.constant 0 : index
    %c0_304 = arith.constant 0 : index
    %c0_305 = arith.constant 0 : index
    %455 = vector.load %arg33[%c0_303, %c0_304, %c0_305] : memref<4x1x16xf32, #tpu.memory_space<vmem>>, vector<1x1x16xf32>
    %456 = vector.shape_cast %455 : vector<1x1x16xf32> to vector<1x16xf32>
    %457 = vector.broadcast %456 : vector<1x16xf32> to vector<8x16xf32>
    %458 = arith.addf %454, %457 : vector<8x16xf32>
    %c0_306 = arith.constant 0 : index
    %c0_307 = arith.constant 0 : index
    %c0_308 = arith.constant 0 : index
    %459 = vector.load %arg34[%c0_306, %c0_307, %c0_308] : memref<4x64x16xbf16, #tpu.memory_space<vmem>>, vector<1x64x16xbf16>
    %460 = vector.shape_cast %459 : vector<1x64x16xbf16> to vector<64x16xbf16>
    %cst_309 = arith.constant dense<0.000000e+00> : vector<8x16xf32>
    %461 = tpu.matmul %450, %460, %cst_309 {dimension_numbers = #tpu.dot_dimension_numbers<[1], [0], [0], [1], [0, 0, 1, 1], [], []>} : vector<8x64xbf16>, vector<64x16xbf16>, vector<8x16xf32> -> vector<8x16xf32>
    %c0_310 = arith.constant 0 : index
    %c0_311 = arith.constant 0 : index
    %c0_312 = arith.constant 0 : index
    %462 = vector.load %arg35[%c0_310, %c0_311, %c0_312] : memref<4x1x16xf32, #tpu.memory_space<vmem>>, vector<1x1x16xf32>
    %463 = vector.shape_cast %462 : vector<1x1x16xf32> to vector<1x16xf32>
    %464 = vector.broadcast %463 : vector<1x16xf32> to vector<8x16xf32>
    %465 = arith.addf %461, %464 : vector<8x16xf32>
    %c0_313 = arith.constant 0 : index
    %c0_314 = arith.constant 0 : index
    %c0_315 = arith.constant 0 : index
    %466 = vector.load %arg36[%c0_313, %c0_314, %c0_315] : memref<4x64x16xbf16, #tpu.memory_space<vmem>>, vector<1x64x16xbf16>
    %467 = vector.shape_cast %466 : vector<1x64x16xbf16> to vector<64x16xbf16>
    %cst_316 = arith.constant dense<0.000000e+00> : vector<8x16xf32>
    %468 = tpu.matmul %450, %467, %cst_316 {dimension_numbers = #tpu.dot_dimension_numbers<[1], [0], [0], [1], [0, 0, 1, 1], [], []>} : vector<8x64xbf16>, vector<64x16xbf16>, vector<8x16xf32> -> vector<8x16xf32>
    %c0_317 = arith.constant 0 : index
    %c0_318 = arith.constant 0 : index
    %c0_319 = arith.constant 0 : index
    %469 = vector.load %arg37[%c0_317, %c0_318, %c0_319] : memref<4x1x16xf32, #tpu.memory_space<vmem>>, vector<1x1x16xf32>
    %470 = vector.shape_cast %469 : vector<1x1x16xf32> to vector<1x16xf32>
    %471 = vector.broadcast %470 : vector<1x16xf32> to vector<8x16xf32>
    %472 = arith.addf %468, %471 : vector<8x16xf32>
    %cst_320 = arith.constant dense<0.000000e+00> : vector<8x8xf32>
    %473 = tpu.matmul %458, %465, %cst_320 {dimension_numbers = #tpu.dot_dimension_numbers<[1], [1], [0], [0], [0, 0, 1, 0], [], []>} : vector<8x16xf32>, vector<8x16xf32>, vector<8x8xf32> -> vector<8x8xf32>
    %cst_321 = arith.constant 2.500000e-01 : f32
    %474 = vector.broadcast %cst_321 : f32 to vector<8x8xf32>
    %475 = arith.mulf %473, %474 : vector<8x8xf32>
    %cst_322 = arith.constant dense<0xFF800000> : vector<8xf32>
    %476 = vector.multi_reduction <maximumf>, %475, %cst_322 [1] : vector<8x8xf32> to vector<8xf32>
    %477 = vector.shape_cast %476 : vector<8xf32> to vector<8x1xf32>
    %478 = vector.broadcast %477 : vector<8x1xf32> to vector<8x8xf32>
    %479 = arith.subf %475, %478 : vector<8x8xf32>
    %480 = math.exp %479 : vector<8x8xf32>
    %cst_323 = arith.constant dense<0.000000e+00> : vector<8xf32>
    %481 = vector.multi_reduction <add>, %480, %cst_323 [1] : vector<8x8xf32> to vector<8xf32>
    %482 = vector.shape_cast %481 : vector<8xf32> to vector<8x1xf32>
    %483 = tpu.reciprocal %482 {approx = true} : vector<8x1xf32> -> vector<8x1xf32>
    %484 = vector.broadcast %483 : vector<8x1xf32> to vector<8x8xf32>
    %485 = arith.mulf %480, %484 : vector<8x8xf32>
    %486 = arith.truncf %485 : vector<8x8xf32> to vector<8x8xbf16>
    %487 = arith.truncf %472 : vector<8x16xf32> to vector<8x16xbf16>
    %cst_324 = arith.constant dense<0.000000e+00> : vector<8x16xf32>
    %488 = tpu.matmul %486, %487, %cst_324 {dimension_numbers = #tpu.dot_dimension_numbers<[1], [0], [0], [1], [0, 0, 1, 1], [], []>} : vector<8x8xbf16>, vector<8x16xbf16>, vector<8x16xf32> -> vector<8x16xf32>
    %489 = arith.truncf %488 : vector<8x16xf32> to vector<8x16xbf16>
    %c0_325 = arith.constant 0 : index
    %c0_326 = arith.constant 0 : index
    %c0_327 = arith.constant 0 : index
    %490 = vector.load %arg38[%c0_325, %c0_326, %c0_327] : memref<4x16x64xbf16, #tpu.memory_space<vmem>>, vector<1x16x64xbf16>
    %491 = vector.shape_cast %490 : vector<1x16x64xbf16> to vector<16x64xbf16>
    %cst_328 = arith.constant dense<0.000000e+00> : vector<8x64xf32>
    %492 = tpu.matmul %489, %491, %cst_328 {dimension_numbers = #tpu.dot_dimension_numbers<[1], [0], [0], [1], [0, 0, 1, 1], [], []>} : vector<8x16xbf16>, vector<16x64xbf16>, vector<8x64xf32> -> vector<8x64xf32>
    %493 = vector.broadcast %451 : vector<1x64xf32> to vector<8x64xf32>
    %494 = arith.addf %493, %492 : vector<8x64xf32>
    %c1_329 = arith.constant 1 : index
    %c0_330 = arith.constant 0 : index
    %c0_331 = arith.constant 0 : index
    %495 = vector.load %arg32[%c1_329, %c0_330, %c0_331] : memref<4x64x16xbf16, #tpu.memory_space<vmem>>, vector<1x64x16xbf16>
    %496 = vector.shape_cast %495 : vector<1x64x16xbf16> to vector<64x16xbf16>
    %cst_332 = arith.constant dense<0.000000e+00> : vector<8x16xf32>
    %497 = tpu.matmul %449, %496, %cst_332 {dimension_numbers = #tpu.dot_dimension_numbers<[1], [0], [0], [1], [0, 0, 1, 1], [], []>} : vector<8x64xbf16>, vector<64x16xbf16>, vector<8x16xf32> -> vector<8x16xf32>
    %c1_333 = arith.constant 1 : index
    %c0_334 = arith.constant 0 : index
    %c0_335 = arith.constant 0 : index
    %498 = vector.load %arg33[%c1_333, %c0_334, %c0_335] : memref<4x1x16xf32, #tpu.memory_space<vmem>>, vector<1x1x16xf32>
    %499 = vector.shape_cast %498 : vector<1x1x16xf32> to vector<1x16xf32>
    %500 = vector.broadcast %499 : vector<1x16xf32> to vector<8x16xf32>
    %501 = arith.addf %497, %500 : vector<8x16xf32>
    %c1_336 = arith.constant 1 : index
    %c0_337 = arith.constant 0 : index
    %c0_338 = arith.constant 0 : index
    %502 = vector.load %arg34[%c1_336, %c0_337, %c0_338] : memref<4x64x16xbf16, #tpu.memory_space<vmem>>, vector<1x64x16xbf16>
    %503 = vector.shape_cast %502 : vector<1x64x16xbf16> to vector<64x16xbf16>
    %cst_339 = arith.constant dense<0.000000e+00> : vector<8x16xf32>
    %504 = tpu.matmul %450, %503, %cst_339 {dimension_numbers = #tpu.dot_dimension_numbers<[1], [0], [0], [1], [0, 0, 1, 1], [], []>} : vector<8x64xbf16>, vector<64x16xbf16>, vector<8x16xf32> -> vector<8x16xf32>
    %c1_340 = arith.constant 1 : index
    %c0_341 = arith.constant 0 : index
    %c0_342 = arith.constant 0 : index
    %505 = vector.load %arg35[%c1_340, %c0_341, %c0_342] : memref<4x1x16xf32, #tpu.memory_space<vmem>>, vector<1x1x16xf32>
    %506 = vector.shape_cast %505 : vector<1x1x16xf32> to vector<1x16xf32>
    %507 = vector.broadcast %506 : vector<1x16xf32> to vector<8x16xf32>
    %508 = arith.addf %504, %507 : vector<8x16xf32>
    %c1_343 = arith.constant 1 : index
    %c0_344 = arith.constant 0 : index
    %c0_345 = arith.constant 0 : index
    %509 = vector.load %arg36[%c1_343, %c0_344, %c0_345] : memref<4x64x16xbf16, #tpu.memory_space<vmem>>, vector<1x64x16xbf16>
    %510 = vector.shape_cast %509 : vector<1x64x16xbf16> to vector<64x16xbf16>
    %cst_346 = arith.constant dense<0.000000e+00> : vector<8x16xf32>
    %511 = tpu.matmul %450, %510, %cst_346 {dimension_numbers = #tpu.dot_dimension_numbers<[1], [0], [0], [1], [0, 0, 1, 1], [], []>} : vector<8x64xbf16>, vector<64x16xbf16>, vector<8x16xf32> -> vector<8x16xf32>
    %c1_347 = arith.constant 1 : index
    %c0_348 = arith.constant 0 : index
    %c0_349 = arith.constant 0 : index
    %512 = vector.load %arg37[%c1_347, %c0_348, %c0_349] : memref<4x1x16xf32, #tpu.memory_space<vmem>>, vector<1x1x16xf32>
    %513 = vector.shape_cast %512 : vector<1x1x16xf32> to vector<1x16xf32>
    %514 = vector.broadcast %513 : vector<1x16xf32> to vector<8x16xf32>
    %515 = arith.addf %511, %514 : vector<8x16xf32>
    %cst_350 = arith.constant dense<0.000000e+00> : vector<8x8xf32>
    %516 = tpu.matmul %501, %508, %cst_350 {dimension_numbers = #tpu.dot_dimension_numbers<[1], [1], [0], [0], [0, 0, 1, 0], [], []>} : vector<8x16xf32>, vector<8x16xf32>, vector<8x8xf32> -> vector<8x8xf32>
    %cst_351 = arith.constant 2.500000e-01 : f32
    %517 = vector.broadcast %cst_351 : f32 to vector<8x8xf32>
    %518 = arith.mulf %516, %517 : vector<8x8xf32>
    %cst_352 = arith.constant dense<0xFF800000> : vector<8xf32>
    %519 = vector.multi_reduction <maximumf>, %518, %cst_352 [1] : vector<8x8xf32> to vector<8xf32>
    %520 = vector.shape_cast %519 : vector<8xf32> to vector<8x1xf32>
    %521 = vector.broadcast %520 : vector<8x1xf32> to vector<8x8xf32>
    %522 = arith.subf %518, %521 : vector<8x8xf32>
    %523 = math.exp %522 : vector<8x8xf32>
    %cst_353 = arith.constant dense<0.000000e+00> : vector<8xf32>
    %524 = vector.multi_reduction <add>, %523, %cst_353 [1] : vector<8x8xf32> to vector<8xf32>
    %525 = vector.shape_cast %524 : vector<8xf32> to vector<8x1xf32>
    %526 = tpu.reciprocal %525 {approx = true} : vector<8x1xf32> -> vector<8x1xf32>
    %527 = vector.broadcast %526 : vector<8x1xf32> to vector<8x8xf32>
    %528 = arith.mulf %523, %527 : vector<8x8xf32>
    %529 = arith.truncf %528 : vector<8x8xf32> to vector<8x8xbf16>
    %530 = arith.truncf %515 : vector<8x16xf32> to vector<8x16xbf16>
    %cst_354 = arith.constant dense<0.000000e+00> : vector<8x16xf32>
    %531 = tpu.matmul %529, %530, %cst_354 {dimension_numbers = #tpu.dot_dimension_numbers<[1], [0], [0], [1], [0, 0, 1, 1], [], []>} : vector<8x8xbf16>, vector<8x16xbf16>, vector<8x16xf32> -> vector<8x16xf32>
    %532 = arith.truncf %531 : vector<8x16xf32> to vector<8x16xbf16>
    %c1_355 = arith.constant 1 : index
    %c0_356 = arith.constant 0 : index
    %c0_357 = arith.constant 0 : index
    %533 = vector.load %arg38[%c1_355, %c0_356, %c0_357] : memref<4x16x64xbf16, #tpu.memory_space<vmem>>, vector<1x16x64xbf16>
    %534 = vector.shape_cast %533 : vector<1x16x64xbf16> to vector<16x64xbf16>
    %cst_358 = arith.constant dense<0.000000e+00> : vector<8x64xf32>
    %535 = tpu.matmul %532, %534, %cst_358 {dimension_numbers = #tpu.dot_dimension_numbers<[1], [0], [0], [1], [0, 0, 1, 1], [], []>} : vector<8x16xbf16>, vector<16x64xbf16>, vector<8x64xf32> -> vector<8x64xf32>
    %536 = arith.addf %494, %535 : vector<8x64xf32>
    %c2_359 = arith.constant 2 : index
    %c0_360 = arith.constant 0 : index
    %c0_361 = arith.constant 0 : index
    %537 = vector.load %arg32[%c2_359, %c0_360, %c0_361] : memref<4x64x16xbf16, #tpu.memory_space<vmem>>, vector<1x64x16xbf16>
    %538 = vector.shape_cast %537 : vector<1x64x16xbf16> to vector<64x16xbf16>
    %cst_362 = arith.constant dense<0.000000e+00> : vector<8x16xf32>
    %539 = tpu.matmul %449, %538, %cst_362 {dimension_numbers = #tpu.dot_dimension_numbers<[1], [0], [0], [1], [0, 0, 1, 1], [], []>} : vector<8x64xbf16>, vector<64x16xbf16>, vector<8x16xf32> -> vector<8x16xf32>
    %c2_363 = arith.constant 2 : index
    %c0_364 = arith.constant 0 : index
    %c0_365 = arith.constant 0 : index
    %540 = vector.load %arg33[%c2_363, %c0_364, %c0_365] : memref<4x1x16xf32, #tpu.memory_space<vmem>>, vector<1x1x16xf32>
    %541 = vector.shape_cast %540 : vector<1x1x16xf32> to vector<1x16xf32>
    %542 = vector.broadcast %541 : vector<1x16xf32> to vector<8x16xf32>
    %543 = arith.addf %539, %542 : vector<8x16xf32>
    %c2_366 = arith.constant 2 : index
    %c0_367 = arith.constant 0 : index
    %c0_368 = arith.constant 0 : index
    %544 = vector.load %arg34[%c2_366, %c0_367, %c0_368] : memref<4x64x16xbf16, #tpu.memory_space<vmem>>, vector<1x64x16xbf16>
    %545 = vector.shape_cast %544 : vector<1x64x16xbf16> to vector<64x16xbf16>
    %cst_369 = arith.constant dense<0.000000e+00> : vector<8x16xf32>
    %546 = tpu.matmul %450, %545, %cst_369 {dimension_numbers = #tpu.dot_dimension_numbers<[1], [0], [0], [1], [0, 0, 1, 1], [], []>} : vector<8x64xbf16>, vector<64x16xbf16>, vector<8x16xf32> -> vector<8x16xf32>
    %c2_370 = arith.constant 2 : index
    %c0_371 = arith.constant 0 : index
    %c0_372 = arith.constant 0 : index
    %547 = vector.load %arg35[%c2_370, %c0_371, %c0_372] : memref<4x1x16xf32, #tpu.memory_space<vmem>>, vector<1x1x16xf32>
    %548 = vector.shape_cast %547 : vector<1x1x16xf32> to vector<1x16xf32>
    %549 = vector.broadcast %548 : vector<1x16xf32> to vector<8x16xf32>
    %550 = arith.addf %546, %549 : vector<8x16xf32>
    %c2_373 = arith.constant 2 : index
    %c0_374 = arith.constant 0 : index
    %c0_375 = arith.constant 0 : index
    %551 = vector.load %arg36[%c2_373, %c0_374, %c0_375] : memref<4x64x16xbf16, #tpu.memory_space<vmem>>, vector<1x64x16xbf16>
    %552 = vector.shape_cast %551 : vector<1x64x16xbf16> to vector<64x16xbf16>
    %cst_376 = arith.constant dense<0.000000e+00> : vector<8x16xf32>
    %553 = tpu.matmul %450, %552, %cst_376 {dimension_numbers = #tpu.dot_dimension_numbers<[1], [0], [0], [1], [0, 0, 1, 1], [], []>} : vector<8x64xbf16>, vector<64x16xbf16>, vector<8x16xf32> -> vector<8x16xf32>
    %c2_377 = arith.constant 2 : index
    %c0_378 = arith.constant 0 : index
    %c0_379 = arith.constant 0 : index
    %554 = vector.load %arg37[%c2_377, %c0_378, %c0_379] : memref<4x1x16xf32, #tpu.memory_space<vmem>>, vector<1x1x16xf32>
    %555 = vector.shape_cast %554 : vector<1x1x16xf32> to vector<1x16xf32>
    %556 = vector.broadcast %555 : vector<1x16xf32> to vector<8x16xf32>
    %557 = arith.addf %553, %556 : vector<8x16xf32>
    %cst_380 = arith.constant dense<0.000000e+00> : vector<8x8xf32>
    %558 = tpu.matmul %543, %550, %cst_380 {dimension_numbers = #tpu.dot_dimension_numbers<[1], [1], [0], [0], [0, 0, 1, 0], [], []>} : vector<8x16xf32>, vector<8x16xf32>, vector<8x8xf32> -> vector<8x8xf32>
    %cst_381 = arith.constant 2.500000e-01 : f32
    %559 = vector.broadcast %cst_381 : f32 to vector<8x8xf32>
    %560 = arith.mulf %558, %559 : vector<8x8xf32>
    %cst_382 = arith.constant dense<0xFF800000> : vector<8xf32>
    %561 = vector.multi_reduction <maximumf>, %560, %cst_382 [1] : vector<8x8xf32> to vector<8xf32>
    %562 = vector.shape_cast %561 : vector<8xf32> to vector<8x1xf32>
    %563 = vector.broadcast %562 : vector<8x1xf32> to vector<8x8xf32>
    %564 = arith.subf %560, %563 : vector<8x8xf32>
    %565 = math.exp %564 : vector<8x8xf32>
    %cst_383 = arith.constant dense<0.000000e+00> : vector<8xf32>
    %566 = vector.multi_reduction <add>, %565, %cst_383 [1] : vector<8x8xf32> to vector<8xf32>
    %567 = vector.shape_cast %566 : vector<8xf32> to vector<8x1xf32>
    %568 = tpu.reciprocal %567 {approx = true} : vector<8x1xf32> -> vector<8x1xf32>
    %569 = vector.broadcast %568 : vector<8x1xf32> to vector<8x8xf32>
    %570 = arith.mulf %565, %569 : vector<8x8xf32>
    %571 = arith.truncf %570 : vector<8x8xf32> to vector<8x8xbf16>
    %572 = arith.truncf %557 : vector<8x16xf32> to vector<8x16xbf16>
    %cst_384 = arith.constant dense<0.000000e+00> : vector<8x16xf32>
    %573 = tpu.matmul %571, %572, %cst_384 {dimension_numbers = #tpu.dot_dimension_numbers<[1], [0], [0], [1], [0, 0, 1, 1], [], []>} : vector<8x8xbf16>, vector<8x16xbf16>, vector<8x16xf32> -> vector<8x16xf32>
    %574 = arith.truncf %573 : vector<8x16xf32> to vector<8x16xbf16>
    %c2_385 = arith.constant 2 : index
    %c0_386 = arith.constant 0 : index
    %c0_387 = arith.constant 0 : index
    %575 = vector.load %arg38[%c2_385, %c0_386, %c0_387] : memref<4x16x64xbf16, #tpu.memory_space<vmem>>, vector<1x16x64xbf16>
    %576 = vector.shape_cast %575 : vector<1x16x64xbf16> to vector<16x64xbf16>
    %cst_388 = arith.constant dense<0.000000e+00> : vector<8x64xf32>
    %577 = tpu.matmul %574, %576, %cst_388 {dimension_numbers = #tpu.dot_dimension_numbers<[1], [0], [0], [1], [0, 0, 1, 1], [], []>} : vector<8x16xbf16>, vector<16x64xbf16>, vector<8x64xf32> -> vector<8x64xf32>
    %578 = arith.addf %536, %577 : vector<8x64xf32>
    %c3_389 = arith.constant 3 : index
    %c0_390 = arith.constant 0 : index
    %c0_391 = arith.constant 0 : index
    %579 = vector.load %arg32[%c3_389, %c0_390, %c0_391] : memref<4x64x16xbf16, #tpu.memory_space<vmem>>, vector<1x64x16xbf16>
    %580 = vector.shape_cast %579 : vector<1x64x16xbf16> to vector<64x16xbf16>
    %cst_392 = arith.constant dense<0.000000e+00> : vector<8x16xf32>
    %581 = tpu.matmul %449, %580, %cst_392 {dimension_numbers = #tpu.dot_dimension_numbers<[1], [0], [0], [1], [0, 0, 1, 1], [], []>} : vector<8x64xbf16>, vector<64x16xbf16>, vector<8x16xf32> -> vector<8x16xf32>
    %c3_393 = arith.constant 3 : index
    %c0_394 = arith.constant 0 : index
    %c0_395 = arith.constant 0 : index
    %582 = vector.load %arg33[%c3_393, %c0_394, %c0_395] : memref<4x1x16xf32, #tpu.memory_space<vmem>>, vector<1x1x16xf32>
    %583 = vector.shape_cast %582 : vector<1x1x16xf32> to vector<1x16xf32>
    %584 = vector.broadcast %583 : vector<1x16xf32> to vector<8x16xf32>
    %585 = arith.addf %581, %584 : vector<8x16xf32>
    %c3_396 = arith.constant 3 : index
    %c0_397 = arith.constant 0 : index
    %c0_398 = arith.constant 0 : index
    %586 = vector.load %arg34[%c3_396, %c0_397, %c0_398] : memref<4x64x16xbf16, #tpu.memory_space<vmem>>, vector<1x64x16xbf16>
    %587 = vector.shape_cast %586 : vector<1x64x16xbf16> to vector<64x16xbf16>
    %cst_399 = arith.constant dense<0.000000e+00> : vector<8x16xf32>
    %588 = tpu.matmul %450, %587, %cst_399 {dimension_numbers = #tpu.dot_dimension_numbers<[1], [0], [0], [1], [0, 0, 1, 1], [], []>} : vector<8x64xbf16>, vector<64x16xbf16>, vector<8x16xf32> -> vector<8x16xf32>
    %c3_400 = arith.constant 3 : index
    %c0_401 = arith.constant 0 : index
    %c0_402 = arith.constant 0 : index
    %589 = vector.load %arg35[%c3_400, %c0_401, %c0_402] : memref<4x1x16xf32, #tpu.memory_space<vmem>>, vector<1x1x16xf32>
    %590 = vector.shape_cast %589 : vector<1x1x16xf32> to vector<1x16xf32>
    %591 = vector.broadcast %590 : vector<1x16xf32> to vector<8x16xf32>
    %592 = arith.addf %588, %591 : vector<8x16xf32>
    %c3_403 = arith.constant 3 : index
    %c0_404 = arith.constant 0 : index
    %c0_405 = arith.constant 0 : index
    %593 = vector.load %arg36[%c3_403, %c0_404, %c0_405] : memref<4x64x16xbf16, #tpu.memory_space<vmem>>, vector<1x64x16xbf16>
    %594 = vector.shape_cast %593 : vector<1x64x16xbf16> to vector<64x16xbf16>
    %cst_406 = arith.constant dense<0.000000e+00> : vector<8x16xf32>
    %595 = tpu.matmul %450, %594, %cst_406 {dimension_numbers = #tpu.dot_dimension_numbers<[1], [0], [0], [1], [0, 0, 1, 1], [], []>} : vector<8x64xbf16>, vector<64x16xbf16>, vector<8x16xf32> -> vector<8x16xf32>
    %c3_407 = arith.constant 3 : index
    %c0_408 = arith.constant 0 : index
    %c0_409 = arith.constant 0 : index
    %596 = vector.load %arg37[%c3_407, %c0_408, %c0_409] : memref<4x1x16xf32, #tpu.memory_space<vmem>>, vector<1x1x16xf32>
    %597 = vector.shape_cast %596 : vector<1x1x16xf32> to vector<1x16xf32>
    %598 = vector.broadcast %597 : vector<1x16xf32> to vector<8x16xf32>
    %599 = arith.addf %595, %598 : vector<8x16xf32>
    %cst_410 = arith.constant dense<0.000000e+00> : vector<8x8xf32>
    %600 = tpu.matmul %585, %592, %cst_410 {dimension_numbers = #tpu.dot_dimension_numbers<[1], [1], [0], [0], [0, 0, 1, 0], [], []>} : vector<8x16xf32>, vector<8x16xf32>, vector<8x8xf32> -> vector<8x8xf32>
    %cst_411 = arith.constant 2.500000e-01 : f32
    %601 = vector.broadcast %cst_411 : f32 to vector<8x8xf32>
    %602 = arith.mulf %600, %601 : vector<8x8xf32>
    %cst_412 = arith.constant dense<0xFF800000> : vector<8xf32>
    %603 = vector.multi_reduction <maximumf>, %602, %cst_412 [1] : vector<8x8xf32> to vector<8xf32>
    %604 = vector.shape_cast %603 : vector<8xf32> to vector<8x1xf32>
    %605 = vector.broadcast %604 : vector<8x1xf32> to vector<8x8xf32>
    %606 = arith.subf %602, %605 : vector<8x8xf32>
    %607 = math.exp %606 : vector<8x8xf32>
    %cst_413 = arith.constant dense<0.000000e+00> : vector<8xf32>
    %608 = vector.multi_reduction <add>, %607, %cst_413 [1] : vector<8x8xf32> to vector<8xf32>
    %609 = vector.shape_cast %608 : vector<8xf32> to vector<8x1xf32>
    %610 = tpu.reciprocal %609 {approx = true} : vector<8x1xf32> -> vector<8x1xf32>
    %611 = vector.broadcast %610 : vector<8x1xf32> to vector<8x8xf32>
    %612 = arith.mulf %607, %611 : vector<8x8xf32>
    %613 = arith.truncf %612 : vector<8x8xf32> to vector<8x8xbf16>
    %614 = arith.truncf %599 : vector<8x16xf32> to vector<8x16xbf16>
    %cst_414 = arith.constant dense<0.000000e+00> : vector<8x16xf32>
    %615 = tpu.matmul %613, %614, %cst_414 {dimension_numbers = #tpu.dot_dimension_numbers<[1], [0], [0], [1], [0, 0, 1, 1], [], []>} : vector<8x8xbf16>, vector<8x16xbf16>, vector<8x16xf32> -> vector<8x16xf32>
    %616 = arith.truncf %615 : vector<8x16xf32> to vector<8x16xbf16>
    %c3_415 = arith.constant 3 : index
    %c0_416 = arith.constant 0 : index
    %c0_417 = arith.constant 0 : index
    %617 = vector.load %arg38[%c3_415, %c0_416, %c0_417] : memref<4x16x64xbf16, #tpu.memory_space<vmem>>, vector<1x16x64xbf16>
    %618 = vector.shape_cast %617 : vector<1x16x64xbf16> to vector<16x64xbf16>
    %cst_418 = arith.constant dense<0.000000e+00> : vector<8x64xf32>
    %619 = tpu.matmul %616, %618, %cst_418 {dimension_numbers = #tpu.dot_dimension_numbers<[1], [0], [0], [1], [0, 0, 1, 1], [], []>} : vector<8x16xbf16>, vector<16x64xbf16>, vector<8x64xf32> -> vector<8x64xf32>
    %620 = arith.addf %578, %619 : vector<8x64xf32>
    %621 = arith.addf %448, %620 : vector<8x64xf32>
    %cst_419 = arith.constant dense<0.000000e+00> : vector<8xf32>
    %622 = vector.multi_reduction <add>, %621, %cst_419 [1] : vector<8x64xf32> to vector<8xf32>
    %623 = vector.shape_cast %622 : vector<8xf32> to vector<8x1xf32>
    %cst_420 = arith.constant 6.400000e+01 : f32
    %624 = vector.broadcast %cst_420 : f32 to vector<8x1xf32>
    %625 = arith.divf %623, %624 : vector<8x1xf32>
    %626 = vector.broadcast %625 : vector<8x1xf32> to vector<8x64xf32>
    %627 = arith.subf %621, %626 : vector<8x64xf32>
    %628 = arith.mulf %627, %627 : vector<8x64xf32>
    %cst_421 = arith.constant dense<0.000000e+00> : vector<8xf32>
    %629 = vector.multi_reduction <add>, %628, %cst_421 [1] : vector<8x64xf32> to vector<8xf32>
    %630 = vector.shape_cast %629 : vector<8xf32> to vector<8x1xf32>
    %cst_422 = arith.constant 6.400000e+01 : f32
    %631 = vector.broadcast %cst_422 : f32 to vector<8x1xf32>
    %632 = arith.divf %630, %631 : vector<8x1xf32>
    %cst_423 = arith.constant 9.99999974E-6 : f32
    %633 = vector.broadcast %cst_423 : f32 to vector<8x1xf32>
    %634 = arith.addf %632, %633 : vector<8x1xf32>
    %635 = math.rsqrt %634 : vector<8x1xf32>
    %636 = vector.broadcast %635 : vector<8x1xf32> to vector<8x64xf32>
    %637 = arith.mulf %627, %636 : vector<8x64xf32>
    %c0_424 = arith.constant 0 : index
    %c0_425 = arith.constant 0 : index
    %638 = vector.load %arg40[%c0_424, %c0_425] : memref<1x64xf32, #tpu.memory_space<vmem>>, vector<1x64xf32>
    %639 = vector.broadcast %638 : vector<1x64xf32> to vector<8x64xf32>
    %640 = arith.mulf %637, %639 : vector<8x64xf32>
    %c0_426 = arith.constant 0 : index
    %c0_427 = arith.constant 0 : index
    %641 = vector.load %arg41[%c0_426, %c0_427] : memref<1x64xf32, #tpu.memory_space<vmem>>, vector<1x64xf32>
    %642 = vector.broadcast %641 : vector<1x64xf32> to vector<8x64xf32>
    %643 = arith.addf %640, %642 : vector<8x64xf32>
    %644 = arith.truncf %643 : vector<8x64xf32> to vector<8x64xbf16>
    %c0_428 = arith.constant 0 : index
    %c0_429 = arith.constant 0 : index
    %645 = vector.load %arg42[%c0_428, %c0_429] : memref<64x256xbf16, #tpu.memory_space<vmem>>, vector<64x256xbf16>
    %cst_430 = arith.constant dense<0.000000e+00> : vector<8x256xf32>
    %646 = tpu.matmul %644, %645, %cst_430 {dimension_numbers = #tpu.dot_dimension_numbers<[1], [0], [0], [1], [0, 0, 1, 1], [], []>} : vector<8x64xbf16>, vector<64x256xbf16>, vector<8x256xf32> -> vector<8x256xf32>
    %c0_431 = arith.constant 0 : index
    %c0_432 = arith.constant 0 : index
    %647 = vector.load %arg43[%c0_431, %c0_432] : memref<1x256xf32, #tpu.memory_space<vmem>>, vector<1x256xf32>
    %648 = vector.broadcast %647 : vector<1x256xf32> to vector<8x256xf32>
    %649 = arith.addf %646, %648 : vector<8x256xf32>
    %cst_433 = arith.constant 0.000000e+00 : f32
    %650 = vector.broadcast %cst_433 : f32 to vector<8x256xf32>
    %651 = arith.maximumf %649, %650 : vector<8x256xf32>
    %652 = arith.truncf %651 : vector<8x256xf32> to vector<8x256xbf16>
    %c0_434 = arith.constant 0 : index
    %c0_435 = arith.constant 0 : index
    %653 = vector.load %arg44[%c0_434, %c0_435] : memref<256x64xbf16, #tpu.memory_space<vmem>>, vector<256x64xbf16>
    %cst_436 = arith.constant dense<0.000000e+00> : vector<8x64xf32>
    %654 = tpu.matmul %652, %653, %cst_436 {dimension_numbers = #tpu.dot_dimension_numbers<[1], [0], [0], [1], [0, 0, 1, 1], [], []>} : vector<8x256xbf16>, vector<256x64xbf16>, vector<8x64xf32> -> vector<8x64xf32>
    %c0_437 = arith.constant 0 : index
    %c0_438 = arith.constant 0 : index
    %655 = vector.load %arg45[%c0_437, %c0_438] : memref<1x64xf32, #tpu.memory_space<vmem>>, vector<1x64xf32>
    %656 = vector.broadcast %655 : vector<1x64xf32> to vector<8x64xf32>
    %657 = arith.addf %654, %656 : vector<8x64xf32>
    %658 = arith.addf %643, %657 : vector<8x64xf32>
    %cst_439 = arith.constant dense<0.000000e+00> : vector<8xf32>
    %659 = vector.multi_reduction <add>, %658, %cst_439 [1] : vector<8x64xf32> to vector<8xf32>
    %660 = vector.shape_cast %659 : vector<8xf32> to vector<8x1xf32>
    %cst_440 = arith.constant 6.400000e+01 : f32
    %661 = vector.broadcast %cst_440 : f32 to vector<8x1xf32>
    %662 = arith.divf %660, %661 : vector<8x1xf32>
    %663 = vector.broadcast %662 : vector<8x1xf32> to vector<8x64xf32>
    %664 = arith.subf %658, %663 : vector<8x64xf32>
    %665 = arith.mulf %664, %664 : vector<8x64xf32>
    %cst_441 = arith.constant dense<0.000000e+00> : vector<8xf32>
    %666 = vector.multi_reduction <add>, %665, %cst_441 [1] : vector<8x64xf32> to vector<8xf32>
    %667 = vector.shape_cast %666 : vector<8xf32> to vector<8x1xf32>
    %cst_442 = arith.constant 6.400000e+01 : f32
    %668 = vector.broadcast %cst_442 : f32 to vector<8x1xf32>
    %669 = arith.divf %667, %668 : vector<8x1xf32>
    %cst_443 = arith.constant 9.99999974E-6 : f32
    %670 = vector.broadcast %cst_443 : f32 to vector<8x1xf32>
    %671 = arith.addf %669, %670 : vector<8x1xf32>
    %672 = math.rsqrt %671 : vector<8x1xf32>
    %673 = vector.broadcast %672 : vector<8x1xf32> to vector<8x64xf32>
    %674 = arith.mulf %664, %673 : vector<8x64xf32>
    %c0_444 = arith.constant 0 : index
    %c0_445 = arith.constant 0 : index
    %675 = vector.load %arg46[%c0_444, %c0_445] : memref<1x64xf32, #tpu.memory_space<vmem>>, vector<1x64xf32>
    %676 = vector.broadcast %675 : vector<1x64xf32> to vector<8x64xf32>
    %677 = arith.mulf %674, %676 : vector<8x64xf32>
    %c0_446 = arith.constant 0 : index
    %c0_447 = arith.constant 0 : index
    %678 = vector.load %arg47[%c0_446, %c0_447] : memref<1x64xf32, #tpu.memory_space<vmem>>, vector<1x64xf32>
    %679 = vector.broadcast %678 : vector<1x64xf32> to vector<8x64xf32>
    %680 = arith.addf %677, %679 : vector<8x64xf32>
    %681 = arith.truncf %680 : vector<8x64xf32> to vector<8x64xbf16>
    %c0_448 = arith.constant 0 : index
    %c0_449 = arith.constant 0 : index
    %682 = vector.load %arg48[%c0_448, %c0_449] : memref<64x4xbf16, #tpu.memory_space<vmem>>, vector<64x4xbf16>
    %cst_450 = arith.constant dense<0.000000e+00> : vector<8x4xf32>
    %683 = tpu.matmul %681, %682, %cst_450 {dimension_numbers = #tpu.dot_dimension_numbers<[1], [0], [0], [1], [0, 0, 1, 1], [], []>} : vector<8x64xbf16>, vector<64x4xbf16>, vector<8x4xf32> -> vector<8x4xf32>
    %c0_451 = arith.constant 0 : index
    %c0_452 = arith.constant 0 : index
    %684 = vector.load %arg49[%c0_451, %c0_452] : memref<1x4xf32, #tpu.memory_space<vmem>>, vector<1x4xf32>
    %685 = vector.broadcast %684 : vector<1x4xf32> to vector<8x4xf32>
    %686 = arith.addf %683, %685 : vector<8x4xf32>
    %cst_453 = arith.constant 5.000000e-01 : f32
    %687 = vector.broadcast %cst_453 : f32 to vector<8x4xf32>
    %688 = arith.mulf %687, %686 : vector<8x4xf32>
    %689 = math.tanh %688 : vector<8x4xf32>
    %cst_454 = arith.constant 1.000000e+00 : f32
    %690 = vector.broadcast %cst_454 : f32 to vector<8x4xf32>
    %691 = arith.addf %689, %690 : vector<8x4xf32>
    %cst_455 = arith.constant 5.000000e-01 : f32
    %692 = vector.broadcast %cst_455 : f32 to vector<8x4xf32>
    %693 = arith.mulf %692, %691 : vector<8x4xf32>
    %c0_456 = arith.constant 0 : index
    %c0_457 = arith.constant 0 : index
    %c0_458 = arith.constant 0 : index
    %694 = vector.load %arg50[%c0_456, %c0_457, %c0_458] : memref<1x8x4xf32, #tpu.memory_space<vmem>>, vector<1x8x4xf32>
    %695 = vector.shape_cast %694 : vector<1x8x4xf32> to vector<8x4xf32>
    %696 = vector.shape_cast %693 : vector<8x4xf32> to vector<1x8x4xf32>
    tpu.vector_store %arg50[%c0_456, %c0_457, %c0_458], %696 {strides = array<i32>} : memref<1x8x4xf32, #tpu.memory_space<vmem>>, vector<1x8x4xf32>,
    return
  }
  func.func @transform_0(%arg0: i32) -> (i32, i32, i32) {
    %c0_i32 = arith.constant 0 : i32
    %c0_i32_0 = arith.constant 0 : i32
    %c0_i32_1 = arith.constant 0 : i32
    return %arg0, %c0_i32, %c0_i32_0 : i32, i32, i32
  }
  func.func @transform_1(%arg0: i32) -> (i32, i32, i32) {
    %c0_i32 = arith.constant 0 : i32
    %c0_i32_0 = arith.constant 0 : i32
    %c0_i32_1 = arith.constant 0 : i32
    return %arg0, %c0_i32, %c0_i32_0 : i32, i32, i32
  }
  func.func @transform_2(%arg0: i32) -> (i32, i32) {
    %c0_i32 = arith.constant 0 : i32
    %c0_i32_0 = arith.constant 0 : i32
    %c0_i32_1 = arith.constant 0 : i32
    return %c0_i32, %c0_i32_0 : i32, i32
  }
  func.func @transform_3(%arg0: i32) -> (i32, i32) {
    %c0_i32 = arith.constant 0 : i32
    %c0_i32_0 = arith.constant 0 : i32
    %c0_i32_1 = arith.constant 0 : i32
    return %c0_i32, %c0_i32_0 : i32, i32
  }
  func.func @transform_4(%arg0: i32) -> (i32, i32) {
    %c0_i32 = arith.constant 0 : i32
    %c0_i32_0 = arith.constant 0 : i32
    %c0_i32_1 = arith.constant 0 : i32
    return %c0_i32, %c0_i32_0 : i32, i32
  }
  func.func @transform_5(%arg0: i32) -> (i32, i32, i32) {
    %c0_i32 = arith.constant 0 : i32
    %c0_i32_0 = arith.constant 0 : i32
    %c0_i32_1 = arith.constant 0 : i32
    %c0_i32_2 = arith.constant 0 : i32
    return %c0_i32, %c0_i32_0, %c0_i32_1 : i32, i32, i32
  }
  func.func @transform_6(%arg0: i32) -> (i32, i32, i32) {
    %c0_i32 = arith.constant 0 : i32
    %c0_i32_0 = arith.constant 0 : i32
    %c0_i32_1 = arith.constant 0 : i32
    %c0_i32_2 = arith.constant 0 : i32
    return %c0_i32, %c0_i32_0, %c0_i32_1 : i32, i32, i32
  }
  func.func @transform_7(%arg0: i32) -> (i32, i32, i32) {
    %c0_i32 = arith.constant 0 : i32
    %c0_i32_0 = arith.constant 0 : i32
    %c0_i32_1 = arith.constant 0 : i32
    %c0_i32_2 = arith.constant 0 : i32
    return %c0_i32, %c0_i32_0, %c0_i32_1 : i32, i32, i32
  }
  func.func @transform_8(%arg0: i32) -> (i32, i32, i32) {
    %c0_i32 = arith.constant 0 : i32
    %c0_i32_0 = arith.constant 0 : i32
    %c0_i32_1 = arith.constant 0 : i32
    %c0_i32_2 = arith.constant 0 : i32
    return %c0_i32, %c0_i32_0, %c0_i32_1 : i32, i32, i32
  }
  func.func @transform_9(%arg0: i32) -> (i32, i32, i32) {
    %c0_i32 = arith.constant 0 : i32
    %c0_i32_0 = arith.constant 0 : i32
    %c0_i32_1 = arith.constant 0 : i32
    %c0_i32_2 = arith.constant 0 : i32
    return %c0_i32, %c0_i32_0, %c0_i32_1 : i32, i32, i32
  }
  func.func @transform_10(%arg0: i32) -> (i32, i32, i32) {
    %c0_i32 = arith.constant 0 : i32
    %c0_i32_0 = arith.constant 0 : i32
    %c0_i32_1 = arith.constant 0 : i32
    %c0_i32_2 = arith.constant 0 : i32
    return %c0_i32, %c0_i32_0, %c0_i32_1 : i32, i32, i32
  }
  func.func @transform_11(%arg0: i32) -> (i32, i32, i32) {
    %c0_i32 = arith.constant 0 : i32
    %c0_i32_0 = arith.constant 0 : i32
    %c0_i32_1 = arith.constant 0 : i32
    %c0_i32_2 = arith.constant 0 : i32
    return %c0_i32, %c0_i32_0, %c0_i32_1 : i32, i32, i32
  }
  func.func @transform_12(%arg0: i32) -> (i32, i32) {
    %c0_i32 = arith.constant 0 : i32
    %c0_i32_0 = arith.constant 0 : i32
    %c0_i32_1 = arith.constant 0 : i32
    return %c0_i32, %c0_i32_0 : i32, i32
  }
  func.func @transform_13(%arg0: i32) -> (i32, i32) {
    %c0_i32 = arith.constant 0 : i32
    %c0_i32_0 = arith.constant 0 : i32
    %c0_i32_1 = arith.constant 0 : i32
    return %c0_i32, %c0_i32_0 : i32, i32
  }
  func.func @transform_14(%arg0: i32) -> (i32, i32) {
    %c0_i32 = arith.constant 0 : i32
    %c0_i32_0 = arith.constant 0 : i32
    %c0_i32_1 = arith.constant 0 : i32
    return %c0_i32, %c0_i32_0 : i32, i32
  }
  func.func @transform_15(%arg0: i32) -> (i32, i32) {
    %c0_i32 = arith.constant 0 : i32
    %c0_i32_0 = arith.constant 0 : i32
    %c0_i32_1 = arith.constant 0 : i32
    return %c0_i32, %c0_i32_0 : i32, i32
  }
  func.func @transform_16(%arg0: i32) -> (i32, i32) {
    %c0_i32 = arith.constant 0 : i32
    %c0_i32_0 = arith.constant 0 : i32
    %c0_i32_1 = arith.constant 0 : i32
    return %c0_i32, %c0_i32_0 : i32, i32
  }
  func.func @transform_17(%arg0: i32) -> (i32, i32) {
    %c0_i32 = arith.constant 0 : i32
    %c0_i32_0 = arith.constant 0 : i32
    %c0_i32_1 = arith.constant 0 : i32
    return %c0_i32, %c0_i32_0 : i32, i32
  }
  func.func @transform_18(%arg0: i32) -> (i32, i32) {
    %c0_i32 = arith.constant 0 : i32
    %c0_i32_0 = arith.constant 0 : i32
    %c0_i32_1 = arith.constant 0 : i32
    return %c0_i32, %c0_i32_0 : i32, i32
  }
  func.func @transform_19(%arg0: i32) -> (i32, i32) {
    %c0_i32 = arith.constant 0 : i32
    %c0_i32_0 = arith.constant 0 : i32
    %c0_i32_1 = arith.constant 0 : i32
    return %c0_i32, %c0_i32_0 : i32, i32
  }
  func.func @transform_20(%arg0: i32) -> (i32, i32) {
    %c0_i32 = arith.constant 0 : i32
    %c0_i32_0 = arith.constant 0 : i32
    %c0_i32_1 = arith.constant 0 : i32
    return %c0_i32, %c0_i32_0 : i32, i32
  }
  func.func @transform_21(%arg0: i32) -> (i32, i32, i32) {
    %c0_i32 = arith.constant 0 : i32
    %c0_i32_0 = arith.constant 0 : i32
    %c0_i32_1 = arith.constant 0 : i32
    %c0_i32_2 = arith.constant 0 : i32
    return %c0_i32, %c0_i32_0, %c0_i32_1 : i32, i32, i32
  }
  func.func @transform_22(%arg0: i32) -> (i32, i32, i32) {
    %c0_i32 = arith.constant 0 : i32
    %c0_i32_0 = arith.constant 0 : i32
    %c0_i32_1 = arith.constant 0 : i32
    %c0_i32_2 = arith.constant 0 : i32
    return %c0_i32, %c0_i32_0, %c0_i32_1 : i32, i32, i32
  }
  func.func @transform_23(%arg0: i32) -> (i32, i32, i32) {
    %c0_i32 = arith.constant 0 : i32
    %c0_i32_0 = arith.constant 0 : i32
    %c0_i32_1 = arith.constant 0 : i32
    %c0_i32_2 = arith.constant 0 : i32
    return %c0_i32, %c0_i32_0, %c0_i32_1 : i32, i32, i32
  }
  func.func @transform_24(%arg0: i32) -> (i32, i32, i32) {
    %c0_i32 = arith.constant 0 : i32
    %c0_i32_0 = arith.constant 0 : i32
    %c0_i32_1 = arith.constant 0 : i32
    %c0_i32_2 = arith.constant 0 : i32
    return %c0_i32, %c0_i32_0, %c0_i32_1 : i32, i32, i32
  }
  func.func @transform_25(%arg0: i32) -> (i32, i32, i32) {
    %c0_i32 = arith.constant 0 : i32
    %c0_i32_0 = arith.constant 0 : i32
    %c0_i32_1 = arith.constant 0 : i32
    %c0_i32_2 = arith.constant 0 : i32
    return %c0_i32, %c0_i32_0, %c0_i32_1 : i32, i32, i32
  }
  func.func @transform_26(%arg0: i32) -> (i32, i32, i32) {
    %c0_i32 = arith.constant 0 : i32
    %c0_i32_0 = arith.constant 0 : i32
    %c0_i32_1 = arith.constant 0 : i32
    %c0_i32_2 = arith.constant 0 : i32
    return %c0_i32, %c0_i32_0, %c0_i32_1 : i32, i32, i32
  }
  func.func @transform_27(%arg0: i32) -> (i32, i32, i32) {
    %c0_i32 = arith.constant 0 : i32
    %c0_i32_0 = arith.constant 0 : i32
    %c0_i32_1 = arith.constant 0 : i32
    %c0_i32_2 = arith.constant 0 : i32
    return %c0_i32, %c0_i32_0, %c0_i32_1 : i32, i32, i32
  }
  func.func @transform_28(%arg0: i32) -> (i32, i32) {
    %c0_i32 = arith.constant 0 : i32
    %c0_i32_0 = arith.constant 0 : i32
    %c0_i32_1 = arith.constant 0 : i32
    return %c0_i32, %c0_i32_0 : i32, i32
  }
  func.func @transform_29(%arg0: i32) -> (i32, i32) {
    %c0_i32 = arith.constant 0 : i32
    %c0_i32_0 = arith.constant 0 : i32
    %c0_i32_1 = arith.constant 0 : i32
    return %c0_i32, %c0_i32_0 : i32, i32
  }
  func.func @transform_30(%arg0: i32) -> (i32, i32) {
    %c0_i32 = arith.constant 0 : i32
    %c0_i32_0 = arith.constant 0 : i32
    %c0_i32_1 = arith.constant 0 : i32
    return %c0_i32, %c0_i32_0 : i32, i32
  }
  func.func @transform_31(%arg0: i32) -> (i32, i32, i32) {
    %c0_i32 = arith.constant 0 : i32
    %c0_i32_0 = arith.constant 0 : i32
    %c0_i32_1 = arith.constant 0 : i32
    %c0_i32_2 = arith.constant 0 : i32
    return %c0_i32, %c0_i32_0, %c0_i32_1 : i32, i32, i32
  }
  func.func @transform_32(%arg0: i32) -> (i32, i32, i32) {
    %c0_i32 = arith.constant 0 : i32
    %c0_i32_0 = arith.constant 0 : i32
    %c0_i32_1 = arith.constant 0 : i32
    %c0_i32_2 = arith.constant 0 : i32
    return %c0_i32, %c0_i32_0, %c0_i32_1 : i32, i32, i32
  }
  func.func @transform_33(%arg0: i32) -> (i32, i32, i32) {
    %c0_i32 = arith.constant 0 : i32
    %c0_i32_0 = arith.constant 0 : i32
    %c0_i32_1 = arith.constant 0 : i32
    %c0_i32_2 = arith.constant 0 : i32
    return %c0_i32, %c0_i32_0, %c0_i32_1 : i32, i32, i32
  }
  func.func @transform_34(%arg0: i32) -> (i32, i32, i32) {
    %c0_i32 = arith.constant 0 : i32
    %c0_i32_0 = arith.constant 0 : i32
    %c0_i32_1 = arith.constant 0 : i32
    %c0_i32_2 = arith.constant 0 : i32
    return %c0_i32, %c0_i32_0, %c0_i32_1 : i32, i32, i32
  }
  func.func @transform_35(%arg0: i32) -> (i32, i32, i32) {
    %c0_i32 = arith.constant 0 : i32
    %c0_i32_0 = arith.constant 0 : i32
    %c0_i32_1 = arith.constant 0 : i32
    %c0_i32_2 = arith.constant 0 : i32
    return %c0_i32, %c0_i32_0, %c0_i32_1 : i32, i32, i32
  }
  func.func @transform_36(%arg0: i32) -> (i32, i32, i32) {
    %c0_i32 = arith.constant 0 : i32
    %c0_i32_0 = arith.constant 0 : i32
    %c0_i32_1 = arith.constant 0 : i32
    %c0_i32_2 = arith.constant 0 : i32
    return %c0_i32, %c0_i32_0, %c0_i32_1 : i32, i32, i32
  }
  func.func @transform_37(%arg0: i32) -> (i32, i32, i32) {
    %c0_i32 = arith.constant 0 : i32
    %c0_i32_0 = arith.constant 0 : i32
    %c0_i32_1 = arith.constant 0 : i32
    %c0_i32_2 = arith.constant 0 : i32
    return %c0_i32, %c0_i32_0, %c0_i32_1 : i32, i32, i32
  }
  func.func @transform_38(%arg0: i32) -> (i32, i32) {
    %c0_i32 = arith.constant 0 : i32
    %c0_i32_0 = arith.constant 0 : i32
    %c0_i32_1 = arith.constant 0 : i32
    return %c0_i32, %c0_i32_0 : i32, i32
  }
  func.func @transform_39(%arg0: i32) -> (i32, i32) {
    %c0_i32 = arith.constant 0 : i32
    %c0_i32_0 = arith.constant 0 : i32
    %c0_i32_1 = arith.constant 0 : i32
    return %c0_i32, %c0_i32_0 : i32, i32
  }
  func.func @transform_40(%arg0: i32) -> (i32, i32) {
    %c0_i32 = arith.constant 0 : i32
    %c0_i32_0 = arith.constant 0 : i32
    %c0_i32_1 = arith.constant 0 : i32
    return %c0_i32, %c0_i32_0 : i32, i32
  }
  func.func @transform_41(%arg0: i32) -> (i32, i32) {
    %c0_i32 = arith.constant 0 : i32
    %c0_i32_0 = arith.constant 0 : i32
    %c0_i32_1 = arith.constant 0 : i32
    return %c0_i32, %c0_i32_0 : i32, i32
  }
  func.func @transform_42(%arg0: i32) -> (i32, i32) {
    %c0_i32 = arith.constant 0 : i32
    %c0_i32_0 = arith.constant 0 : i32
    %c0_i32_1 = arith.constant 0 : i32
    return %c0_i32, %c0_i32_0 : i32, i32
  }
  func.func @transform_43(%arg0: i32) -> (i32, i32) {
    %c0_i32 = arith.constant 0 : i32
    %c0_i32_0 = arith.constant 0 : i32
    %c0_i32_1 = arith.constant 0 : i32
    return %c0_i32, %c0_i32_0 : i32, i32
  }
  func.func @transform_44(%arg0: i32) -> (i32, i32) {
    %c0_i32 = arith.constant 0 : i32
    %c0_i32_0 = arith.constant 0 : i32
    %c0_i32_1 = arith.constant 0 : i32
    return %c0_i32, %c0_i32_0 : i32, i32
  }
  func.func @transform_45(%arg0: i32) -> (i32, i32) {
    %c0_i32 = arith.constant 0 : i32
    %c0_i32_0 = arith.constant 0 : i32
    %c0_i32_1 = arith.constant 0 : i32
    return %c0_i32, %c0_i32_0 : i32, i32
  }
  func.func @transform_46(%arg0: i32) -> (i32, i32) {
    %c0_i32 = arith.constant 0 : i32
    %c0_i32_0 = arith.constant 0 : i32
    %c0_i32_1 = arith.constant 0 : i32
    return %c0_i32, %c0_i32_0 : i32, i32
  }
  func.func @transform_47(%arg0: i32) -> (i32, i32) {
    %c0_i32 = arith.constant 0 : i32
    %c0_i32_0 = arith.constant 0 : i32
    %c0_i32_1 = arith.constant 0 : i32
    return %c0_i32, %c0_i32_0 : i32, i32
  }
  func.func @transform_48(%arg0: i32) -> (i32, i32) {
    %c0_i32 = arith.constant 0 : i32
    %c0_i32_0 = arith.constant 0 : i32
    %c0_i32_1 = arith.constant 0 : i32
    return %c0_i32, %c0_i32_0 : i32, i32
  }
  func.func @transform_49(%arg0: i32) -> (i32, i32, i32) {
    %c0_i32 = arith.constant 0 : i32
    %c0_i32_0 = arith.constant 0 : i32
    %c0_i32_1 = arith.constant 0 : i32
    return %arg0, %c0_i32, %c0_i32_0 : i32, i32, i32
  }
}

</mosaic_0001>

<llo_original>
// kernel: tpu_custom_call.1
$region0: #{tpu_custom_call.1}
  #allocation0 [shape = 'u32[]', space=smem, size = 0x4, offset = 0x4, fixed_abs, tag = 'smem constant byte address 0x4 - core index']
  #allocation1 [shape = 'u32[144,128]{1,0:T(1,128)}', space=vmem, size = 0x12000, scoped, tag = 'internal scratch']
  %s0 = inlined_call_operand.smem [shape: u32[50], index: -1, kind: input, shape index: {}]
  %s1 = sld [smem:[%s0]]
  %s2 = scalar_lea.smem %s0, 1
  %s3 = sld [smem:[%s2]]
  %s4 = scalar_lea.smem %s0, 2
  %s5 = sld [smem:[%s4]]
  %s6 = scalar_lea.smem %s0, 3
  %s7 = sld [smem:[%s6]]
  %s8 = scalar_lea.smem %s0, 4
  %s9 = sld [smem:[%s8]]
  %s10 = scalar_lea.smem %s0, 5
  %s11 = sld [smem:[%s10]]
  %s12 = scalar_lea.smem %s0, 6
  %s13 = sld [smem:[%s12]]
  %s14 = scalar_lea.smem %s0, 7
  %s15 = sld [smem:[%s14]]
  %s16 = scalar_lea.smem %s0, 8
  %s17 = sld [smem:[%s16]]
  %s18 = scalar_lea.smem %s0, 9
  %s19 = sld [smem:[%s18]]
  %s20 = scalar_lea.smem %s0, 10
  %s21 = sld [smem:[%s20]]
  %s22 = scalar_lea.smem %s0, 11
  %s23 = sld [smem:[%s22]]
  %s24 = scalar_lea.smem %s0, 12
  %s25 = sld [smem:[%s24]]
  %s26 = scalar_lea.smem %s0, 13
  %s27 = sld [smem:[%s26]]
  %s28 = scalar_lea.smem %s0, 14
  %s29 = sld [smem:[%s28]]
  %s30 = scalar_lea.smem %s0, 15
  %s31 = sld [smem:[%s30]]
  %s32 = scalar_lea.smem %s0, 16
  %s33 = sld [smem:[%s32]]
  %s34 = scalar_lea.smem %s0, 17
  %s35 = sld [smem:[%s34]]
  %s36 = scalar_lea.smem %s0, 18
  %s37 = sld [smem:[%s36]]
  %s38 = scalar_lea.smem %s0, 19
  %s39 = sld [smem:[%s38]]
  %s40 = scalar_lea.smem %s0, 20
  %s41 = sld [smem:[%s40]]
  %s42 = scalar_lea.smem %s0, 21
  %s43 = sld [smem:[%s42]]
  %s44 = scalar_lea.smem %s0, 22
  %s45 = sld [smem:[%s44]]
  %s46 = scalar_lea.smem %s0, 23
  %s47 = sld [smem:[%s46]]
  %s48 = scalar_lea.smem %s0, 24
  %s49 = sld [smem:[%s48]]
  %s50 = scalar_lea.smem %s0, 25
  %s51 = sld [smem:[%s50]]
  %s52 = scalar_lea.smem %s0, 26
  %s53 = sld [smem:[%s52]]
  %s54 = scalar_lea.smem %s0, 27
  %s55 = sld [smem:[%s54]]
  %s56 = scalar_lea.smem %s0, 28
  %s57 = sld [smem:[%s56]]
  %s58 = scalar_lea.smem %s0, 29
  %s59 = sld [smem:[%s58]]
  %s60 = scalar_lea.smem %s0, 30
  %s61 = sld [smem:[%s60]]
  %s62 = scalar_lea.smem %s0, 31
  %s63 = sld [smem:[%s62]]
  %s64 = scalar_lea.smem %s0, 32
  %s65 = sld [smem:[%s64]]
  %s66 = scalar_lea.smem %s0, 33
  %s67 = sld [smem:[%s66]]
  %s68 = scalar_lea.smem %s0, 34
  %s69 = sld [smem:[%s68]]
  %s70 = scalar_lea.smem %s0, 35
  %s71 = sld [smem:[%s70]]
  %s72 = scalar_lea.smem %s0, 36
  %s73 = sld [smem:[%s72]]
  %s74 = scalar_lea.smem %s0, 37
  %s75 = sld [smem:[%s74]]
  %s76 = scalar_lea.smem %s0, 38
  %s77 = sld [smem:[%s76]]
  %s78 = scalar_lea.smem %s0, 39
  %s79 = sld [smem:[%s78]]
  %s80 = scalar_lea.smem %s0, 40
  %s81 = sld [smem:[%s80]]
  %s82 = scalar_lea.smem %s0, 41
  %s83 = sld [smem:[%s82]]
  %s84 = scalar_lea.smem %s0, 42
  %s85 = sld [smem:[%s84]]
  %s86 = scalar_lea.smem %s0, 43
  %s87 = sld [smem:[%s86]]
  %s88 = scalar_lea.smem %s0, 44
  %s89 = sld [smem:[%s88]]
  %s90 = scalar_lea.smem %s0, 45
  %s91 = sld [smem:[%s90]]
  %s92 = scalar_lea.smem %s0, 46
  %s93 = sld [smem:[%s92]]
  %s94 = scalar_lea.smem %s0, 47
  %s95 = sld [smem:[%s94]]
  %s96 = scalar_lea.smem %s0, 48
  %s97 = sld [smem:[%s96]]
  %s98 = scalar_lea.smem %s0, 49
  %s99 = sld [smem:[%s98]]
  %s100 = sld [smem:[#allocation0]]
  $region229: #{tpu_custom_call.1} parent=0
    _
  %s102 = ssub.s32 1, %s100
  %s103 = scalar_select 0, %s102, %s100
  loop: start=0, step=1, limit=4
  $region2: #{tpu_custom_call.1} parent=0 // loop_pre_header
    _
  $region3: #{tpu_custom_call.1} parent=0 // loop_header
    %s105 = sphi 0, %s109
    %p106 = scmp.ge.s32.totalorder %s105, 4
    %s115 = sphi 0, %s117
    %s118 = sphi 0, %s115
    %s119 = sphi 0, %s118
    %s135 = sphi 0, %s119
    %s141 = sphi 0, %s143
    %s144 = sphi 0, %s141
    %s145 = sphi 0, %s144
    %s161 = sphi 0, %s145
    %s165 = sphi 0, %s165
    %s167 = sphi 0, %s165
    %s168 = sphi 0, %s167
    %s182 = sphi 0, %s168
    %s186 = sphi 0, %s186
    %s188 = sphi 0, %s186
    %s189 = sphi 0, %s188
    %s203 = sphi 0, %s189
    %s207 = sphi 0, %s207
    %s209 = sphi 0, %s207
    %s210 = sphi 0, %s209
    %s224 = sphi 0, %s210
    %s228 = sphi 0, %s228
    %s230 = sphi 0, %s228
    %s231 = sphi 0, %s230
    %s245 = sphi 0, %s231
    %s249 = sphi 0, %s249
    %s251 = sphi 0, %s249
    %s252 = sphi 0, %s251
    %s266 = sphi 0, %s252
    %s270 = sphi 0, %s270
    %s272 = sphi 0, %s270
    %s273 = sphi 0, %s272
    %s287 = sphi 0, %s273
    %s291 = sphi 0, %s291
    %s293 = sphi 0, %s291
    %s294 = sphi 0, %s293
    %s308 = sphi 0, %s294
    %s312 = sphi 0, %s312
    %s314 = sphi 0, %s312
    %s315 = sphi 0, %s314
    %s329 = sphi 0, %s315
    %s333 = sphi 0, %s333
    %s335 = sphi 0, %s333
    %s336 = sphi 0, %s335
    %s350 = sphi 0, %s336
    %s354 = sphi 0, %s354
    %s356 = sphi 0, %s354
    %s357 = sphi 0, %s356
    %s371 = sphi 0, %s357
    %s375 = sphi 0, %s375
    %s377 = sphi 0, %s375
    %s378 = sphi 0, %s377
    %s392 = sphi 0, %s378
    %s396 = sphi 0, %s396
    %s398 = sphi 0, %s396
    %s399 = sphi 0, %s398
    %s413 = sphi 0, %s399
    %s417 = sphi 0, %s417
    %s419 = sphi 0, %s417
    %s420 = sphi 0, %s419
    %s434 = sphi 0, %s420
    %s438 = sphi 0, %s438
    %s440 = sphi 0, %s438
    %s441 = sphi 0, %s440
    %s455 = sphi 0, %s441
    %s459 = sphi 0, %s459
    %s461 = sphi 0, %s459
    %s462 = sphi 0, %s461
    %s476 = sphi 0, %s462
    %s480 = sphi 0, %s480
    %s482 = sphi 0, %s480
    %s483 = sphi 0, %s482
    %s497 = sphi 0, %s483
    %s501 = sphi 0, %s501
    %s503 = sphi 0, %s501
    %s504 = sphi 0, %s503
    %s518 = sphi 0, %s504
    %s522 = sphi 0, %s522
    %s524 = sphi 0, %s522
    %s525 = sphi 0, %s524
    %s539 = sphi 0, %s525
    %s543 = sphi 0, %s543
    %s545 = sphi 0, %s543
    %s546 = sphi 0, %s545
    %s560 = sphi 0, %s546
    %s564 = sphi 0, %s564
    %s566 = sphi 0, %s564
    %s567 = sphi 0, %s566
    %s581 = sphi 0, %s567
    %s585 = sphi 0, %s585
    %s587 = sphi 0, %s585
    %s588 = sphi 0, %s587
    %s602 = sphi 0, %s588
    %s606 = sphi 0, %s606
    %s608 = sphi 0, %s606
    %s609 = sphi 0, %s608
    %s623 = sphi 0, %s609
    %s627 = sphi 0, %s627
    %s629 = sphi 0, %s627
    %s630 = sphi 0, %s629
    %s644 = sphi 0, %s630
    %s648 = sphi 0, %s648
    %s650 = sphi 0, %s648
    %s651 = sphi 0, %s650
    %s665 = sphi 0, %s651
    %s669 = sphi 0, %s669
    %s671 = sphi 0, %s669
    %s672 = sphi 0, %s671
    %s686 = sphi 0, %s672
    %s690 = sphi 0, %s690
    %s692 = sphi 0, %s690
    %s693 = sphi 0, %s692
    %s707 = sphi 0, %s693
    %s711 = sphi 0, %s711
    %s713 = sphi 0, %s711
    %s714 = sphi 0, %s713
    %s728 = sphi 0, %s714
    %s732 = sphi 0, %s732
    %s734 = sphi 0, %s732
    %s735 = sphi 0, %s734
    %s749 = sphi 0, %s735
    %s753 = sphi 0, %s753
    %s755 = sphi 0, %s753
    %s756 = sphi 0, %s755
    %s770 = sphi 0, %s756
    %s774 = sphi 0, %s774
    %s776 = sphi 0, %s774
    %s777 = sphi 0, %s776
    %s791 = sphi 0, %s777
    %s795 = sphi 0, %s795
    %s797 = sphi 0, %s795
    %s798 = sphi 0, %s797
    %s812 = sphi 0, %s798
    %s816 = sphi 0, %s816
    %s818 = sphi 0, %s816
    %s819 = sphi 0, %s818
    %s833 = sphi 0, %s819
    %s837 = sphi 0, %s837
    %s839 = sphi 0, %s837
    %s840 = sphi 0, %s839
    %s854 = sphi 0, %s840
    %s858 = sphi 0, %s858
    %s860 = sphi 0, %s858
    %s861 = sphi 0, %s860
    %s875 = sphi 0, %s861
    %s879 = sphi 0, %s879
    %s881 = sphi 0, %s879
    %s882 = sphi 0, %s881
    %s896 = sphi 0, %s882
    %s900 = sphi 0, %s900
    %s902 = sphi 0, %s900
    %s903 = sphi 0, %s902
    %s917 = sphi 0, %s903
    %s921 = sphi 0, %s921
    %s923 = sphi 0, %s921
    %s924 = sphi 0, %s923
    %s938 = sphi 0, %s924
    %s942 = sphi 0, %s942
    %s944 = sphi 0, %s942
    %s945 = sphi 0, %s944
    %s959 = sphi 0, %s945
    %s963 = sphi 0, %s963
    %s965 = sphi 0, %s963
    %s966 = sphi 0, %s965
    %s980 = sphi 0, %s966
    %s984 = sphi 0, %s984
    %s986 = sphi 0, %s984
    %s987 = sphi 0, %s986
    %s1001 = sphi 0, %s987
    %s1005 = sphi 0, %s1005
    %s1007 = sphi 0, %s1005
    %s1008 = sphi 0, %s1007
    %s1022 = sphi 0, %s1008
    %s1026 = sphi 0, %s1026
    %s1028 = sphi 0, %s1026
    %s1029 = sphi 0, %s1028
    %s1043 = sphi 0, %s1029
    %s1047 = sphi 0, %s1047
    %s1049 = sphi 0, %s1047
    %s1050 = sphi 0, %s1049
    %s1064 = sphi 0, %s1050
    %s1068 = sphi 0, %s1068
    %s1070 = sphi 0, %s1068
    %s1071 = sphi 0, %s1070
    %s1085 = sphi 0, %s1071
    %s1089 = sphi 0, %s1089
    %s1091 = sphi 0, %s1089
    %s1092 = sphi 0, %s1091
    %s1106 = sphi 0, %s1092
    %s1110 = sphi 0, %s1110
    %s1112 = sphi 0, %s1110
    %s1113 = sphi 0, %s1112
    %s1127 = sphi 0, %s1113
    %s1131 = sphi 0, %s1131
    %s1133 = sphi 0, %s1131
    %s1134 = sphi 0, %s1133
    %s1148 = sphi 0, %s1134
    %s1154 = sphi 0, %s1156
    %s1157 = sphi 0, %s1154
    %s1158 = sphi 0, %s1157
    %s1174 = sphi 0, %s1158
  $region4: #{tpu_custom_call.1} parent=0 // loop_header_branch
    %108 = sbr.rel (%p106) target = $region8
  $region5: #{tpu_custom_call.1} parent=0 // loop_body
    %s110 = ssub.s32 %s105, 1
    %s111 = ssub.s32 %s105, 2
    %s112 = sadd.s32 %s105, 1
    %s113 = ssub.s32 %s105, %s112
    %p114 = scmp.eq.s32.totalorder %s113, 0
    %s116 = sadd.s32 %s115, 1
    %s117 = scalar_select %p114, %s115, %s116
    %p120 = pneg %p114
    %p121 = scmp.eq.s32.totalorder %s105, 1
    %p122 = por %p120, %p121
    %p123 = scmp.ne.s32.totalorder %s115, %s118
    %p124 = scmp.eq.s32.totalorder %s105, 0
    %p125 = por %p123, %p124
    %p126 = scmp.ne.s32.totalorder %s115, %s118
    %p127 = scmp.eq.s32.totalorder %s110, 1
    %p128 = por %p126, %p127
    %p129 = scmp.ne.s32.totalorder %s118, %s119
    %p130 = scmp.eq.s32.totalorder %s110, 0
    %p131 = por %p129, %p130
    %p132 = scmp.ne.s32.totalorder %s118, %s119
    %p133 = scmp.eq.s32.totalorder %s111, 1
    %p134 = por %p132, %p133
    %p136 = scmp.ne.s32.totalorder %s119, %s135
    %p137 = scmp.eq.s32.totalorder %s111, 0
    %p138 = por %p136, %p137
    %s139 = ssub.s32 %s105, %s112
    %p140 = scmp.eq.s32.totalorder %s139, 0
    %s142 = sadd.s32 %s141, 1
    %s143 = scalar_select %p140, %s141, %s142
    %p146 = pneg %p140
    %p147 = scmp.eq.s32.totalorder %s105, 1
    %p148 = por %p146, %p147
    %p149 = scmp.ne.s32.totalorder %s141, %s144
    %p150 = scmp.eq.s32.totalorder %s105, 0
    %p151 = por %p149, %p150
    %p152 = scmp.ne.s32.totalorder %s141, %s144
    %p153 = scmp.eq.s32.totalorder %s110, 1
    %p154 = por %p152, %p153
    %p155 = scmp.ne.s32.totalorder %s144, %s145
    %p156 = scmp.eq.s32.totalorder %s110, 0
    %p157 = por %p155, %p156
    %p158 = scmp.ne.s32.totalorder %s144, %s145
    %p159 = scmp.eq.s32.totalorder %s111, 1
    %p160 = por %p158, %p159
    %p162 = scmp.ne.s32.totalorder %s145, %s161
    %p163 = scmp.eq.s32.totalorder %s111, 0
    %p164 = por %p162, %p163
    %s166 = sadd.s32 %s165, 1
    %p169 = scmp.eq.s32.totalorder %s105, 1
    %p170 = scmp.ne.s32.totalorder %s165, %s167
    %p171 = scmp.eq.s32.totalorder %s105, 0
    %p172 = por %p170, %p171
    %p173 = scmp.ne.s32.totalorder %s165, %s167
    %p174 = scmp.eq.s32.totalorder %s110, 1
    %p175 = por %p173, %p174
    %p176 = scmp.ne.s32.totalorder %s167, %s168
    %p177 = scmp.eq.s32.totalorder %s110, 0
    %p178 = por %p176, %p177
    %p179 = scmp.ne.s32.totalorder %s167, %s168
    %p180 = scmp.eq.s32.totalorder %s111, 1
    %p181 = por %p179, %p180
    %p183 = scmp.ne.s32.totalorder %s168, %s182
    %p184 = scmp.eq.s32.totalorder %s111, 0
    %p185 = por %p183, %p184
    %s187 = sadd.s32 %s186, 1
    %p190 = scmp.eq.s32.totalorder %s105, 1
    %p191 = scmp.ne.s32.totalorder %s186, %s188
    %p192 = scmp.eq.s32.totalorder %s105, 0
    %p193 = por %p191, %p192
    %p194 = scmp.ne.s32.totalorder %s186, %s188
    %p195 = scmp.eq.s32.totalorder %s110, 1
    %p196 = por %p194, %p195
    %p197 = scmp.ne.s32.totalorder %s188, %s189
    %p198 = scmp.eq.s32.totalorder %s110, 0
    %p199 = por %p197, %p198
    %p200 = scmp.ne.s32.totalorder %s188, %s189
    %p201 = scmp.eq.s32.totalorder %s111, 1
    %p202 = por %p200, %p201
    %p204 = scmp.ne.s32.totalorder %s189, %s203
    %p205 = scmp.eq.s32.totalorder %s111, 0
    %p206 = por %p204, %p205
    %s208 = sadd.s32 %s207, 1
    %p211 = scmp.eq.s32.totalorder %s105, 1
    %p212 = scmp.ne.s32.totalorder %s207, %s209
    %p213 = scmp.eq.s32.totalorder %s105, 0
    %p214 = por %p212, %p213
    %p215 = scmp.ne.s32.totalorder %s207, %s209
    %p216 = scmp.eq.s32.totalorder %s110, 1
    %p217 = por %p215, %p216
    %p218 = scmp.ne.s32.totalorder %s209, %s210
    %p219 = scmp.eq.s32.totalorder %s110, 0
    %p220 = por %p218, %p219
    %p221 = scmp.ne.s32.totalorder %s209, %s210
    %p222 = scmp.eq.s32.totalorder %s111, 1
    %p223 = por %p221, %p222
    %p225 = scmp.ne.s32.totalorder %s210, %s224
    %p226 = scmp.eq.s32.totalorder %s111, 0
    %p227 = por %p225, %p226
    %s229 = sadd.s32 %s228, 1
    %p232 = scmp.eq.s32.totalorder %s105, 1
    %p233 = scmp.ne.s32.totalorder %s228, %s230
    %p234 = scmp.eq.s32.totalorder %s105, 0
    %p235 = por %p233, %p234
    %p236 = scmp.ne.s32.totalorder %s228, %s230
    %p237 = scmp.eq.s32.totalorder %s110, 1
    %p238 = por %p236, %p237
    %p239 = scmp.ne.s32.totalorder %s230, %s231
    %p240 = scmp.eq.s32.totalorder %s110, 0
    %p241 = por %p239, %p240
    %p242 = scmp.ne.s32.totalorder %s230, %s231
    %p243 = scmp.eq.s32.totalorder %s111, 1
    %p244 = por %p242, %p243
    %p246 = scmp.ne.s32.totalorder %s231, %s245
    %p247 = scmp.eq.s32.totalorder %s111, 0
    %p248 = por %p246, %p247
    %s250 = sadd.s32 %s249, 1
    %p253 = scmp.eq.s32.totalorder %s105, 1
    %p254 = scmp.ne.s32.totalorder %s249, %s251
    %p255 = scmp.eq.s32.totalorder %s105, 0
    %p256 = por %p254, %p255
    %p257 = scmp.ne.s32.totalorder %s249, %s251
    %p258 = scmp.eq.s32.totalorder %s110, 1
    %p259 = por %p257, %p258
    %p260 = scmp.ne.s32.totalorder %s251, %s252
    %p261 = scmp.eq.s32.totalorder %s110, 0
    %p262 = por %p260, %p261
    %p263 = scmp.ne.s32.totalorder %s251, %s252
    %p264 = scmp.eq.s32.totalorder %s111, 1
    %p265 = por %p263, %p264
    %p267 = scmp.ne.s32.totalorder %s252, %s266
    %p268 = scmp.eq.s32.totalorder %s111, 0
    %p269 = por %p267, %p268
    %s271 = sadd.s32 %s270, 1
    %p274 = scmp.eq.s32.totalorder %s105, 1
    %p275 = scmp.ne.s32.totalorder %s270, %s272
    %p276 = scmp.eq.s32.totalorder %s105, 0
    %p277 = por %p275, %p276
    %p278 = scmp.ne.s32.totalorder %s270, %s272
    %p279 = scmp.eq.s32.totalorder %s110, 1
    %p280 = por %p278, %p279
    %p281 = scmp.ne.s32.totalorder %s272, %s273
    %p282 = scmp.eq.s32.totalorder %s110, 0
    %p283 = por %p281, %p282
    %p284 = scmp.ne.s32.totalorder %s272, %s273
    %p285 = scmp.eq.s32.totalorder %s111, 1
    %p286 = por %p284, %p285
    %p288 = scmp.ne.s32.totalorder %s273, %s287
    %p289 = scmp.eq.s32.totalorder %s111, 0
    %p290 = por %p288, %p289
    %s292 = sadd.s32 %s291, 1
    %p295 = scmp.eq.s32.totalorder %s105, 1
    %p296 = scmp.ne.s32.totalorder %s291, %s293
    %p297 = scmp.eq.s32.totalorder %s105, 0
    %p298 = por %p296, %p297
    %p299 = scmp.ne.s32.totalorder %s291, %s293
    %p300 = scmp.eq.s32.totalorder %s110, 1
    %p301 = por %p299, %p300
    %p302 = scmp.ne.s32.totalorder %s293, %s294
    %p303 = scmp.eq.s32.totalorder %s110, 0
    %p304 = por %p302, %p303
    %p305 = scmp.ne.s32.totalorder %s293, %s294
    %p306 = scmp.eq.s32.totalorder %s111, 1
    %p307 = por %p305, %p306
    %p309 = scmp.ne.s32.totalorder %s294, %s308
    %p310 = scmp.eq.s32.totalorder %s111, 0
    %p311 = por %p309, %p310
    %s313 = sadd.s32 %s312, 1
    %p316 = scmp.eq.s32.totalorder %s105, 1
    %p317 = scmp.ne.s32.totalorder %s312, %s314
    %p318 = scmp.eq.s32.totalorder %s105, 0
    %p319 = por %p317, %p318
    %p320 = scmp.ne.s32.totalorder %s312, %s314
    %p321 = scmp.eq.s32.totalorder %s110, 1
    %p322 = por %p320, %p321
    %p323 = scmp.ne.s32.totalorder %s314, %s315
    %p324 = scmp.eq.s32.totalorder %s110, 0
    %p325 = por %p323, %p324
    %p326 = scmp.ne.s32.totalorder %s314, %s315
    %p327 = scmp.eq.s32.totalorder %s111, 1
    %p328 = por %p326, %p327
    %p330 = scmp.ne.s32.totalorder %s315, %s329
    %p331 = scmp.eq.s32.totalorder %s111, 0
    %p332 = por %p330, %p331
    %s334 = sadd.s32 %s333, 1
    %p337 = scmp.eq.s32.totalorder %s105, 1
    %p338 = scmp.ne.s32.totalorder %s333, %s335
    %p339 = scmp.eq.s32.totalorder %s105, 0
    %p340 = por %p338, %p339
    %p341 = scmp.ne.s32.totalorder %s333, %s335
    %p342 = scmp.eq.s32.totalorder %s110, 1
    %p343 = por %p341, %p342
    %p344 = scmp.ne.s32.totalorder %s335, %s336
    %p345 = scmp.eq.s32.totalorder %s110, 0
    %p346 = por %p344, %p345
    %p347 = scmp.ne.s32.totalorder %s335, %s336
    %p348 = scmp.eq.s32.totalorder %s111, 1
    %p349 = por %p347, %p348
    %p351 = scmp.ne.s32.totalorder %s336, %s350
    %p352 = scmp.eq.s32.totalorder %s111, 0
    %p353 = por %p351, %p352
    %s355 = sadd.s32 %s354, 1
    %p358 = scmp.eq.s32.totalorder %s105, 1
    %p359 = scmp.ne.s32.totalorder %s354, %s356
    %p360 = scmp.eq.s32.totalorder %s105, 0
    %p361 = por %p359, %p360
    %p362 = scmp.ne.s32.totalorder %s354, %s356
    %p363 = scmp.eq.s32.totalorder %s110, 1
    %p364 = por %p362, %p363
    %p365 = scmp.ne.s32.totalorder %s356, %s357
    %p366 = scmp.eq.s32.totalorder %s110, 0
    %p367 = por %p365, %p366
    %p368 = scmp.ne.s32.totalorder %s356, %s357
    %p369 = scmp.eq.s32.totalorder %s111, 1
    %p370 = por %p368, %p369
    %p372 = scmp.ne.s32.totalorder %s357, %s371
    %p373 = scmp.eq.s32.totalorder %s111, 0
    %p374 = por %p372, %p373
    %s376 = sadd.s32 %s375, 1
    %p379 = scmp.eq.s32.totalorder %s105, 1
    %p380 = scmp.ne.s32.totalorder %s375, %s377
    %p381 = scmp.eq.s32.totalorder %s105, 0
    %p382 = por %p380, %p381
    %p383 = scmp.ne.s32.totalorder %s375, %s377
    %p384 = scmp.eq.s32.totalorder %s110, 1
    %p385 = por %p383, %p384
    %p386 = scmp.ne.s32.totalorder %s377, %s378
    %p387 = scmp.eq.s32.totalorder %s110, 0
    %p388 = por %p386, %p387
    %p389 = scmp.ne.s32.totalorder %s377, %s378
    %p390 = scmp.eq.s32.totalorder %s111, 1
    %p391 = por %p389, %p390
    %p393 = scmp.ne.s32.totalorder %s378, %s392
    %p394 = scmp.eq.s32.totalorder %s111, 0
    %p395 = por %p393, %p394
    %s397 = sadd.s32 %s396, 1
    %p400 = scmp.eq.s32.totalorder %s105, 1
    %p401 = scmp.ne.s32.totalorder %s396, %s398
    %p402 = scmp.eq.s32.totalorder %s105, 0
    %p403 = por %p401, %p402
    %p404 = scmp.ne.s32.totalorder %s396, %s398
    %p405 = scmp.eq.s32.totalorder %s110, 1
    %p406 = por %p404, %p405
    %p407 = scmp.ne.s32.totalorder %s398, %s399
    %p408 = scmp.eq.s32.totalorder %s110, 0
    %p409 = por %p407, %p408
    %p410 = scmp.ne.s32.totalorder %s398, %s399
    %p411 = scmp.eq.s32.totalorder %s111, 1
    %p412 = por %p410, %p411
    %p414 = scmp.ne.s32.totalorder %s399, %s413
    %p415 = scmp.eq.s32.totalorder %s111, 0
    %p416 = por %p414, %p415
    %s418 = sadd.s32 %s417, 1
    %p421 = scmp.eq.s32.totalorder %s105, 1
    %p422 = scmp.ne.s32.totalorder %s417, %s419
    %p423 = scmp.eq.s32.totalorder %s105, 0
    %p424 = por %p422, %p423
    %p425 = scmp.ne.s32.totalorder %s417, %s419
    %p426 = scmp.eq.s32.totalorder %s110, 1
    %p427 = por %p425, %p426
    %p428 = scmp.ne.s32.totalorder %s419, %s420
    %p429 = scmp.eq.s32.totalorder %s110, 0
    %p430 = por %p428, %p429
    %p431 = scmp.ne.s32.totalorder %s419, %s420
    %p432 = scmp.eq.s32.totalorder %s111, 1
    %p433 = por %p431, %p432
    %p435 = scmp.ne.s32.totalorder %s420, %s434
    %p436 = scmp.eq.s32.totalorder %s111, 0
    %p437 = por %p435, %p436
    %s439 = sadd.s32 %s438, 1
    %p442 = scmp.eq.s32.totalorder %s105, 1
    %p443 = scmp.ne.s32.totalorder %s438, %s440
    %p444 = scmp.eq.s32.totalorder %s105, 0
    %p445 = por %p443, %p444
    %p446 = scmp.ne.s32.totalorder %s438, %s440
    %p447 = scmp.eq.s32.totalorder %s110, 1
    %p448 = por %p446, %p447
    %p449 = scmp.ne.s32.totalorder %s440, %s441
    %p450 = scmp.eq.s32.totalorder %s110, 0
    %p451 = por %p449, %p450
    %p452 = scmp.ne.s32.totalorder %s440, %s441
    %p453 = scmp.eq.s32.totalorder %s111, 1
    %p454 = por %p452, %p453
    %p456 = scmp.ne.s32.totalorder %s441, %s455
    %p457 = scmp.eq.s32.totalorder %s111, 0
    %p458 = por %p456, %p457
    %s460 = sadd.s32 %s459, 1
    %p463 = scmp.eq.s32.totalorder %s105, 1
    %p464 = scmp.ne.s32.totalorder %s459, %s461
    %p465 = scmp.eq.s32.totalorder %s105, 0
    %p466 = por %p464, %p465
    %p467 = scmp.ne.s32.totalorder %s459, %s461
    %p468 = scmp.eq.s32.totalorder %s110, 1
    %p469 = por %p467, %p468
    %p470 = scmp.ne.s32.totalorder %s461, %s462
    %p471 = scmp.eq.s32.totalorder %s110, 0
    %p472 = por %p470, %p471
    %p473 = scmp.ne.s32.totalorder %s461, %s462
    %p474 = scmp.eq.s32.totalorder %s111, 1
    %p475 = por %p473, %p474
    %p477 = scmp.ne.s32.totalorder %s462, %s476
    %p478 = scmp.eq.s32.totalorder %s111, 0
    %p479 = por %p477, %p478
    %s481 = sadd.s32 %s480, 1
    %p484 = scmp.eq.s32.totalorder %s105, 1
    %p485 = scmp.ne.s32.totalorder %s480, %s482
    %p486 = scmp.eq.s32.totalorder %s105, 0
    %p487 = por %p485, %p486
    %p488 = scmp.ne.s32.totalorder %s480, %s482
    %p489 = scmp.eq.s32.totalorder %s110, 1
    %p490 = por %p488, %p489
    %p491 = scmp.ne.s32.totalorder %s482, %s483
    %p492 = scmp.eq.s32.totalorder %s110, 0
    %p493 = por %p491, %p492
    %p494 = scmp.ne.s32.totalorder %s482, %s483
    %p495 = scmp.eq.s32.totalorder %s111, 1
    %p496 = por %p494, %p495
    %p498 = scmp.ne.s32.totalorder %s483, %s497
    %p499 = scmp.eq.s32.totalorder %s111, 0
    %p500 = por %p498, %p499
    %s502 = sadd.s32 %s501, 1
    %p505 = scmp.eq.s32.totalorder %s105, 1
    %p506 = scmp.ne.s32.totalorder %s501, %s503
    %p507 = scmp.eq.s32.totalorder %s105, 0
    %p508 = por %p506, %p507
    %p509 = scmp.ne.s32.totalorder %s501, %s503
    %p510 = scmp.eq.s32.totalorder %s110, 1
    %p511 = por %p509, %p510
    %p512 = scmp.ne.s32.totalorder %s503, %s504
    %p513 = scmp.eq.s32.totalorder %s110, 0
    %p514 = por %p512, %p513
    %p515 = scmp.ne.s32.totalorder %s503, %s504
    %p516 = scmp.eq.s32.totalorder %s111, 1
    %p517 = por %p515, %p516
    %p519 = scmp.ne.s32.totalorder %s504, %s518
    %p520 = scmp.eq.s32.totalorder %s111, 0
    %p521 = por %p519, %p520
    %s523 = sadd.s32 %s522, 1
    %p526 = scmp.eq.s32.totalorder %s105, 1
    %p527 = scmp.ne.s32.totalorder %s522, %s524
    %p528 = scmp.eq.s32.totalorder %s105, 0
    %p529 = por %p527, %p528
    %p530 = scmp.ne.s32.totalorder %s522, %s524
    %p531 = scmp.eq.s32.totalorder %s110, 1
    %p532 = por %p530, %p531
    %p533 = scmp.ne.s32.totalorder %s524, %s525
    %p534 = scmp.eq.s32.totalorder %s110, 0
    %p535 = por %p533, %p534
    %p536 = scmp.ne.s32.totalorder %s524, %s525
    %p537 = scmp.eq.s32.totalorder %s111, 1
    %p538 = por %p536, %p537
    %p540 = scmp.ne.s32.totalorder %s525, %s539
    %p541 = scmp.eq.s32.totalorder %s111, 0
    %p542 = por %p540, %p541
    %s544 = sadd.s32 %s543, 1
    %p547 = scmp.eq.s32.totalorder %s105, 1
    %p548 = scmp.ne.s32.totalorder %s543, %s545
    %p549 = scmp.eq.s32.totalorder %s105, 0
    %p550 = por %p548, %p549
    %p551 = scmp.ne.s32.totalorder %s543, %s545
    %p552 = scmp.eq.s32.totalorder %s110, 1
    %p553 = por %p551, %p552
    %p554 = scmp.ne.s32.totalorder %s545, %s546
    %p555 = scmp.eq.s32.totalorder %s110, 0
    %p556 = por %p554, %p555
    %p557 = scmp.ne.s32.totalorder %s545, %s546
    %p558 = scmp.eq.s32.totalorder %s111, 1
    %p559 = por %p557, %p558
    %p561 = scmp.ne.s32.totalorder %s546, %s560
    %p562 = scmp.eq.s32.totalorder %s111, 0
    %p563 = por %p561, %p562
    %s565 = sadd.s32 %s564, 1
    %p568 = scmp.eq.s32.totalorder %s105, 1
    %p569 = scmp.ne.s32.totalorder %s564, %s566
    %p570 = scmp.eq.s32.totalorder %s105, 0
    %p571 = por %p569, %p570
    %p572 = scmp.ne.s32.totalorder %s564, %s566
    %p573 = scmp.eq.s32.totalorder %s110, 1
    %p574 = por %p572, %p573
    %p575 = scmp.ne.s32.totalorder %s566, %s567
    %p576 = scmp.eq.s32.totalorder %s110, 0
    %p577 = por %p575, %p576
    %p578 = scmp.ne.s32.totalorder %s566, %s567
    %p579 = scmp.eq.s32.totalorder %s111, 1
    %p580 = por %p578, %p579
    %p582 = scmp.ne.s32.totalorder %s567, %s581
    %p583 = scmp.eq.s32.totalorder %s111, 0
    %p584 = por %p582, %p583
    %s586 = sadd.s32 %s585, 1
    %p589 = scmp.eq.s32.totalorder %s105, 1
    %p590 = scmp.ne.s32.totalorder %s585, %s587
    %p591 = scmp.eq.s32.totalorder %s105, 0
    %p592 = por %p590, %p591
    %p593 = scmp.ne.s32.totalorder %s585, %s587
    %p594 = scmp.eq.s32.totalorder %s110, 1
    %p595 = por %p593, %p594
    %p596 = scmp.ne.s32.totalorder %s587, %s588
    %p597 = scmp.eq.s32.totalorder %s110, 0
    %p598 = por %p596, %p597
    %p599 = scmp.ne.s32.totalorder %s587, %s588
    %p600 = scmp.eq.s32.totalorder %s111, 1
    %p601 = por %p599, %p600
    %p603 = scmp.ne.s32.totalorder %s588, %s602
    %p604 = scmp.eq.s32.totalorder %s111, 0
    %p605 = por %p603, %p604
    %s607 = sadd.s32 %s606, 1
    %p610 = scmp.eq.s32.totalorder %s105, 1
    %p611 = scmp.ne.s32.totalorder %s606, %s608
    %p612 = scmp.eq.s32.totalorder %s105, 0
    %p613 = por %p611, %p612
    %p614 = scmp.ne.s32.totalorder %s606, %s608
    %p615 = scmp.eq.s32.totalorder %s110, 1
    %p616 = por %p614, %p615
    %p617 = scmp.ne.s32.totalorder %s608, %s609
    %p618 = scmp.eq.s32.totalorder %s110, 0
    %p619 = por %p617, %p618
    %p620 = scmp.ne.s32.totalorder %s608, %s609
    %p621 = scmp.eq.s32.totalorder %s111, 1
    %p622 = por %p620, %p621
    %p624 = scmp.ne.s32.totalorder %s609, %s623
    %p625 = scmp.eq.s32.totalorder %s111, 0
    %p626 = por %p624, %p625
    %s628 = sadd.s32 %s627, 1
    %p631 = scmp.eq.s32.totalorder %s105, 1
    %p632 = scmp.ne.s32.totalorder %s627, %s629
    %p633 = scmp.eq.s32.totalorder %s105, 0
    %p634 = por %p632, %p633
    %p635 = scmp.ne.s32.totalorder %s627, %s629
    %p636 = scmp.eq.s32.totalorder %s110, 1
    %p637 = por %p635, %p636
    %p638 = scmp.ne.s32.totalorder %s629, %s630
    %p639 = scmp.eq.s32.totalorder %s110, 0
    %p640 = por %p638, %p639
    %p641 = scmp.ne.s32.totalorder %s629, %s630
    %p642 = scmp.eq.s32.totalorder %s111, 1
    %p643 = por %p641, %p642
    %p645 = scmp.ne.s32.totalorder %s630, %s644
    %p646 = scmp.eq.s32.totalorder %s111, 0
    %p647 = por %p645, %p646
    %s649 = sadd.s32 %s648, 1
    %p652 = scmp.eq.s32.totalorder %s105, 1
    %p653 = scmp.ne.s32.totalorder %s648, %s650
    %p654 = scmp.eq.s32.totalorder %s105, 0
    %p655 = por %p653, %p654
    %p656 = scmp.ne.s32.totalorder %s648, %s650
    %p657 = scmp.eq.s32.totalorder %s110, 1
    %p658 = por %p656, %p657
    %p659 = scmp.ne.s32.totalorder %s650, %s651
    %p660 = scmp.eq.s32.totalorder %s110, 0
    %p661 = por %p659, %p660
    %p662 = scmp.ne.s32.totalorder %s650, %s651
    %p663 = scmp.eq.s32.totalorder %s111, 1
    %p664 = por %p662, %p663
    %p666 = scmp.ne.s32.totalorder %s651, %s665
    %p667 = scmp.eq.s32.totalorder %s111, 0
    %p668 = por %p666, %p667
    %s670 = sadd.s32 %s669, 1
    %p673 = scmp.eq.s32.totalorder %s105, 1
    %p674 = scmp.ne.s32.totalorder %s669, %s671
    %p675 = scmp.eq.s32.totalorder %s105, 0
    %p676 = por %p674, %p675
    %p677 = scmp.ne.s32.totalorder %s669, %s671
    %p678 = scmp.eq.s32.totalorder %s110, 1
    %p679 = por %p677, %p678
    %p680 = scmp.ne.s32.totalorder %s671, %s672
    %p681 = scmp.eq.s32.totalorder %s110, 0
    %p682 = por %p680, %p681
    %p683 = scmp.ne.s32.totalorder %s671, %s672
    %p684 = scmp.eq.s32.totalorder %s111, 1
    %p685 = por %p683, %p684
    %p687 = scmp.ne.s32.totalorder %s672, %s686
    %p688 = scmp.eq.s32.totalorder %s111, 0
    %p689 = por %p687, %p688
    %s691 = sadd.s32 %s690, 1
    %p694 = scmp.eq.s32.totalorder %s105, 1
    %p695 = scmp.ne.s32.totalorder %s690, %s692
    %p696 = scmp.eq.s32.totalorder %s105, 0
    %p697 = por %p695, %p696
    %p698 = scmp.ne.s32.totalorder %s690, %s692
    %p699 = scmp.eq.s32.totalorder %s110, 1
    %p700 = por %p698, %p699
    %p701 = scmp.ne.s32.totalorder %s692, %s693
    %p702 = scmp.eq.s32.totalorder %s110, 0
    %p703 = por %p701, %p702
    %p704 = scmp.ne.s32.totalorder %s692, %s693
    %p705 = scmp.eq.s32.totalorder %s111, 1
    %p706 = por %p704, %p705
    %p708 = scmp.ne.s32.totalorder %s693, %s707
    %p709 = scmp.eq.s32.totalorder %s111, 0
    %p710 = por %p708, %p709
    %s712 = sadd.s32 %s711, 1
    %p715 = scmp.eq.s32.totalorder %s105, 1
    %p716 = scmp.ne.s32.totalorder %s711, %s713
    %p717 = scmp.eq.s32.totalorder %s105, 0
    %p718 = por %p716, %p717
    %p719 = scmp.ne.s32.totalorder %s711, %s713
    %p720 = scmp.eq.s32.totalorder %s110, 1
    %p721 = por %p719, %p720
    %p722 = scmp.ne.s32.totalorder %s713, %s714
    %p723 = scmp.eq.s32.totalorder %s110, 0
    %p724 = por %p722, %p723
    %p725 = scmp.ne.s32.totalorder %s713, %s714
    %p726 = scmp.eq.s32.totalorder %s111, 1
    %p727 = por %p725, %p726
    %p729 = scmp.ne.s32.totalorder %s714, %s728
    %p730 = scmp.eq.s32.totalorder %s111, 0
    %p731 = por %p729, %p730
    %s733 = sadd.s32 %s732, 1
    %p736 = scmp.eq.s32.totalorder %s105, 1
    %p737 = scmp.ne.s32.totalorder %s732, %s734
    %p738 = scmp.eq.s32.totalorder %s105, 0
    %p739 = por %p737, %p738
    %p740 = scmp.ne.s32.totalorder %s732, %s734
    %p741 = scmp.eq.s32.totalorder %s110, 1
    %p742 = por %p740, %p741
    %p743 = scmp.ne.s32.totalorder %s734, %s735
    %p744 = scmp.eq.s32.totalorder %s110, 0
    %p745 = por %p743, %p744
    %p746 = scmp.ne.s32.totalorder %s734, %s735
    %p747 = scmp.eq.s32.totalorder %s111, 1
    %p748 = por %p746, %p747
    %p750 = scmp.ne.s32.totalorder %s735, %s749
    %p751 = scmp.eq.s32.totalorder %s111, 0
    %p752 = por %p750, %p751
    %s754 = sadd.s32 %s753, 1
    %p757 = scmp.eq.s32.totalorder %s105, 1
    %p758 = scmp.ne.s32.totalorder %s753, %s755
    %p759 = scmp.eq.s32.totalorder %s105, 0
    %p760 = por %p758, %p759
    %p761 = scmp.ne.s32.totalorder %s753, %s755
    %p762 = scmp.eq.s32.totalorder %s110, 1
    %p763 = por %p761, %p762
    %p764 = scmp.ne.s32.totalorder %s755, %s756
    %p765 = scmp.eq.s32.totalorder %s110, 0
    %p766 = por %p764, %p765
    %p767 = scmp.ne.s32.totalorder %s755, %s756
    %p768 = scmp.eq.s32.totalorder %s111, 1
    %p769 = por %p767, %p768
    %p771 = scmp.ne.s32.totalorder %s756, %s770
    %p772 = scmp.eq.s32.totalorder %s111, 0
    %p773 = por %p771, %p772
    %s775 = sadd.s32 %s774, 1
    %p778 = scmp.eq.s32.totalorder %s105, 1
    %p779 = scmp.ne.s32.totalorder %s774, %s776
    %p780 = scmp.eq.s32.totalorder %s105, 0
    %p781 = por %p779, %p780
    %p782 = scmp.ne.s32.totalorder %s774, %s776
    %p783 = scmp.eq.s32.totalorder %s110, 1
    %p784 = por %p782, %p783
    %p785 = scmp.ne.s32.totalorder %s776, %s777
    %p786 = scmp.eq.s32.totalorder %s110, 0
    %p787 = por %p785, %p786
    %p788 = scmp.ne.s32.totalorder %s776, %s777
    %p789 = scmp.eq.s32.totalorder %s111, 1
    %p790 = por %p788, %p789
    %p792 = scmp.ne.s32.totalorder %s777, %s791
    %p793 = scmp.eq.s32.totalorder %s111, 0
    %p794 = por %p792, %p793
    %s796 = sadd.s32 %s795, 1
    %p799 = scmp.eq.s32.totalorder %s105, 1
    %p800 = scmp.ne.s32.totalorder %s795, %s797
    %p801 = scmp.eq.s32.totalorder %s105, 0
    %p802 = por %p800, %p801
    %p803 = scmp.ne.s32.totalorder %s795, %s797
    %p804 = scmp.eq.s32.totalorder %s110, 1
    %p805 = por %p803, %p804
    %p806 = scmp.ne.s32.totalorder %s797, %s798
    %p807 = scmp.eq.s32.totalorder %s110, 0
    %p808 = por %p806, %p807
    %p809 = scmp.ne.s32.totalorder %s797, %s798
    %p810 = scmp.eq.s32.totalorder %s111, 1
    %p811 = por %p809, %p810
    %p813 = scmp.ne.s32.totalorder %s798, %s812
    %p814 = scmp.eq.s32.totalorder %s111, 0
    %p815 = por %p813, %p814
    %s817 = sadd.s32 %s816, 1
    %p820 = scmp.eq.s32.totalorder %s105, 1
    %p821 = scmp.ne.s32.totalorder %s816, %s818
    %p822 = scmp.eq.s32.totalorder %s105, 0
    %p823 = por %p821, %p822
    %p824 = scmp.ne.s32.totalorder %s816, %s818
    %p825 = scmp.eq.s32.totalorder %s110, 1
    %p826 = por %p824, %p825
    %p827 = scmp.ne.s32.totalorder %s818, %s819
    %p828 = scmp.eq.s32.totalorder %s110, 0
    %p829 = por %p827, %p828
    %p830 = scmp.ne.s32.totalorder %s818, %s819
    %p831 = scmp.eq.s32.totalorder %s111, 1
    %p832 = por %p830, %p831
    %p834 = scmp.ne.s32.totalorder %s819, %s833
    %p835 = scmp.eq.s32.totalorder %s111, 0
    %p836 = por %p834, %p835
    %s838 = sadd.s32 %s837, 1
    %p841 = scmp.eq.s32.totalorder %s105, 1
    %p842 = scmp.ne.s32.totalorder %s837, %s839
    %p843 = scmp.eq.s32.totalorder %s105, 0
    %p844 = por %p842, %p843
    %p845 = scmp.ne.s32.totalorder %s837, %s839
    %p846 = scmp.eq.s32.totalorder %s110, 1
    %p847 = por %p845, %p846
    %p848 = scmp.ne.s32.totalorder %s839, %s840
    %p849 = scmp.eq.s32.totalorder %s110, 0
    %p850 = por %p848, %p849
    %p851 = scmp.ne.s32.totalorder %s839, %s840
    %p852 = scmp.eq.s32.totalorder %s111, 1
    %p853 = por %p851, %p852
    %p855 = scmp.ne.s32.totalorder %s840, %s854
    %p856 = scmp.eq.s32.totalorder %s111, 0
    %p857 = por %p855, %p856
    %s859 = sadd.s32 %s858, 1
    %p862 = scmp.eq.s32.totalorder %s105, 1
    %p863 = scmp.ne.s32.totalorder %s858, %s860
    %p864 = scmp.eq.s32.totalorder %s105, 0
    %p865 = por %p863, %p864
    %p866 = scmp.ne.s32.totalorder %s858, %s860
    %p867 = scmp.eq.s32.totalorder %s110, 1
    %p868 = por %p866, %p867
    %p869 = scmp.ne.s32.totalorder %s860, %s861
    %p870 = scmp.eq.s32.totalorder %s110, 0
    %p871 = por %p869, %p870
    %p872 = scmp.ne.s32.totalorder %s860, %s861
    %p873 = scmp.eq.s32.totalorder %s111, 1
    %p874 = por %p872, %p873
    %p876 = scmp.ne.s32.totalorder %s861, %s875
    %p877 = scmp.eq.s32.totalorder %s111, 0
    %p878 = por %p876, %p877
    %s880 = sadd.s32 %s879, 1
    %p883 = scmp.eq.s32.totalorder %s105, 1
    %p884 = scmp.ne.s32.totalorder %s879, %s881
    %p885 = scmp.eq.s32.totalorder %s105, 0
    %p886 = por %p884, %p885
    %p887 = scmp.ne.s32.totalorder %s879, %s881
    %p888 = scmp.eq.s32.totalorder %s110, 1
    %p889 = por %p887, %p888
    %p890 = scmp.ne.s32.totalorder %s881, %s882
    %p891 = scmp.eq.s32.totalorder %s110, 0
    %p892 = por %p890, %p891
    %p893 = scmp.ne.s32.totalorder %s881, %s882
    %p894 = scmp.eq.s32.totalorder %s111, 1
    %p895 = por %p893, %p894
    %p897 = scmp.ne.s32.totalorder %s882, %s896
    %p898 = scmp.eq.s32.totalorder %s111, 0
    %p899 = por %p897, %p898
    %s901 = sadd.s32 %s900, 1
    %p904 = scmp.eq.s32.totalorder %s105, 1
    %p905 = scmp.ne.s32.totalorder %s900, %s902
    %p906 = scmp.eq.s32.totalorder %s105, 0
    %p907 = por %p905, %p906
    %p908 = scmp.ne.s32.totalorder %s900, %s902
    %p909 = scmp.eq.s32.totalorder %s110, 1
    %p910 = por %p908, %p909
    %p911 = scmp.ne.s32.totalorder %s902, %s903
    %p912 = scmp.eq.s32.totalorder %s110, 0
    %p913 = por %p911, %p912
    %p914 = scmp.ne.s32.totalorder %s902, %s903
    %p915 = scmp.eq.s32.totalorder %s111, 1
    %p916 = por %p914, %p915
    %p918 = scmp.ne.s32.totalorder %s903, %s917
    %p919 = scmp.eq.s32.totalorder %s111, 0
    %p920 = por %p918, %p919
    %s922 = sadd.s32 %s921, 1
    %p925 = scmp.eq.s32.totalorder %s105, 1
    %p926 = scmp.ne.s32.totalorder %s921, %s923
    %p927 = scmp.eq.s32.totalorder %s105, 0
    %p928 = por %p926, %p927
    %p929 = scmp.ne.s32.totalorder %s921, %s923
    %p930 = scmp.eq.s32.totalorder %s110, 1
    %p931 = por %p929, %p930
    %p932 = scmp.ne.s32.totalorder %s923, %s924
    %p933 = scmp.eq.s32.totalorder %s110, 0
    %p934 = por %p932, %p933
    %p935 = scmp.ne.s32.totalorder %s923, %s924
    %p936 = scmp.eq.s32.totalorder %s111, 1
    %p937 = por %p935, %p936
    %p939 = scmp.ne.s32.totalorder %s924, %s938
    %p940 = scmp.eq.s32.totalorder %s111, 0
    %p941 = por %p939, %p940
    %s943 = sadd.s32 %s942, 1
    %p946 = scmp.eq.s32.totalorder %s105, 1
    %p947 = scmp.ne.s32.totalorder %s942, %s944
    %p948 = scmp.eq.s32.totalorder %s105, 0
    %p949 = por %p947, %p948
    %p950 = scmp.ne.s32.totalorder %s942, %s944
    %p951 = scmp.eq.s32.totalorder %s110, 1
    %p952 = por %p950, %p951
    %p953 = scmp.ne.s32.totalorder %s944, %s945
    %p954 = scmp.eq.s32.totalorder %s110, 0
    %p955 = por %p953, %p954
    %p956 = scmp.ne.s32.totalorder %s944, %s945
    %p957 = scmp.eq.s32.totalorder %s111, 1
    %p958 = por %p956, %p957
    %p960 = scmp.ne.s32.totalorder %s945, %s959
    %p961 = scmp.eq.s32.totalorder %s111, 0
    %p962 = por %p960, %p961
    %s964 = sadd.s32 %s963, 1
    %p967 = scmp.eq.s32.totalorder %s105, 1
    %p968 = scmp.ne.s32.totalorder %s963, %s965
    %p969 = scmp.eq.s32.totalorder %s105, 0
    %p970 = por %p968, %p969
    %p971 = scmp.ne.s32.totalorder %s963, %s965
    %p972 = scmp.eq.s32.totalorder %s110, 1
    %p973 = por %p971, %p972
    %p974 = scmp.ne.s32.totalorder %s965, %s966
    %p975 = scmp.eq.s32.totalorder %s110, 0
    %p976 = por %p974, %p975
    %p977 = scmp.ne.s32.totalorder %s965, %s966
    %p978 = scmp.eq.s32.totalorder %s111, 1
    %p979 = por %p977, %p978
    %p981 = scmp.ne.s32.totalorder %s966, %s980
    %p982 = scmp.eq.s32.totalorder %s111, 0
    %p983 = por %p981, %p982
    %s985 = sadd.s32 %s984, 1
    %p988 = scmp.eq.s32.totalorder %s105, 1
    %p989 = scmp.ne.s32.totalorder %s984, %s986
    %p990 = scmp.eq.s32.totalorder %s105, 0
    %p991 = por %p989, %p990
    %p992 = scmp.ne.s32.totalorder %s984, %s986
    %p993 = scmp.eq.s32.totalorder %s110, 1
    %p994 = por %p992, %p993
    %p995 = scmp.ne.s32.totalorder %s986, %s987
    %p996 = scmp.eq.s32.totalorder %s110, 0
    %p997 = por %p995, %p996
    %p998 = scmp.ne.s32.totalorder %s986, %s987
    %p999 = scmp.eq.s32.totalorder %s111, 1
    %p1000 = por %p998, %p999
    %p1002 = scmp.ne.s32.totalorder %s987, %s1001
    %p1003 = scmp.eq.s32.totalorder %s111, 0
    %p1004 = por %p1002, %p1003
    %s1006 = sadd.s32 %s1005, 1
    %p1009 = scmp.eq.s32.totalorder %s105, 1
    %p1010 = scmp.ne.s32.totalorder %s1005, %s1007
    %p1011 = scmp.eq.s32.totalorder %s105, 0
    %p1012 = por %p1010, %p1011
    %p1013 = scmp.ne.s32.totalorder %s1005, %s1007
    %p1014 = scmp.eq.s32.totalorder %s110, 1
    %p1015 = por %p1013, %p1014
    %p1016 = scmp.ne.s32.totalorder %s1007, %s1008
    %p1017 = scmp.eq.s32.totalorder %s110, 0
    %p1018 = por %p1016, %p1017
    %p1019 = scmp.ne.s32.totalorder %s1007, %s1008
    %p1020 = scmp.eq.s32.totalorder %s111, 1
    %p1021 = por %p1019, %p1020
    %p1023 = scmp.ne.s32.totalorder %s1008, %s1022
    %p1024 = scmp.eq.s32.totalorder %s111, 0
    %p1025 = por %p1023, %p1024
    %s1027 = sadd.s32 %s1026, 1
    %p1030 = scmp.eq.s32.totalorder %s105, 1
    %p1031 = scmp.ne.s32.totalorder %s1026, %s1028
    %p1032 = scmp.eq.s32.totalorder %s105, 0
    %p1033 = por %p1031, %p1032
    %p1034 = scmp.ne.s32.totalorder %s1026, %s1028
    %p1035 = scmp.eq.s32.totalorder %s110, 1
    %p1036 = por %p1034, %p1035
    %p1037 = scmp.ne.s32.totalorder %s1028, %s1029
    %p1038 = scmp.eq.s32.totalorder %s110, 0
    %p1039 = por %p1037, %p1038
    %p1040 = scmp.ne.s32.totalorder %s1028, %s1029
    %p1041 = scmp.eq.s32.totalorder %s111, 1
    %p1042 = por %p1040, %p1041
    %p1044 = scmp.ne.s32.totalorder %s1029, %s1043
    %p1045 = scmp.eq.s32.totalorder %s111, 0
    %p1046 = por %p1044, %p1045
    %s1048 = sadd.s32 %s1047, 1
    %p1051 = scmp.eq.s32.totalorder %s105, 1
    %p1052 = scmp.ne.s32.totalorder %s1047, %s1049
    %p1053 = scmp.eq.s32.totalorder %s105, 0
    %p1054 = por %p1052, %p1053
    %p1055 = scmp.ne.s32.totalorder %s1047, %s1049
    %p1056 = scmp.eq.s32.totalorder %s110, 1
    %p1057 = por %p1055, %p1056
    %p1058 = scmp.ne.s32.totalorder %s1049, %s1050
    %p1059 = scmp.eq.s32.totalorder %s110, 0
    %p1060 = por %p1058, %p1059
    %p1061 = scmp.ne.s32.totalorder %s1049, %s1050
    %p1062 = scmp.eq.s32.totalorder %s111, 1
    %p1063 = por %p1061, %p1062
    %p1065 = scmp.ne.s32.totalorder %s1050, %s1064
    %p1066 = scmp.eq.s32.totalorder %s111, 0
    %p1067 = por %p1065, %p1066
    %s1069 = sadd.s32 %s1068, 1
    %p1072 = scmp.eq.s32.totalorder %s105, 1
    %p1073 = scmp.ne.s32.totalorder %s1068, %s1070
    %p1074 = scmp.eq.s32.totalorder %s105, 0
    %p1075 = por %p1073, %p1074
    %p1076 = scmp.ne.s32.totalorder %s1068, %s1070
    %p1077 = scmp.eq.s32.totalorder %s110, 1
    %p1078 = por %p1076, %p1077
    %p1079 = scmp.ne.s32.totalorder %s1070, %s1071
    %p1080 = scmp.eq.s32.totalorder %s110, 0
    %p1081 = por %p1079, %p1080
    %p1082 = scmp.ne.s32.totalorder %s1070, %s1071
    %p1083 = scmp.eq.s32.totalorder %s111, 1
    %p1084 = por %p1082, %p1083
    %p1086 = scmp.ne.s32.totalorder %s1071, %s1085
    %p1087 = scmp.eq.s32.totalorder %s111, 0
    %p1088 = por %p1086, %p1087
    %s1090 = sadd.s32 %s1089, 1
    %p1093 = scmp.eq.s32.totalorder %s105, 1
    %p1094 = scmp.ne.s32.totalorder %s1089, %s1091
    %p1095 = scmp.eq.s32.totalorder %s105, 0
    %p1096 = por %p1094, %p1095
    %p1097 = scmp.ne.s32.totalorder %s1089, %s1091
    %p1098 = scmp.eq.s32.totalorder %s110, 1
    %p1099 = por %p1097, %p1098
    %p1100 = scmp.ne.s32.totalorder %s1091, %s1092
    %p1101 = scmp.eq.s32.totalorder %s110, 0
    %p1102 = por %p1100, %p1101
    %p1103 = scmp.ne.s32.totalorder %s1091, %s1092
    %p1104 = scmp.eq.s32.totalorder %s111, 1
    %p1105 = por %p1103, %p1104
    %p1107 = scmp.ne.s32.totalorder %s1092, %s1106
    %p1108 = scmp.eq.s32.totalorder %s111, 0
    %p1109 = por %p1107, %p1108
    %s1111 = sadd.s32 %s1110, 1
    %p1114 = scmp.eq.s32.totalorder %s105, 1
    %p1115 = scmp.ne.s32.totalorder %s1110, %s1112
    %p1116 = scmp.eq.s32.totalorder %s105, 0
    %p1117 = por %p1115, %p1116
    %p1118 = scmp.ne.s32.totalorder %s1110, %s1112
    %p1119 = scmp.eq.s32.totalorder %s110, 1
    %p1120 = por %p1118, %p1119
    %p1121 = scmp.ne.s32.totalorder %s1112, %s1113
    %p1122 = scmp.eq.s32.totalorder %s110, 0
    %p1123 = por %p1121, %p1122
    %p1124 = scmp.ne.s32.totalorder %s1112, %s1113
    %p1125 = scmp.eq.s32.totalorder %s111, 1
    %p1126 = por %p1124, %p1125
    %p1128 = scmp.ne.s32.totalorder %s1113, %s1127
    %p1129 = scmp.eq.s32.totalorder %s111, 0
    %p1130 = por %p1128, %p1129
    %s1132 = sadd.s32 %s1131, 1
    %p1135 = scmp.eq.s32.totalorder %s105, 1
    %p1136 = scmp.ne.s32.totalorder %s1131, %s1133
    %p1137 = scmp.eq.s32.totalorder %s105, 0
    %p1138 = por %p1136, %p1137
    %p1139 = scmp.ne.s32.totalorder %s1131, %s1133
    %p1140 = scmp.eq.s32.totalorder %s110, 1
    %p1141 = por %p1139, %p1140
    %p1142 = scmp.ne.s32.totalorder %s1133, %s1134
    %p1143 = scmp.eq.s32.totalorder %s110, 0
    %p1144 = por %p1142, %p1143
    %p1145 = scmp.ne.s32.totalorder %s1133, %s1134
    %p1146 = scmp.eq.s32.totalorder %s111, 1
    %p1147 = por %p1145, %p1146
    %p1149 = scmp.ne.s32.totalorder %s1134, %s1148
    %p1150 = scmp.eq.s32.totalorder %s111, 0
    %p1151 = por %p1149, %p1150
    %s1152 = ssub.s32 %s105, %s112
    %p1153 = scmp.eq.s32.totalorder %s1152, 0
    %s1155 = sadd.s32 %s1154, 1
    %s1156 = scalar_select %p1153, %s1154, %s1155
    %p1159 = pneg %p1153
    %p1160 = scmp.eq.s32.totalorder %s105, 1
    %p1161 = por %p1159, %p1160
    %p1162 = scmp.ne.s32.totalorder %s1154, %s1157
    %p1163 = scmp.eq.s32.totalorder %s105, 0
    %p1164 = por %p1162, %p1163
    %p1165 = scmp.ne.s32.totalorder %s1154, %s1157
    %p1166 = scmp.eq.s32.totalorder %s110, 1
    %p1167 = por %p1165, %p1166
    %p1168 = scmp.ne.s32.totalorder %s1157, %s1158
    %p1169 = scmp.eq.s32.totalorder %s110, 0
    %p1170 = por %p1168, %p1169
    %p1171 = scmp.ne.s32.totalorder %s1157, %s1158
    %p1172 = scmp.eq.s32.totalorder %s111, 1
    %p1173 = por %p1171, %p1172
    %p1175 = scmp.ne.s32.totalorder %s1158, %s1174
    %p1176 = scmp.eq.s32.totalorder %s111, 0
    %p1177 = por %p1175, %p1176
    %p1178 = scmp.le.s32.totalorder 1, %s105
    %p1179 = scmp.lt.s32.totalorder %s105, 3
    %p1180 = pnand %p1178, %p1179
    %p1181 = pneg %p1180
    // Predicated region
    $region9: #{tpu_custom_call.1} parent=5 // pred_check
      _
    $region10: #{tpu_custom_call.1} parent=5 // pred_check_branch
      %1183 = sbr.rel (%p1180) target = $region12
    $region11: #{tpu_custom_call.1} parent=5 // pred_region
      %s1184 = ssub.s32 %s105, 1
      // Predicated region
      $region13: #{tpu_custom_call.1} parent=11 // pred_check
        %p1185 = pneg %p178
      $region14: #{tpu_custom_call.1} parent=11 // pred_check_branch
        %1187 = sbr.rel (%p1185) target = $region16
      $region15: #{tpu_custom_call.1} parent=11 // pred_region
        _
      $region16: #{tpu_custom_call.1} parent=11 // pred_fallthru
        _
      // Predicated region
      $region17: #{tpu_custom_call.1} parent=11 // pred_check
        %p1188 = pneg %p199
      $region18: #{tpu_custom_call.1} parent=11 // pred_check_branch
        %1190 = sbr.rel (%p1188) target = $region20
      $region19: #{tpu_custom_call.1} parent=11 // pred_region
        _
      $region20: #{tpu_custom_call.1} parent=11 // pred_fallthru
        _
      // Predicated region
      $region21: #{tpu_custom_call.1} parent=11 // pred_check
        %p1191 = pneg %p220
      $region22: #{tpu_custom_call.1} parent=11 // pred_check_branch
        %1193 = sbr.rel (%p1191) target = $region24
      $region23: #{tpu_custom_call.1} parent=11 // pred_region
        _
      $region24: #{tpu_custom_call.1} parent=11 // pred_fallthru
        _
      // Predicated region
      $region25: #{tpu_custom_call.1} parent=11 // pred_check
        %p1194 = pneg %p241
      $region26: #{tpu_custom_call.1} parent=11 // pred_check_branch
        %1196 = sbr.rel (%p1194) target = $region28
      $region27: #{tpu_custom_call.1} parent=11 // pred_region
        _
      $region28: #{tpu_custom_call.1} parent=11 // pred_fallthru
        _
      // Predicated region
      $region29: #{tpu_custom_call.1} parent=11 // pred_check
        %p1197 = pneg %p262
      $region30: #{tpu_custom_call.1} parent=11 // pred_check_branch
        %1199 = sbr.rel (%p1197) target = $region32
      $region31: #{tpu_custom_call.1} parent=11 // pred_region
        _
      $region32: #{tpu_custom_call.1} parent=11 // pred_fallthru
        _
      // Predicated region
      $region33: #{tpu_custom_call.1} parent=11 // pred_check
        %p1200 = pneg %p283
      $region34: #{tpu_custom_call.1} parent=11 // pred_check_branch
        %1202 = sbr.rel (%p1200) target = $region36
      $region35: #{tpu_custom_call.1} parent=11 // pred_region
        _
      $region36: #{tpu_custom_call.1} parent=11 // pred_fallthru
        _
      // Predicated region
      $region37: #{tpu_custom_call.1} parent=11 // pred_check
        %p1203 = pneg %p304
      $region38: #{tpu_custom_call.1} parent=11 // pred_check_branch
        %1205 = sbr.rel (%p1203) target = $region40
      $region39: #{tpu_custom_call.1} parent=11 // pred_region
        _
      $region40: #{tpu_custom_call.1} parent=11 // pred_fallthru
        _
      // Predicated region
      $region41: #{tpu_custom_call.1} parent=11 // pred_check
        %p1206 = pneg %p325
      $region42: #{tpu_custom_call.1} parent=11 // pred_check_branch
        %1208 = sbr.rel (%p1206) target = $region44
      $region43: #{tpu_custom_call.1} parent=11 // pred_region
        _
      $region44: #{tpu_custom_call.1} parent=11 // pred_fallthru
        _
      // Predicated region
      $region45: #{tpu_custom_call.1} parent=11 // pred_check
        %p1209 = pneg %p346
      $region46: #{tpu_custom_call.1} parent=11 // pred_check_branch
        %1211 = sbr.rel (%p1209) target = $region48
      $region47: #{tpu_custom_call.1} parent=11 // pred_region
        _
      $region48: #{tpu_custom_call.1} parent=11 // pred_fallthru
        _
      // Predicated region
      $region49: #{tpu_custom_call.1} parent=11 // pred_check
        %p1212 = pneg %p367
      $region50: #{tpu_custom_call.1} parent=11 // pred_check_branch
        %1214 = sbr.rel (%p1212) target = $region52
      $region51: #{tpu_custom_call.1} parent=11 // pred_region
        _
      $region52: #{tpu_custom_call.1} parent=11 // pred_fallthru
        _
      // Predicated region
      $region53: #{tpu_custom_call.1} parent=11 // pred_check
        %p1215 = pneg %p388
      $region54: #{tpu_custom_call.1} parent=11 // pred_check_branch
        %1217 = sbr.rel (%p1215) target = $region56
      $region55: #{tpu_custom_call.1} parent=11 // pred_region
        _
      $region56: #{tpu_custom_call.1} parent=11 // pred_fallthru
        _
      // Predicated region
      $region57: #{tpu_custom_call.1} parent=11 // pred_check
        %p1218 = pneg %p409
      $region58: #{tpu_custom_call.1} parent=11 // pred_check_branch
        %1220 = sbr.rel (%p1218) target = $region60
      $region59: #{tpu_custom_call.1} parent=11 // pred_region
        _
      $region60: #{tpu_custom_call.1} parent=11 // pred_fallthru
        _
      // Predicated region
      $region61: #{tpu_custom_call.1} parent=11 // pred_check
        %p1221 = pneg %p430
      $region62: #{tpu_custom_call.1} parent=11 // pred_check_branch
        %1223 = sbr.rel (%p1221) target = $region64
      $region63: #{tpu_custom_call.1} parent=11 // pred_region
        _
      $region64: #{tpu_custom_call.1} parent=11 // pred_fallthru
        _
      // Predicated region
      $region65: #{tpu_custom_call.1} parent=11 // pred_check
        %p1224 = pneg %p451
      $region66: #{tpu_custom_call.1} parent=11 // pred_check_branch
        %1226 = sbr.rel (%p1224) target = $region68
      $region67: #{tpu_custom_call.1} parent=11 // pred_region
        _
      $region68: #{tpu_custom_call.1} parent=11 // pred_fallthru
        _
      // Predicated region
      $region69: #{tpu_custom_call.1} parent=11 // pred_check
        %p1227 = pneg %p472
      $region70: #{tpu_custom_call.1} parent=11 // pred_check_branch
        %1229 = sbr.rel (%p1227) target = $region72
      $region71: #{tpu_custom_call.1} parent=11 // pred_region
        _
      $region72: #{tpu_custom_call.1} parent=11 // pred_fallthru
        _
      // Predicated region
      $region73: #{tpu_custom_call.1} parent=11 // pred_check
        %p1230 = pneg %p493
      $region74: #{tpu_custom_call.1} parent=11 // pred_check_branch
        %1232 = sbr.rel (%p1230) target = $region76
      $region75: #{tpu_custom_call.1} parent=11 // pred_region
        _
      $region76: #{tpu_custom_call.1} parent=11 // pred_fallthru
        _
      // Predicated region
      $region77: #{tpu_custom_call.1} parent=11 // pred_check
        %p1233 = pneg %p514
      $region78: #{tpu_custom_call.1} parent=11 // pred_check_branch
        %1235 = sbr.rel (%p1233) target = $region80
      $region79: #{tpu_custom_call.1} parent=11 // pred_region
        _
      $region80: #{tpu_custom_call.1} parent=11 // pred_fallthru
        _
      // Predicated region
      $region81: #{tpu_custom_call.1} parent=11 // pred_check
        %p1236 = pneg %p535
      $region82: #{tpu_custom_call.1} parent=11 // pred_check_branch
        %1238 = sbr.rel (%p1236) target = $region84
      $region83: #{tpu_custom_call.1} parent=11 // pred_region
        _
      $region84: #{tpu_custom_call.1} parent=11 // pred_fallthru
        _
      // Predicated region
      $region85: #{tpu_custom_call.1} parent=11 // pred_check
        %p1239 = pneg %p556
      $region86: #{tpu_custom_call.1} parent=11 // pred_check_branch
        %1241 = sbr.rel (%p1239) target = $region88
      $region87: #{tpu_custom_call.1} parent=11 // pred_region
        _
      $region88: #{tpu_custom_call.1} parent=11 // pred_fallthru
        _
      // Predicated region
      $region89: #{tpu_custom_call.1} parent=11 // pred_check
        %p1242 = pneg %p577
      $region90: #{tpu_custom_call.1} parent=11 // pred_check_branch
        %1244 = sbr.rel (%p1242) target = $region92
      $region91: #{tpu_custom_call.1} parent=11 // pred_region
        _
      $region92: #{tpu_custom_call.1} parent=11 // pred_fallthru
        _
      // Predicated region
      $region93: #{tpu_custom_call.1} parent=11 // pred_check
        %p1245 = pneg %p598
      $region94: #{tpu_custom_call.1} parent=11 // pred_check_branch
        %1247 = sbr.rel (%p1245) target = $region96
      $region95: #{tpu_custom_call.1} parent=11 // pred_region
        _
      $region96: #{tpu_custom_call.1} parent=11 // pred_fallthru
        _
      // Predicated region
      $region97: #{tpu_custom_call.1} parent=11 // pred_check
        %p1248 = pneg %p619
      $region98: #{tpu_custom_call.1} parent=11 // pred_check_branch
        %1250 = sbr.rel (%p1248) target = $region100
      $region99: #{tpu_custom_call.1} parent=11 // pred_region
        _
      $region100: #{tpu_custom_call.1} parent=11 // pred_fallthru
        _
      // Predicated region
      $region101: #{tpu_custom_call.1} parent=11 // pred_check
        %p1251 = pneg %p640
      $region102: #{tpu_custom_call.1} parent=11 // pred_check_branch
        %1253 = sbr.rel (%p1251) target = $region104
      $region103: #{tpu_custom_call.1} parent=11 // pred_region
        _
      $region104: #{tpu_custom_call.1} parent=11 // pred_fallthru
        _
      // Predicated region
      $region105: #{tpu_custom_call.1} parent=11 // pred_check
        %p1254 = pneg %p661
      $region106: #{tpu_custom_call.1} parent=11 // pred_check_branch
        %1256 = sbr.rel (%p1254) target = $region108
      $region107: #{tpu_custom_call.1} parent=11 // pred_region
        _
      $region108: #{tpu_custom_call.1} parent=11 // pred_fallthru
        _
      // Predicated region
      $region109: #{tpu_custom_call.1} parent=11 // pred_check
        %p1257 = pneg %p682
      $region110: #{tpu_custom_call.1} parent=11 // pred_check_branch
        %1259 = sbr.rel (%p1257) target = $region112
      $region111: #{tpu_custom_call.1} parent=11 // pred_region
        _
      $region112: #{tpu_custom_call.1} parent=11 // pred_fallthru
        _
      // Predicated region
      $region113: #{tpu_custom_call.1} parent=11 // pred_check
        %p1260 = pneg %p703
      $region114: #{tpu_custom_call.1} parent=11 // pred_check_branch
        %1262 = sbr.rel (%p1260) target = $region116
      $region115: #{tpu_custom_call.1} parent=11 // pred_region
        _
      $region116: #{tpu_custom_call.1} parent=11 // pred_fallthru
        _
      // Predicated region
      $region117: #{tpu_custom_call.1} parent=11 // pred_check
        %p1263 = pneg %p724
      $region118: #{tpu_custom_call.1} parent=11 // pred_check_branch
        %1265 = sbr.rel (%p1263) target = $region120
      $region119: #{tpu_custom_call.1} parent=11 // pred_region
        _
      $region120: #{tpu_custom_call.1} parent=11 // pred_fallthru
        _
      // Predicated region
      $region121: #{tpu_custom_call.1} parent=11 // pred_check
        %p1266 = pneg %p745
      $region122: #{tpu_custom_call.1} parent=11 // pred_check_branch
        %1268 = sbr.rel (%p1266) target = $region124
      $region123: #{tpu_custom_call.1} parent=11 // pred_region
        _
      $region124: #{tpu_custom_call.1} parent=11 // pred_fallthru
        _
      // Predicated region
      $region125: #{tpu_custom_call.1} parent=11 // pred_check
        %p1269 = pneg %p766
      $region126: #{tpu_custom_call.1} parent=11 // pred_check_branch
        %1271 = sbr.rel (%p1269) target = $region128
      $region127: #{tpu_custom_call.1} parent=11 // pred_region
        _
      $region128: #{tpu_custom_call.1} parent=11 // pred_fallthru
        _
      // Predicated region
      $region129: #{tpu_custom_call.1} parent=11 // pred_check
        %p1272 = pneg %p787
      $region130: #{tpu_custom_call.1} parent=11 // pred_check_branch
        %1274 = sbr.rel (%p1272) target = $region132
      $region131: #{tpu_custom_call.1} parent=11 // pred_region
        _
      $region132: #{tpu_custom_call.1} parent=11 // pred_fallthru
        _
      // Predicated region
      $region133: #{tpu_custom_call.1} parent=11 // pred_check
        %p1275 = pneg %p808
      $region134: #{tpu_custom_call.1} parent=11 // pred_check_branch
        %1277 = sbr.rel (%p1275) target = $region136
      $region135: #{tpu_custom_call.1} parent=11 // pred_region
        _
      $region136: #{tpu_custom_call.1} parent=11 // pred_fallthru
        _
      // Predicated region
      $region137: #{tpu_custom_call.1} parent=11 // pred_check
        %p1278 = pneg %p829
      $region138: #{tpu_custom_call.1} parent=11 // pred_check_branch
        %1280 = sbr.rel (%p1278) target = $region140
      $region139: #{tpu_custom_call.1} parent=11 // pred_region
        _
      $region140: #{tpu_custom_call.1} parent=11 // pred_fallthru
        _
      // Predicated region
      $region141: #{tpu_custom_call.1} parent=11 // pred_check
        %p1281 = pneg %p850
      $region142: #{tpu_custom_call.1} parent=11 // pred_check_branch
        %1283 = sbr.rel (%p1281) target = $region144
      $region143: #{tpu_custom_call.1} parent=11 // pred_region
        _
      $region144: #{tpu_custom_call.1} parent=11 // pred_fallthru
        _
      // Predicated region
      $region145: #{tpu_custom_call.1} parent=11 // pred_check
        %p1284 = pneg %p871
      $region146: #{tpu_custom_call.1} parent=11 // pred_check_branch
        %1286 = sbr.rel (%p1284) target = $region148
      $region147: #{tpu_custom_call.1} parent=11 // pred_region
        _
      $region148: #{tpu_custom_call.1} parent=11 // pred_fallthru
        _
      // Predicated region
      $region149: #{tpu_custom_call.1} parent=11 // pred_check
        %p1287 = pneg %p892
      $region150: #{tpu_custom_call.1} parent=11 // pred_check_branch
        %1289 = sbr.rel (%p1287) target = $region152
      $region151: #{tpu_custom_call.1} parent=11 // pred_region
        _
      $region152: #{tpu_custom_call.1} parent=11 // pred_fallthru
        _
      // Predicated region
      $region153: #{tpu_custom_call.1} parent=11 // pred_check
        %p1290 = pneg %p913
      $region154: #{tpu_custom_call.1} parent=11 // pred_check_branch
        %1292 = sbr.rel (%p1290) target = $region156
      $region155: #{tpu_custom_call.1} parent=11 // pred_region
        _
      $region156: #{tpu_custom_call.1} parent=11 // pred_fallthru
        _
      // Predicated region
      $region157: #{tpu_custom_call.1} parent=11 // pred_check
        %p1293 = pneg %p934
      $region158: #{tpu_custom_call.1} parent=11 // pred_check_branch
        %1295 = sbr.rel (%p1293) target = $region160
      $region159: #{tpu_custom_call.1} parent=11 // pred_region
        _
      $region160: #{tpu_custom_call.1} parent=11 // pred_fallthru
        _
      // Predicated region
      $region161: #{tpu_custom_call.1} parent=11 // pred_check
        %p1296 = pneg %p955
      $region162: #{tpu_custom_call.1} parent=11 // pred_check_branch
        %1298 = sbr.rel (%p1296) target = $region164
      $region163: #{tpu_custom_call.1} parent=11 // pred_region
        _
      $region164: #{tpu_custom_call.1} parent=11 // pred_fallthru
        _
      // Predicated region
      $region165: #{tpu_custom_call.1} parent=11 // pred_check
        %p1299 = pneg %p976
      $region166: #{tpu_custom_call.1} parent=11 // pred_check_branch
        %1301 = sbr.rel (%p1299) target = $region168
      $region167: #{tpu_custom_call.1} parent=11 // pred_region
        _
      $region168: #{tpu_custom_call.1} parent=11 // pred_fallthru
        _
      // Predicated region
      $region169: #{tpu_custom_call.1} parent=11 // pred_check
        %p1302 = pneg %p997
      $region170: #{tpu_custom_call.1} parent=11 // pred_check_branch
        %1304 = sbr.rel (%p1302) target = $region172
      $region171: #{tpu_custom_call.1} parent=11 // pred_region
        _
      $region172: #{tpu_custom_call.1} parent=11 // pred_fallthru
        _
      // Predicated region
      $region173: #{tpu_custom_call.1} parent=11 // pred_check
        %p1305 = pneg %p1018
      $region174: #{tpu_custom_call.1} parent=11 // pred_check_branch
        %1307 = sbr.rel (%p1305) target = $region176
      $region175: #{tpu_custom_call.1} parent=11 // pred_region
        _
      $region176: #{tpu_custom_call.1} parent=11 // pred_fallthru
        _
      // Predicated region
      $region177: #{tpu_custom_call.1} parent=11 // pred_check
        %p1308 = pneg %p1039
      $region178: #{tpu_custom_call.1} parent=11 // pred_check_branch
        %1310 = sbr.rel (%p1308) target = $region180
      $region179: #{tpu_custom_call.1} parent=11 // pred_region
        _
      $region180: #{tpu_custom_call.1} parent=11 // pred_fallthru
        _
      // Predicated region
      $region181: #{tpu_custom_call.1} parent=11 // pred_check
        %p1311 = pneg %p1060
      $region182: #{tpu_custom_call.1} parent=11 // pred_check_branch
        %1313 = sbr.rel (%p1311) target = $region184
      $region183: #{tpu_custom_call.1} parent=11 // pred_region
        _
      $region184: #{tpu_custom_call.1} parent=11 // pred_fallthru
        _
      // Predicated region
      $region185: #{tpu_custom_call.1} parent=11 // pred_check
        %p1314 = pneg %p1081
      $region186: #{tpu_custom_call.1} parent=11 // pred_check_branch
        %1316 = sbr.rel (%p1314) target = $region188
      $region187: #{tpu_custom_call.1} parent=11 // pred_region
        _
      $region188: #{tpu_custom_call.1} parent=11 // pred_fallthru
        _
      // Predicated region
      $region189: #{tpu_custom_call.1} parent=11 // pred_check
        %p1317 = pneg %p1102
      $region190: #{tpu_custom_call.1} parent=11 // pred_check_branch
        %1319 = sbr.rel (%p1317) target = $region192
      $region191: #{tpu_custom_call.1} parent=11 // pred_region
        _
      $region192: #{tpu_custom_call.1} parent=11 // pred_fallthru
        _
      // Predicated region
      $region193: #{tpu_custom_call.1} parent=11 // pred_check
        %p1320 = pneg %p1123
      $region194: #{tpu_custom_call.1} parent=11 // pred_check_branch
        %1322 = sbr.rel (%p1320) target = $region196
      $region195: #{tpu_custom_call.1} parent=11 // pred_region
        _
      $region196: #{tpu_custom_call.1} parent=11 // pred_fallthru
        _
      // Predicated region
      $region197: #{tpu_custom_call.1} parent=11 // pred_check
        %p1323 = pneg %p1144
      $region198: #{tpu_custom_call.1} parent=11 // pred_check_branch
        %1325 = sbr.rel (%p1323) target = $region200
      $region199: #{tpu_custom_call.1} parent=11 // pred_region
        _
      $region200: #{tpu_custom_call.1} parent=11 // pred_fallthru
        _
    $region12: #{tpu_custom_call.1} parent=5 // pred_fallthru
      _
    %p1326 = scmp.lt.s32.totalorder %s105, 2
    // Predicated region
    $region201: #{tpu_custom_call.1} parent=5 // pred_check
      %p1327 = pneg %p1326
    $region202: #{tpu_custom_call.1} parent=5 // pred_check_branch
      %1329 = sbr.rel (%p1327) target = $region204
    $region203: #{tpu_custom_call.1} parent=5 // pred_region
      // Predicated region
      $region205: #{tpu_custom_call.1} parent=203 // pred_check
        %p1330 = pneg %p125
      $region206: #{tpu_custom_call.1} parent=203 // pred_check_branch
        %1332 = sbr.rel (%p1330) target = $region208
      $region207: #{tpu_custom_call.1} parent=203 // pred_region
        %p1333 = scmp.lt.s32.totalorder %s105, 1
        %s1334 = scalar_select %p1333, %s105, 1
        %s1335 = smul.addr %s1334, 8
        %s1336 = scalar_lea.vmem %s1, %s1335
      $region208: #{tpu_custom_call.1} parent=203 // pred_fallthru
        _
      // Predicated region
      $region209: #{tpu_custom_call.1} parent=203 // pred_check
        %p1337 = pneg %p151
      $region210: #{tpu_custom_call.1} parent=203 // pred_check_branch
        %1339 = sbr.rel (%p1337) target = $region212
      $region211: #{tpu_custom_call.1} parent=203 // pred_region
        %p1340 = scmp.lt.s32.totalorder %s105, 1
        %s1341 = scalar_select %p1340, %s105, 1
        %s1342 = smul.addr %s1341, 8
        %s1343 = scalar_lea.vmem %s3, %s1342
      $region212: #{tpu_custom_call.1} parent=203 // pred_fallthru
        _
    $region204: #{tpu_custom_call.1} parent=5 // pred_fallthru
      _
    %p1344 = scmp.le.s32.totalorder 1, %s105
    %p1345 = scmp.lt.s32.totalorder %s105, 3
    %p1346 = pnand %p1344, %p1345
    %p1347 = pneg %p1346
    // Predicated region
    $region213: #{tpu_custom_call.1} parent=5 // pred_check
      _
    $region214: #{tpu_custom_call.1} parent=5 // pred_check_branch
      %1349 = sbr.rel (%p1346) target = $region216
    $region215: #{tpu_custom_call.1} parent=5 // pred_region
      %s1350 = ssub.s32 %s105, 1
      %p1351 = scmp.lt.s32.totalorder %s110, 1
      %s1352 = scalar_select %p1351, %s110, 1
      %s1353 = smul.addr %s1352, 8
      %s1354 = scalar_lea.vmem %s1, %s1353
      %p1355 = pneg %p131
      %p1356 = pneg %p128
      %p1357 = scmp.lt.s32.totalorder %s110, 1
      %s1358 = scalar_select %p1357, %s110, 1
      %s1359 = smul.addr %s1358, 8
      %s1360 = scalar_lea.vmem %s3, %s1359
      %p1361 = pneg %p157
      %p1362 = pneg %p154
      %p1363 = pneg %p178
      %p1364 = pneg %p175
      %p1365 = pneg %p199
      %p1366 = pneg %p196
      %p1367 = pneg %p220
      %p1368 = pneg %p217
      %p1369 = pneg %p241
      %p1370 = pneg %p238
      %p1371 = pneg %p262
      %p1372 = pneg %p259
      %p1373 = pneg %p283
      %p1374 = pneg %p280
      %p1375 = pneg %p304
      %p1376 = pneg %p301
      %p1377 = pneg %p325
      %p1378 = pneg %p322
      %p1379 = pneg %p346
      %p1380 = pneg %p343
      %p1381 = pneg %p367
      %p1382 = pneg %p364
      %p1383 = pneg %p388
      %p1384 = pneg %p385
      %p1385 = pneg %p409
      %p1386 = pneg %p406
      %p1387 = pneg %p430
      %p1388 = pneg %p427
      %p1389 = pneg %p451
      %p1390 = pneg %p448
      %p1391 = pneg %p472
      %p1392 = pneg %p469
      %p1393 = pneg %p493
      %p1394 = pneg %p490
      %p1395 = pneg %p514
      %p1396 = pneg %p511
      %p1397 = pneg %p535
      %p1398 = pneg %p532
      %p1399 = pneg %p556
      %p1400 = pneg %p553
      %p1401 = pneg %p577
      %p1402 = pneg %p574
      %p1403 = pneg %p598
      %p1404 = pneg %p595
      %p1405 = pneg %p619
      %p1406 = pneg %p616
      %p1407 = pneg %p640
      %p1408 = pneg %p637
      %p1409 = pneg %p661
      %p1410 = pneg %p658
      %p1411 = pneg %p682
      %p1412 = pneg %p679
      %p1413 = pneg %p703
      %p1414 = pneg %p700
      %p1415 = pneg %p724
      %p1416 = pneg %p721
      %p1417 = pneg %p745
      %p1418 = pneg %p742
      %p1419 = pneg %p766
      %p1420 = pneg %p763
      %p1421 = pneg %p787
      %p1422 = pneg %p784
      %p1423 = pneg %p808
      %p1424 = pneg %p805
      %p1425 = pneg %p829
      %p1426 = pneg %p826
      %p1427 = pneg %p850
      %p1428 = pneg %p847
      %p1429 = pneg %p871
      %p1430 = pneg %p868
      %p1431 = pneg %p892
      %p1432 = pneg %p889
      %p1433 = pneg %p913
      %p1434 = pneg %p910
      %p1435 = pneg %p934
      %p1436 = pneg %p931
      %p1437 = pneg %p955
      %p1438 = pneg %p952
      %p1439 = pneg %p976
      %p1440 = pneg %p973
      %p1441 = pneg %p997
      %p1442 = pneg %p994
      %p1443 = pneg %p1018
      %p1444 = pneg %p1015
      %p1445 = pneg %p1039
      %p1446 = pneg %p1036
      %p1447 = pneg %p1060
      %p1448 = pneg %p1057
      %p1449 = pneg %p1081
      %p1450 = pneg %p1078
      %p1451 = pneg %p1102
      %p1452 = pneg %p1099
      %p1453 = pneg %p1123
      %p1454 = pneg %p1120
      %p1455 = pneg %p1144
      %p1456 = pneg %p1141
      %p1457 = pneg %p1170
      %p1458 = pneg %p1167
      %p1459 = scmp.lt.s32.totalorder %s110, 1
      %s1460 = scalar_select %p1459, %s110, 1
      %s1461 = smul.addr %s1460, 8
      %s1462 = scalar_lea.vmem %s99, %s1461
      %p1463 = scmp.lt.s32.totalorder %s110, 1
      %s1464 = scalar_select %p1463, %s110, 1
      %s1465 = smul.addr %s1464, 8
      %s1466 = scalar_lea.vmem %s1, %s1465
      %p1467 = scmp.lt.s32.totalorder %s110, 1
      %s1468 = scalar_select %p1467, %s110, 1
      %s1469 = smul.addr %s1468, 8
      %s1470 = scalar_lea.vmem %s3, %s1469
      %p1471 = scmp.lt.s32.totalorder %s110, 1
      %s1472 = scalar_select %p1471, %s110, 1
      %s1473 = smul.addr %s1472, 8
      %s1474 = scalar_lea.vmem %s99, %s1473
      %v1476 = vld [vmem:[%s1466] sm:$0xff]
      %v1477 = vmul.f32 %v1476, 2.0
      %v1478 = vpack.c.bf16 %v1477, %v1477
      %v1479 = vld [vmem:[%s7] sm:$0x3]
      %v1480 = vld [vmem:[%s9] sm:$0x1]
      %v1482 = vlaneseq
      %v1483 = vshrl.u32 %v1482, 7
      %v1484 = vsub.s32 0, %v1483
      %v1485 = vrot.slane %v1480, %v1484
      %vm1487 = vcmask 31744
      %v1489 = vsel %vm1487, %v1478, 0
      %vm1491 = vcmask 1041408
      %v1493 = vsel %vm1491, %v1479, 0
      %1495 = vmatprep.subr.bf16.mxu0 0
      %1496 = vmatpush1.bf16.msra.mxu0 %v1493
      %1497 = vmatprep.subr.bf16.mxu0 0
      %1498 = vmatpush1.bf16.msra.mxu0 0
      %1499 = vmatprep.subr.bf16.mxu0 0
      %1500 = vmatpush1.bf16.msra.mxu0 0
      %1501 = vmatprep.subr.bf16.mxu0 0
      %1502 = vmatpush1.bf16.msra.mxu0 0
      %1503 = vmatprep.subr.bf16.mxu0 0
      %1504 = vmatpush1.bf16.msra.mxu0 0
      %1505 = vmatprep.subr.bf16.mxu0 0
      %1506 = vmatpush1.bf16.msra.mxu0 0
      %1507 = vmatprep.subr.bf16.mxu0 0
      %1508 = vmatpush1.bf16.msra.mxu0 0
      %1509 = vmatprep.subr.bf16.mxu0 0
      %1510 = vmatpush1.bf16.msra.mxu0 0
      %1511 = vmatprep.subr.bf16.mxu0 0
      %1512 = vmatpush1.bf16.msra.mxu0 0
      %1513 = vmatprep.subr.bf16.mxu0 0
      %1514 = vmatpush1.bf16.msra.mxu0 0
      %1515 = vmatprep.subr.bf16.mxu0 0
      %1516 = vmatpush1.bf16.msra.mxu0 0
      %1517 = vmatprep.subr.bf16.mxu0 0
      %1518 = vmatpush1.bf16.msra.mxu0 0
      %1519 = vmatprep.subr.bf16.mxu0 0
      %1520 = vmatpush1.bf16.msra.mxu0 0
      %1521 = vmatprep.subr.bf16.mxu0 0
      %1522 = vmatpush1.bf16.msra.mxu0 0
      %1523 = vmatprep.subr.bf16.mxu0 0
      %1524 = vmatpush1.bf16.msra.mxu0 0
      %1525 = vmatprep.subr.bf16.mxu0 0
      %1526 = vmatpush1.bf16.msra.mxu0 0
      %1527 = vmatprep.mubr.bf16.mxu0 0
      %1528 = vmatmul.mubr.bf16.gmra.mrb[0].mxu0 %v1489
      %v1529 = vpop.f32.mrb[0].mxu0
      %v1530 = vadd.f32 %v1485, %v1529
      %v1531 = vpop.f32.mrb[0].mxu0
      %v1532 = vpop.f32.mrb[0].mxu0
      %v1533 = vpop.f32.mrb[0].mxu0
      %1534 = vdwg.mxu0
      %v1535 = vld [vmem:[%s5] sm:$0xff]
      %v1536 = vadd.f32 %v1530, %v1535
      %v1537 = vpack.c.bf16 %v1536, %v1536
      %v1538 = vld [vmem:[%s25] sm:$0x1]
      %v1539 = vld [vmem:[%s11] sm:$0xf]
      %v1540 = vld [vmem:[%s11 + $0x4] sm:$0xf]
      %v1541 = vld [vmem:[%s11 + $0x8] sm:$0xf]
      %v1542 = vld [vmem:[%s11 + $0xc] sm:$0xf]
      %v1543 = vld [vmem:[%s11 + $0x10] sm:$0xf]
      %v1544 = vld [vmem:[%s11 + $0x14] sm:$0xf]
      %v1545 = vld [vmem:[%s11 + $0x18] sm:$0xf]
      %v1546 = vld [vmem:[%s11 + $0x1c] sm:$0xf]
      %v1547 = vld [vmem:[%s13] sm:$0x1]
      %v1549 = vlaneseq
      %v1550 = vshrl.u32 %v1549, 7
      %v1551 = vsub.s32 0, %v1550
      %v1552 = vrot.slane %v1547, %v1551
      %v1562 = vunpack.c.l.b16 %v1539
      %v1563 = vunpack.c.l.b16 %v1540
      %v1564 = vunpack.c.l.b16 %v1541
      %v1565 = vunpack.c.l.b16 %v1542
      %v1566 = vunpack.c.l.b16 %v1543
      %v1567 = vunpack.c.l.b16 %v1544
      %v1568 = vunpack.c.l.b16 %v1545
      %v1569 = vunpack.c.l.b16 %v1546
      %v1570 = vpack.c.b16 %v1563, %v1562
      %v1571 = vpack.c.b16 %v1565, %v1564
      %v1572 = vpack.c.b16 %v1567, %v1566
      %v1573 = vpack.c.b16 %v1569, %v1568
      %vm1578 = vcmask 523264
      %v1580 = vsel %vm1578, %v1537, 0
      %1582 = vmatprep.subr.bf16.mxu0 0
      %1583 = vmatpush1.bf16.msra.mxu0 %v1570
      %1584 = vmatprep.subr.bf16.mxu0 0
      %1585 = vmatpush1.bf16.msra.mxu0 %v1571
      %1586 = vmatprep.subr.bf16.mxu0 0
      %1587 = vmatpush1.bf16.msra.mxu0 %v1572
      %1588 = vmatprep.subr.bf16.mxu0 0
      %1589 = vmatpush1.bf16.msra.mxu0 %v1573
      %1590 = vmatprep.subr.bf16.mxu0 0
      %1591 = vmatpush1.bf16.msra.mxu0 0
      %1592 = vmatprep.subr.bf16.mxu0 0
      %1593 = vmatpush1.bf16.msra.mxu0 0
      %1594 = vmatprep.subr.bf16.mxu0 0
      %1595 = vmatpush1.bf16.msra.mxu0 0
      %1596 = vmatprep.subr.bf16.mxu0 0
      %1597 = vmatpush1.bf16.msra.mxu0 0
      %1598 = vmatprep.subr.bf16.mxu0 0
      %1599 = vmatpush1.bf16.msra.mxu0 0
      %1600 = vmatprep.subr.bf16.mxu0 0
      %1601 = vmatpush1.bf16.msra.mxu0 0
      %1602 = vmatprep.subr.bf16.mxu0 0
      %1603 = vmatpush1.bf16.msra.mxu0 0
      %1604 = vmatprep.subr.bf16.mxu0 0
      %1605 = vmatpush1.bf16.msra.mxu0 0
      %1606 = vmatprep.subr.bf16.mxu0 0
      %1607 = vmatpush1.bf16.msra.mxu0 0
      %1608 = vmatprep.subr.bf16.mxu0 0
      %1609 = vmatpush1.bf16.msra.mxu0 0
      %1610 = vmatprep.subr.bf16.mxu0 0
      %1611 = vmatpush1.bf16.msra.mxu0 0
      %1612 = vmatprep.subr.bf16.mxu0 0
      %1613 = vmatpush1.bf16.msra.mxu0 0
      %1614 = vmatprep.mubr.bf16.mxu0 0
      %1615 = vmatmul.mubr.bf16.gmra.mrb[0].mxu0 %v1580
      %v1616 = vpop.f32.mrb[0].mxu0
      %v1617 = vadd.f32 %v1552, %v1616
      %v1618 = vpop.f32.mrb[0].mxu0
      %v1619 = vpop.f32.mrb[0].mxu0
      %v1620 = vpop.f32.mrb[0].mxu0
      %1621 = vdwg.mxu0
      %v1622 = vld [vmem:[%s15] sm:$0xf]
      %v1623 = vld [vmem:[%s15 + $0x4] sm:$0xf]
      %v1624 = vld [vmem:[%s15 + $0x8] sm:$0xf]
      %v1625 = vld [vmem:[%s15 + $0xc] sm:$0xf]
      %v1626 = vld [vmem:[%s15 + $0x10] sm:$0xf]
      %v1627 = vld [vmem:[%s15 + $0x14] sm:$0xf]
      %v1628 = vld [vmem:[%s15 + $0x18] sm:$0xf]
      %v1629 = vld [vmem:[%s15 + $0x1c] sm:$0xf]
      %v1630 = vld [vmem:[%s17] sm:$0x1]
      %v1632 = vlaneseq
      %v1633 = vshrl.u32 %v1632, 7
      %v1634 = vsub.s32 0, %v1633
      %v1635 = vrot.slane %v1630, %v1634
      %v1645 = vunpack.c.l.b16 %v1622
      %v1646 = vunpack.c.l.b16 %v1623
      %v1647 = vunpack.c.l.b16 %v1624
      %v1648 = vunpack.c.l.b16 %v1625
      %v1649 = vunpack.c.l.b16 %v1626
      %v1650 = vunpack.c.l.b16 %v1627
      %v1651 = vunpack.c.l.b16 %v1628
      %v1652 = vunpack.c.l.b16 %v1629
      %v1653 = vpack.c.b16 %v1646, %v1645
      %v1654 = vpack.c.b16 %v1648, %v1647
      %v1655 = vpack.c.b16 %v1650, %v1649
      %v1656 = vpack.c.b16 %v1652, %v1651
      %1661 = vmatprep.subr.bf16.mxu0 0
      %1662 = vmatpush1.bf16.msra.mxu0 %v1653
      %1663 = vmatprep.subr.bf16.mxu0 0
      %1664 = vmatpush1.bf16.msra.mxu0 %v1654
      %1665 = vmatprep.subr.bf16.mxu0 0
      %1666 = vmatpush1.bf16.msra.mxu0 %v1655
      %1667 = vmatprep.subr.bf16.mxu0 0
      %1668 = vmatpush1.bf16.msra.mxu0 %v1656
      %1669 = vmatprep.subr.bf16.mxu0 0
      %1670 = vmatpush1.bf16.msra.mxu0 0
      %1671 = vmatprep.subr.bf16.mxu0 0
      %1672 = vmatpush1.bf16.msra.mxu0 0
      %1673 = vmatprep.subr.bf16.mxu0 0
      %1674 = vmatpush1.bf16.msra.mxu0 0
      %1675 = vmatprep.subr.bf16.mxu0 0
      %1676 = vmatpush1.bf16.msra.mxu0 0
      %1677 = vmatprep.subr.bf16.mxu0 0
      %1678 = vmatpush1.bf16.msra.mxu0 0
      %1679 = vmatprep.subr.bf16.mxu0 0
      %1680 = vmatpush1.bf16.msra.mxu0 0
      %1681 = vmatprep.subr.bf16.mxu0 0
      %1682 = vmatpush1.bf16.msra.mxu0 0
      %1683 = vmatprep.subr.bf16.mxu0 0
      %1684 = vmatpush1.bf16.msra.mxu0 0
      %1685 = vmatprep.subr.bf16.mxu0 0
      %1686 = vmatpush1.bf16.msra.mxu0 0
      %1687 = vmatprep.subr.bf16.mxu0 0
      %1688 = vmatpush1.bf16.msra.mxu0 0
      %1689 = vmatprep.subr.bf16.mxu0 0
      %1690 = vmatpush1.bf16.msra.mxu0 0
      %1691 = vmatprep.subr.bf16.mxu0 0
      %1692 = vmatpush1.bf16.msra.mxu0 0
      %1693 = vmatprep.mubr.bf16.mxu0 0
      %1694 = vmatmul.mubr.bf16.gmra.mrb[0].mxu0 %v1580
      %v1695 = vpop.f32.mrb[0].mxu0
      %v1696 = vadd.f32 %v1635, %v1695
      %v1697 = vpop.f32.mrb[0].mxu0
      %v1698 = vpop.f32.mrb[0].mxu0
      %v1699 = vpop.f32.mrb[0].mxu0
      %1700 = vdwg.mxu0
      %v1701 = vld [vmem:[%s19] sm:$0xf]
      %v1702 = vld [vmem:[%s19 + $0x4] sm:$0xf]
      %v1703 = vld [vmem:[%s19 + $0x8] sm:$0xf]
      %v1704 = vld [vmem:[%s19 + $0xc] sm:$0xf]
      %v1705 = vld [vmem:[%s19 + $0x10] sm:$0xf]
      %v1706 = vld [vmem:[%s19 + $0x14] sm:$0xf]
      %v1707 = vld [vmem:[%s19 + $0x18] sm:$0xf]
      %v1708 = vld [vmem:[%s19 + $0x1c] sm:$0xf]
      %v1709 = vld [vmem:[%s21] sm:$0x1]
      %v1711 = vlaneseq
      %v1712 = vshrl.u32 %v1711, 7
      %v1713 = vsub.s32 0, %v1712
      %v1714 = vrot.slane %v1709, %v1713
      %v1724 = vunpack.c.l.b16 %v1701
      %v1725 = vunpack.c.l.b16 %v1702
      %v1726 = vunpack.c.l.b16 %v1703
      %v1727 = vunpack.c.l.b16 %v1704
      %v1728 = vunpack.c.l.b16 %v1705
      %v1729 = vunpack.c.l.b16 %v1706
      %v1730 = vunpack.c.l.b16 %v1707
      %v1731 = vunpack.c.l.b16 %v1708
      %v1732 = vpack.c.b16 %v1725, %v1724
      %v1733 = vpack.c.b16 %v1727, %v1726
      %v1734 = vpack.c.b16 %v1729, %v1728
      %v1735 = vpack.c.b16 %v1731, %v1730
      %1740 = vmatprep.subr.bf16.mxu0 0
      %1741 = vmatpush1.bf16.msra.mxu0 %v1732
      %1742 = vmatprep.subr.bf16.mxu0 0
      %1743 = vmatpush1.bf16.msra.mxu0 %v1733
      %1744 = vmatprep.subr.bf16.mxu0 0
      %1745 = vmatpush1.bf16.msra.mxu0 %v1734
      %1746 = vmatprep.subr.bf16.mxu0 0
      %1747 = vmatpush1.bf16.msra.mxu0 %v1735
      %1748 = vmatprep.subr.bf16.mxu0 0
      %1749 = vmatpush1.bf16.msra.mxu0 0
      %1750 = vmatprep.subr.bf16.mxu0 0
      %1751 = vmatpush1.bf16.msra.mxu0 0
      %1752 = vmatprep.subr.bf16.mxu0 0
      %1753 = vmatpush1.bf16.msra.mxu0 0
      %1754 = vmatprep.subr.bf16.mxu0 0
      %1755 = vmatpush1.bf16.msra.mxu0 0
      %1756 = vmatprep.subr.bf16.mxu0 0
      %1757 = vmatpush1.bf16.msra.mxu0 0
      %1758 = vmatprep.subr.bf16.mxu0 0
      %1759 = vmatpush1.bf16.msra.mxu0 0
      %1760 = vmatprep.subr.bf16.mxu0 0
      %1761 = vmatpush1.bf16.msra.mxu0 0
      %1762 = vmatprep.subr.bf16.mxu0 0
      %1763 = vmatpush1.bf16.msra.mxu0 0
      %1764 = vmatprep.subr.bf16.mxu0 0
      %1765 = vmatpush1.bf16.msra.mxu0 0
      %1766 = vmatprep.subr.bf16.mxu0 0
      %1767 = vmatpush1.bf16.msra.mxu0 0
      %1768 = vmatprep.subr.bf16.mxu0 0
      %1769 = vmatpush1.bf16.msra.mxu0 0
      %1770 = vmatprep.subr.bf16.mxu0 0
      %1771 = vmatpush1.bf16.msra.mxu0 0
      %1772 = vmatprep.mubr.bf16.mxu0 0
      %1773 = vmatmul.mubr.bf16.gmra.mrb[0].mxu0 %v1580
      %v1774 = vpop.f32.mrb[0].mxu0
      %v1775 = vadd.f32 %v1714, %v1774
      %v1776 = vpop.f32.mrb[0].mxu0
      %v1777 = vpop.f32.mrb[0].mxu0
      %v1778 = vpop.f32.mrb[0].mxu0
      %1779 = vdwg.mxu0
      %vm1780 = vcmask 130048
      %v1782 = vsel %vm1780, %v1617, 0
      %v1785 = vsel %vm1780, %v1696, 0
      %1787 = vmatprep.subr.mxu0 0.0
      %1788 = vmatpush1.xpose.msra.mxu0 %v1785
      %1789 = vmatprep.subr.mxu0 0.0
      %1790 = vmatpush1.xpose.msra.mxu0 0.0
      %1791 = vmatprep.subr.mxu0 0.0
      %1792 = vmatpush1.xpose.msra.mxu0 0.0
      %1793 = vmatprep.subr.mxu0 0.0
      %1794 = vmatpush1.xpose.msra.mxu0 0.0
      %1795 = vmatprep.subr.mxu0 0.0
      %1796 = vmatpush1.xpose.msra.mxu0 0.0
      %1797 = vmatprep.subr.mxu0 0.0
      %1798 = vmatpush1.xpose.msra.mxu0 0.0
      %1799 = vmatprep.subr.mxu0 0.0
      %1800 = vmatpush1.xpose.msra.mxu0 0.0
      %1801 = vmatprep.subr.mxu0 0.0
      %1802 = vmatpush1.xpose.msra.mxu0 0.0
      %1803 = vmatprep.subr.mxu0 0.0
      %1804 = vmatpush1.xpose.msra.mxu0 0.0
      %1805 = vmatprep.subr.mxu0 0.0
      %1806 = vmatpush1.xpose.msra.mxu0 0.0
      %1807 = vmatprep.subr.mxu0 0.0
      %1808 = vmatpush1.xpose.msra.mxu0 0.0
      %1809 = vmatprep.subr.mxu0 0.0
      %1810 = vmatpush1.xpose.msra.mxu0 0.0
      %1811 = vmatprep.subr.mxu0 0.0
      %1812 = vmatpush1.xpose.msra.mxu0 0.0
      %1813 = vmatprep.subr.mxu0 0.0
      %1814 = vmatpush1.xpose.msra.mxu0 0.0
      %1815 = vmatprep.subr.mxu0 0.0
      %1816 = vmatpush1.xpose.msra.mxu0 0.0
      %1817 = vmatprep.subr.mxu0 0.0
      %1818 = vmatpush1.xpose.msra.mxu0 0.0
      %1819 = vmatprep.subr.mxu0 0.0
      %1820 = vmatpush1.xpose.msra.mxu0 0.0
      %1821 = vmatprep.subr.mxu0 0.0
      %1822 = vmatpush1.xpose.msra.mxu0 0.0
      %1823 = vmatprep.subr.mxu0 0.0
      %1824 = vmatpush1.xpose.msra.mxu0 0.0
      %1825 = vmatprep.subr.mxu0 0.0
      %1826 = vmatpush1.xpose.msra.mxu0 0.0
      %1827 = vmatprep.subr.mxu0 0.0
      %1828 = vmatpush1.xpose.msra.mxu0 0.0
      %1829 = vmatprep.subr.mxu0 0.0
      %1830 = vmatpush1.xpose.msra.mxu0 0.0
      %1831 = vmatprep.subr.mxu0 0.0
      %1832 = vmatpush1.xpose.msra.mxu0 0.0
      %1833 = vmatprep.subr.mxu0 0.0
      %1834 = vmatpush1.xpose.msra.mxu0 0.0
      %1835 = vmatprep.subr.mxu0 0.0
      %1836 = vmatpush1.xpose.msra.mxu0 0.0
      %1837 = vmatprep.subr.mxu0 0.0
      %1838 = vmatpush1.xpose.msra.mxu0 0.0
      %1839 = vmatprep.subr.mxu0 0.0
      %1840 = vmatpush1.xpose.msra.mxu0 0.0
      %1841 = vmatprep.subr.mxu0 0.0
      %1842 = vmatpush1.xpose.msra.mxu0 0.0
      %1843 = vmatprep.subr.mxu0 0.0
      %1844 = vmatpush1.xpose.msra.mxu0 0.0
      %1845 = vmatprep.subr.mxu0 0.0
      %1846 = vmatpush1.xpose.msra.mxu0 0.0
      %1847 = vmatprep.subr.mxu0 0.0
      %1848 = vmatpush1.xpose.msra.mxu0 0.0
      %1849 = vmatprep.subr.mxu0 0.0
      %1850 = vmatpush1.xpose.msra.mxu0 0.0
      %1851 = vmatprep.mubr.f32.mxu0 0.0
      %1852 = vmatmul.mubr.f32.gmra.mrb[0].mxu0 %v1782
      %v1853 = vpop.f32.mrb[0].mxu0
      %v1854 = vadd.f32 0.0, %v1853
      %v1855 = vpop.f32.mrb[0].mxu0
      %1856 = vdwg.mxu0
      %v1857 = vmul.f32 %v1854, 0.25
      %vm1858 = vcmask 64512
      %v1859 = vsel %vm1858, %v1857, -inf
      %1860 = vmax.xlane.f32.xlu0 %v1859
      %v1861 = vpop.xlane.xlu0 %1860
      %v1862 = vsub.f32 %v1857, %v1861
      %v1863 = vmul.f32 %v1862, 1.442695
      %v1864 = vpow.pop %v1863
      %v1865 = vsel %vm1858, %v1864, 0.0
      %1866 = vadd.xlane.f32.xlu0 %v1865
      %v1867 = vpop.xlane.xlu0 %1866
      %v1868 = vrcp.pop %v1867
      %v1869 = vmul.f32 %v1864, %v1868
      %v1870 = vpack.c.bf16 %v1869, %v1869
      %v1871 = vpack.c.bf16 %v1775, %v1775
      %v1873 = vsel %vm1858, %v1870, 0
      %vm1875 = vcmask 1043456
      %v1877 = vsel %vm1875, %v1871, 0
      %1879 = vmatprep.subr.bf16.mxu0 0
      %1880 = vmatpush1.bf16.msra.mxu0 %v1877
      %1881 = vmatprep.subr.bf16.mxu0 0
      %1882 = vmatpush1.bf16.msra.mxu0 0
      %1883 = vmatprep.subr.bf16.mxu0 0
      %1884 = vmatpush1.bf16.msra.mxu0 0
      %1885 = vmatprep.subr.bf16.mxu0 0
      %1886 = vmatpush1.bf16.msra.mxu0 0
      %1887 = vmatprep.subr.bf16.mxu0 0
      %1888 = vmatpush1.bf16.msra.mxu0 0
      %1889 = vmatprep.subr.bf16.mxu0 0
      %1890 = vmatpush1.bf16.msra.mxu0 0
      %1891 = vmatprep.subr.bf16.mxu0 0
      %1892 = vmatpush1.bf16.msra.mxu0 0
      %1893 = vmatprep.subr.bf16.mxu0 0
      %1894 = vmatpush1.bf16.msra.mxu0 0
      %1895 = vmatprep.subr.bf16.mxu0 0
      %1896 = vmatpush1.bf16.msra.mxu0 0
      %1897 = vmatprep.subr.bf16.mxu0 0
      %1898 = vmatpush1.bf16.msra.mxu0 0
      %1899 = vmatprep.subr.bf16.mxu0 0
      %1900 = vmatpush1.bf16.msra.mxu0 0
      %1901 = vmatprep.subr.bf16.mxu0 0
      %1902 = vmatpush1.bf16.msra.mxu0 0
      %1903 = vmatprep.subr.bf16.mxu0 0
      %1904 = vmatpush1.bf16.msra.mxu0 0
      %1905 = vmatprep.subr.bf16.mxu0 0
      %1906 = vmatpush1.bf16.msra.mxu0 0
      %1907 = vmatprep.subr.bf16.mxu0 0
      %1908 = vmatpush1.bf16.msra.mxu0 0
      %1909 = vmatprep.subr.bf16.mxu0 0
      %1910 = vmatpush1.bf16.msra.mxu0 0
      %1911 = vmatprep.mubr.bf16.mxu0 0
      %1912 = vmatmul.mubr.bf16.gmra.mrb[0].mxu0 %v1873
      %v1913 = vpop.f32.mrb[0].mxu0
      %v1914 = vadd.f32 0.0, %v1913
      %v1915 = vpop.f32.mrb[0].mxu0
      %v1916 = vpop.f32.mrb[0].mxu0
      %v1917 = vpop.f32.mrb[0].mxu0
      %1918 = vdwg.mxu0
      %v1919 = vpack.c.bf16 %v1914, %v1914
      %v1920 = vld [vmem:[%s23] sm:$0xf]
      %v1921 = vld [vmem:[%s23 + $0x4] sm:$0xf]
      %v1924 = vunpack.c.l.b16 %v1920
      %v1925 = vunpack.c.l.b16 %v1921
      %v1926 = vpack.c.b16 %v1925, %v1924
      %v1929 = vsel %vm1780, %v1919, 0
      %1931 = vmatprep.subr.bf16.mxu0 0
      %1932 = vmatpush1.bf16.msra.mxu0 %v1926
      %1933 = vmatprep.subr.bf16.mxu0 0
      %1934 = vmatpush1.bf16.msra.mxu0 0
      %1935 = vmatprep.subr.bf16.mxu0 0
      %1936 = vmatpush1.bf16.msra.mxu0 0
      %1937 = vmatprep.subr.bf16.mxu0 0
      %1938 = vmatpush1.bf16.msra.mxu0 0
      %1939 = vmatprep.subr.bf16.mxu0 0
      %1940 = vmatpush1.bf16.msra.mxu0 0
      %1941 = vmatprep.subr.bf16.mxu0 0
      %1942 = vmatpush1.bf16.msra.mxu0 0
      %1943 = vmatprep.subr.bf16.mxu0 0
      %1944 = vmatpush1.bf16.msra.mxu0 0
      %1945 = vmatprep.subr.bf16.mxu0 0
      %1946 = vmatpush1.bf16.msra.mxu0 0
      %1947 = vmatprep.subr.bf16.mxu0 0
      %1948 = vmatpush1.bf16.msra.mxu0 0
      %1949 = vmatprep.subr.bf16.mxu0 0
      %1950 = vmatpush1.bf16.msra.mxu0 0
      %1951 = vmatprep.subr.bf16.mxu0 0
      %1952 = vmatpush1.bf16.msra.mxu0 0
      %1953 = vmatprep.subr.bf16.mxu0 0
      %1954 = vmatpush1.bf16.msra.mxu0 0
      %1955 = vmatprep.subr.bf16.mxu0 0
      %1956 = vmatpush1.bf16.msra.mxu0 0
      %1957 = vmatprep.subr.bf16.mxu0 0
      %1958 = vmatpush1.bf16.msra.mxu0 0
      %1959 = vmatprep.subr.bf16.mxu0 0
      %1960 = vmatpush1.bf16.msra.mxu0 0
      %1961 = vmatprep.subr.bf16.mxu0 0
      %1962 = vmatpush1.bf16.msra.mxu0 0
      %1963 = vmatprep.mubr.bf16.mxu0 0
      %1964 = vmatmul.mubr.bf16.gmra.mrb[0].mxu0 %v1929
      %v1965 = vpop.f32.mrb[0].mxu0
      %v1966 = vadd.f32 0.0, %v1965
      %v1967 = vpop.f32.mrb[0].mxu0
      %v1968 = vpop.f32.mrb[0].mxu0
      %v1969 = vpop.f32.mrb[0].mxu0
      %1970 = vdwg.mxu0
      %v1972 = vlaneseq
      %v1973 = vshrl.u32 %v1972, 7
      %v1974 = vsub.s32 0, %v1973
      %v1975 = vrot.slane %v1538, %v1974
      %v1977 = vadd.f32 %v1975, %v1966
      %s1978 = scalar_lea.vmem %s11, 32
      %v1979 = vld [vmem:[%s1978] sm:$0xf]
      %v1980 = vld [vmem:[%s1978 + $0x4] sm:$0xf]
      %v1981 = vld [vmem:[%s1978 + $0x8] sm:$0xf]
      %v1982 = vld [vmem:[%s1978 + $0xc] sm:$0xf]
      %v1983 = vld [vmem:[%s1978 + $0x10] sm:$0xf]
      %v1984 = vld [vmem:[%s1978 + $0x14] sm:$0xf]
      %v1985 = vld [vmem:[%s1978 + $0x18] sm:$0xf]
      %v1986 = vld [vmem:[%s1978 + $0x1c] sm:$0xf]
      %s1987 = scalar_lea.vmem %s13, 1
      %v1988 = vld [vmem:[%s1987] sm:$0x1]
      %v1990 = vlaneseq
      %v1991 = vshrl.u32 %v1990, 7
      %v1992 = vsub.s32 0, %v1991
      %v1993 = vrot.slane %v1988, %v1992
      %v2003 = vunpack.c.l.b16 %v1979
      %v2004 = vunpack.c.l.b16 %v1980
      %v2005 = vunpack.c.l.b16 %v1981
      %v2006 = vunpack.c.l.b16 %v1982
      %v2007 = vunpack.c.l.b16 %v1983
      %v2008 = vunpack.c.l.b16 %v1984
      %v2009 = vunpack.c.l.b16 %v1985
      %v2010 = vunpack.c.l.b16 %v1986
      %v2011 = vpack.c.b16 %v2004, %v2003
      %v2012 = vpack.c.b16 %v2006, %v2005
      %v2013 = vpack.c.b16 %v2008, %v2007
      %v2014 = vpack.c.b16 %v2010, %v2009
      %2019 = vmatprep.subr.bf16.mxu0 0
      %2020 = vmatpush1.bf16.msra.mxu0 %v2011
      %2021 = vmatprep.subr.bf16.mxu0 0
      %2022 = vmatpush1.bf16.msra.mxu0 %v2012
      %2023 = vmatprep.subr.bf16.mxu0 0
      %2024 = vmatpush1.bf16.msra.mxu0 %v2013
      %2025 = vmatprep.subr.bf16.mxu0 0
      %2026 = vmatpush1.bf16.msra.mxu0 %v2014
      %2027 = vmatprep.subr.bf16.mxu0 0
      %2028 = vmatpush1.bf16.msra.mxu0 0
      %2029 = vmatprep.subr.bf16.mxu0 0
      %2030 = vmatpush1.bf16.msra.mxu0 0
      %2031 = vmatprep.subr.bf16.mxu0 0
      %2032 = vmatpush1.bf16.msra.mxu0 0
      %2033 = vmatprep.subr.bf16.mxu0 0
      %2034 = vmatpush1.bf16.msra.mxu0 0
      %2035 = vmatprep.subr.bf16.mxu0 0
      %2036 = vmatpush1.bf16.msra.mxu0 0
      %2037 = vmatprep.subr.bf16.mxu0 0
      %2038 = vmatpush1.bf16.msra.mxu0 0
      %2039 = vmatprep.subr.bf16.mxu0 0
      %2040 = vmatpush1.bf16.msra.mxu0 0
      %2041 = vmatprep.subr.bf16.mxu0 0
      %2042 = vmatpush1.bf16.msra.mxu0 0
      %2043 = vmatprep.subr.bf16.mxu0 0
      %2044 = vmatpush1.bf16.msra.mxu0 0
      %2045 = vmatprep.subr.bf16.mxu0 0
      %2046 = vmatpush1.bf16.msra.mxu0 0
      %2047 = vmatprep.subr.bf16.mxu0 0
      %2048 = vmatpush1.bf16.msra.mxu0 0
      %2049 = vmatprep.subr.bf16.mxu0 0
      %2050 = vmatpush1.bf16.msra.mxu0 0
      %2051 = vmatprep.mubr.bf16.mxu0 0
      %2052 = vmatmul.mubr.bf16.gmra.mrb[0].mxu0 %v1580
      %v2053 = vpop.f32.mrb[0].mxu0
      %v2054 = vadd.f32 %v1993, %v2053
      %v2055 = vpop.f32.mrb[0].mxu0
      %v2056 = vpop.f32.mrb[0].mxu0
      %v2057 = vpop.f32.mrb[0].mxu0
      %2058 = vdwg.mxu0
      %s2059 = scalar_lea.vmem %s15, 32
      %v2060 = vld [vmem:[%s2059] sm:$0xf]
      %v2061 = vld [vmem:[%s2059 + $0x4] sm:$0xf]
      %v2062 = vld [vmem:[%s2059 + $0x8] sm:$0xf]
      %v2063 = vld [vmem:[%s2059 + $0xc] sm:$0xf]
      %v2064 = vld [vmem:[%s2059 + $0x10] sm:$0xf]
      %v2065 = vld [vmem:[%s2059 + $0x14] sm:$0xf]
      %v2066 = vld [vmem:[%s2059 + $0x18] sm:$0xf]
      %v2067 = vld [vmem:[%s2059 + $0x1c] sm:$0xf]
      %s2068 = scalar_lea.vmem %s17, 1
      %v2069 = vld [vmem:[%s2068] sm:$0x1]
      %v2071 = vlaneseq
      %v2072 = vshrl.u32 %v2071, 7
      %v2073 = vsub.s32 0, %v2072
      %v2074 = vrot.slane %v2069, %v2073
      %v2084 = vunpack.c.l.b16 %v2060
      %v2085 = vunpack.c.l.b16 %v2061
      %v2086 = vunpack.c.l.b16 %v2062
      %v2087 = vunpack.c.l.b16 %v2063
      %v2088 = vunpack.c.l.b16 %v2064
      %v2089 = vunpack.c.l.b16 %v2065
      %v2090 = vunpack.c.l.b16 %v2066
      %v2091 = vunpack.c.l.b16 %v2067
      %v2092 = vpack.c.b16 %v2085, %v2084
      %v2093 = vpack.c.b16 %v2087, %v2086
      %v2094 = vpack.c.b16 %v2089, %v2088
      %v2095 = vpack.c.b16 %v2091, %v2090
      %2100 = vmatprep.subr.bf16.mxu0 0
      %2101 = vmatpush1.bf16.msra.mxu0 %v2092
      %2102 = vmatprep.subr.bf16.mxu0 0
      %2103 = vmatpush1.bf16.msra.mxu0 %v2093
      %2104 = vmatprep.subr.bf16.mxu0 0
      %2105 = vmatpush1.bf16.msra.mxu0 %v2094
      %2106 = vmatprep.subr.bf16.mxu0 0
      %2107 = vmatpush1.bf16.msra.mxu0 %v2095
      %2108 = vmatprep.subr.bf16.mxu0 0
      %2109 = vmatpush1.bf16.msra.mxu0 0
      %2110 = vmatprep.subr.bf16.mxu0 0
      %2111 = vmatpush1.bf16.msra.mxu0 0
      %2112 = vmatprep.subr.bf16.mxu0 0
      %2113 = vmatpush1.bf16.msra.mxu0 0
      %2114 = vmatprep.subr.bf16.mxu0 0
      %2115 = vmatpush1.bf16.msra.mxu0 0
      %2116 = vmatprep.subr.bf16.mxu0 0
      %2117 = vmatpush1.bf16.msra.mxu0 0
      %2118 = vmatprep.subr.bf16.mxu0 0
      %2119 = vmatpush1.bf16.msra.mxu0 0
      %2120 = vmatprep.subr.bf16.mxu0 0
      %2121 = vmatpush1.bf16.msra.mxu0 0
      %2122 = vmatprep.subr.bf16.mxu0 0
      %2123 = vmatpush1.bf16.msra.mxu0 0
      %2124 = vmatprep.subr.bf16.mxu0 0
      %2125 = vmatpush1.bf16.msra.mxu0 0
      %2126 = vmatprep.subr.bf16.mxu0 0
      %2127 = vmatpush1.bf16.msra.mxu0 0
      %2128 = vmatprep.subr.bf16.mxu0 0
      %2129 = vmatpush1.bf16.msra.mxu0 0
      %2130 = vmatprep.subr.bf16.mxu0 0
      %2131 = vmatpush1.bf16.msra.mxu0 0
      %2132 = vmatprep.mubr.bf16.mxu0 0
      %2133 = vmatmul.mubr.bf16.gmra.mrb[0].mxu0 %v1580
      %v2134 = vpop.f32.mrb[0].mxu0
      %v2135 = vadd.f32 %v2074, %v2134
      %v2136 = vpop.f32.mrb[0].mxu0
      %v2137 = vpop.f32.mrb[0].mxu0
      %v2138 = vpop.f32.mrb[0].mxu0
      %2139 = vdwg.mxu0
      %s2140 = scalar_lea.vmem %s19, 32
      %v2141 = vld [vmem:[%s2140] sm:$0xf]
      %v2142 = vld [vmem:[%s2140 + $0x4] sm:$0xf]
      %v2143 = vld [vmem:[%s2140 + $0x8] sm:$0xf]
      %v2144 = vld [vmem:[%s2140 + $0xc] sm:$0xf]
      %v2145 = vld [vmem:[%s2140 + $0x10] sm:$0xf]
      %v2146 = vld [vmem:[%s2140 + $0x14] sm:$0xf]
      %v2147 = vld [vmem:[%s2140 + $0x18] sm:$0xf]
      %v2148 = vld [vmem:[%s2140 + $0x1c] sm:$0xf]
      %s2149 = scalar_lea.vmem %s21, 1
      %v2150 = vld [vmem:[%s2149] sm:$0x1]
      %v2152 = vlaneseq
      %v2153 = vshrl.u32 %v2152, 7
      %v2154 = vsub.s32 0, %v2153
      %v2155 = vrot.slane %v2150, %v2154
      %v2165 = vunpack.c.l.b16 %v2141
      %v2166 = vunpack.c.l.b16 %v2142
      %v2167 = vunpack.c.l.b16 %v2143
      %v2168 = vunpack.c.l.b16 %v2144
      %v2169 = vunpack.c.l.b16 %v2145
      %v2170 = vunpack.c.l.b16 %v2146
      %v2171 = vunpack.c.l.b16 %v2147
      %v2172 = vunpack.c.l.b16 %v2148
      %v2173 = vpack.c.b16 %v2166, %v2165
      %v2174 = vpack.c.b16 %v2168, %v2167
      %v2175 = vpack.c.b16 %v2170, %v2169
      %v2176 = vpack.c.b16 %v2172, %v2171
      %2181 = vmatprep.subr.bf16.mxu0 0
      %2182 = vmatpush1.bf16.msra.mxu0 %v2173
      %2183 = vmatprep.subr.bf16.mxu0 0
      %2184 = vmatpush1.bf16.msra.mxu0 %v2174
      %2185 = vmatprep.subr.bf16.mxu0 0
      %2186 = vmatpush1.bf16.msra.mxu0 %v2175
      %2187 = vmatprep.subr.bf16.mxu0 0
      %2188 = vmatpush1.bf16.msra.mxu0 %v2176
      %2189 = vmatprep.subr.bf16.mxu0 0
      %2190 = vmatpush1.bf16.msra.mxu0 0
      %2191 = vmatprep.subr.bf16.mxu0 0
      %2192 = vmatpush1.bf16.msra.mxu0 0
      %2193 = vmatprep.subr.bf16.mxu0 0
      %2194 = vmatpush1.bf16.msra.mxu0 0
      %2195 = vmatprep.subr.bf16.mxu0 0
      %2196 = vmatpush1.bf16.msra.mxu0 0
      %2197 = vmatprep.subr.bf16.mxu0 0
      %2198 = vmatpush1.bf16.msra.mxu0 0
      %2199 = vmatprep.subr.bf16.mxu0 0
      %2200 = vmatpush1.bf16.msra.mxu0 0
      %2201 = vmatprep.subr.bf16.mxu0 0
      %2202 = vmatpush1.bf16.msra.mxu0 0
      %2203 = vmatprep.subr.bf16.mxu0 0
      %2204 = vmatpush1.bf16.msra.mxu0 0
      %2205 = vmatprep.subr.bf16.mxu0 0
      %2206 = vmatpush1.bf16.msra.mxu0 0
      %2207 = vmatprep.subr.bf16.mxu0 0
      %2208 = vmatpush1.bf16.msra.mxu0 0
      %2209 = vmatprep.subr.bf16.mxu0 0
      %2210 = vmatpush1.bf16.msra.mxu0 0
      %2211 = vmatprep.subr.bf16.mxu0 0
      %2212 = vmatpush1.bf16.msra.mxu0 0
      %2213 = vmatprep.mubr.bf16.mxu0 0
      %2214 = vmatmul.mubr.bf16.gmra.mrb[0].mxu0 %v1580
      %v2215 = vpop.f32.mrb[0].mxu0
      %v2216 = vadd.f32 %v2155, %v2215
      %v2217 = vpop.f32.mrb[0].mxu0
      %v2218 = vpop.f32.mrb[0].mxu0
      %v2219 = vpop.f32.mrb[0].mxu0
      %2220 = vdwg.mxu0
      %v2222 = vsel %vm1780, %v2054, 0
      %v2225 = vsel %vm1780, %v2135, 0
      %2227 = vmatprep.subr.mxu0 0.0
      %2228 = vmatpush1.xpose.msra.mxu0 %v2225
      %2229 = vmatprep.subr.mxu0 0.0
      %2230 = vmatpush1.xpose.msra.mxu0 0.0
      %2231 = vmatprep.subr.mxu0 0.0
      %2232 = vmatpush1.xpose.msra.mxu0 0.0
      %2233 = vmatprep.subr.mxu0 0.0
      %2234 = vmatpush1.xpose.msra.mxu0 0.0
      %2235 = vmatprep.subr.mxu0 0.0
      %2236 = vmatpush1.xpose.msra.mxu0 0.0
      %2237 = vmatprep.subr.mxu0 0.0
      %2238 = vmatpush1.xpose.msra.mxu0 0.0
      %2239 = vmatprep.subr.mxu0 0.0
      %2240 = vmatpush1.xpose.msra.mxu0 0.0
      %2241 = vmatprep.subr.mxu0 0.0
      %2242 = vmatpush1.xpose.msra.mxu0 0.0
      %2243 = vmatprep.subr.mxu0 0.0
      %2244 = vmatpush1.xpose.msra.mxu0 0.0
      %2245 = vmatprep.subr.mxu0 0.0
      %2246 = vmatpush1.xpose.msra.mxu0 0.0
      %2247 = vmatprep.subr.mxu0 0.0
      %2248 = vmatpush1.xpose.msra.mxu0 0.0
      %2249 = vmatprep.subr.mxu0 0.0
      %2250 = vmatpush1.xpose.msra.mxu0 0.0
      %2251 = vmatprep.subr.mxu0 0.0
      %2252 = vmatpush1.xpose.msra.mxu0 0.0
      %2253 = vmatprep.subr.mxu0 0.0
      %2254 = vmatpush1.xpose.msra.mxu0 0.0
      %2255 = vmatprep.subr.mxu0 0.0
      %2256 = vmatpush1.xpose.msra.mxu0 0.0
      %2257 = vmatprep.subr.mxu0 0.0
      %2258 = vmatpush1.xpose.msra.mxu0 0.0
      %2259 = vmatprep.subr.mxu0 0.0
      %2260 = vmatpush1.xpose.msra.mxu0 0.0
      %2261 = vmatprep.subr.mxu0 0.0
      %2262 = vmatpush1.xpose.msra.mxu0 0.0
      %2263 = vmatprep.subr.mxu0 0.0
      %2264 = vmatpush1.xpose.msra.mxu0 0.0
      %2265 = vmatprep.subr.mxu0 0.0
      %2266 = vmatpush1.xpose.msra.mxu0 0.0
      %2267 = vmatprep.subr.mxu0 0.0
      %2268 = vmatpush1.xpose.msra.mxu0 0.0
      %2269 = vmatprep.subr.mxu0 0.0
      %2270 = vmatpush1.xpose.msra.mxu0 0.0
      %2271 = vmatprep.subr.mxu0 0.0
      %2272 = vmatpush1.xpose.msra.mxu0 0.0
      %2273 = vmatprep.subr.mxu0 0.0
      %2274 = vmatpush1.xpose.msra.mxu0 0.0
      %2275 = vmatprep.subr.mxu0 0.0
      %2276 = vmatpush1.xpose.msra.mxu0 0.0
      %2277 = vmatprep.subr.mxu0 0.0
      %2278 = vmatpush1.xpose.msra.mxu0 0.0
      %2279 = vmatprep.subr.mxu0 0.0
      %2280 = vmatpush1.xpose.msra.mxu0 0.0
      %2281 = vmatprep.subr.mxu0 0.0
      %2282 = vmatpush1.xpose.msra.mxu0 0.0
      %2283 = vmatprep.subr.mxu0 0.0
      %2284 = vmatpush1.xpose.msra.mxu0 0.0
      %2285 = vmatprep.subr.mxu0 0.0
      %2286 = vmatpush1.xpose.msra.mxu0 0.0
      %2287 = vmatprep.subr.mxu0 0.0
      %2288 = vmatpush1.xpose.msra.mxu0 0.0
      %2289 = vmatprep.subr.mxu0 0.0
      %2290 = vmatpush1.xpose.msra.mxu0 0.0
      %2291 = vmatprep.mubr.f32.mxu0 0.0
      %2292 = vmatmul.mubr.f32.gmra.mrb[0].mxu0 %v2222
      %v2293 = vpop.f32.mrb[0].mxu0
      %v2294 = vadd.f32 0.0, %v2293
      %v2295 = vpop.f32.mrb[0].mxu0
      %2296 = vdwg.mxu0
      %v2297 = vmul.f32 %v2294, 0.25
      %v2298 = vsel %vm1858, %v2297, -inf
      %2299 = vmax.xlane.f32.xlu0 %v2298
      %v2300 = vpop.xlane.xlu0 %2299
      %v2301 = vsub.f32 %v2297, %v2300
      %v2302 = vmul.f32 %v2301, 1.442695
      %v2303 = vpow.pop %v2302
      %v2304 = vsel %vm1858, %v2303, 0.0
      %2305 = vadd.xlane.f32.xlu0 %v2304
      %v2306 = vpop.xlane.xlu0 %2305
      %v2307 = vrcp.pop %v2306
      %v2308 = vmul.f32 %v2303, %v2307
      %v2309 = vpack.c.bf16 %v2308, %v2308
      %v2310 = vpack.c.bf16 %v2216, %v2216
      %v2312 = vsel %vm1858, %v2309, 0
      %v2315 = vsel %vm1875, %v2310, 0
      %2317 = vmatprep.subr.bf16.mxu0 0
      %2318 = vmatpush1.bf16.msra.mxu0 %v2315
      %2319 = vmatprep.subr.bf16.mxu0 0
      %2320 = vmatpush1.bf16.msra.mxu0 0
      %2321 = vmatprep.subr.bf16.mxu0 0
      %2322 = vmatpush1.bf16.msra.mxu0 0
      %2323 = vmatprep.subr.bf16.mxu0 0
      %2324 = vmatpush1.bf16.msra.mxu0 0
      %2325 = vmatprep.subr.bf16.mxu0 0
      %2326 = vmatpush1.bf16.msra.mxu0 0
      %2327 = vmatprep.subr.bf16.mxu0 0
      %2328 = vmatpush1.bf16.msra.mxu0 0
      %2329 = vmatprep.subr.bf16.mxu0 0
      %2330 = vmatpush1.bf16.msra.mxu0 0
      %2331 = vmatprep.subr.bf16.mxu0 0
      %2332 = vmatpush1.bf16.msra.mxu0 0
      %2333 = vmatprep.subr.bf16.mxu0 0
      %2334 = vmatpush1.bf16.msra.mxu0 0
      %2335 = vmatprep.subr.bf16.mxu0 0
      %2336 = vmatpush1.bf16.msra.mxu0 0
      %2337 = vmatprep.subr.bf16.mxu0 0
      %2338 = vmatpush1.bf16.msra.mxu0 0
      %2339 = vmatprep.subr.bf16.mxu0 0
      %2340 = vmatpush1.bf16.msra.mxu0 0
      %2341 = vmatprep.subr.bf16.mxu0 0
      %2342 = vmatpush1.bf16.msra.mxu0 0
      %2343 = vmatprep.subr.bf16.mxu0 0
      %2344 = vmatpush1.bf16.msra.mxu0 0
      %2345 = vmatprep.subr.bf16.mxu0 0
      %2346 = vmatpush1.bf16.msra.mxu0 0
      %2347 = vmatprep.subr.bf16.mxu0 0
      %2348 = vmatpush1.bf16.msra.mxu0 0
      %2349 = vmatprep.mubr.bf16.mxu0 0
      %2350 = vmatmul.mubr.bf16.gmra.mrb[0].mxu0 %v2312
      %v2351 = vpop.f32.mrb[0].mxu0
      %v2352 = vadd.f32 0.0, %v2351
      %v2353 = vpop.f32.mrb[0].mxu0
      %v2354 = vpop.f32.mrb[0].mxu0
      %v2355 = vpop.f32.mrb[0].mxu0
      %2356 = vdwg.mxu0
      %v2357 = vpack.c.bf16 %v2352, %v2352
      %s2358 = scalar_lea.vmem %s23, 8
      %v2359 = vld [vmem:[%s2358] sm:$0xf]
      %v2360 = vld [vmem:[%s2358 + $0x4] sm:$0xf]
      %v2363 = vunpack.c.l.b16 %v2359
      %v2364 = vunpack.c.l.b16 %v2360
      %v2365 = vpack.c.b16 %v2364, %v2363
      %v2368 = vsel %vm1780, %v2357, 0
      %2370 = vmatprep.subr.bf16.mxu0 0
      %2371 = vmatpush1.bf16.msra.mxu0 %v2365
      %2372 = vmatprep.subr.bf16.mxu0 0
      %2373 = vmatpush1.bf16.msra.mxu0 0
      %2374 = vmatprep.subr.bf16.mxu0 0
      %2375 = vmatpush1.bf16.msra.mxu0 0
      %2376 = vmatprep.subr.bf16.mxu0 0
      %2377 = vmatpush1.bf16.msra.mxu0 0
      %2378 = vmatprep.subr.bf16.mxu0 0
      %2379 = vmatpush1.bf16.msra.mxu0 0
      %2380 = vmatprep.subr.bf16.mxu0 0
      %2381 = vmatpush1.bf16.msra.mxu0 0
      %2382 = vmatprep.subr.bf16.mxu0 0
      %2383 = vmatpush1.bf16.msra.mxu0 0
      %2384 = vmatprep.subr.bf16.mxu0 0
      %2385 = vmatpush1.bf16.msra.mxu0 0
      %2386 = vmatprep.subr.bf16.mxu0 0
      %2387 = vmatpush1.bf16.msra.mxu0 0
      %2388 = vmatprep.subr.bf16.mxu0 0
      %2389 = vmatpush1.bf16.msra.mxu0 0
      %2390 = vmatprep.subr.bf16.mxu0 0
      %2391 = vmatpush1.bf16.msra.mxu0 0
      %2392 = vmatprep.subr.bf16.mxu0 0
      %2393 = vmatpush1.bf16.msra.mxu0 0
      %2394 = vmatprep.subr.bf16.mxu0 0
      %2395 = vmatpush1.bf16.msra.mxu0 0
      %2396 = vmatprep.subr.bf16.mxu0 0
      %2397 = vmatpush1.bf16.msra.mxu0 0
      %2398 = vmatprep.subr.bf16.mxu0 0
      %2399 = vmatpush1.bf16.msra.mxu0 0
      %2400 = vmatprep.subr.bf16.mxu0 0
      %2401 = vmatpush1.bf16.msra.mxu0 0
      %2402 = vmatprep.mubr.bf16.mxu0 0
      %2403 = vmatmul.mubr.bf16.gmra.mrb[0].mxu0 %v2368
      %v2404 = vpop.f32.mrb[0].mxu0
      %v2405 = vadd.f32 0.0, %v2404
      %v2406 = vpop.f32.mrb[0].mxu0
      %v2407 = vpop.f32.mrb[0].mxu0
      %v2408 = vpop.f32.mrb[0].mxu0
      %2409 = vdwg.mxu0
      %v2410 = vadd.f32 %v1977, %v2405
      %s2411 = scalar_lea.vmem %s11, 64
      %v2412 = vld [vmem:[%s2411] sm:$0xf]
      %v2413 = vld [vmem:[%s2411 + $0x4] sm:$0xf]
      %v2414 = vld [vmem:[%s2411 + $0x8] sm:$0xf]
      %v2415 = vld [vmem:[%s2411 + $0xc] sm:$0xf]
      %v2416 = vld [vmem:[%s2411 + $0x10] sm:$0xf]
      %v2417 = vld [vmem:[%s2411 + $0x14] sm:$0xf]
      %v2418 = vld [vmem:[%s2411 + $0x18] sm:$0xf]
      %v2419 = vld [vmem:[%s2411 + $0x1c] sm:$0xf]
      %s2420 = scalar_lea.vmem %s13, 2
      %v2421 = vld [vmem:[%s2420] sm:$0x1]
      %v2423 = vlaneseq
      %v2424 = vshrl.u32 %v2423, 7
      %v2425 = vsub.s32 0, %v2424
      %v2426 = vrot.slane %v2421, %v2425
      %v2436 = vunpack.c.l.b16 %v2412
      %v2437 = vunpack.c.l.b16 %v2413
      %v2438 = vunpack.c.l.b16 %v2414
      %v2439 = vunpack.c.l.b16 %v2415
      %v2440 = vunpack.c.l.b16 %v2416
      %v2441 = vunpack.c.l.b16 %v2417
      %v2442 = vunpack.c.l.b16 %v2418
      %v2443 = vunpack.c.l.b16 %v2419
      %v2444 = vpack.c.b16 %v2437, %v2436
      %v2445 = vpack.c.b16 %v2439, %v2438
      %v2446 = vpack.c.b16 %v2441, %v2440
      %v2447 = vpack.c.b16 %v2443, %v2442
      %2452 = vmatprep.subr.bf16.mxu0 0
      %2453 = vmatpush1.bf16.msra.mxu0 %v2444
      %2454 = vmatprep.subr.bf16.mxu0 0
      %2455 = vmatpush1.bf16.msra.mxu0 %v2445
      %2456 = vmatprep.subr.bf16.mxu0 0
      %2457 = vmatpush1.bf16.msra.mxu0 %v2446
      %2458 = vmatprep.subr.bf16.mxu0 0
      %2459 = vmatpush1.bf16.msra.mxu0 %v2447
      %2460 = vmatprep.subr.bf16.mxu0 0
      %2461 = vmatpush1.bf16.msra.mxu0 0
      %2462 = vmatprep.subr.bf16.mxu0 0
      %2463 = vmatpush1.bf16.msra.mxu0 0
      %2464 = vmatprep.subr.bf16.mxu0 0
      %2465 = vmatpush1.bf16.msra.mxu0 0
      %2466 = vmatprep.subr.bf16.mxu0 0
      %2467 = vmatpush1.bf16.msra.mxu0 0
      %2468 = vmatprep.subr.bf16.mxu0 0
      %2469 = vmatpush1.bf16.msra.mxu0 0
      %2470 = vmatprep.subr.bf16.mxu0 0
      %2471 = vmatpush1.bf16.msra.mxu0 0
      %2472 = vmatprep.subr.bf16.mxu0 0
      %2473 = vmatpush1.bf16.msra.mxu0 0
      %2474 = vmatprep.subr.bf16.mxu0 0
      %2475 = vmatpush1.bf16.msra.mxu0 0
      %2476 = vmatprep.subr.bf16.mxu0 0
      %2477 = vmatpush1.bf16.msra.mxu0 0
      %2478 = vmatprep.subr.bf16.mxu0 0
      %2479 = vmatpush1.bf16.msra.mxu0 0
      %2480 = vmatprep.subr.bf16.mxu0 0
      %2481 = vmatpush1.bf16.msra.mxu0 0
      %2482 = vmatprep.subr.bf16.mxu0 0
      %2483 = vmatpush1.bf16.msra.mxu0 0
      %2484 = vmatprep.mubr.bf16.mxu0 0
      %2485 = vmatmul.mubr.bf16.gmra.mrb[0].mxu0 %v1580
      %v2486 = vpop.f32.mrb[0].mxu0
      %v2487 = vadd.f32 %v2426, %v2486
      %v2488 = vpop.f32.mrb[0].mxu0
      %v2489 = vpop.f32.mrb[0].mxu0
      %v2490 = vpop.f32.mrb[0].mxu0
      %2491 = vdwg.mxu0
      %s2492 = scalar_lea.vmem %s15, 64
      %v2493 = vld [vmem:[%s2492] sm:$0xf]
      %v2494 = vld [vmem:[%s2492 + $0x4] sm:$0xf]
      %v2495 = vld [vmem:[%s2492 + $0x8] sm:$0xf]
      %v2496 = vld [vmem:[%s2492 + $0xc] sm:$0xf]
      %v2497 = vld [vmem:[%s2492 + $0x10] sm:$0xf]
      %v2498 = vld [vmem:[%s2492 + $0x14] sm:$0xf]
      %v2499 = vld [vmem:[%s2492 + $0x18] sm:$0xf]
      %v2500 = vld [vmem:[%s2492 + $0x1c] sm:$0xf]
      %s2501 = scalar_lea.vmem %s17, 2
      %v2502 = vld [vmem:[%s2501] sm:$0x1]
      %v2504 = vlaneseq
      %v2505 = vshrl.u32 %v2504, 7
      %v2506 = vsub.s32 0, %v2505
      %v2507 = vrot.slane %v2502, %v2506
      %v2517 = vunpack.c.l.b16 %v2493
      %v2518 = vunpack.c.l.b16 %v2494
      %v2519 = vunpack.c.l.b16 %v2495
      %v2520 = vunpack.c.l.b16 %v2496
      %v2521 = vunpack.c.l.b16 %v2497
      %v2522 = vunpack.c.l.b16 %v2498
      %v2523 = vunpack.c.l.b16 %v2499
      %v2524 = vunpack.c.l.b16 %v2500
      %v2525 = vpack.c.b16 %v2518, %v2517
      %v2526 = vpack.c.b16 %v2520, %v2519
      %v2527 = vpack.c.b16 %v2522, %v2521
      %v2528 = vpack.c.b16 %v2524, %v2523
      %2533 = vmatprep.subr.bf16.mxu0 0
      %2534 = vmatpush1.bf16.msra.mxu0 %v2525
      %2535 = vmatprep.subr.bf16.mxu0 0
      %2536 = vmatpush1.bf16.msra.mxu0 %v2526
      %2537 = vmatprep.subr.bf16.mxu0 0
      %2538 = vmatpush1.bf16.msra.mxu0 %v2527
      %2539 = vmatprep.subr.bf16.mxu0 0
      %2540 = vmatpush1.bf16.msra.mxu0 %v2528
      %2541 = vmatprep.subr.bf16.mxu0 0
      %2542 = vmatpush1.bf16.msra.mxu0 0
      %2543 = vmatprep.subr.bf16.mxu0 0
      %2544 = vmatpush1.bf16.msra.mxu0 0
      %2545 = vmatprep.subr.bf16.mxu0 0
      %2546 = vmatpush1.bf16.msra.mxu0 0
      %2547 = vmatprep.subr.bf16.mxu0 0
      %2548 = vmatpush1.bf16.msra.mxu0 0
      %2549 = vmatprep.subr.bf16.mxu0 0
      %2550 = vmatpush1.bf16.msra.mxu0 0
      %2551 = vmatprep.subr.bf16.mxu0 0
      %2552 = vmatpush1.bf16.msra.mxu0 0
      %2553 = vmatprep.subr.bf16.mxu0 0
      %2554 = vmatpush1.bf16.msra.mxu0 0
      %2555 = vmatprep.subr.bf16.mxu0 0
      %2556 = vmatpush1.bf16.msra.mxu0 0
      %2557 = vmatprep.subr.bf16.mxu0 0
      %2558 = vmatpush1.bf16.msra.mxu0 0
      %2559 = vmatprep.subr.bf16.mxu0 0
      %2560 = vmatpush1.bf16.msra.mxu0 0
      %2561 = vmatprep.subr.bf16.mxu0 0
      %2562 = vmatpush1.bf16.msra.mxu0 0
      %2563 = vmatprep.subr.bf16.mxu0 0
      %2564 = vmatpush1.bf16.msra.mxu0 0
      %2565 = vmatprep.mubr.bf16.mxu0 0
      %2566 = vmatmul.mubr.bf16.gmra.mrb[0].mxu0 %v1580
      %v2567 = vpop.f32.mrb[0].mxu0
      %v2568 = vadd.f32 %v2507, %v2567
      %v2569 = vpop.f32.mrb[0].mxu0
      %v2570 = vpop.f32.mrb[0].mxu0
      %v2571 = vpop.f32.mrb[0].mxu0
      %2572 = vdwg.mxu0
      %s2573 = scalar_lea.vmem %s19, 64
      %v2574 = vld [vmem:[%s2573] sm:$0xf]
      %v2575 = vld [vmem:[%s2573 + $0x4] sm:$0xf]
      %v2576 = vld [vmem:[%s2573 + $0x8] sm:$0xf]
      %v2577 = vld [vmem:[%s2573 + $0xc] sm:$0xf]
      %v2578 = vld [vmem:[%s2573 + $0x10] sm:$0xf]
      %v2579 = vld [vmem:[%s2573 + $0x14] sm:$0xf]
      %v2580 = vld [vmem:[%s2573 + $0x18] sm:$0xf]
      %v2581 = vld [vmem:[%s2573 + $0x1c] sm:$0xf]
      %s2582 = scalar_lea.vmem %s21, 2
      %v2583 = vld [vmem:[%s2582] sm:$0x1]
      %v2585 = vlaneseq
      %v2586 = vshrl.u32 %v2585, 7
      %v2587 = vsub.s32 0, %v2586
      %v2588 = vrot.slane %v2583, %v2587
      %v2598 = vunpack.c.l.b16 %v2574
      %v2599 = vunpack.c.l.b16 %v2575
      %v2600 = vunpack.c.l.b16 %v2576
      %v2601 = vunpack.c.l.b16 %v2577
      %v2602 = vunpack.c.l.b16 %v2578
      %v2603 = vunpack.c.l.b16 %v2579
      %v2604 = vunpack.c.l.b16 %v2580
      %v2605 = vunpack.c.l.b16 %v2581
      %v2606 = vpack.c.b16 %v2599, %v2598
      %v2607 = vpack.c.b16 %v2601, %v2600
      %v2608 = vpack.c.b16 %v2603, %v2602
      %v2609 = vpack.c.b16 %v2605, %v2604
      %2614 = vmatprep.subr.bf16.mxu0 0
      %2615 = vmatpush1.bf16.msra.mxu0 %v2606
      %2616 = vmatprep.subr.bf16.mxu0 0
      %2617 = vmatpush1.bf16.msra.mxu0 %v2607
      %2618 = vmatprep.subr.bf16.mxu0 0
      %2619 = vmatpush1.bf16.msra.mxu0 %v2608
      %2620 = vmatprep.subr.bf16.mxu0 0
      %2621 = vmatpush1.bf16.msra.mxu0 %v2609
      %2622 = vmatprep.subr.bf16.mxu0 0
      %2623 = vmatpush1.bf16.msra.mxu0 0
      %2624 = vmatprep.subr.bf16.mxu0 0
      %2625 = vmatpush1.bf16.msra.mxu0 0
      %2626 = vmatprep.subr.bf16.mxu0 0
      %2627 = vmatpush1.bf16.msra.mxu0 0
      %2628 = vmatprep.subr.bf16.mxu0 0
      %2629 = vmatpush1.bf16.msra.mxu0 0
      %2630 = vmatprep.subr.bf16.mxu0 0
      %2631 = vmatpush1.bf16.msra.mxu0 0
      %2632 = vmatprep.subr.bf16.mxu0 0
      %2633 = vmatpush1.bf16.msra.mxu0 0
      %2634 = vmatprep.subr.bf16.mxu0 0
      %2635 = vmatpush1.bf16.msra.mxu0 0
      %2636 = vmatprep.subr.bf16.mxu0 0
      %2637 = vmatpush1.bf16.msra.mxu0 0
      %2638 = vmatprep.subr.bf16.mxu0 0
      %2639 = vmatpush1.bf16.msra.mxu0 0
      %2640 = vmatprep.subr.bf16.mxu0 0
      %2641 = vmatpush1.bf16.msra.mxu0 0
      %2642 = vmatprep.subr.bf16.mxu0 0
      %2643 = vmatpush1.bf16.msra.mxu0 0
      %2644 = vmatprep.subr.bf16.mxu0 0
      %2645 = vmatpush1.bf16.msra.mxu0 0
      %2646 = vmatprep.mubr.bf16.mxu0 0
      %2647 = vmatmul.mubr.bf16.gmra.mrb[0].mxu0 %v1580
      %v2648 = vpop.f32.mrb[0].mxu0
      %v2649 = vadd.f32 %v2588, %v2648
      %v2650 = vpop.f32.mrb[0].mxu0
      %v2651 = vpop.f32.mrb[0].mxu0
      %v2652 = vpop.f32.mrb[0].mxu0
      %2653 = vdwg.mxu0
      %v2655 = vsel %vm1780, %v2487, 0
      %v2658 = vsel %vm1780, %v2568, 0
      %2660 = vmatprep.subr.mxu0 0.0
      %2661 = vmatpush1.xpose.msra.mxu0 %v2658
      %2662 = vmatprep.subr.mxu0 0.0
      %2663 = vmatpush1.xpose.msra.mxu0 0.0
      %2664 = vmatprep.subr.mxu0 0.0
      %2665 = vmatpush1.xpose.msra.mxu0 0.0
      %2666 = vmatprep.subr.mxu0 0.0
      %2667 = vmatpush1.xpose.msra.mxu0 0.0
      %2668 = vmatprep.subr.mxu0 0.0
      %2669 = vmatpush1.xpose.msra.mxu0 0.0
      %2670 = vmatprep.subr.mxu0 0.0
      %2671 = vmatpush1.xpose.msra.mxu0 0.0
      %2672 = vmatprep.subr.mxu0 0.0
      %2673 = vmatpush1.xpose.msra.mxu0 0.0
      %2674 = vmatprep.subr.mxu0 0.0
      %2675 = vmatpush1.xpose.msra.mxu0 0.0
      %2676 = vmatprep.subr.mxu0 0.0
      %2677 = vmatpush1.xpose.msra.mxu0 0.0
      %2678 = vmatprep.subr.mxu0 0.0
      %2679 = vmatpush1.xpose.msra.mxu0 0.0
      %2680 = vmatprep.subr.mxu0 0.0
      %2681 = vmatpush1.xpose.msra.mxu0 0.0
      %2682 = vmatprep.subr.mxu0 0.0
      %2683 = vmatpush1.xpose.msra.mxu0 0.0
      %2684 = vmatprep.subr.mxu0 0.0
      %2685 = vmatpush1.xpose.msra.mxu0 0.0
      %2686 = vmatprep.subr.mxu0 0.0
      %2687 = vmatpush1.xpose.msra.mxu0 0.0
      %2688 = vmatprep.subr.mxu0 0.0
      %2689 = vmatpush1.xpose.msra.mxu0 0.0
      %2690 = vmatprep.subr.mxu0 0.0
      %2691 = vmatpush1.xpose.msra.mxu0 0.0
      %2692 = vmatprep.subr.mxu0 0.0
      %2693 = vmatpush1.xpose.msra.mxu0 0.0
      %2694 = vmatprep.subr.mxu0 0.0
      %2695 = vmatpush1.xpose.msra.mxu0 0.0
      %2696 = vmatprep.subr.mxu0 0.0
      %2697 = vmatpush1.xpose.msra.mxu0 0.0
      %2698 = vmatprep.subr.mxu0 0.0
      %2699 = vmatpush1.xpose.msra.mxu0 0.0
      %2700 = vmatprep.subr.mxu0 0.0
      %2701 = vmatpush1.xpose.msra.mxu0 0.0
      %2702 = vmatprep.subr.mxu0 0.0
      %2703 = vmatpush1.xpose.msra.mxu0 0.0
      %2704 = vmatprep.subr.mxu0 0.0
      %2705 = vmatpush1.xpose.msra.mxu0 0.0
      %2706 = vmatprep.subr.mxu0 0.0
      %2707 = vmatpush1.xpose.msra.mxu0 0.0
      %2708 = vmatprep.subr.mxu0 0.0
      %2709 = vmatpush1.xpose.msra.mxu0 0.0
      %2710 = vmatprep.subr.mxu0 0.0
      %2711 = vmatpush1.xpose.msra.mxu0 0.0
      %2712 = vmatprep.subr.mxu0 0.0
      %2713 = vmatpush1.xpose.msra.mxu0 0.0
      %2714 = vmatprep.subr.mxu0 0.0
      %2715 = vmatpush1.xpose.msra.mxu0 0.0
      %2716 = vmatprep.subr.mxu0 0.0
      %2717 = vmatpush1.xpose.msra.mxu0 0.0
      %2718 = vmatprep.subr.mxu0 0.0
      %2719 = vmatpush1.xpose.msra.mxu0 0.0
      %2720 = vmatprep.subr.mxu0 0.0
      %2721 = vmatpush1.xpose.msra.mxu0 0.0
      %2722 = vmatprep.subr.mxu0 0.0
      %2723 = vmatpush1.xpose.msra.mxu0 0.0
      %2724 = vmatprep.mubr.f32.mxu0 0.0
      %2725 = vmatmul.mubr.f32.gmra.mrb[0].mxu0 %v2655
      %v2726 = vpop.f32.mrb[0].mxu0
      %v2727 = vadd.f32 0.0, %v2726
      %v2728 = vpop.f32.mrb[0].mxu0
      %2729 = vdwg.mxu0
      %v2730 = vmul.f32 %v2727, 0.25
      %v2731 = vsel %vm1858, %v2730, -inf
      %2732 = vmax.xlane.f32.xlu0 %v2731
      %v2733 = vpop.xlane.xlu0 %2732
      %v2734 = vsub.f32 %v2730, %v2733
      %v2735 = vmul.f32 %v2734, 1.442695
      %v2736 = vpow.pop %v2735
      %v2737 = vsel %vm1858, %v2736, 0.0
      %2738 = vadd.xlane.f32.xlu0 %v2737
      %v2739 = vpop.xlane.xlu0 %2738
      %v2740 = vrcp.pop %v2739
      %v2741 = vmul.f32 %v2736, %v2740
      %v2742 = vpack.c.bf16 %v2741, %v2741
      %v2743 = vpack.c.bf16 %v2649, %v2649
      %v2745 = vsel %vm1858, %v2742, 0
      %v2748 = vsel %vm1875, %v2743, 0
      %2750 = vmatprep.subr.bf16.mxu0 0
      %2751 = vmatpush1.bf16.msra.mxu0 %v2748
      %2752 = vmatprep.subr.bf16.mxu0 0
      %2753 = vmatpush1.bf16.msra.mxu0 0
      %2754 = vmatprep.subr.bf16.mxu0 0
      %2755 = vmatpush1.bf16.msra.mxu0 0
      %2756 = vmatprep.subr.bf16.mxu0 0
      %2757 = vmatpush1.bf16.msra.mxu0 0
      %2758 = vmatprep.subr.bf16.mxu0 0
      %2759 = vmatpush1.bf16.msra.mxu0 0
      %2760 = vmatprep.subr.bf16.mxu0 0
      %2761 = vmatpush1.bf16.msra.mxu0 0
      %2762 = vmatprep.subr.bf16.mxu0 0
      %2763 = vmatpush1.bf16.msra.mxu0 0
      %2764 = vmatprep.subr.bf16.mxu0 0
      %2765 = vmatpush1.bf16.msra.mxu0 0
      %2766 = vmatprep.subr.bf16.mxu0 0
      %2767 = vmatpush1.bf16.msra.mxu0 0
      %2768 = vmatprep.subr.bf16.mxu0 0
      %2769 = vmatpush1.bf16.msra.mxu0 0
      %2770 = vmatprep.subr.bf16.mxu0 0
      %2771 = vmatpush1.bf16.msra.mxu0 0
      %2772 = vmatprep.subr.bf16.mxu0 0
      %2773 = vmatpush1.bf16.msra.mxu0 0
      %2774 = vmatprep.subr.bf16.mxu0 0
      %2775 = vmatpush1.bf16.msra.mxu0 0
      %2776 = vmatprep.subr.bf16.mxu0 0
      %2777 = vmatpush1.bf16.msra.mxu0 0
      %2778 = vmatprep.subr.bf16.mxu0 0
      %2779 = vmatpush1.bf16.msra.mxu0 0
      %2780 = vmatprep.subr.bf16.mxu0 0
      %2781 = vmatpush1.bf16.msra.mxu0 0
      %2782 = vmatprep.mubr.bf16.mxu0 0
      %2783 = vmatmul.mubr.bf16.gmra.mrb[0].mxu0 %v2745
      %v2784 = vpop.f32.mrb[0].mxu0
      %v2785 = vadd.f32 0.0, %v2784
      %v2786 = vpop.f32.mrb[0].mxu0
      %v2787 = vpop.f32.mrb[0].mxu0
      %v2788 = vpop.f32.mrb[0].mxu0
      %2789 = vdwg.mxu0
      %v2790 = vpack.c.bf16 %v2785, %v2785
      %s2791 = scalar_lea.vmem %s23, 16
      %v2792 = vld [vmem:[%s2791] sm:$0xf]
      %v2793 = vld [vmem:[%s2791 + $0x4] sm:$0xf]
      %v2796 = vunpack.c.l.b16 %v2792
      %v2797 = vunpack.c.l.b16 %v2793
      %v2798 = vpack.c.b16 %v2797, %v2796
      %v2801 = vsel %vm1780, %v2790, 0
      %2803 = vmatprep.subr.bf16.mxu0 0
      %2804 = vmatpush1.bf16.msra.mxu0 %v2798
      %2805 = vmatprep.subr.bf16.mxu0 0
      %2806 = vmatpush1.bf16.msra.mxu0 0
      %2807 = vmatprep.subr.bf16.mxu0 0
      %2808 = vmatpush1.bf16.msra.mxu0 0
      %2809 = vmatprep.subr.bf16.mxu0 0
      %2810 = vmatpush1.bf16.msra.mxu0 0
      %2811 = vmatprep.subr.bf16.mxu0 0
      %2812 = vmatpush1.bf16.msra.mxu0 0
      %2813 = vmatprep.subr.bf16.mxu0 0
      %2814 = vmatpush1.bf16.msra.mxu0 0
      %2815 = vmatprep.subr.bf16.mxu0 0
      %2816 = vmatpush1.bf16.msra.mxu0 0
      %2817 = vmatprep.subr.bf16.mxu0 0
      %2818 = vmatpush1.bf16.msra.mxu0 0
      %2819 = vmatprep.subr.bf16.mxu0 0
      %2820 = vmatpush1.bf16.msra.mxu0 0
      %2821 = vmatprep.subr.bf16.mxu0 0
      %2822 = vmatpush1.bf16.msra.mxu0 0
      %2823 = vmatprep.subr.bf16.mxu0 0
      %2824 = vmatpush1.bf16.msra.mxu0 0
      %2825 = vmatprep.subr.bf16.mxu0 0
      %2826 = vmatpush1.bf16.msra.mxu0 0
      %2827 = vmatprep.subr.bf16.mxu0 0
      %2828 = vmatpush1.bf16.msra.mxu0 0
      %2829 = vmatprep.subr.bf16.mxu0 0
      %2830 = vmatpush1.bf16.msra.mxu0 0
      %2831 = vmatprep.subr.bf16.mxu0 0
      %2832 = vmatpush1.bf16.msra.mxu0 0
      %2833 = vmatprep.subr.bf16.mxu0 0
      %2834 = vmatpush1.bf16.msra.mxu0 0
      %2835 = vmatprep.mubr.bf16.mxu0 0
      %2836 = vmatmul.mubr.bf16.gmra.mrb[0].mxu0 %v2801
      %v2837 = vpop.f32.mrb[0].mxu0
      %v2838 = vadd.f32 0.0, %v2837
      %v2839 = vpop.f32.mrb[0].mxu0
      %v2840 = vpop.f32.mrb[0].mxu0
      %v2841 = vpop.f32.mrb[0].mxu0
      %2842 = vdwg.mxu0
      %v2843 = vadd.f32 %v2410, %v2838
      %s2844 = scalar_lea.vmem %s11, 96
      %v2845 = vld [vmem:[%s2844] sm:$0xf]
      %v2846 = vld [vmem:[%s2844 + $0x4] sm:$0xf]
      %v2847 = vld [vmem:[%s2844 + $0x8] sm:$0xf]
      %v2848 = vld [vmem:[%s2844 + $0xc] sm:$0xf]
      %v2849 = vld [vmem:[%s2844 + $0x10] sm:$0xf]
      %v2850 = vld [vmem:[%s2844 + $0x14] sm:$0xf]
      %v2851 = vld [vmem:[%s2844 + $0x18] sm:$0xf]
      %v2852 = vld [vmem:[%s2844 + $0x1c] sm:$0xf]
      %s2853 = scalar_lea.vmem %s13, 3
      %v2854 = vld [vmem:[%s2853] sm:$0x1]
      %v2856 = vlaneseq
      %v2857 = vshrl.u32 %v2856, 7
      %v2858 = vsub.s32 0, %v2857
      %v2859 = vrot.slane %v2854, %v2858
      %v2869 = vunpack.c.l.b16 %v2845
      %v2870 = vunpack.c.l.b16 %v2846
      %v2871 = vunpack.c.l.b16 %v2847
      %v2872 = vunpack.c.l.b16 %v2848
      %v2873 = vunpack.c.l.b16 %v2849
      %v2874 = vunpack.c.l.b16 %v2850
      %v2875 = vunpack.c.l.b16 %v2851
      %v2876 = vunpack.c.l.b16 %v2852
      %v2877 = vpack.c.b16 %v2870, %v2869
      %v2878 = vpack.c.b16 %v2872, %v2871
      %v2879 = vpack.c.b16 %v2874, %v2873
      %v2880 = vpack.c.b16 %v2876, %v2875
      %2885 = vmatprep.subr.bf16.mxu0 0
      %2886 = vmatpush1.bf16.msra.mxu0 %v2877
      %2887 = vmatprep.subr.bf16.mxu0 0
      %2888 = vmatpush1.bf16.msra.mxu0 %v2878
      %2889 = vmatprep.subr.bf16.mxu0 0
      %2890 = vmatpush1.bf16.msra.mxu0 %v2879
      %2891 = vmatprep.subr.bf16.mxu0 0
      %2892 = vmatpush1.bf16.msra.mxu0 %v2880
      %2893 = vmatprep.subr.bf16.mxu0 0
      %2894 = vmatpush1.bf16.msra.mxu0 0
      %2895 = vmatprep.subr.bf16.mxu0 0
      %2896 = vmatpush1.bf16.msra.mxu0 0
      %2897 = vmatprep.subr.bf16.mxu0 0
      %2898 = vmatpush1.bf16.msra.mxu0 0
      %2899 = vmatprep.subr.bf16.mxu0 0
      %2900 = vmatpush1.bf16.msra.mxu0 0
      %2901 = vmatprep.subr.bf16.mxu0 0
      %2902 = vmatpush1.bf16.msra.mxu0 0
      %2903 = vmatprep.subr.bf16.mxu0 0
      %2904 = vmatpush1.bf16.msra.mxu0 0
      %2905 = vmatprep.subr.bf16.mxu0 0
      %2906 = vmatpush1.bf16.msra.mxu0 0
      %2907 = vmatprep.subr.bf16.mxu0 0
      %2908 = vmatpush1.bf16.msra.mxu0 0
      %2909 = vmatprep.subr.bf16.mxu0 0
      %2910 = vmatpush1.bf16.msra.mxu0 0
      %2911 = vmatprep.subr.bf16.mxu0 0
      %2912 = vmatpush1.bf16.msra.mxu0 0
      %2913 = vmatprep.subr.bf16.mxu0 0
      %2914 = vmatpush1.bf16.msra.mxu0 0
      %2915 = vmatprep.subr.bf16.mxu0 0
      %2916 = vmatpush1.bf16.msra.mxu0 0
      %2917 = vmatprep.mubr.bf16.mxu0 0
      %2918 = vmatmul.mubr.bf16.gmra.mrb[0].mxu0 %v1580
      %v2919 = vpop.f32.mrb[0].mxu0
      %v2920 = vadd.f32 %v2859, %v2919
      %v2921 = vpop.f32.mrb[0].mxu0
      %v2922 = vpop.f32.mrb[0].mxu0
      %v2923 = vpop.f32.mrb[0].mxu0
      %2924 = vdwg.mxu0
      %s2925 = scalar_lea.vmem %s15, 96
      %v2926 = vld [vmem:[%s2925] sm:$0xf]
      %v2927 = vld [vmem:[%s2925 + $0x4] sm:$0xf]
      %v2928 = vld [vmem:[%s2925 + $0x8] sm:$0xf]
      %v2929 = vld [vmem:[%s2925 + $0xc] sm:$0xf]
      %v2930 = vld [vmem:[%s2925 + $0x10] sm:$0xf]
      %v2931 = vld [vmem:[%s2925 + $0x14] sm:$0xf]
      %v2932 = vld [vmem:[%s2925 + $0x18] sm:$0xf]
      %v2933 = vld [vmem:[%s2925 + $0x1c] sm:$0xf]
      %s2934 = scalar_lea.vmem %s17, 3
      %v2935 = vld [vmem:[%s2934] sm:$0x1]
      %v2937 = vlaneseq
      %v2938 = vshrl.u32 %v2937, 7
      %v2939 = vsub.s32 0, %v2938
      %v2940 = vrot.slane %v2935, %v2939
      %v2950 = vunpack.c.l.b16 %v2926
      %v2951 = vunpack.c.l.b16 %v2927
      %v2952 = vunpack.c.l.b16 %v2928
      %v2953 = vunpack.c.l.b16 %v2929
      %v2954 = vunpack.c.l.b16 %v2930
      %v2955 = vunpack.c.l.b16 %v2931
      %v2956 = vunpack.c.l.b16 %v2932
      %v2957 = vunpack.c.l.b16 %v2933
      %v2958 = vpack.c.b16 %v2951, %v2950
      %v2959 = vpack.c.b16 %v2953, %v2952
      %v2960 = vpack.c.b16 %v2955, %v2954
      %v2961 = vpack.c.b16 %v2957, %v2956
      %2966 = vmatprep.subr.bf16.mxu0 0
      %2967 = vmatpush1.bf16.msra.mxu0 %v2958
      %2968 = vmatprep.subr.bf16.mxu0 0
      %2969 = vmatpush1.bf16.msra.mxu0 %v2959
      %2970 = vmatprep.subr.bf16.mxu0 0
      %2971 = vmatpush1.bf16.msra.mxu0 %v2960
      %2972 = vmatprep.subr.bf16.mxu0 0
      %2973 = vmatpush1.bf16.msra.mxu0 %v2961
      %2974 = vmatprep.subr.bf16.mxu0 0
      %2975 = vmatpush1.bf16.msra.mxu0 0
      %2976 = vmatprep.subr.bf16.mxu0 0
      %2977 = vmatpush1.bf16.msra.mxu0 0
      %2978 = vmatprep.subr.bf16.mxu0 0
      %2979 = vmatpush1.bf16.msra.mxu0 0
      %2980 = vmatprep.subr.bf16.mxu0 0
      %2981 = vmatpush1.bf16.msra.mxu0 0
      %2982 = vmatprep.subr.bf16.mxu0 0
      %2983 = vmatpush1.bf16.msra.mxu0 0
      %2984 = vmatprep.subr.bf16.mxu0 0
      %2985 = vmatpush1.bf16.msra.mxu0 0
      %2986 = vmatprep.subr.bf16.mxu0 0
      %2987 = vmatpush1.bf16.msra.mxu0 0
      %2988 = vmatprep.subr.bf16.mxu0 0
      %2989 = vmatpush1.bf16.msra.mxu0 0
      %2990 = vmatprep.subr.bf16.mxu0 0
      %2991 = vmatpush1.bf16.msra.mxu0 0
      %2992 = vmatprep.subr.bf16.mxu0 0
      %2993 = vmatpush1.bf16.msra.mxu0 0
      %2994 = vmatprep.subr.bf16.mxu0 0
      %2995 = vmatpush1.bf16.msra.mxu0 0
      %2996 = vmatprep.subr.bf16.mxu0 0
      %2997 = vmatpush1.bf16.msra.mxu0 0
      %2998 = vmatprep.mubr.bf16.mxu0 0
      %2999 = vmatmul.mubr.bf16.gmra.mrb[0].mxu0 %v1580
      %v3000 = vpop.f32.mrb[0].mxu0
      %v3001 = vadd.f32 %v2940, %v3000
      %v3002 = vpop.f32.mrb[0].mxu0
      %v3003 = vpop.f32.mrb[0].mxu0
      %v3004 = vpop.f32.mrb[0].mxu0
      %3005 = vdwg.mxu0
      %s3006 = scalar_lea.vmem %s19, 96
      %v3007 = vld [vmem:[%s3006] sm:$0xf]
      %v3008 = vld [vmem:[%s3006 + $0x4] sm:$0xf]
      %v3009 = vld [vmem:[%s3006 + $0x8] sm:$0xf]
      %v3010 = vld [vmem:[%s3006 + $0xc] sm:$0xf]
      %v3011 = vld [vmem:[%s3006 + $0x10] sm:$0xf]
      %v3012 = vld [vmem:[%s3006 + $0x14] sm:$0xf]
      %v3013 = vld [vmem:[%s3006 + $0x18] sm:$0xf]
      %v3014 = vld [vmem:[%s3006 + $0x1c] sm:$0xf]
      %s3015 = scalar_lea.vmem %s21, 3
      %v3016 = vld [vmem:[%s3015] sm:$0x1]
      %v3018 = vlaneseq
      %v3019 = vshrl.u32 %v3018, 7
      %v3020 = vsub.s32 0, %v3019
      %v3021 = vrot.slane %v3016, %v3020
      %v3031 = vunpack.c.l.b16 %v3007
      %v3032 = vunpack.c.l.b16 %v3008
      %v3033 = vunpack.c.l.b16 %v3009
      %v3034 = vunpack.c.l.b16 %v3010
      %v3035 = vunpack.c.l.b16 %v3011
      %v3036 = vunpack.c.l.b16 %v3012
      %v3037 = vunpack.c.l.b16 %v3013
      %v3038 = vunpack.c.l.b16 %v3014
      %v3039 = vpack.c.b16 %v3032, %v3031
      %v3040 = vpack.c.b16 %v3034, %v3033
      %v3041 = vpack.c.b16 %v3036, %v3035
      %v3042 = vpack.c.b16 %v3038, %v3037
      %3047 = vmatprep.subr.bf16.mxu0 0
      %3048 = vmatpush1.bf16.msra.mxu0 %v3039
      %3049 = vmatprep.subr.bf16.mxu0 0
      %3050 = vmatpush1.bf16.msra.mxu0 %v3040
      %3051 = vmatprep.subr.bf16.mxu0 0
      %3052 = vmatpush1.bf16.msra.mxu0 %v3041
      %3053 = vmatprep.subr.bf16.mxu0 0
      %3054 = vmatpush1.bf16.msra.mxu0 %v3042
      %3055 = vmatprep.subr.bf16.mxu0 0
      %3056 = vmatpush1.bf16.msra.mxu0 0
      %3057 = vmatprep.subr.bf16.mxu0 0
      %3058 = vmatpush1.bf16.msra.mxu0 0
      %3059 = vmatprep.subr.bf16.mxu0 0
      %3060 = vmatpush1.bf16.msra.mxu0 0
      %3061 = vmatprep.subr.bf16.mxu0 0
      %3062 = vmatpush1.bf16.msra.mxu0 0
      %3063 = vmatprep.subr.bf16.mxu0 0
      %3064 = vmatpush1.bf16.msra.mxu0 0
      %3065 = vmatprep.subr.bf16.mxu0 0
      %3066 = vmatpush1.bf16.msra.mxu0 0
      %3067 = vmatprep.subr.bf16.mxu0 0
      %3068 = vmatpush1.bf16.msra.mxu0 0
      %3069 = vmatprep.subr.bf16.mxu0 0
      %3070 = vmatpush1.bf16.msra.mxu0 0
      %3071 = vmatprep.subr.bf16.mxu0 0
      %3072 = vmatpush1.bf16.msra.mxu0 0
      %3073 = vmatprep.subr.bf16.mxu0 0
      %3074 = vmatpush1.bf16.msra.mxu0 0
      %3075 = vmatprep.subr.bf16.mxu0 0
      %3076 = vmatpush1.bf16.msra.mxu0 0
      %3077 = vmatprep.subr.bf16.mxu0 0
      %3078 = vmatpush1.bf16.msra.mxu0 0
      %3079 = vmatprep.mubr.bf16.mxu0 0
      %3080 = vmatmul.mubr.bf16.gmra.mrb[0].mxu0 %v1580
      %v3081 = vpop.f32.mrb[0].mxu0
      %v3082 = vadd.f32 %v3021, %v3081
      %v3083 = vpop.f32.mrb[0].mxu0
      %v3084 = vpop.f32.mrb[0].mxu0
      %v3085 = vpop.f32.mrb[0].mxu0
      %3086 = vdwg.mxu0
      %v3088 = vsel %vm1780, %v2920, 0
      %v3091 = vsel %vm1780, %v3001, 0
      %3093 = vmatprep.subr.mxu0 0.0
      %3094 = vmatpush1.xpose.msra.mxu0 %v3091
      %3095 = vmatprep.subr.mxu0 0.0
      %3096 = vmatpush1.xpose.msra.mxu0 0.0
      %3097 = vmatprep.subr.mxu0 0.0
      %3098 = vmatpush1.xpose.msra.mxu0 0.0
      %3099 = vmatprep.subr.mxu0 0.0
      %3100 = vmatpush1.xpose.msra.mxu0 0.0
      %3101 = vmatprep.subr.mxu0 0.0
      %3102 = vmatpush1.xpose.msra.mxu0 0.0
      %3103 = vmatprep.subr.mxu0 0.0
      %3104 = vmatpush1.xpose.msra.mxu0 0.0
      %3105 = vmatprep.subr.mxu0 0.0
      %3106 = vmatpush1.xpose.msra.mxu0 0.0
      %3107 = vmatprep.subr.mxu0 0.0
      %3108 = vmatpush1.xpose.msra.mxu0 0.0
      %3109 = vmatprep.subr.mxu0 0.0
      %3110 = vmatpush1.xpose.msra.mxu0 0.0
      %3111 = vmatprep.subr.mxu0 0.0
      %3112 = vmatpush1.xpose.msra.mxu0 0.0
      %3113 = vmatprep.subr.mxu0 0.0
      %3114 = vmatpush1.xpose.msra.mxu0 0.0
      %3115 = vmatprep.subr.mxu0 0.0
      %3116 = vmatpush1.xpose.msra.mxu0 0.0
      %3117 = vmatprep.subr.mxu0 0.0
      %3118 = vmatpush1.xpose.msra.mxu0 0.0
      %3119 = vmatprep.subr.mxu0 0.0
      %3120 = vmatpush1.xpose.msra.mxu0 0.0
      %3121 = vmatprep.subr.mxu0 0.0
      %3122 = vmatpush1.xpose.msra.mxu0 0.0
      %3123 = vmatprep.subr.mxu0 0.0
      %3124 = vmatpush1.xpose.msra.mxu0 0.0
      %3125 = vmatprep.subr.mxu0 0.0
      %3126 = vmatpush1.xpose.msra.mxu0 0.0
      %3127 = vmatprep.subr.mxu0 0.0
      %3128 = vmatpush1.xpose.msra.mxu0 0.0
      %3129 = vmatprep.subr.mxu0 0.0
      %3130 = vmatpush1.xpose.msra.mxu0 0.0
      %3131 = vmatprep.subr.mxu0 0.0
      %3132 = vmatpush1.xpose.msra.mxu0 0.0
      %3133 = vmatprep.subr.mxu0 0.0
      %3134 = vmatpush1.xpose.msra.mxu0 0.0
      %3135 = vmatprep.subr.mxu0 0.0
      %3136 = vmatpush1.xpose.msra.mxu0 0.0
      %3137 = vmatprep.subr.mxu0 0.0
      %3138 = vmatpush1.xpose.msra.mxu0 0.0
      %3139 = vmatprep.subr.mxu0 0.0
      %3140 = vmatpush1.xpose.msra.mxu0 0.0
      %3141 = vmatprep.subr.mxu0 0.0
      %3142 = vmatpush1.xpose.msra.mxu0 0.0
      %3143 = vmatprep.subr.mxu0 0.0
      %3144 = vmatpush1.xpose.msra.mxu0 0.0
      %3145 = vmatprep.subr.mxu0 0.0
      %3146 = vmatpush1.xpose.msra.mxu0 0.0
      %3147 = vmatprep.subr.mxu0 0.0
      %3148 = vmatpush1.xpose.msra.mxu0 0.0
      %3149 = vmatprep.subr.mxu0 0.0
      %3150 = vmatpush1.xpose.msra.mxu0 0.0
      %3151 = vmatprep.subr.mxu0 0.0
      %3152 = vmatpush1.xpose.msra.mxu0 0.0
      %3153 = vmatprep.subr.mxu0 0.0
      %3154 = vmatpush1.xpose.msra.mxu0 0.0
      %3155 = vmatprep.subr.mxu0 0.0
      %3156 = vmatpush1.xpose.msra.mxu0 0.0
      %3157 = vmatprep.mubr.f32.mxu0 0.0
      %3158 = vmatmul.mubr.f32.gmra.mrb[0].mxu0 %v3088
      %v3159 = vpop.f32.mrb[0].mxu0
      %v3160 = vadd.f32 0.0, %v3159
      %v3161 = vpop.f32.mrb[0].mxu0
      %3162 = vdwg.mxu0
      %v3163 = vmul.f32 %v3160, 0.25
      %v3164 = vsel %vm1858, %v3163, -inf
      %3165 = vmax.xlane.f32.xlu0 %v3164
      %v3166 = vpop.xlane.xlu0 %3165
      %v3167 = vsub.f32 %v3163, %v3166
      %v3168 = vmul.f32 %v3167, 1.442695
      %v3169 = vpow.pop %v3168
      %v3170 = vsel %vm1858, %v3169, 0.0
      %3171 = vadd.xlane.f32.xlu0 %v3170
      %v3172 = vpop.xlane.xlu0 %3171
      %v3173 = vrcp.pop %v3172
      %v3174 = vmul.f32 %v3169, %v3173
      %v3175 = vpack.c.bf16 %v3174, %v3174
      %v3176 = vpack.c.bf16 %v3082, %v3082
      %v3178 = vsel %vm1858, %v3175, 0
      %v3181 = vsel %vm1875, %v3176, 0
      %3183 = vmatprep.subr.bf16.mxu0 0
      %3184 = vmatpush1.bf16.msra.mxu0 %v3181
      %3185 = vmatprep.subr.bf16.mxu0 0
      %3186 = vmatpush1.bf16.msra.mxu0 0
      %3187 = vmatprep.subr.bf16.mxu0 0
      %3188 = vmatpush1.bf16.msra.mxu0 0
      %3189 = vmatprep.subr.bf16.mxu0 0
      %3190 = vmatpush1.bf16.msra.mxu0 0
      %3191 = vmatprep.subr.bf16.mxu0 0
      %3192 = vmatpush1.bf16.msra.mxu0 0
      %3193 = vmatprep.subr.bf16.mxu0 0
      %3194 = vmatpush1.bf16.msra.mxu0 0
      %3195 = vmatprep.subr.bf16.mxu0 0
      %3196 = vmatpush1.bf16.msra.mxu0 0
      %3197 = vmatprep.subr.bf16.mxu0 0
      %3198 = vmatpush1.bf16.msra.mxu0 0
      %3199 = vmatprep.subr.bf16.mxu0 0
      %3200 = vmatpush1.bf16.msra.mxu0 0
      %3201 = vmatprep.subr.bf16.mxu0 0
      %3202 = vmatpush1.bf16.msra.mxu0 0
      %3203 = vmatprep.subr.bf16.mxu0 0
      %3204 = vmatpush1.bf16.msra.mxu0 0
      %3205 = vmatprep.subr.bf16.mxu0 0
      %3206 = vmatpush1.bf16.msra.mxu0 0
      %3207 = vmatprep.subr.bf16.mxu0 0
      %3208 = vmatpush1.bf16.msra.mxu0 0
      %3209 = vmatprep.subr.bf16.mxu0 0
      %3210 = vmatpush1.bf16.msra.mxu0 0
      %3211 = vmatprep.subr.bf16.mxu0 0
      %3212 = vmatpush1.bf16.msra.mxu0 0
      %3213 = vmatprep.subr.bf16.mxu0 0
      %3214 = vmatpush1.bf16.msra.mxu0 0
      %3215 = vmatprep.mubr.bf16.mxu0 0
      %3216 = vmatmul.mubr.bf16.gmra.mrb[0].mxu0 %v3178
      %v3217 = vpop.f32.mrb[0].mxu0
      %v3218 = vadd.f32 0.0, %v3217
      %v3219 = vpop.f32.mrb[0].mxu0
      %v3220 = vpop.f32.mrb[0].mxu0
      %v3221 = vpop.f32.mrb[0].mxu0
      %3222 = vdwg.mxu0
      %v3223 = vpack.c.bf16 %v3218, %v3218
      %s3224 = scalar_lea.vmem %s23, 24
      %v3225 = vld [vmem:[%s3224] sm:$0xf]
      %v3226 = vld [vmem:[%s3224 + $0x4] sm:$0xf]
      %v3229 = vunpack.c.l.b16 %v3225
      %v3230 = vunpack.c.l.b16 %v3226
      %v3231 = vpack.c.b16 %v3230, %v3229
      %v3234 = vsel %vm1780, %v3223, 0
      %3236 = vmatprep.subr.bf16.mxu0 0
      %3237 = vmatpush1.bf16.msra.mxu0 %v3231
      %3238 = vmatprep.subr.bf16.mxu0 0
      %3239 = vmatpush1.bf16.msra.mxu0 0
      %3240 = vmatprep.subr.bf16.mxu0 0
      %3241 = vmatpush1.bf16.msra.mxu0 0
      %3242 = vmatprep.subr.bf16.mxu0 0
      %3243 = vmatpush1.bf16.msra.mxu0 0
      %3244 = vmatprep.subr.bf16.mxu0 0
      %3245 = vmatpush1.bf16.msra.mxu0 0
      %3246 = vmatprep.subr.bf16.mxu0 0
      %3247 = vmatpush1.bf16.msra.mxu0 0
      %3248 = vmatprep.subr.bf16.mxu0 0
      %3249 = vmatpush1.bf16.msra.mxu0 0
      %3250 = vmatprep.subr.bf16.mxu0 0
      %3251 = vmatpush1.bf16.msra.mxu0 0
      %3252 = vmatprep.subr.bf16.mxu0 0
      %3253 = vmatpush1.bf16.msra.mxu0 0
      %3254 = vmatprep.subr.bf16.mxu0 0
      %3255 = vmatpush1.bf16.msra.mxu0 0
      %3256 = vmatprep.subr.bf16.mxu0 0
      %3257 = vmatpush1.bf16.msra.mxu0 0
      %3258 = vmatprep.subr.bf16.mxu0 0
      %3259 = vmatpush1.bf16.msra.mxu0 0
      %3260 = vmatprep.subr.bf16.mxu0 0
      %3261 = vmatpush1.bf16.msra.mxu0 0
      %3262 = vmatprep.subr.bf16.mxu0 0
      %3263 = vmatpush1.bf16.msra.mxu0 0
      %3264 = vmatprep.subr.bf16.mxu0 0
      %3265 = vmatpush1.bf16.msra.mxu0 0
      %3266 = vmatprep.subr.bf16.mxu0 0
      %3267 = vmatpush1.bf16.msra.mxu0 0
      %3268 = vmatprep.mubr.bf16.mxu0 0
      %3269 = vmatmul.mubr.bf16.gmra.mrb[0].mxu0 %v3234
      %v3270 = vpop.f32.mrb[0].mxu0
      %v3271 = vadd.f32 0.0, %v3270
      %v3272 = vpop.f32.mrb[0].mxu0
      %v3273 = vpop.f32.mrb[0].mxu0
      %v3274 = vpop.f32.mrb[0].mxu0
      %3275 = vdwg.mxu0
      %v3276 = vadd.f32 %v2843, %v3271
      %v3277 = vadd.f32 %v1536, %v3276
      %v3278 = vsel %vm1578, %v3277, 0.0
      %3279 = vadd.xlane.f32.xlu0 %v3278
      %v3280 = vpop.xlane.xlu0 %3279
      %v3281 = vrcp.pop 64.0
      %v3282 = vmul.f32 %v3280, %v3281
      %v3283 = vsub.f32 %v3277, %v3282
      %v3284 = vmul.f32 %v3283, %v3283
      %v3285 = vsel %vm1578, %v3284, 0.0
      %3286 = vadd.xlane.f32.xlu0 %v3285
      %v3287 = vpop.xlane.xlu0 %3286
      %v3288 = vmul.f32 %v3287, %v3281
      %v3289 = vadd.f32 %v3288, 1e-05
      %v3290 = vrsqrt.pop %v3289
      %v3291 = vmul.f32 %v3283, %v3290
      %v3292 = vld [vmem:[%s27] sm:$0x1]
      %v3294 = vlaneseq
      %v3295 = vshrl.u32 %v3294, 7
      %v3296 = vsub.s32 0, %v3295
      %v3297 = vrot.slane %v3292, %v3296
      %v3299 = vmul.f32 %v3291, %v3297
      %v3300 = vld [vmem:[%s29] sm:$0x1]
      %v3302 = vlaneseq
      %v3303 = vshrl.u32 %v3302, 7
      %v3304 = vsub.s32 0, %v3303
      %v3305 = vrot.slane %v3300, %v3304
      %v3307 = vadd.f32 %v3299, %v3305
      %v3308 = vpack.c.bf16 %v3307, %v3307
      %v3309 = vld [vmem:[%s31] sm:$0xff]
      %v3310 = vld [vmem:[%s31 + $0x8] sm:$0xff]
      %v3311 = vld [vmem:[%s31 + $0x10] sm:$0xff]
      %v3312 = vld [vmem:[%s31 + $0x18] sm:$0xff]
      %v3313 = vld [vmem:[%s31 + $0x20] sm:$0xff]
      %v3314 = vld [vmem:[%s31 + $0x28] sm:$0xff]
      %v3315 = vld [vmem:[%s31 + $0x30] sm:$0xff]
      %v3316 = vld [vmem:[%s31 + $0x38] sm:$0xff]
      %v3317 = vld [vmem:[%s33] sm:$0x3]
      %v3319 = vlaneseq
      %v3320 = vshrl.u32 %v3319, 7
      %v3321 = vsub.s32 0, %v3320
      %v3322 = vrot.slane %v3317, %v3321
      %v3323 = vlaneseq
      %v3324 = vshrl.u32 %v3323, 7
      %v3325 = vsub.s32 1, %v3324
      %v3326 = vrot.slane %v3317, %v3325
      %v3337 = vunpack.c.l.b16 %v3309
      %v3338 = vunpack.c.h.b16 %v3309
      %v3339 = vunpack.c.l.b16 %v3310
      %v3340 = vunpack.c.h.b16 %v3310
      %v3341 = vunpack.c.l.b16 %v3311
      %v3342 = vunpack.c.h.b16 %v3311
      %v3343 = vunpack.c.l.b16 %v3312
      %v3344 = vunpack.c.h.b16 %v3312
      %v3345 = vunpack.c.l.b16 %v3313
      %v3346 = vunpack.c.h.b16 %v3313
      %v3347 = vunpack.c.l.b16 %v3314
      %v3348 = vunpack.c.h.b16 %v3314
      %v3349 = vunpack.c.l.b16 %v3315
      %v3350 = vunpack.c.h.b16 %v3315
      %v3351 = vunpack.c.l.b16 %v3316
      %v3352 = vunpack.c.h.b16 %v3316
      %v3353 = vpack.c.b16 %v3339, %v3337
      %v3354 = vpack.c.b16 %v3340, %v3338
      %v3355 = vpack.c.b16 %v3343, %v3341
      %v3356 = vpack.c.b16 %v3344, %v3342
      %v3357 = vpack.c.b16 %v3347, %v3345
      %v3358 = vpack.c.b16 %v3348, %v3346
      %v3359 = vpack.c.b16 %v3351, %v3349
      %v3360 = vpack.c.b16 %v3352, %v3350
      %v3370 = vsel %vm1578, %v3308, 0
      %3372 = vmatprep.subr.bf16.mxu0 %v3354
      %3373 = vmatpush1.bf16.msra.mxu0 %v3353
      %3374 = vmatprep.subr.bf16.mxu0 %v3356
      %3375 = vmatpush1.bf16.msra.mxu0 %v3355
      %3376 = vmatprep.subr.bf16.mxu0 %v3358
      %3377 = vmatpush1.bf16.msra.mxu0 %v3357
      %3378 = vmatprep.subr.bf16.mxu0 %v3360
      %3379 = vmatpush1.bf16.msra.mxu0 %v3359
      %3380 = vmatprep.subr.bf16.mxu0 0
      %3381 = vmatpush1.bf16.msra.mxu0 0
      %3382 = vmatprep.subr.bf16.mxu0 0
      %3383 = vmatpush1.bf16.msra.mxu0 0
      %3384 = vmatprep.subr.bf16.mxu0 0
      %3385 = vmatpush1.bf16.msra.mxu0 0
      %3386 = vmatprep.subr.bf16.mxu0 0
      %3387 = vmatpush1.bf16.msra.mxu0 0
      %3388 = vmatprep.subr.bf16.mxu0 0
      %3389 = vmatpush1.bf16.msra.mxu0 0
      %3390 = vmatprep.subr.bf16.mxu0 0
      %3391 = vmatpush1.bf16.msra.mxu0 0
      %3392 = vmatprep.subr.bf16.mxu0 0
      %3393 = vmatpush1.bf16.msra.mxu0 0
      %3394 = vmatprep.subr.bf16.mxu0 0
      %3395 = vmatpush1.bf16.msra.mxu0 0
      %3396 = vmatprep.subr.bf16.mxu0 0
      %3397 = vmatpush1.bf16.msra.mxu0 0
      %3398 = vmatprep.subr.bf16.mxu0 0
      %3399 = vmatpush1.bf16.msra.mxu0 0
      %3400 = vmatprep.subr.bf16.mxu0 0
      %3401 = vmatpush1.bf16.msra.mxu0 0
      %3402 = vmatprep.subr.bf16.mxu0 0
      %3403 = vmatpush1.bf16.msra.mxu0 0
      %3404 = vmatprep.mubr.bf16.mxu0 0
      %3405 = vmatmul.mubr.bf16.gmra.mrb[0].mxu0 %v3370
      %v3406 = vpop.f32.mrb[0].mxu0
      %v3407 = vadd.f32 %v3322, %v3406
      %v3408 = vpop.f32.mrb[0].mxu0
      %v3409 = vadd.f32 %v3326, %v3408
      %v3410 = vpop.f32.mrb[0].mxu0
      %v3411 = vpop.f32.mrb[0].mxu0
      %3412 = vdwg.mxu0
      %v3413 = vmax.f32 %v3407, 0.0
      %v3414 = vmax.f32 %v3409, 0.0
      %v3415 = vpack.c.bf16 %v3413, %v3413
      %v3416 = vpack.c.bf16 %v3414, %v3414
      %v3417 = vld [vmem:[%s35] sm:$0xf]
      %v3418 = vld [vmem:[%s35 + $0x4] sm:$0xf]
      %v3419 = vld [vmem:[%s35 + $0x8] sm:$0xf]
      %v3420 = vld [vmem:[%s35 + $0xc] sm:$0xf]
      %v3421 = vld [vmem:[%s35 + $0x10] sm:$0xf]
      %v3422 = vld [vmem:[%s35 + $0x14] sm:$0xf]
      %v3423 = vld [vmem:[%s35 + $0x18] sm:$0xf]
      %v3424 = vld [vmem:[%s35 + $0x1c] sm:$0xf]
      %v3425 = vld [vmem:[%s35 + $0x20] sm:$0xf]
      %v3426 = vld [vmem:[%s35 + $0x24] sm:$0xf]
      %v3427 = vld [vmem:[%s35 + $0x28] sm:$0xf]
      %v3428 = vld [vmem:[%s35 + $0x2c] sm:$0xf]
      %v3429 = vld [vmem:[%s35 + $0x30] sm:$0xf]
      %v3430 = vld [vmem:[%s35 + $0x34] sm:$0xf]
      %v3431 = vld [vmem:[%s35 + $0x38] sm:$0xf]
      %v3432 = vld [vmem:[%s35 + $0x3c] sm:$0xf]
      %v3433 = vld [vmem:[%s35 + $0x40] sm:$0xf]
      %v3434 = vld [vmem:[%s35 + $0x44] sm:$0xf]
      %v3435 = vld [vmem:[%s35 + $0x48] sm:$0xf]
      %v3436 = vld [vmem:[%s35 + $0x4c] sm:$0xf]
      %v3437 = vld [vmem:[%s35 + $0x50] sm:$0xf]
      %v3438 = vld [vmem:[%s35 + $0x54] sm:$0xf]
      %v3439 = vld [vmem:[%s35 + $0x58] sm:$0xf]
      %v3440 = vld [vmem:[%s35 + $0x5c] sm:$0xf]
      %v3441 = vld [vmem:[%s35 + $0x60] sm:$0xf]
      %v3442 = vld [vmem:[%s35 + $0x64] sm:$0xf]
      %v3443 = vld [vmem:[%s35 + $0x68] sm:$0xf]
      %v3444 = vld [vmem:[%s35 + $0x6c] sm:$0xf]
      %v3445 = vld [vmem:[%s35 + $0x70] sm:$0xf]
      %v3446 = vld [vmem:[%s35 + $0x74] sm:$0xf]
      %v3447 = vld [vmem:[%s35 + $0x78] sm:$0xf]
      %v3448 = vld [vmem:[%s35 + $0x7c] sm:$0xf]
      %v3449 = vld [vmem:[%s37] sm:$0x1]
      %v3451 = vlaneseq
      %v3452 = vshrl.u32 %v3451, 7
      %v3453 = vsub.s32 0, %v3452
      %v3454 = vrot.slane %v3449, %v3453
      %v3488 = vunpack.c.l.b16 %v3417
      %v3489 = vunpack.c.l.b16 %v3418
      %v3490 = vunpack.c.l.b16 %v3419
      %v3491 = vunpack.c.l.b16 %v3420
      %v3492 = vunpack.c.l.b16 %v3421
      %v3493 = vunpack.c.l.b16 %v3422
      %v3494 = vunpack.c.l.b16 %v3423
      %v3495 = vunpack.c.l.b16 %v3424
      %v3496 = vunpack.c.l.b16 %v3425
      %v3497 = vunpack.c.l.b16 %v3426
      %v3498 = vunpack.c.l.b16 %v3427
      %v3499 = vunpack.c.l.b16 %v3428
      %v3500 = vunpack.c.l.b16 %v3429
      %v3501 = vunpack.c.l.b16 %v3430
      %v3502 = vunpack.c.l.b16 %v3431
      %v3503 = vunpack.c.l.b16 %v3432
      %v3504 = vunpack.c.l.b16 %v3433
      %v3505 = vunpack.c.l.b16 %v3434
      %v3506 = vunpack.c.l.b16 %v3435
      %v3507 = vunpack.c.l.b16 %v3436
      %v3508 = vunpack.c.l.b16 %v3437
      %v3509 = vunpack.c.l.b16 %v3438
      %v3510 = vunpack.c.l.b16 %v3439
      %v3511 = vunpack.c.l.b16 %v3440
      %v3512 = vunpack.c.l.b16 %v3441
      %v3513 = vunpack.c.l.b16 %v3442
      %v3514 = vunpack.c.l.b16 %v3443
      %v3515 = vunpack.c.l.b16 %v3444
      %v3516 = vunpack.c.l.b16 %v3445
      %v3517 = vunpack.c.l.b16 %v3446
      %v3518 = vunpack.c.l.b16 %v3447
      %v3519 = vunpack.c.l.b16 %v3448
      %v3520 = vpack.c.b16 %v3489, %v3488
      %v3521 = vpack.c.b16 %v3491, %v3490
      %v3522 = vpack.c.b16 %v3493, %v3492
      %v3523 = vpack.c.b16 %v3495, %v3494
      %v3524 = vpack.c.b16 %v3497, %v3496
      %v3525 = vpack.c.b16 %v3499, %v3498
      %v3526 = vpack.c.b16 %v3501, %v3500
      %v3527 = vpack.c.b16 %v3503, %v3502
      %v3528 = vpack.c.b16 %v3505, %v3504
      %v3529 = vpack.c.b16 %v3507, %v3506
      %v3530 = vpack.c.b16 %v3509, %v3508
      %v3531 = vpack.c.b16 %v3511, %v3510
      %v3532 = vpack.c.b16 %v3513, %v3512
      %v3533 = vpack.c.b16 %v3515, %v3514
      %v3534 = vpack.c.b16 %v3517, %v3516
      %v3535 = vpack.c.b16 %v3519, %v3518
      %3552 = vmatprep.subr.bf16.mxu0 0
      %3553 = vmatpush1.bf16.msra.mxu0 %v3520
      %3554 = vmatprep.subr.bf16.mxu0 0
      %3555 = vmatpush1.bf16.msra.mxu0 %v3521
      %3556 = vmatprep.subr.bf16.mxu0 0
      %3557 = vmatpush1.bf16.msra.mxu0 %v3522
      %3558 = vmatprep.subr.bf16.mxu0 0
      %3559 = vmatpush1.bf16.msra.mxu0 %v3523
      %3560 = vmatprep.subr.bf16.mxu0 0
      %3561 = vmatpush1.bf16.msra.mxu0 %v3524
      %3562 = vmatprep.subr.bf16.mxu0 0
      %3563 = vmatpush1.bf16.msra.mxu0 %v3525
      %3564 = vmatprep.subr.bf16.mxu0 0
      %3565 = vmatpush1.bf16.msra.mxu0 %v3526
      %3566 = vmatprep.subr.bf16.mxu0 0
      %3567 = vmatpush1.bf16.msra.mxu0 %v3527
      %3568 = vmatprep.subr.bf16.mxu0 0
      %3569 = vmatpush1.bf16.msra.mxu0 %v3528
      %3570 = vmatprep.subr.bf16.mxu0 0
      %3571 = vmatpush1.bf16.msra.mxu0 %v3529
      %3572 = vmatprep.subr.bf16.mxu0 0
      %3573 = vmatpush1.bf16.msra.mxu0 %v3530
      %3574 = vmatprep.subr.bf16.mxu0 0
      %3575 = vmatpush1.bf16.msra.mxu0 %v3531
      %3576 = vmatprep.subr.bf16.mxu0 0
      %3577 = vmatpush1.bf16.msra.mxu0 %v3532
      %3578 = vmatprep.subr.bf16.mxu0 0
      %3579 = vmatpush1.bf16.msra.mxu0 %v3533
      %3580 = vmatprep.subr.bf16.mxu0 0
      %3581 = vmatpush1.bf16.msra.mxu0 %v3534
      %3582 = vmatprep.subr.bf16.mxu0 0
      %3583 = vmatpush1.bf16.msra.mxu0 %v3535
      %3584 = vmatprep.mubr.bf16.mxu0 %v3416
      %3585 = vmatmul.mubr.bf16.gmra.mrb[0].mxu0 %v3415
      %v3586 = vpop.f32.mrb[0].mxu0
      %v3587 = vadd.f32 %v3454, %v3586
      %v3588 = vpop.f32.mrb[0].mxu0
      %v3589 = vpop.f32.mrb[0].mxu0
      %v3590 = vpop.f32.mrb[0].mxu0
      %3591 = vdwg.mxu0
      %v3592 = vadd.f32 %v3307, %v3587
      %v3593 = vsel %vm1578, %v3592, 0.0
      %3594 = vadd.xlane.f32.xlu0 %v3593
      %v3595 = vpop.xlane.xlu0 %3594
      %v3596 = vmul.f32 %v3595, %v3281
      %v3597 = vsub.f32 %v3592, %v3596
      %v3598 = vmul.f32 %v3597, %v3597
      %v3599 = vsel %vm1578, %v3598, 0.0
      %3600 = vadd.xlane.f32.xlu0 %v3599
      %v3601 = vpop.xlane.xlu0 %3600
      %v3602 = vmul.f32 %v3601, %v3281
      %v3603 = vadd.f32 %v3602, 1e-05
      %v3604 = vrsqrt.pop %v3603
      %v3605 = vmul.f32 %v3597, %v3604
      %v3606 = vld [vmem:[%s39] sm:$0x1]
      %v3608 = vlaneseq
      %v3609 = vshrl.u32 %v3608, 7
      %v3610 = vsub.s32 0, %v3609
      %v3611 = vrot.slane %v3606, %v3610
      %v3613 = vmul.f32 %v3605, %v3611
      %v3614 = vld [vmem:[%s41] sm:$0x1]
      %v3616 = vlaneseq
      %v3617 = vshrl.u32 %v3616, 7
      %v3618 = vsub.s32 0, %v3617
      %v3619 = vrot.slane %v3614, %v3618
      %v3621 = vadd.f32 %v3613, %v3619
      %v3622 = vld [vmem:[%s1470] sm:$0xff]
      %v3623 = vmul.f32 %v3622, 2.0
      %v3624 = vpack.c.bf16 %v3623, %v3623
      %v3626 = vsel %vm1487, %v3624, 0
      %3628 = vmatprep.subr.bf16.mxu0 0
      %3629 = vmatpush1.bf16.msra.mxu0 %v1493
      %3630 = vmatprep.subr.bf16.mxu0 0
      %3631 = vmatpush1.bf16.msra.mxu0 0
      %3632 = vmatprep.subr.bf16.mxu0 0
      %3633 = vmatpush1.bf16.msra.mxu0 0
      %3634 = vmatprep.subr.bf16.mxu0 0
      %3635 = vmatpush1.bf16.msra.mxu0 0
      %3636 = vmatprep.subr.bf16.mxu0 0
      %3637 = vmatpush1.bf16.msra.mxu0 0
      %3638 = vmatprep.subr.bf16.mxu0 0
      %3639 = vmatpush1.bf16.msra.mxu0 0
      %3640 = vmatprep.subr.bf16.mxu0 0
      %3641 = vmatpush1.bf16.msra.mxu0 0
      %3642 = vmatprep.subr.bf16.mxu0 0
      %3643 = vmatpush1.bf16.msra.mxu0 0
      %3644 = vmatprep.subr.bf16.mxu0 0
      %3645 = vmatpush1.bf16.msra.mxu0 0
      %3646 = vmatprep.subr.bf16.mxu0 0
      %3647 = vmatpush1.bf16.msra.mxu0 0
      %3648 = vmatprep.subr.bf16.mxu0 0
      %3649 = vmatpush1.bf16.msra.mxu0 0
      %3650 = vmatprep.subr.bf16.mxu0 0
      %3651 = vmatpush1.bf16.msra.mxu0 0
      %3652 = vmatprep.subr.bf16.mxu0 0
      %3653 = vmatpush1.bf16.msra.mxu0 0
      %3654 = vmatprep.subr.bf16.mxu0 0
      %3655 = vmatpush1.bf16.msra.mxu0 0
      %3656 = vmatprep.subr.bf16.mxu0 0
      %3657 = vmatpush1.bf16.msra.mxu0 0
      %3658 = vmatprep.subr.bf16.mxu0 0
      %3659 = vmatpush1.bf16.msra.mxu0 0
      %3660 = vmatprep.mubr.bf16.mxu0 0
      %3661 = vmatmul.mubr.bf16.gmra.mrb[0].mxu0 %v3626
      %v3662 = vpop.f32.mrb[0].mxu0
      %v3663 = vadd.f32 %v1485, %v3662
      %v3664 = vpop.f32.mrb[0].mxu0
      %v3665 = vpop.f32.mrb[0].mxu0
      %v3666 = vpop.f32.mrb[0].mxu0
      %3667 = vdwg.mxu0
      %v3668 = vpack.c.bf16 %v3663, %v3663
      %v3669 = vld [vmem:[%s57] sm:$0x1]
      %v3670 = vld [vmem:[%s43] sm:$0xf]
      %v3671 = vld [vmem:[%s43 + $0x4] sm:$0xf]
      %v3672 = vld [vmem:[%s43 + $0x8] sm:$0xf]
      %v3673 = vld [vmem:[%s43 + $0xc] sm:$0xf]
      %v3674 = vld [vmem:[%s43 + $0x10] sm:$0xf]
      %v3675 = vld [vmem:[%s43 + $0x14] sm:$0xf]
      %v3676 = vld [vmem:[%s43 + $0x18] sm:$0xf]
      %v3677 = vld [vmem:[%s43 + $0x1c] sm:$0xf]
      %v3678 = vld [vmem:[%s45] sm:$0x1]
      %v3680 = vlaneseq
      %v3681 = vshrl.u32 %v3680, 7
      %v3682 = vsub.s32 0, %v3681
      %v3683 = vrot.slane %v3678, %v3682
      %v3693 = vunpack.c.l.b16 %v3670
      %v3694 = vunpack.c.l.b16 %v3671
      %v3695 = vunpack.c.l.b16 %v3672
      %v3696 = vunpack.c.l.b16 %v3673
      %v3697 = vunpack.c.l.b16 %v3674
      %v3698 = vunpack.c.l.b16 %v3675
      %v3699 = vunpack.c.l.b16 %v3676
      %v3700 = vunpack.c.l.b16 %v3677
      %v3701 = vpack.c.b16 %v3694, %v3693
      %v3702 = vpack.c.b16 %v3696, %v3695
      %v3703 = vpack.c.b16 %v3698, %v3697
      %v3704 = vpack.c.b16 %v3700, %v3699
      %v3710 = vsel %vm1578, %v3668, 0
      %3712 = vmatprep.subr.bf16.mxu0 0
      %3713 = vmatpush1.bf16.msra.mxu0 %v3701
      %3714 = vmatprep.subr.bf16.mxu0 0
      %3715 = vmatpush1.bf16.msra.mxu0 %v3702
      %3716 = vmatprep.subr.bf16.mxu0 0
      %3717 = vmatpush1.bf16.msra.mxu0 %v3703
      %3718 = vmatprep.subr.bf16.mxu0 0
      %3719 = vmatpush1.bf16.msra.mxu0 %v3704
      %3720 = vmatprep.subr.bf16.mxu0 0
      %3721 = vmatpush1.bf16.msra.mxu0 0
      %3722 = vmatprep.subr.bf16.mxu0 0
      %3723 = vmatpush1.bf16.msra.mxu0 0
      %3724 = vmatprep.subr.bf16.mxu0 0
      %3725 = vmatpush1.bf16.msra.mxu0 0
      %3726 = vmatprep.subr.bf16.mxu0 0
      %3727 = vmatpush1.bf16.msra.mxu0 0
      %3728 = vmatprep.subr.bf16.mxu0 0
      %3729 = vmatpush1.bf16.msra.mxu0 0
      %3730 = vmatprep.subr.bf16.mxu0 0
      %3731 = vmatpush1.bf16.msra.mxu0 0
      %3732 = vmatprep.subr.bf16.mxu0 0
      %3733 = vmatpush1.bf16.msra.mxu0 0
      %3734 = vmatprep.subr.bf16.mxu0 0
      %3735 = vmatpush1.bf16.msra.mxu0 0
      %3736 = vmatprep.subr.bf16.mxu0 0
      %3737 = vmatpush1.bf16.msra.mxu0 0
      %3738 = vmatprep.subr.bf16.mxu0 0
      %3739 = vmatpush1.bf16.msra.mxu0 0
      %3740 = vmatprep.subr.bf16.mxu0 0
      %3741 = vmatpush1.bf16.msra.mxu0 0
      %3742 = vmatprep.subr.bf16.mxu0 0
      %3743 = vmatpush1.bf16.msra.mxu0 0
      %3744 = vmatprep.mubr.bf16.mxu0 0
      %3745 = vmatmul.mubr.bf16.gmra.mrb[0].mxu0 %v3710
      %v3746 = vpop.f32.mrb[0].mxu0
      %v3747 = vadd.f32 %v3683, %v3746
      %v3748 = vpop.f32.mrb[0].mxu0
      %v3749 = vpop.f32.mrb[0].mxu0
      %v3750 = vpop.f32.mrb[0].mxu0
      %3751 = vdwg.mxu0
      %v3752 = vld [vmem:[%s47] sm:$0xf]
      %v3753 = vld [vmem:[%s47 + $0x4] sm:$0xf]
      %v3754 = vld [vmem:[%s47 + $0x8] sm:$0xf]
      %v3755 = vld [vmem:[%s47 + $0xc] sm:$0xf]
      %v3756 = vld [vmem:[%s47 + $0x10] sm:$0xf]
      %v3757 = vld [vmem:[%s47 + $0x14] sm:$0xf]
      %v3758 = vld [vmem:[%s47 + $0x18] sm:$0xf]
      %v3759 = vld [vmem:[%s47 + $0x1c] sm:$0xf]
      %v3760 = vld [vmem:[%s49] sm:$0x1]
      %v3762 = vlaneseq
      %v3763 = vshrl.u32 %v3762, 7
      %v3764 = vsub.s32 0, %v3763
      %v3765 = vrot.slane %v3760, %v3764
      %v3775 = vunpack.c.l.b16 %v3752
      %v3776 = vunpack.c.l.b16 %v3753
      %v3777 = vunpack.c.l.b16 %v3754
      %v3778 = vunpack.c.l.b16 %v3755
      %v3779 = vunpack.c.l.b16 %v3756
      %v3780 = vunpack.c.l.b16 %v3757
      %v3781 = vunpack.c.l.b16 %v3758
      %v3782 = vunpack.c.l.b16 %v3759
      %v3783 = vpack.c.b16 %v3776, %v3775
      %v3784 = vpack.c.b16 %v3778, %v3777
      %v3785 = vpack.c.b16 %v3780, %v3779
      %v3786 = vpack.c.b16 %v3782, %v3781
      %3791 = vmatprep.subr.bf16.mxu0 0
      %3792 = vmatpush1.bf16.msra.mxu0 %v3783
      %3793 = vmatprep.subr.bf16.mxu0 0
      %3794 = vmatpush1.bf16.msra.mxu0 %v3784
      %3795 = vmatprep.subr.bf16.mxu0 0
      %3796 = vmatpush1.bf16.msra.mxu0 %v3785
      %3797 = vmatprep.subr.bf16.mxu0 0
      %3798 = vmatpush1.bf16.msra.mxu0 %v3786
      %3799 = vmatprep.subr.bf16.mxu0 0
      %3800 = vmatpush1.bf16.msra.mxu0 0
      %3801 = vmatprep.subr.bf16.mxu0 0
      %3802 = vmatpush1.bf16.msra.mxu0 0
      %3803 = vmatprep.subr.bf16.mxu0 0
      %3804 = vmatpush1.bf16.msra.mxu0 0
      %3805 = vmatprep.subr.bf16.mxu0 0
      %3806 = vmatpush1.bf16.msra.mxu0 0
      %3807 = vmatprep.subr.bf16.mxu0 0
      %3808 = vmatpush1.bf16.msra.mxu0 0
      %3809 = vmatprep.subr.bf16.mxu0 0
      %3810 = vmatpush1.bf16.msra.mxu0 0
      %3811 = vmatprep.subr.bf16.mxu0 0
      %3812 = vmatpush1.bf16.msra.mxu0 0
      %3813 = vmatprep.subr.bf16.mxu0 0
      %3814 = vmatpush1.bf16.msra.mxu0 0
      %3815 = vmatprep.subr.bf16.mxu0 0
      %3816 = vmatpush1.bf16.msra.mxu0 0
      %3817 = vmatprep.subr.bf16.mxu0 0
      %3818 = vmatpush1.bf16.msra.mxu0 0
      %3819 = vmatprep.subr.bf16.mxu0 0
      %3820 = vmatpush1.bf16.msra.mxu0 0
      %3821 = vmatprep.subr.bf16.mxu0 0
      %3822 = vmatpush1.bf16.msra.mxu0 0
      %3823 = vmatprep.mubr.bf16.mxu0 0
      %3824 = vmatmul.mubr.bf16.gmra.mrb[0].mxu0 %v3710
      %v3825 = vpop.f32.mrb[0].mxu0
      %v3826 = vadd.f32 %v3765, %v3825
      %v3827 = vpop.f32.mrb[0].mxu0
      %v3828 = vpop.f32.mrb[0].mxu0
      %v3829 = vpop.f32.mrb[0].mxu0
      %3830 = vdwg.mxu0
      %v3831 = vld [vmem:[%s51] sm:$0xf]
      %v3832 = vld [vmem:[%s51 + $0x4] sm:$0xf]
      %v3833 = vld [vmem:[%s51 + $0x8] sm:$0xf]
      %v3834 = vld [vmem:[%s51 + $0xc] sm:$0xf]
      %v3835 = vld [vmem:[%s51 + $0x10] sm:$0xf]
      %v3836 = vld [vmem:[%s51 + $0x14] sm:$0xf]
      %v3837 = vld [vmem:[%s51 + $0x18] sm:$0xf]
      %v3838 = vld [vmem:[%s51 + $0x1c] sm:$0xf]
      %v3839 = vld [vmem:[%s53] sm:$0x1]
      %v3841 = vlaneseq
      %v3842 = vshrl.u32 %v3841, 7
      %v3843 = vsub.s32 0, %v3842
      %v3844 = vrot.slane %v3839, %v3843
      %v3854 = vunpack.c.l.b16 %v3831
      %v3855 = vunpack.c.l.b16 %v3832
      %v3856 = vunpack.c.l.b16 %v3833
      %v3857 = vunpack.c.l.b16 %v3834
      %v3858 = vunpack.c.l.b16 %v3835
      %v3859 = vunpack.c.l.b16 %v3836
      %v3860 = vunpack.c.l.b16 %v3837
      %v3861 = vunpack.c.l.b16 %v3838
      %v3862 = vpack.c.b16 %v3855, %v3854
      %v3863 = vpack.c.b16 %v3857, %v3856
      %v3864 = vpack.c.b16 %v3859, %v3858
      %v3865 = vpack.c.b16 %v3861, %v3860
      %3870 = vmatprep.subr.bf16.mxu0 0
      %3871 = vmatpush1.bf16.msra.mxu0 %v3862
      %3872 = vmatprep.subr.bf16.mxu0 0
      %3873 = vmatpush1.bf16.msra.mxu0 %v3863
      %3874 = vmatprep.subr.bf16.mxu0 0
      %3875 = vmatpush1.bf16.msra.mxu0 %v3864
      %3876 = vmatprep.subr.bf16.mxu0 0
      %3877 = vmatpush1.bf16.msra.mxu0 %v3865
      %3878 = vmatprep.subr.bf16.mxu0 0
      %3879 = vmatpush1.bf16.msra.mxu0 0
      %3880 = vmatprep.subr.bf16.mxu0 0
      %3881 = vmatpush1.bf16.msra.mxu0 0
      %3882 = vmatprep.subr.bf16.mxu0 0
      %3883 = vmatpush1.bf16.msra.mxu0 0
      %3884 = vmatprep.subr.bf16.mxu0 0
      %3885 = vmatpush1.bf16.msra.mxu0 0
      %3886 = vmatprep.subr.bf16.mxu0 0
      %3887 = vmatpush1.bf16.msra.mxu0 0
      %3888 = vmatprep.subr.bf16.mxu0 0
      %3889 = vmatpush1.bf16.msra.mxu0 0
      %3890 = vmatprep.subr.bf16.mxu0 0
      %3891 = vmatpush1.bf16.msra.mxu0 0
      %3892 = vmatprep.subr.bf16.mxu0 0
      %3893 = vmatpush1.bf16.msra.mxu0 0
      %3894 = vmatprep.subr.bf16.mxu0 0
      %3895 = vmatpush1.bf16.msra.mxu0 0
      %3896 = vmatprep.subr.bf16.mxu0 0
      %3897 = vmatpush1.bf16.msra.mxu0 0
      %3898 = vmatprep.subr.bf16.mxu0 0
      %3899 = vmatpush1.bf16.msra.mxu0 0
      %3900 = vmatprep.subr.bf16.mxu0 0
      %3901 = vmatpush1.bf16.msra.mxu0 0
      %3902 = vmatprep.mubr.bf16.mxu0 0
      %3903 = vmatmul.mubr.bf16.gmra.mrb[0].mxu0 %v3710
      %v3904 = vpop.f32.mrb[0].mxu0
      %v3905 = vadd.f32 %v3844, %v3904
      %v3906 = vpop.f32.mrb[0].mxu0
      %v3907 = vpop.f32.mrb[0].mxu0
      %v3908 = vpop.f32.mrb[0].mxu0
      %3909 = vdwg.mxu0
      %v3911 = vsel %vm1780, %v3747, 0
      %v3914 = vsel %vm1780, %v3826, 0
      %3916 = vmatprep.subr.mxu0 0.0
      %3917 = vmatpush1.xpose.msra.mxu0 %v3914
      %3918 = vmatprep.subr.mxu0 0.0
      %3919 = vmatpush1.xpose.msra.mxu0 0.0
      %3920 = vmatprep.subr.mxu0 0.0
      %3921 = vmatpush1.xpose.msra.mxu0 0.0
      %3922 = vmatprep.subr.mxu0 0.0
      %3923 = vmatpush1.xpose.msra.mxu0 0.0
      %3924 = vmatprep.subr.mxu0 0.0
      %3925 = vmatpush1.xpose.msra.mxu0 0.0
      %3926 = vmatprep.subr.mxu0 0.0
      %3927 = vmatpush1.xpose.msra.mxu0 0.0
      %3928 = vmatprep.subr.mxu0 0.0
      %3929 = vmatpush1.xpose.msra.mxu0 0.0
      %3930 = vmatprep.subr.mxu0 0.0
      %3931 = vmatpush1.xpose.msra.mxu0 0.0
      %3932 = vmatprep.subr.mxu0 0.0
      %3933 = vmatpush1.xpose.msra.mxu0 0.0
      %3934 = vmatprep.subr.mxu0 0.0
      %3935 = vmatpush1.xpose.msra.mxu0 0.0
      %3936 = vmatprep.subr.mxu0 0.0
      %3937 = vmatpush1.xpose.msra.mxu0 0.0
      %3938 = vmatprep.subr.mxu0 0.0
      %3939 = vmatpush1.xpose.msra.mxu0 0.0
      %3940 = vmatprep.subr.mxu0 0.0
      %3941 = vmatpush1.xpose.msra.mxu0 0.0
      %3942 = vmatprep.subr.mxu0 0.0
      %3943 = vmatpush1.xpose.msra.mxu0 0.0
      %3944 = vmatprep.subr.mxu0 0.0
      %3945 = vmatpush1.xpose.msra.mxu0 0.0
      %3946 = vmatprep.subr.mxu0 0.0
      %3947 = vmatpush1.xpose.msra.mxu0 0.0
      %3948 = vmatprep.subr.mxu0 0.0
      %3949 = vmatpush1.xpose.msra.mxu0 0.0
      %3950 = vmatprep.subr.mxu0 0.0
      %3951 = vmatpush1.xpose.msra.mxu0 0.0
      %3952 = vmatprep.subr.mxu0 0.0
      %3953 = vmatpush1.xpose.msra.mxu0 0.0
      %3954 = vmatprep.subr.mxu0 0.0
      %3955 = vmatpush1.xpose.msra.mxu0 0.0
      %3956 = vmatprep.subr.mxu0 0.0
      %3957 = vmatpush1.xpose.msra.mxu0 0.0
      %3958 = vmatprep.subr.mxu0 0.0
      %3959 = vmatpush1.xpose.msra.mxu0 0.0
      %3960 = vmatprep.subr.mxu0 0.0
      %3961 = vmatpush1.xpose.msra.mxu0 0.0
      %3962 = vmatprep.subr.mxu0 0.0
      %3963 = vmatpush1.xpose.msra.mxu0 0.0
      %3964 = vmatprep.subr.mxu0 0.0
      %3965 = vmatpush1.xpose.msra.mxu0 0.0
      %3966 = vmatprep.subr.mxu0 0.0
      %3967 = vmatpush1.xpose.msra.mxu0 0.0
      %3968 = vmatprep.subr.mxu0 0.0
      %3969 = vmatpush1.xpose.msra.mxu0 0.0
      %3970 = vmatprep.subr.mxu0 0.0
      %3971 = vmatpush1.xpose.msra.mxu0 0.0
      %3972 = vmatprep.subr.mxu0 0.0
      %3973 = vmatpush1.xpose.msra.mxu0 0.0
      %3974 = vmatprep.subr.mxu0 0.0
      %3975 = vmatpush1.xpose.msra.mxu0 0.0
      %3976 = vmatprep.subr.mxu0 0.0
      %3977 = vmatpush1.xpose.msra.mxu0 0.0
      %3978 = vmatprep.subr.mxu0 0.0
      %3979 = vmatpush1.xpose.msra.mxu0 0.0
      %3980 = vmatprep.mubr.f32.mxu0 0.0
      %3981 = vmatmul.mubr.f32.gmra.mrb[0].mxu0 %v3911
      %v3982 = vpop.f32.mrb[0].mxu0
      %v3983 = vadd.f32 0.0, %v3982
      %v3984 = vpop.f32.mrb[0].mxu0
      %3985 = vdwg.mxu0
      %v3986 = vmul.f32 %v3983, 0.25
      %v3987 = vsel %vm1858, %v3986, -inf
      %3988 = vmax.xlane.f32.xlu0 %v3987
      %v3989 = vpop.xlane.xlu0 %3988
      %v3990 = vsub.f32 %v3986, %v3989
      %v3991 = vmul.f32 %v3990, 1.442695
      %v3992 = vpow.pop %v3991
      %v3993 = vsel %vm1858, %v3992, 0.0
      %3994 = vadd.xlane.f32.xlu0 %v3993
      %v3995 = vpop.xlane.xlu0 %3994
      %v3996 = vrcp.pop %v3995
      %v3997 = vmul.f32 %v3992, %v3996
      %v3998 = vpack.c.bf16 %v3997, %v3997
      %v3999 = vpack.c.bf16 %v3905, %v3905
      %v4001 = vsel %vm1858, %v3998, 0
      %v4004 = vsel %vm1875, %v3999, 0
      %4006 = vmatprep.subr.bf16.mxu0 0
      %4007 = vmatpush1.bf16.msra.mxu0 %v4004
      %4008 = vmatprep.subr.bf16.mxu0 0
      %4009 = vmatpush1.bf16.msra.mxu0 0
      %4010 = vmatprep.subr.bf16.mxu0 0
      %4011 = vmatpush1.bf16.msra.mxu0 0
      %4012 = vmatprep.subr.bf16.mxu0 0
      %4013 = vmatpush1.bf16.msra.mxu0 0
      %4014 = vmatprep.subr.bf16.mxu0 0
      %4015 = vmatpush1.bf16.msra.mxu0 0
      %4016 = vmatprep.subr.bf16.mxu0 0
      %4017 = vmatpush1.bf16.msra.mxu0 0
      %4018 = vmatprep.subr.bf16.mxu0 0
      %4019 = vmatpush1.bf16.msra.mxu0 0
      %4020 = vmatprep.subr.bf16.mxu0 0
      %4021 = vmatpush1.bf16.msra.mxu0 0
      %4022 = vmatprep.subr.bf16.mxu0 0
      %4023 = vmatpush1.bf16.msra.mxu0 0
      %4024 = vmatprep.subr.bf16.mxu0 0
      %4025 = vmatpush1.bf16.msra.mxu0 0
      %4026 = vmatprep.subr.bf16.mxu0 0
      %4027 = vmatpush1.bf16.msra.mxu0 0
      %4028 = vmatprep.subr.bf16.mxu0 0
      %4029 = vmatpush1.bf16.msra.mxu0 0
      %4030 = vmatprep.subr.bf16.mxu0 0
      %4031 = vmatpush1.bf16.msra.mxu0 0
      %4032 = vmatprep.subr.bf16.mxu0 0
      %4033 = vmatpush1.bf16.msra.mxu0 0
      %4034 = vmatprep.subr.bf16.mxu0 0
      %4035 = vmatpush1.bf16.msra.mxu0 0
      %4036 = vmatprep.subr.bf16.mxu0 0
      %4037 = vmatpush1.bf16.msra.mxu0 0
      %4038 = vmatprep.mubr.bf16.mxu0 0
      %4039 = vmatmul.mubr.bf16.gmra.mrb[0].mxu0 %v4001
      %v4040 = vpop.f32.mrb[0].mxu0
      %v4041 = vadd.f32 0.0, %v4040
      %v4042 = vpop.f32.mrb[0].mxu0
      %v4043 = vpop.f32.mrb[0].mxu0
      %v4044 = vpop.f32.mrb[0].mxu0
      %4045 = vdwg.mxu0
      %v4046 = vpack.c.bf16 %v4041, %v4041
      %v4047 = vld [vmem:[%s55] sm:$0xf]
      %v4048 = vld [vmem:[%s55 + $0x4] sm:$0xf]
      %v4051 = vunpack.c.l.b16 %v4047
      %v4052 = vunpack.c.l.b16 %v4048
      %v4053 = vpack.c.b16 %v4052, %v4051
      %v4056 = vsel %vm1780, %v4046, 0
      %4058 = vmatprep.subr.bf16.mxu0 0
      %4059 = vmatpush1.bf16.msra.mxu0 %v4053
      %4060 = vmatprep.subr.bf16.mxu0 0
      %4061 = vmatpush1.bf16.msra.mxu0 0
      %4062 = vmatprep.subr.bf16.mxu0 0
      %4063 = vmatpush1.bf16.msra.mxu0 0
      %4064 = vmatprep.subr.bf16.mxu0 0
      %4065 = vmatpush1.bf16.msra.mxu0 0
      %4066 = vmatprep.subr.bf16.mxu0 0
      %4067 = vmatpush1.bf16.msra.mxu0 0
      %4068 = vmatprep.subr.bf16.mxu0 0
      %4069 = vmatpush1.bf16.msra.mxu0 0
      %4070 = vmatprep.subr.bf16.mxu0 0
      %4071 = vmatpush1.bf16.msra.mxu0 0
      %4072 = vmatprep.subr.bf16.mxu0 0
      %4073 = vmatpush1.bf16.msra.mxu0 0
      %4074 = vmatprep.subr.bf16.mxu0 0
      %4075 = vmatpush1.bf16.msra.mxu0 0
      %4076 = vmatprep.subr.bf16.mxu0 0
      %4077 = vmatpush1.bf16.msra.mxu0 0
      %4078 = vmatprep.subr.bf16.mxu0 0
      %4079 = vmatpush1.bf16.msra.mxu0 0
      %4080 = vmatprep.subr.bf16.mxu0 0
      %4081 = vmatpush1.bf16.msra.mxu0 0
      %4082 = vmatprep.subr.bf16.mxu0 0
      %4083 = vmatpush1.bf16.msra.mxu0 0
      %4084 = vmatprep.subr.bf16.mxu0 0
      %4085 = vmatpush1.bf16.msra.mxu0 0
      %4086 = vmatprep.subr.bf16.mxu0 0
      %4087 = vmatpush1.bf16.msra.mxu0 0
      %4088 = vmatprep.subr.bf16.mxu0 0
      %4089 = vmatpush1.bf16.msra.mxu0 0
      %4090 = vmatprep.mubr.bf16.mxu0 0
      %4091 = vmatmul.mubr.bf16.gmra.mrb[0].mxu0 %v4056
      %v4092 = vpop.f32.mrb[0].mxu0
      %v4093 = vadd.f32 0.0, %v4092
      %v4094 = vpop.f32.mrb[0].mxu0
      %v4095 = vpop.f32.mrb[0].mxu0
      %v4096 = vpop.f32.mrb[0].mxu0
      %4097 = vdwg.mxu0
      %v4099 = vlaneseq
      %v4100 = vshrl.u32 %v4099, 7
      %v4101 = vsub.s32 0, %v4100
      %v4102 = vrot.slane %v3669, %v4101
      %v4104 = vadd.f32 %v4102, %v4093
      %s4105 = scalar_lea.vmem %s43, 32
      %v4106 = vld [vmem:[%s4105] sm:$0xf]
      %v4107 = vld [vmem:[%s4105 + $0x4] sm:$0xf]
      %v4108 = vld [vmem:[%s4105 + $0x8] sm:$0xf]
      %v4109 = vld [vmem:[%s4105 + $0xc] sm:$0xf]
      %v4110 = vld [vmem:[%s4105 + $0x10] sm:$0xf]
      %v4111 = vld [vmem:[%s4105 + $0x14] sm:$0xf]
      %v4112 = vld [vmem:[%s4105 + $0x18] sm:$0xf]
      %v4113 = vld [vmem:[%s4105 + $0x1c] sm:$0xf]
      %s4114 = scalar_lea.vmem %s45, 1
      %v4115 = vld [vmem:[%s4114] sm:$0x1]
      %v4117 = vlaneseq
      %v4118 = vshrl.u32 %v4117, 7
      %v4119 = vsub.s32 0, %v4118
      %v4120 = vrot.slane %v4115, %v4119
      %v4130 = vunpack.c.l.b16 %v4106
      %v4131 = vunpack.c.l.b16 %v4107
      %v4132 = vunpack.c.l.b16 %v4108
      %v4133 = vunpack.c.l.b16 %v4109
      %v4134 = vunpack.c.l.b16 %v4110
      %v4135 = vunpack.c.l.b16 %v4111
      %v4136 = vunpack.c.l.b16 %v4112
      %v4137 = vunpack.c.l.b16 %v4113
      %v4138 = vpack.c.b16 %v4131, %v4130
      %v4139 = vpack.c.b16 %v4133, %v4132
      %v4140 = vpack.c.b16 %v4135, %v4134
      %v4141 = vpack.c.b16 %v4137, %v4136
      %4146 = vmatprep.subr.bf16.mxu0 0
      %4147 = vmatpush1.bf16.msra.mxu0 %v4138
      %4148 = vmatprep.subr.bf16.mxu0 0
      %4149 = vmatpush1.bf16.msra.mxu0 %v4139
      %4150 = vmatprep.subr.bf16.mxu0 0
      %4151 = vmatpush1.bf16.msra.mxu0 %v4140
      %4152 = vmatprep.subr.bf16.mxu0 0
      %4153 = vmatpush1.bf16.msra.mxu0 %v4141
      %4154 = vmatprep.subr.bf16.mxu0 0
      %4155 = vmatpush1.bf16.msra.mxu0 0
      %4156 = vmatprep.subr.bf16.mxu0 0
      %4157 = vmatpush1.bf16.msra.mxu0 0
      %4158 = vmatprep.subr.bf16.mxu0 0
      %4159 = vmatpush1.bf16.msra.mxu0 0
      %4160 = vmatprep.subr.bf16.mxu0 0
      %4161 = vmatpush1.bf16.msra.mxu0 0
      %4162 = vmatprep.subr.bf16.mxu0 0
      %4163 = vmatpush1.bf16.msra.mxu0 0
      %4164 = vmatprep.subr.bf16.mxu0 0
      %4165 = vmatpush1.bf16.msra.mxu0 0
      %4166 = vmatprep.subr.bf16.mxu0 0
      %4167 = vmatpush1.bf16.msra.mxu0 0
      %4168 = vmatprep.subr.bf16.mxu0 0
      %4169 = vmatpush1.bf16.msra.mxu0 0
      %4170 = vmatprep.subr.bf16.mxu0 0
      %4171 = vmatpush1.bf16.msra.mxu0 0
      %4172 = vmatprep.subr.bf16.mxu0 0
      %4173 = vmatpush1.bf16.msra.mxu0 0
      %4174 = vmatprep.subr.bf16.mxu0 0
      %4175 = vmatpush1.bf16.msra.mxu0 0
      %4176 = vmatprep.subr.bf16.mxu0 0
      %4177 = vmatpush1.bf16.msra.mxu0 0
      %4178 = vmatprep.mubr.bf16.mxu0 0
      %4179 = vmatmul.mubr.bf16.gmra.mrb[0].mxu0 %v3710
      %v4180 = vpop.f32.mrb[0].mxu0
      %v4181 = vadd.f32 %v4120, %v4180
      %v4182 = vpop.f32.mrb[0].mxu0
      %v4183 = vpop.f32.mrb[0].mxu0
      %v4184 = vpop.f32.mrb[0].mxu0
      %4185 = vdwg.mxu0
      %s4186 = scalar_lea.vmem %s47, 32
      %v4187 = vld [vmem:[%s4186] sm:$0xf]
      %v4188 = vld [vmem:[%s4186 + $0x4] sm:$0xf]
      %v4189 = vld [vmem:[%s4186 + $0x8] sm:$0xf]
      %v4190 = vld [vmem:[%s4186 + $0xc] sm:$0xf]
      %v4191 = vld [vmem:[%s4186 + $0x10] sm:$0xf]
      %v4192 = vld [vmem:[%s4186 + $0x14] sm:$0xf]
      %v4193 = vld [vmem:[%s4186 + $0x18] sm:$0xf]
      %v4194 = vld [vmem:[%s4186 + $0x1c] sm:$0xf]
      %s4195 = scalar_lea.vmem %s49, 1
      %v4196 = vld [vmem:[%s4195] sm:$0x1]
      %v4198 = vlaneseq
      %v4199 = vshrl.u32 %v4198, 7
      %v4200 = vsub.s32 0, %v4199
      %v4201 = vrot.slane %v4196, %v4200
      %v4211 = vunpack.c.l.b16 %v4187
      %v4212 = vunpack.c.l.b16 %v4188
      %v4213 = vunpack.c.l.b16 %v4189
      %v4214 = vunpack.c.l.b16 %v4190
      %v4215 = vunpack.c.l.b16 %v4191
      %v4216 = vunpack.c.l.b16 %v4192
      %v4217 = vunpack.c.l.b16 %v4193
      %v4218 = vunpack.c.l.b16 %v4194
      %v4219 = vpack.c.b16 %v4212, %v4211
      %v4220 = vpack.c.b16 %v4214, %v4213
      %v4221 = vpack.c.b16 %v4216, %v4215
      %v4222 = vpack.c.b16 %v4218, %v4217
      %4227 = vmatprep.subr.bf16.mxu0 0
      %4228 = vmatpush1.bf16.msra.mxu0 %v4219
      %4229 = vmatprep.subr.bf16.mxu0 0
      %4230 = vmatpush1.bf16.msra.mxu0 %v4220
      %4231 = vmatprep.subr.bf16.mxu0 0
      %4232 = vmatpush1.bf16.msra.mxu0 %v4221
      %4233 = vmatprep.subr.bf16.mxu0 0
      %4234 = vmatpush1.bf16.msra.mxu0 %v4222
      %4235 = vmatprep.subr.bf16.mxu0 0
      %4236 = vmatpush1.bf16.msra.mxu0 0
      %4237 = vmatprep.subr.bf16.mxu0 0
      %4238 = vmatpush1.bf16.msra.mxu0 0
      %4239 = vmatprep.subr.bf16.mxu0 0
      %4240 = vmatpush1.bf16.msra.mxu0 0
      %4241 = vmatprep.subr.bf16.mxu0 0
      %4242 = vmatpush1.bf16.msra.mxu0 0
      %4243 = vmatprep.subr.bf16.mxu0 0
      %4244 = vmatpush1.bf16.msra.mxu0 0
      %4245 = vmatprep.subr.bf16.mxu0 0
      %4246 = vmatpush1.bf16.msra.mxu0 0
      %4247 = vmatprep.subr.bf16.mxu0 0
      %4248 = vmatpush1.bf16.msra.mxu0 0
      %4249 = vmatprep.subr.bf16.mxu0 0
      %4250 = vmatpush1.bf16.msra.mxu0 0
      %4251 = vmatprep.subr.bf16.mxu0 0
      %4252 = vmatpush1.bf16.msra.mxu0 0
      %4253 = vmatprep.subr.bf16.mxu0 0
      %4254 = vmatpush1.bf16.msra.mxu0 0
      %4255 = vmatprep.subr.bf16.mxu0 0
      %4256 = vmatpush1.bf16.msra.mxu0 0
      %4257 = vmatprep.subr.bf16.mxu0 0
      %4258 = vmatpush1.bf16.msra.mxu0 0
      %4259 = vmatprep.mubr.bf16.mxu0 0
      %4260 = vmatmul.mubr.bf16.gmra.mrb[0].mxu0 %v3710
      %v4261 = vpop.f32.mrb[0].mxu0
      %v4262 = vadd.f32 %v4201, %v4261
      %v4263 = vpop.f32.mrb[0].mxu0
      %v4264 = vpop.f32.mrb[0].mxu0
      %v4265 = vpop.f32.mrb[0].mxu0
      %4266 = vdwg.mxu0
      %s4267 = scalar_lea.vmem %s51, 32
      %v4268 = vld [vmem:[%s4267] sm:$0xf]
      %v4269 = vld [vmem:[%s4267 + $0x4] sm:$0xf]
      %v4270 = vld [vmem:[%s4267 + $0x8] sm:$0xf]
      %v4271 = vld [vmem:[%s4267 + $0xc] sm:$0xf]
      %v4272 = vld [vmem:[%s4267 + $0x10] sm:$0xf]
      %v4273 = vld [vmem:[%s4267 + $0x14] sm:$0xf]
      %v4274 = vld [vmem:[%s4267 + $0x18] sm:$0xf]
      %v4275 = vld [vmem:[%s4267 + $0x1c] sm:$0xf]
      %s4276 = scalar_lea.vmem %s53, 1
      %v4277 = vld [vmem:[%s4276] sm:$0x1]
      %v4279 = vlaneseq
      %v4280 = vshrl.u32 %v4279, 7
      %v4281 = vsub.s32 0, %v4280
      %v4282 = vrot.slane %v4277, %v4281
      %v4292 = vunpack.c.l.b16 %v4268
      %v4293 = vunpack.c.l.b16 %v4269
      %v4294 = vunpack.c.l.b16 %v4270
      %v4295 = vunpack.c.l.b16 %v4271
      %v4296 = vunpack.c.l.b16 %v4272
      %v4297 = vunpack.c.l.b16 %v4273
      %v4298 = vunpack.c.l.b16 %v4274
      %v4299 = vunpack.c.l.b16 %v4275
      %v4300 = vpack.c.b16 %v4293, %v4292
      %v4301 = vpack.c.b16 %v4295, %v4294
      %v4302 = vpack.c.b16 %v4297, %v4296
      %v4303 = vpack.c.b16 %v4299, %v4298
      %4308 = vmatprep.subr.bf16.mxu0 0
      %4309 = vmatpush1.bf16.msra.mxu0 %v4300
      %4310 = vmatprep.subr.bf16.mxu0 0
      %4311 = vmatpush1.bf16.msra.mxu0 %v4301
      %4312 = vmatprep.subr.bf16.mxu0 0
      %4313 = vmatpush1.bf16.msra.mxu0 %v4302
      %4314 = vmatprep.subr.bf16.mxu0 0
      %4315 = vmatpush1.bf16.msra.mxu0 %v4303
      %4316 = vmatprep.subr.bf16.mxu0 0
      %4317 = vmatpush1.bf16.msra.mxu0 0
      %4318 = vmatprep.subr.bf16.mxu0 0
      %4319 = vmatpush1.bf16.msra.mxu0 0
      %4320 = vmatprep.subr.bf16.mxu0 0
      %4321 = vmatpush1.bf16.msra.mxu0 0
      %4322 = vmatprep.subr.bf16.mxu0 0
      %4323 = vmatpush1.bf16.msra.mxu0 0
      %4324 = vmatprep.subr.bf16.mxu0 0
      %4325 = vmatpush1.bf16.msra.mxu0 0
      %4326 = vmatprep.subr.bf16.mxu0 0
      %4327 = vmatpush1.bf16.msra.mxu0 0
      %4328 = vmatprep.subr.bf16.mxu0 0
      %4329 = vmatpush1.bf16.msra.mxu0 0
      %4330 = vmatprep.subr.bf16.mxu0 0
      %4331 = vmatpush1.bf16.msra.mxu0 0
      %4332 = vmatprep.subr.bf16.mxu0 0
      %4333 = vmatpush1.bf16.msra.mxu0 0
      %4334 = vmatprep.subr.bf16.mxu0 0
      %4335 = vmatpush1.bf16.msra.mxu0 0
      %4336 = vmatprep.subr.bf16.mxu0 0
      %4337 = vmatpush1.bf16.msra.mxu0 0
      %4338 = vmatprep.subr.bf16.mxu0 0
      %4339 = vmatpush1.bf16.msra.mxu0 0
      %4340 = vmatprep.mubr.bf16.mxu0 0
      %4341 = vmatmul.mubr.bf16.gmra.mrb[0].mxu0 %v3710
      %v4342 = vpop.f32.mrb[0].mxu0
      %v4343 = vadd.f32 %v4282, %v4342
      %v4344 = vpop.f32.mrb[0].mxu0
      %v4345 = vpop.f32.mrb[0].mxu0
      %v4346 = vpop.f32.mrb[0].mxu0
      %4347 = vdwg.mxu0
      %v4349 = vsel %vm1780, %v4181, 0
      %v4352 = vsel %vm1780, %v4262, 0
      %4354 = vmatprep.subr.mxu0 0.0
      %4355 = vmatpush1.xpose.msra.mxu0 %v4352
      %4356 = vmatprep.subr.mxu0 0.0
      %4357 = vmatpush1.xpose.msra.mxu0 0.0
      %4358 = vmatprep.subr.mxu0 0.0
      %4359 = vmatpush1.xpose.msra.mxu0 0.0
      %4360 = vmatprep.subr.mxu0 0.0
      %4361 = vmatpush1.xpose.msra.mxu0 0.0
      %4362 = vmatprep.subr.mxu0 0.0
      %4363 = vmatpush1.xpose.msra.mxu0 0.0
      %4364 = vmatprep.subr.mxu0 0.0
      %4365 = vmatpush1.xpose.msra.mxu0 0.0
      %4366 = vmatprep.subr.mxu0 0.0
      %4367 = vmatpush1.xpose.msra.mxu0 0.0
      %4368 = vmatprep.subr.mxu0 0.0
      %4369 = vmatpush1.xpose.msra.mxu0 0.0
      %4370 = vmatprep.subr.mxu0 0.0
      %4371 = vmatpush1.xpose.msra.mxu0 0.0
      %4372 = vmatprep.subr.mxu0 0.0
      %4373 = vmatpush1.xpose.msra.mxu0 0.0
      %4374 = vmatprep.subr.mxu0 0.0
      %4375 = vmatpush1.xpose.msra.mxu0 0.0
      %4376 = vmatprep.subr.mxu0 0.0
      %4377 = vmatpush1.xpose.msra.mxu0 0.0
      %4378 = vmatprep.subr.mxu0 0.0
      %4379 = vmatpush1.xpose.msra.mxu0 0.0
      %4380 = vmatprep.subr.mxu0 0.0
      %4381 = vmatpush1.xpose.msra.mxu0 0.0
      %4382 = vmatprep.subr.mxu0 0.0
      %4383 = vmatpush1.xpose.msra.mxu0 0.0
      %4384 = vmatprep.subr.mxu0 0.0
      %4385 = vmatpush1.xpose.msra.mxu0 0.0
      %4386 = vmatprep.subr.mxu0 0.0
      %4387 = vmatpush1.xpose.msra.mxu0 0.0
      %4388 = vmatprep.subr.mxu0 0.0
      %4389 = vmatpush1.xpose.msra.mxu0 0.0
      %4390 = vmatprep.subr.mxu0 0.0
      %4391 = vmatpush1.xpose.msra.mxu0 0.0
      %4392 = vmatprep.subr.mxu0 0.0
      %4393 = vmatpush1.xpose.msra.mxu0 0.0
      %4394 = vmatprep.subr.mxu0 0.0
      %4395 = vmatpush1.xpose.msra.mxu0 0.0
      %4396 = vmatprep.subr.mxu0 0.0
      %4397 = vmatpush1.xpose.msra.mxu0 0.0
      %4398 = vmatprep.subr.mxu0 0.0
      %4399 = vmatpush1.xpose.msra.mxu0 0.0
      %4400 = vmatprep.subr.mxu0 0.0
      %4401 = vmatpush1.xpose.msra.mxu0 0.0
      %4402 = vmatprep.subr.mxu0 0.0
      %4403 = vmatpush1.xpose.msra.mxu0 0.0
      %4404 = vmatprep.subr.mxu0 0.0
      %4405 = vmatpush1.xpose.msra.mxu0 0.0
      %4406 = vmatprep.subr.mxu0 0.0
      %4407 = vmatpush1.xpose.msra.mxu0 0.0
      %4408 = vmatprep.subr.mxu0 0.0
      %4409 = vmatpush1.xpose.msra.mxu0 0.0
      %4410 = vmatprep.subr.mxu0 0.0
      %4411 = vmatpush1.xpose.msra.mxu0 0.0
      %4412 = vmatprep.subr.mxu0 0.0
      %4413 = vmatpush1.xpose.msra.mxu0 0.0
      %4414 = vmatprep.subr.mxu0 0.0
      %4415 = vmatpush1.xpose.msra.mxu0 0.0
      %4416 = vmatprep.subr.mxu0 0.0
      %4417 = vmatpush1.xpose.msra.mxu0 0.0
      %4418 = vmatprep.mubr.f32.mxu0 0.0
      %4419 = vmatmul.mubr.f32.gmra.mrb[0].mxu0 %v4349
      %v4420 = vpop.f32.mrb[0].mxu0
      %v4421 = vadd.f32 0.0, %v4420
      %v4422 = vpop.f32.mrb[0].mxu0
      %4423 = vdwg.mxu0
      %v4424 = vmul.f32 %v4421, 0.25
      %v4425 = vsel %vm1858, %v4424, -inf
      %4426 = vmax.xlane.f32.xlu0 %v4425
      %v4427 = vpop.xlane.xlu0 %4426
      %v4428 = vsub.f32 %v4424, %v4427
      %v4429 = vmul.f32 %v4428, 1.442695
      %v4430 = vpow.pop %v4429
      %v4431 = vsel %vm1858, %v4430, 0.0
      %4432 = vadd.xlane.f32.xlu0 %v4431
      %v4433 = vpop.xlane.xlu0 %4432
      %v4434 = vrcp.pop %v4433
      %v4435 = vmul.f32 %v4430, %v4434
      %v4436 = vpack.c.bf16 %v4435, %v4435
      %v4437 = vpack.c.bf16 %v4343, %v4343
      %v4439 = vsel %vm1858, %v4436, 0
      %v4442 = vsel %vm1875, %v4437, 0
      %4444 = vmatprep.subr.bf16.mxu0 0
      %4445 = vmatpush1.bf16.msra.mxu0 %v4442
      %4446 = vmatprep.subr.bf16.mxu0 0
      %4447 = vmatpush1.bf16.msra.mxu0 0
      %4448 = vmatprep.subr.bf16.mxu0 0
      %4449 = vmatpush1.bf16.msra.mxu0 0
      %4450 = vmatprep.subr.bf16.mxu0 0
      %4451 = vmatpush1.bf16.msra.mxu0 0
      %4452 = vmatprep.subr.bf16.mxu0 0
      %4453 = vmatpush1.bf16.msra.mxu0 0
      %4454 = vmatprep.subr.bf16.mxu0 0
      %4455 = vmatpush1.bf16.msra.mxu0 0
      %4456 = vmatprep.subr.bf16.mxu0 0
      %4457 = vmatpush1.bf16.msra.mxu0 0
      %4458 = vmatprep.subr.bf16.mxu0 0
      %4459 = vmatpush1.bf16.msra.mxu0 0
      %4460 = vmatprep.subr.bf16.mxu0 0
      %4461 = vmatpush1.bf16.msra.mxu0 0
      %4462 = vmatprep.subr.bf16.mxu0 0
      %4463 = vmatpush1.bf16.msra.mxu0 0
      %4464 = vmatprep.subr.bf16.mxu0 0
      %4465 = vmatpush1.bf16.msra.mxu0 0
      %4466 = vmatprep.subr.bf16.mxu0 0
      %4467 = vmatpush1.bf16.msra.mxu0 0
      %4468 = vmatprep.subr.bf16.mxu0 0
      %4469 = vmatpush1.bf16.msra.mxu0 0
      %4470 = vmatprep.subr.bf16.mxu0 0
      %4471 = vmatpush1.bf16.msra.mxu0 0
      %4472 = vmatprep.subr.bf16.mxu0 0
      %4473 = vmatpush1.bf16.msra.mxu0 0
      %4474 = vmatprep.subr.bf16.mxu0 0
      %4475 = vmatpush1.bf16.msra.mxu0 0
      %4476 = vmatprep.mubr.bf16.mxu0 0
      %4477 = vmatmul.mubr.bf16.gmra.mrb[0].mxu0 %v4439
      %v4478 = vpop.f32.mrb[0].mxu0
      %v4479 = vadd.f32 0.0, %v4478
      %v4480 = vpop.f32.mrb[0].mxu0
      %v4481 = vpop.f32.mrb[0].mxu0
      %v4482 = vpop.f32.mrb[0].mxu0
      %4483 = vdwg.mxu0
      %v4484 = vpack.c.bf16 %v4479, %v4479
      %s4485 = scalar_lea.vmem %s55, 8
      %v4486 = vld [vmem:[%s4485] sm:$0xf]
      %v4487 = vld [vmem:[%s4485 + $0x4] sm:$0xf]
      %v4490 = vunpack.c.l.b16 %v4486
      %v4491 = vunpack.c.l.b16 %v4487
      %v4492 = vpack.c.b16 %v4491, %v4490
      %v4495 = vsel %vm1780, %v4484, 0
      %4497 = vmatprep.subr.bf16.mxu0 0
      %4498 = vmatpush1.bf16.msra.mxu0 %v4492
      %4499 = vmatprep.subr.bf16.mxu0 0
      %4500 = vmatpush1.bf16.msra.mxu0 0
      %4501 = vmatprep.subr.bf16.mxu0 0
      %4502 = vmatpush1.bf16.msra.mxu0 0
      %4503 = vmatprep.subr.bf16.mxu0 0
      %4504 = vmatpush1.bf16.msra.mxu0 0
      %4505 = vmatprep.subr.bf16.mxu0 0
      %4506 = vmatpush1.bf16.msra.mxu0 0
      %4507 = vmatprep.subr.bf16.mxu0 0
      %4508 = vmatpush1.bf16.msra.mxu0 0
      %4509 = vmatprep.subr.bf16.mxu0 0
      %4510 = vmatpush1.bf16.msra.mxu0 0
      %4511 = vmatprep.subr.bf16.mxu0 0
      %4512 = vmatpush1.bf16.msra.mxu0 0
      %4513 = vmatprep.subr.bf16.mxu0 0
      %4514 = vmatpush1.bf16.msra.mxu0 0
      %4515 = vmatprep.subr.bf16.mxu0 0
      %4516 = vmatpush1.bf16.msra.mxu0 0
      %4517 = vmatprep.subr.bf16.mxu0 0
      %4518 = vmatpush1.bf16.msra.mxu0 0
      %4519 = vmatprep.subr.bf16.mxu0 0
      %4520 = vmatpush1.bf16.msra.mxu0 0
      %4521 = vmatprep.subr.bf16.mxu0 0
      %4522 = vmatpush1.bf16.msra.mxu0 0
      %4523 = vmatprep.subr.bf16.mxu0 0
      %4524 = vmatpush1.bf16.msra.mxu0 0
      %4525 = vmatprep.subr.bf16.mxu0 0
      %4526 = vmatpush1.bf16.msra.mxu0 0
      %4527 = vmatprep.subr.bf16.mxu0 0
      %4528 = vmatpush1.bf16.msra.mxu0 0
      %4529 = vmatprep.mubr.bf16.mxu0 0
      %4530 = vmatmul.mubr.bf16.gmra.mrb[0].mxu0 %v4495
      %v4531 = vpop.f32.mrb[0].mxu0
      %v4532 = vadd.f32 0.0, %v4531
      %v4533 = vpop.f32.mrb[0].mxu0
      %v4534 = vpop.f32.mrb[0].mxu0
      %v4535 = vpop.f32.mrb[0].mxu0
      %4536 = vdwg.mxu0
      %v4537 = vadd.f32 %v4104, %v4532
      %s4538 = scalar_lea.vmem %s43, 64
      %v4539 = vld [vmem:[%s4538] sm:$0xf]
      %v4540 = vld [vmem:[%s4538 + $0x4] sm:$0xf]
      %v4541 = vld [vmem:[%s4538 + $0x8] sm:$0xf]
      %v4542 = vld [vmem:[%s4538 + $0xc] sm:$0xf]
      %v4543 = vld [vmem:[%s4538 + $0x10] sm:$0xf]
      %v4544 = vld [vmem:[%s4538 + $0x14] sm:$0xf]
      %v4545 = vld [vmem:[%s4538 + $0x18] sm:$0xf]
      %v4546 = vld [vmem:[%s4538 + $0x1c] sm:$0xf]
      %s4547 = scalar_lea.vmem %s45, 2
      %v4548 = vld [vmem:[%s4547] sm:$0x1]
      %v4550 = vlaneseq
      %v4551 = vshrl.u32 %v4550, 7
      %v4552 = vsub.s32 0, %v4551
      %v4553 = vrot.slane %v4548, %v4552
      %v4563 = vunpack.c.l.b16 %v4539
      %v4564 = vunpack.c.l.b16 %v4540
      %v4565 = vunpack.c.l.b16 %v4541
      %v4566 = vunpack.c.l.b16 %v4542
      %v4567 = vunpack.c.l.b16 %v4543
      %v4568 = vunpack.c.l.b16 %v4544
      %v4569 = vunpack.c.l.b16 %v4545
      %v4570 = vunpack.c.l.b16 %v4546
      %v4571 = vpack.c.b16 %v4564, %v4563
      %v4572 = vpack.c.b16 %v4566, %v4565
      %v4573 = vpack.c.b16 %v4568, %v4567
      %v4574 = vpack.c.b16 %v4570, %v4569
      %4579 = vmatprep.subr.bf16.mxu0 0
      %4580 = vmatpush1.bf16.msra.mxu0 %v4571
      %4581 = vmatprep.subr.bf16.mxu0 0
      %4582 = vmatpush1.bf16.msra.mxu0 %v4572
      %4583 = vmatprep.subr.bf16.mxu0 0
      %4584 = vmatpush1.bf16.msra.mxu0 %v4573
      %4585 = vmatprep.subr.bf16.mxu0 0
      %4586 = vmatpush1.bf16.msra.mxu0 %v4574
      %4587 = vmatprep.subr.bf16.mxu0 0
      %4588 = vmatpush1.bf16.msra.mxu0 0
      %4589 = vmatprep.subr.bf16.mxu0 0
      %4590 = vmatpush1.bf16.msra.mxu0 0
      %4591 = vmatprep.subr.bf16.mxu0 0
      %4592 = vmatpush1.bf16.msra.mxu0 0
      %4593 = vmatprep.subr.bf16.mxu0 0
      %4594 = vmatpush1.bf16.msra.mxu0 0
      %4595 = vmatprep.subr.bf16.mxu0 0
      %4596 = vmatpush1.bf16.msra.mxu0 0
      %4597 = vmatprep.subr.bf16.mxu0 0
      %4598 = vmatpush1.bf16.msra.mxu0 0
      %4599 = vmatprep.subr.bf16.mxu0 0
      %4600 = vmatpush1.bf16.msra.mxu0 0
      %4601 = vmatprep.subr.bf16.mxu0 0
      %4602 = vmatpush1.bf16.msra.mxu0 0
      %4603 = vmatprep.subr.bf16.mxu0 0
      %4604 = vmatpush1.bf16.msra.mxu0 0
      %4605 = vmatprep.subr.bf16.mxu0 0
      %4606 = vmatpush1.bf16.msra.mxu0 0
      %4607 = vmatprep.subr.bf16.mxu0 0
      %4608 = vmatpush1.bf16.msra.mxu0 0
      %4609 = vmatprep.subr.bf16.mxu0 0
      %4610 = vmatpush1.bf16.msra.mxu0 0
      %4611 = vmatprep.mubr.bf16.mxu0 0
      %4612 = vmatmul.mubr.bf16.gmra.mrb[0].mxu0 %v3710
      %v4613 = vpop.f32.mrb[0].mxu0
      %v4614 = vadd.f32 %v4553, %v4613
      %v4615 = vpop.f32.mrb[0].mxu0
      %v4616 = vpop.f32.mrb[0].mxu0
      %v4617 = vpop.f32.mrb[0].mxu0
      %4618 = vdwg.mxu0
      %s4619 = scalar_lea.vmem %s47, 64
      %v4620 = vld [vmem:[%s4619] sm:$0xf]
      %v4621 = vld [vmem:[%s4619 + $0x4] sm:$0xf]
      %v4622 = vld [vmem:[%s4619 + $0x8] sm:$0xf]
      %v4623 = vld [vmem:[%s4619 + $0xc] sm:$0xf]
      %v4624 = vld [vmem:[%s4619 + $0x10] sm:$0xf]
      %v4625 = vld [vmem:[%s4619 + $0x14] sm:$0xf]
      %v4626 = vld [vmem:[%s4619 + $0x18] sm:$0xf]
      %v4627 = vld [vmem:[%s4619 + $0x1c] sm:$0xf]
      %s4628 = scalar_lea.vmem %s49, 2
      %v4629 = vld [vmem:[%s4628] sm:$0x1]
      %v4631 = vlaneseq
      %v4632 = vshrl.u32 %v4631, 7
      %v4633 = vsub.s32 0, %v4632
      %v4634 = vrot.slane %v4629, %v4633
      %v4644 = vunpack.c.l.b16 %v4620
      %v4645 = vunpack.c.l.b16 %v4621
      %v4646 = vunpack.c.l.b16 %v4622
      %v4647 = vunpack.c.l.b16 %v4623
      %v4648 = vunpack.c.l.b16 %v4624
      %v4649 = vunpack.c.l.b16 %v4625
      %v4650 = vunpack.c.l.b16 %v4626
      %v4651 = vunpack.c.l.b16 %v4627
      %v4652 = vpack.c.b16 %v4645, %v4644
      %v4653 = vpack.c.b16 %v4647, %v4646
      %v4654 = vpack.c.b16 %v4649, %v4648
      %v4655 = vpack.c.b16 %v4651, %v4650
      %4660 = vmatprep.subr.bf16.mxu0 0
      %4661 = vmatpush1.bf16.msra.mxu0 %v4652
      %4662 = vmatprep.subr.bf16.mxu0 0
      %4663 = vmatpush1.bf16.msra.mxu0 %v4653
      %4664 = vmatprep.subr.bf16.mxu0 0
      %4665 = vmatpush1.bf16.msra.mxu0 %v4654
      %4666 = vmatprep.subr.bf16.mxu0 0
      %4667 = vmatpush1.bf16.msra.mxu0 %v4655
      %4668 = vmatprep.subr.bf16.mxu0 0
      %4669 = vmatpush1.bf16.msra.mxu0 0
      %4670 = vmatprep.subr.bf16.mxu0 0
      %4671 = vmatpush1.bf16.msra.mxu0 0
      %4672 = vmatprep.subr.bf16.mxu0 0
      %4673 = vmatpush1.bf16.msra.mxu0 0
      %4674 = vmatprep.subr.bf16.mxu0 0
      %4675 = vmatpush1.bf16.msra.mxu0 0
      %4676 = vmatprep.subr.bf16.mxu0 0
      %4677 = vmatpush1.bf16.msra.mxu0 0
      %4678 = vmatprep.subr.bf16.mxu0 0
      %4679 = vmatpush1.bf16.msra.mxu0 0
      %4680 = vmatprep.subr.bf16.mxu0 0
      %4681 = vmatpush1.bf16.msra.mxu0 0
      %4682 = vmatprep.subr.bf16.mxu0 0
      %4683 = vmatpush1.bf16.msra.mxu0 0
      %4684 = vmatprep.subr.bf16.mxu0 0
      %4685 = vmatpush1.bf16.msra.mxu0 0
      %4686 = vmatprep.subr.bf16.mxu0 0
      %4687 = vmatpush1.bf16.msra.mxu0 0
      %4688 = vmatprep.subr.bf16.mxu0 0
      %4689 = vmatpush1.bf16.msra.mxu0 0
      %4690 = vmatprep.subr.bf16.mxu0 0
      %4691 = vmatpush1.bf16.msra.mxu0 0
      %4692 = vmatprep.mubr.bf16.mxu0 0
      %4693 = vmatmul.mubr.bf16.gmra.mrb[0].mxu0 %v3710
      %v4694 = vpop.f32.mrb[0].mxu0
      %v4695 = vadd.f32 %v4634, %v4694
      %v4696 = vpop.f32.mrb[0].mxu0
      %v4697 = vpop.f32.mrb[0].mxu0
      %v4698 = vpop.f32.mrb[0].mxu0
      %4699 = vdwg.mxu0
      %s4700 = scalar_lea.vmem %s51, 64
      %v4701 = vld [vmem:[%s4700] sm:$0xf]
      %v4702 = vld [vmem:[%s4700 + $0x4] sm:$0xf]
      %v4703 = vld [vmem:[%s4700 + $0x8] sm:$0xf]
      %v4704 = vld [vmem:[%s4700 + $0xc] sm:$0xf]
      %v4705 = vld [vmem:[%s4700 + $0x10] sm:$0xf]
      %v4706 = vld [vmem:[%s4700 + $0x14] sm:$0xf]
      %v4707 = vld [vmem:[%s4700 + $0x18] sm:$0xf]
      %v4708 = vld [vmem:[%s4700 + $0x1c] sm:$0xf]
      %s4709 = scalar_lea.vmem %s53, 2
      %v4710 = vld [vmem:[%s4709] sm:$0x1]
      %v4712 = vlaneseq
      %v4713 = vshrl.u32 %v4712, 7
      %v4714 = vsub.s32 0, %v4713
      %v4715 = vrot.slane %v4710, %v4714
      %v4725 = vunpack.c.l.b16 %v4701
      %v4726 = vunpack.c.l.b16 %v4702
      %v4727 = vunpack.c.l.b16 %v4703
      %v4728 = vunpack.c.l.b16 %v4704
      %v4729 = vunpack.c.l.b16 %v4705
      %v4730 = vunpack.c.l.b16 %v4706
      %v4731 = vunpack.c.l.b16 %v4707
      %v4732 = vunpack.c.l.b16 %v4708
      %v4733 = vpack.c.b16 %v4726, %v4725
      %v4734 = vpack.c.b16 %v4728, %v4727
      %v4735 = vpack.c.b16 %v4730, %v4729
      %v4736 = vpack.c.b16 %v4732, %v4731
      %4741 = vmatprep.subr.bf16.mxu0 0
      %4742 = vmatpush1.bf16.msra.mxu0 %v4733
      %4743 = vmatprep.subr.bf16.mxu0 0
      %4744 = vmatpush1.bf16.msra.mxu0 %v4734
      %4745 = vmatprep.subr.bf16.mxu0 0
      %4746 = vmatpush1.bf16.msra.mxu0 %v4735
      %4747 = vmatprep.subr.bf16.mxu0 0
      %4748 = vmatpush1.bf16.msra.mxu0 %v4736
      %4749 = vmatprep.subr.bf16.mxu0 0
      %4750 = vmatpush1.bf16.msra.mxu0 0
      %4751 = vmatprep.subr.bf16.mxu0 0
      %4752 = vmatpush1.bf16.msra.mxu0 0
      %4753 = vmatprep.subr.bf16.mxu0 0
      %4754 = vmatpush1.bf16.msra.mxu0 0
      %4755 = vmatprep.subr.bf16.mxu0 0
      %4756 = vmatpush1.bf16.msra.mxu0 0
      %4757 = vmatprep.subr.bf16.mxu0 0
      %4758 = vmatpush1.bf16.msra.mxu0 0
      %4759 = vmatprep.subr.bf16.mxu0 0
      %4760 = vmatpush1.bf16.msra.mxu0 0
      %4761 = vmatprep.subr.bf16.mxu0 0
      %4762 = vmatpush1.bf16.msra.mxu0 0
      %4763 = vmatprep.subr.bf16.mxu0 0
      %4764 = vmatpush1.bf16.msra.mxu0 0
      %4765 = vmatprep.subr.bf16.mxu0 0
      %4766 = vmatpush1.bf16.msra.mxu0 0
      %4767 = vmatprep.subr.bf16.mxu0 0
      %4768 = vmatpush1.bf16.msra.mxu0 0
      %4769 = vmatprep.subr.bf16.mxu0 0
      %4770 = vmatpush1.bf16.msra.mxu0 0
      %4771 = vmatprep.subr.bf16.mxu0 0
      %4772 = vmatpush1.bf16.msra.mxu0 0
      %4773 = vmatprep.mubr.bf16.mxu0 0
      %4774 = vmatmul.mubr.bf16.gmra.mrb[0].mxu0 %v3710
      %v4775 = vpop.f32.mrb[0].mxu0
      %v4776 = vadd.f32 %v4715, %v4775
      %v4777 = vpop.f32.mrb[0].mxu0
      %v4778 = vpop.f32.mrb[0].mxu0
      %v4779 = vpop.f32.mrb[0].mxu0
      %4780 = vdwg.mxu0
      %v4782 = vsel %vm1780, %v4614, 0
      %v4785 = vsel %vm1780, %v4695, 0
      %4787 = vmatprep.subr.mxu0 0.0
      %4788 = vmatpush1.xpose.msra.mxu0 %v4785
      %4789 = vmatprep.subr.mxu0 0.0
      %4790 = vmatpush1.xpose.msra.mxu0 0.0
      %4791 = vmatprep.subr.mxu0 0.0
      %4792 = vmatpush1.xpose.msra.mxu0 0.0
      %4793 = vmatprep.subr.mxu0 0.0
      %4794 = vmatpush1.xpose.msra.mxu0 0.0
      %4795 = vmatprep.subr.mxu0 0.0
      %4796 = vmatpush1.xpose.msra.mxu0 0.0
      %4797 = vmatprep.subr.mxu0 0.0
      %4798 = vmatpush1.xpose.msra.mxu0 0.0
      %4799 = vmatprep.subr.mxu0 0.0
      %4800 = vmatpush1.xpose.msra.mxu0 0.0
      %4801 = vmatprep.subr.mxu0 0.0
      %4802 = vmatpush1.xpose.msra.mxu0 0.0
      %4803 = vmatprep.subr.mxu0 0.0
      %4804 = vmatpush1.xpose.msra.mxu0 0.0
      %4805 = vmatprep.subr.mxu0 0.0
      %4806 = vmatpush1.xpose.msra.mxu0 0.0
      %4807 = vmatprep.subr.mxu0 0.0
      %4808 = vmatpush1.xpose.msra.mxu0 0.0
      %4809 = vmatprep.subr.mxu0 0.0
      %4810 = vmatpush1.xpose.msra.mxu0 0.0
      %4811 = vmatprep.subr.mxu0 0.0
      %4812 = vmatpush1.xpose.msra.mxu0 0.0
      %4813 = vmatprep.subr.mxu0 0.0
      %4814 = vmatpush1.xpose.msra.mxu0 0.0
      %4815 = vmatprep.subr.mxu0 0.0
      %4816 = vmatpush1.xpose.msra.mxu0 0.0
      %4817 = vmatprep.subr.mxu0 0.0
      %4818 = vmatpush1.xpose.msra.mxu0 0.0
      %4819 = vmatprep.subr.mxu0 0.0
      %4820 = vmatpush1.xpose.msra.mxu0 0.0
      %4821 = vmatprep.subr.mxu0 0.0
      %4822 = vmatpush1.xpose.msra.mxu0 0.0
      %4823 = vmatprep.subr.mxu0 0.0
      %4824 = vmatpush1.xpose.msra.mxu0 0.0
      %4825 = vmatprep.subr.mxu0 0.0
      %4826 = vmatpush1.xpose.msra.mxu0 0.0
      %4827 = vmatprep.subr.mxu0 0.0
      %4828 = vmatpush1.xpose.msra.mxu0 0.0
      %4829 = vmatprep.subr.mxu0 0.0
      %4830 = vmatpush1.xpose.msra.mxu0 0.0
      %4831 = vmatprep.subr.mxu0 0.0
      %4832 = vmatpush1.xpose.msra.mxu0 0.0
      %4833 = vmatprep.subr.mxu0 0.0
      %4834 = vmatpush1.xpose.msra.mxu0 0.0
      %4835 = vmatprep.subr.mxu0 0.0
      %4836 = vmatpush1.xpose.msra.mxu0 0.0
      %4837 = vmatprep.subr.mxu0 0.0
      %4838 = vmatpush1.xpose.msra.mxu0 0.0
      %4839 = vmatprep.subr.mxu0 0.0
      %4840 = vmatpush1.xpose.msra.mxu0 0.0
      %4841 = vmatprep.subr.mxu0 0.0
      %4842 = vmatpush1.xpose.msra.mxu0 0.0
      %4843 = vmatprep.subr.mxu0 0.0
      %4844 = vmatpush1.xpose.msra.mxu0 0.0
      %4845 = vmatprep.subr.mxu0 0.0
      %4846 = vmatpush1.xpose.msra.mxu0 0.0
      %4847 = vmatprep.subr.mxu0 0.0
      %4848 = vmatpush1.xpose.msra.mxu0 0.0
      %4849 = vmatprep.subr.mxu0 0.0
      %4850 = vmatpush1.xpose.msra.mxu0 0.0
      %4851 = vmatprep.mubr.f32.mxu0 0.0
      %4852 = vmatmul.mubr.f32.gmra.mrb[0].mxu0 %v4782
      %v4853 = vpop.f32.mrb[0].mxu0
      %v4854 = vadd.f32 0.0, %v4853
      %v4855 = vpop.f32.mrb[0].mxu0
      %4856 = vdwg.mxu0
      %v4857 = vmul.f32 %v4854, 0.25
      %v4858 = vsel %vm1858, %v4857, -inf
      %4859 = vmax.xlane.f32.xlu0 %v4858
      %v4860 = vpop.xlane.xlu0 %4859
      %v4861 = vsub.f32 %v4857, %v4860
      %v4862 = vmul.f32 %v4861, 1.442695
      %v4863 = vpow.pop %v4862
      %v4864 = vsel %vm1858, %v4863, 0.0
      %4865 = vadd.xlane.f32.xlu0 %v4864
      %v4866 = vpop.xlane.xlu0 %4865
      %v4867 = vrcp.pop %v4866
      %v4868 = vmul.f32 %v4863, %v4867
      %v4869 = vpack.c.bf16 %v4868, %v4868
      %v4870 = vpack.c.bf16 %v4776, %v4776
      %v4872 = vsel %vm1858, %v4869, 0
      %v4875 = vsel %vm1875, %v4870, 0
      %4877 = vmatprep.subr.bf16.mxu0 0
      %4878 = vmatpush1.bf16.msra.mxu0 %v4875
      %4879 = vmatprep.subr.bf16.mxu0 0
      %4880 = vmatpush1.bf16.msra.mxu0 0
      %4881 = vmatprep.subr.bf16.mxu0 0
      %4882 = vmatpush1.bf16.msra.mxu0 0
      %4883 = vmatprep.subr.bf16.mxu0 0
      %4884 = vmatpush1.bf16.msra.mxu0 0
      %4885 = vmatprep.subr.bf16.mxu0 0
      %4886 = vmatpush1.bf16.msra.mxu0 0
      %4887 = vmatprep.subr.bf16.mxu0 0
      %4888 = vmatpush1.bf16.msra.mxu0 0
      %4889 = vmatprep.subr.bf16.mxu0 0
      %4890 = vmatpush1.bf16.msra.mxu0 0
      %4891 = vmatprep.subr.bf16.mxu0 0
      %4892 = vmatpush1.bf16.msra.mxu0 0
      %4893 = vmatprep.subr.bf16.mxu0 0
      %4894 = vmatpush1.bf16.msra.mxu0 0
      %4895 = vmatprep.subr.bf16.mxu0 0
      %4896 = vmatpush1.bf16.msra.mxu0 0
      %4897 = vmatprep.subr.bf16.mxu0 0
      %4898 = vmatpush1.bf16.msra.mxu0 0
      %4899 = vmatprep.subr.bf16.mxu0 0
      %4900 = vmatpush1.bf16.msra.mxu0 0
      %4901 = vmatprep.subr.bf16.mxu0 0
      %4902 = vmatpush1.bf16.msra.mxu0 0
      %4903 = vmatprep.subr.bf16.mxu0 0
      %4904 = vmatpush1.bf16.msra.mxu0 0
      %4905 = vmatprep.subr.bf16.mxu0 0
      %4906 = vmatpush1.bf16.msra.mxu0 0
      %4907 = vmatprep.subr.bf16.mxu0 0
      %4908 = vmatpush1.bf16.msra.mxu0 0
      %4909 = vmatprep.mubr.bf16.mxu0 0
      %4910 = vmatmul.mubr.bf16.gmra.mrb[0].mxu0 %v4872
      %v4911 = vpop.f32.mrb[0].mxu0
      %v4912 = vadd.f32 0.0, %v4911
      %v4913 = vpop.f32.mrb[0].mxu0
      %v4914 = vpop.f32.mrb[0].mxu0
      %v4915 = vpop.f32.mrb[0].mxu0
      %4916 = vdwg.mxu0
      %v4917 = vpack.c.bf16 %v4912, %v4912
      %s4918 = scalar_lea.vmem %s55, 16
      %v4919 = vld [vmem:[%s4918] sm:$0xf]
      %v4920 = vld [vmem:[%s4918 + $0x4] sm:$0xf]
      %v4923 = vunpack.c.l.b16 %v4919
      %v4924 = vunpack.c.l.b16 %v4920
      %v4925 = vpack.c.b16 %v4924, %v4923
      %v4928 = vsel %vm1780, %v4917, 0
      %4930 = vmatprep.subr.bf16.mxu0 0
      %4931 = vmatpush1.bf16.msra.mxu0 %v4925
      %4932 = vmatprep.subr.bf16.mxu0 0
      %4933 = vmatpush1.bf16.msra.mxu0 0
      %4934 = vmatprep.subr.bf16.mxu0 0
      %4935 = vmatpush1.bf16.msra.mxu0 0
      %4936 = vmatprep.subr.bf16.mxu0 0
      %4937 = vmatpush1.bf16.msra.mxu0 0
      %4938 = vmatprep.subr.bf16.mxu0 0
      %4939 = vmatpush1.bf16.msra.mxu0 0
      %4940 = vmatprep.subr.bf16.mxu0 0
      %4941 = vmatpush1.bf16.msra.mxu0 0
      %4942 = vmatprep.subr.bf16.mxu0 0
      %4943 = vmatpush1.bf16.msra.mxu0 0
      %4944 = vmatprep.subr.bf16.mxu0 0
      %4945 = vmatpush1.bf16.msra.mxu0 0
      %4946 = vmatprep.subr.bf16.mxu0 0
      %4947 = vmatpush1.bf16.msra.mxu0 0
      %4948 = vmatprep.subr.bf16.mxu0 0
      %4949 = vmatpush1.bf16.msra.mxu0 0
      %4950 = vmatprep.subr.bf16.mxu0 0
      %4951 = vmatpush1.bf16.msra.mxu0 0
      %4952 = vmatprep.subr.bf16.mxu0 0
      %4953 = vmatpush1.bf16.msra.mxu0 0
      %4954 = vmatprep.subr.bf16.mxu0 0
      %4955 = vmatpush1.bf16.msra.mxu0 0
      %4956 = vmatprep.subr.bf16.mxu0 0
      %4957 = vmatpush1.bf16.msra.mxu0 0
      %4958 = vmatprep.subr.bf16.mxu0 0
      %4959 = vmatpush1.bf16.msra.mxu0 0
      %4960 = vmatprep.subr.bf16.mxu0 0
      %4961 = vmatpush1.bf16.msra.mxu0 0
      %4962 = vmatprep.mubr.bf16.mxu0 0
      %4963 = vmatmul.mubr.bf16.gmra.mrb[0].mxu0 %v4928
      %v4964 = vpop.f32.mrb[0].mxu0
      %v4965 = vadd.f32 0.0, %v4964
      %v4966 = vpop.f32.mrb[0].mxu0
      %v4967 = vpop.f32.mrb[0].mxu0
      %v4968 = vpop.f32.mrb[0].mxu0
      %4969 = vdwg.mxu0
      %v4970 = vadd.f32 %v4537, %v4965
      %s4971 = scalar_lea.vmem %s43, 96
      %v4972 = vld [vmem:[%s4971] sm:$0xf]
      %v4973 = vld [vmem:[%s4971 + $0x4] sm:$0xf]
      %v4974 = vld [vmem:[%s4971 + $0x8] sm:$0xf]
      %v4975 = vld [vmem:[%s4971 + $0xc] sm:$0xf]
      %v4976 = vld [vmem:[%s4971 + $0x10] sm:$0xf]
      %v4977 = vld [vmem:[%s4971 + $0x14] sm:$0xf]
      %v4978 = vld [vmem:[%s4971 + $0x18] sm:$0xf]
      %v4979 = vld [vmem:[%s4971 + $0x1c] sm:$0xf]
      %s4980 = scalar_lea.vmem %s45, 3
      %v4981 = vld [vmem:[%s4980] sm:$0x1]
      %v4983 = vlaneseq
      %v4984 = vshrl.u32 %v4983, 7
      %v4985 = vsub.s32 0, %v4984
      %v4986 = vrot.slane %v4981, %v4985
      %v4996 = vunpack.c.l.b16 %v4972
      %v4997 = vunpack.c.l.b16 %v4973
      %v4998 = vunpack.c.l.b16 %v4974
      %v4999 = vunpack.c.l.b16 %v4975
      %v5000 = vunpack.c.l.b16 %v4976
      %v5001 = vunpack.c.l.b16 %v4977
      %v5002 = vunpack.c.l.b16 %v4978
      %v5003 = vunpack.c.l.b16 %v4979
      %v5004 = vpack.c.b16 %v4997, %v4996
      %v5005 = vpack.c.b16 %v4999, %v4998
      %v5006 = vpack.c.b16 %v5001, %v5000
      %v5007 = vpack.c.b16 %v5003, %v5002
      %5012 = vmatprep.subr.bf16.mxu0 0
      %5013 = vmatpush1.bf16.msra.mxu0 %v5004
      %5014 = vmatprep.subr.bf16.mxu0 0
      %5015 = vmatpush1.bf16.msra.mxu0 %v5005
      %5016 = vmatprep.subr.bf16.mxu0 0
      %5017 = vmatpush1.bf16.msra.mxu0 %v5006
      %5018 = vmatprep.subr.bf16.mxu0 0
      %5019 = vmatpush1.bf16.msra.mxu0 %v5007
      %5020 = vmatprep.subr.bf16.mxu0 0
      %5021 = vmatpush1.bf16.msra.mxu0 0
      %5022 = vmatprep.subr.bf16.mxu0 0
      %5023 = vmatpush1.bf16.msra.mxu0 0
      %5024 = vmatprep.subr.bf16.mxu0 0
      %5025 = vmatpush1.bf16.msra.mxu0 0
      %5026 = vmatprep.subr.bf16.mxu0 0
      %5027 = vmatpush1.bf16.msra.mxu0 0
      %5028 = vmatprep.subr.bf16.mxu0 0
      %5029 = vmatpush1.bf16.msra.mxu0 0
      %5030 = vmatprep.subr.bf16.mxu0 0
      %5031 = vmatpush1.bf16.msra.mxu0 0
      %5032 = vmatprep.subr.bf16.mxu0 0
      %5033 = vmatpush1.bf16.msra.mxu0 0
      %5034 = vmatprep.subr.bf16.mxu0 0
      %5035 = vmatpush1.bf16.msra.mxu0 0
      %5036 = vmatprep.subr.bf16.mxu0 0
      %5037 = vmatpush1.bf16.msra.mxu0 0
      %5038 = vmatprep.subr.bf16.mxu0 0
      %5039 = vmatpush1.bf16.msra.mxu0 0
      %5040 = vmatprep.subr.bf16.mxu0 0
      %5041 = vmatpush1.bf16.msra.mxu0 0
      %5042 = vmatprep.subr.bf16.mxu0 0
      %5043 = vmatpush1.bf16.msra.mxu0 0
      %5044 = vmatprep.mubr.bf16.mxu0 0
      %5045 = vmatmul.mubr.bf16.gmra.mrb[0].mxu0 %v3710
      %v5046 = vpop.f32.mrb[0].mxu0
      %v5047 = vadd.f32 %v4986, %v5046
      %v5048 = vpop.f32.mrb[0].mxu0
      %v5049 = vpop.f32.mrb[0].mxu0
      %v5050 = vpop.f32.mrb[0].mxu0
      %5051 = vdwg.mxu0
      %s5052 = scalar_lea.vmem %s47, 96
      %v5053 = vld [vmem:[%s5052] sm:$0xf]
      %v5054 = vld [vmem:[%s5052 + $0x4] sm:$0xf]
      %v5055 = vld [vmem:[%s5052 + $0x8] sm:$0xf]
      %v5056 = vld [vmem:[%s5052 + $0xc] sm:$0xf]
      %v5057 = vld [vmem:[%s5052 + $0x10] sm:$0xf]
      %v5058 = vld [vmem:[%s5052 + $0x14] sm:$0xf]
      %v5059 = vld [vmem:[%s5052 + $0x18] sm:$0xf]
      %v5060 = vld [vmem:[%s5052 + $0x1c] sm:$0xf]
      %s5061 = scalar_lea.vmem %s49, 3
      %v5062 = vld [vmem:[%s5061] sm:$0x1]
      %v5064 = vlaneseq
      %v5065 = vshrl.u32 %v5064, 7
      %v5066 = vsub.s32 0, %v5065
      %v5067 = vrot.slane %v5062, %v5066
      %v5077 = vunpack.c.l.b16 %v5053
      %v5078 = vunpack.c.l.b16 %v5054
      %v5079 = vunpack.c.l.b16 %v5055
      %v5080 = vunpack.c.l.b16 %v5056
      %v5081 = vunpack.c.l.b16 %v5057
      %v5082 = vunpack.c.l.b16 %v5058
      %v5083 = vunpack.c.l.b16 %v5059
      %v5084 = vunpack.c.l.b16 %v5060
      %v5085 = vpack.c.b16 %v5078, %v5077
      %v5086 = vpack.c.b16 %v5080, %v5079
      %v5087 = vpack.c.b16 %v5082, %v5081
      %v5088 = vpack.c.b16 %v5084, %v5083
      %5093 = vmatprep.subr.bf16.mxu0 0
      %5094 = vmatpush1.bf16.msra.mxu0 %v5085
      %5095 = vmatprep.subr.bf16.mxu0 0
      %5096 = vmatpush1.bf16.msra.mxu0 %v5086
      %5097 = vmatprep.subr.bf16.mxu0 0
      %5098 = vmatpush1.bf16.msra.mxu0 %v5087
      %5099 = vmatprep.subr.bf16.mxu0 0
      %5100 = vmatpush1.bf16.msra.mxu0 %v5088
      %5101 = vmatprep.subr.bf16.mxu0 0
      %5102 = vmatpush1.bf16.msra.mxu0 0
      %5103 = vmatprep.subr.bf16.mxu0 0
      %5104 = vmatpush1.bf16.msra.mxu0 0
      %5105 = vmatprep.subr.bf16.mxu0 0
      %5106 = vmatpush1.bf16.msra.mxu0 0
      %5107 = vmatprep.subr.bf16.mxu0 0
      %5108 = vmatpush1.bf16.msra.mxu0 0
      %5109 = vmatprep.subr.bf16.mxu0 0
      %5110 = vmatpush1.bf16.msra.mxu0 0
      %5111 = vmatprep.subr.bf16.mxu0 0
      %5112 = vmatpush1.bf16.msra.mxu0 0
      %5113 = vmatprep.subr.bf16.mxu0 0
      %5114 = vmatpush1.bf16.msra.mxu0 0
      %5115 = vmatprep.subr.bf16.mxu0 0
      %5116 = vmatpush1.bf16.msra.mxu0 0
      %5117 = vmatprep.subr.bf16.mxu0 0
      %5118 = vmatpush1.bf16.msra.mxu0 0
      %5119 = vmatprep.subr.bf16.mxu0 0
      %5120 = vmatpush1.bf16.msra.mxu0 0
      %5121 = vmatprep.subr.bf16.mxu0 0
      %5122 = vmatpush1.bf16.msra.mxu0 0
      %5123 = vmatprep.subr.bf16.mxu0 0
      %5124 = vmatpush1.bf16.msra.mxu0 0
      %5125 = vmatprep.mubr.bf16.mxu0 0
      %5126 = vmatmul.mubr.bf16.gmra.mrb[0].mxu0 %v3710
      %v5127 = vpop.f32.mrb[0].mxu0
      %v5128 = vadd.f32 %v5067, %v5127
      %v5129 = vpop.f32.mrb[0].mxu0
      %v5130 = vpop.f32.mrb[0].mxu0
      %v5131 = vpop.f32.mrb[0].mxu0
      %5132 = vdwg.mxu0
      %s5133 = scalar_lea.vmem %s51, 96
      %v5134 = vld [vmem:[%s5133] sm:$0xf]
      %v5135 = vld [vmem:[%s5133 + $0x4] sm:$0xf]
      %v5136 = vld [vmem:[%s5133 + $0x8] sm:$0xf]
      %v5137 = vld [vmem:[%s5133 + $0xc] sm:$0xf]
      %v5138 = vld [vmem:[%s5133 + $0x10] sm:$0xf]
      %v5139 = vld [vmem:[%s5133 + $0x14] sm:$0xf]
      %v5140 = vld [vmem:[%s5133 + $0x18] sm:$0xf]
      %v5141 = vld [vmem:[%s5133 + $0x1c] sm:$0xf]
      %s5142 = scalar_lea.vmem %s53, 3
      %v5143 = vld [vmem:[%s5142] sm:$0x1]
      %v5145 = vlaneseq
      %v5146 = vshrl.u32 %v5145, 7
      %v5147 = vsub.s32 0, %v5146
      %v5148 = vrot.slane %v5143, %v5147
      %v5158 = vunpack.c.l.b16 %v5134
      %v5159 = vunpack.c.l.b16 %v5135
      %v5160 = vunpack.c.l.b16 %v5136
      %v5161 = vunpack.c.l.b16 %v5137
      %v5162 = vunpack.c.l.b16 %v5138
      %v5163 = vunpack.c.l.b16 %v5139
      %v5164 = vunpack.c.l.b16 %v5140
      %v5165 = vunpack.c.l.b16 %v5141
      %v5166 = vpack.c.b16 %v5159, %v5158
      %v5167 = vpack.c.b16 %v5161, %v5160
      %v5168 = vpack.c.b16 %v5163, %v5162
      %v5169 = vpack.c.b16 %v5165, %v5164
      %5174 = vmatprep.subr.bf16.mxu0 0
      %5175 = vmatpush1.bf16.msra.mxu0 %v5166
      %5176 = vmatprep.subr.bf16.mxu0 0
      %5177 = vmatpush1.bf16.msra.mxu0 %v5167
      %5178 = vmatprep.subr.bf16.mxu0 0
      %5179 = vmatpush1.bf16.msra.mxu0 %v5168
      %5180 = vmatprep.subr.bf16.mxu0 0
      %5181 = vmatpush1.bf16.msra.mxu0 %v5169
      %5182 = vmatprep.subr.bf16.mxu0 0
      %5183 = vmatpush1.bf16.msra.mxu0 0
      %5184 = vmatprep.subr.bf16.mxu0 0
      %5185 = vmatpush1.bf16.msra.mxu0 0
      %5186 = vmatprep.subr.bf16.mxu0 0
      %5187 = vmatpush1.bf16.msra.mxu0 0
      %5188 = vmatprep.subr.bf16.mxu0 0
      %5189 = vmatpush1.bf16.msra.mxu0 0
      %5190 = vmatprep.subr.bf16.mxu0 0
      %5191 = vmatpush1.bf16.msra.mxu0 0
      %5192 = vmatprep.subr.bf16.mxu0 0
      %5193 = vmatpush1.bf16.msra.mxu0 0
      %5194 = vmatprep.subr.bf16.mxu0 0
      %5195 = vmatpush1.bf16.msra.mxu0 0
      %5196 = vmatprep.subr.bf16.mxu0 0
      %5197 = vmatpush1.bf16.msra.mxu0 0
      %5198 = vmatprep.subr.bf16.mxu0 0
      %5199 = vmatpush1.bf16.msra.mxu0 0
      %5200 = vmatprep.subr.bf16.mxu0 0
      %5201 = vmatpush1.bf16.msra.mxu0 0
      %5202 = vmatprep.subr.bf16.mxu0 0
      %5203 = vmatpush1.bf16.msra.mxu0 0
      %5204 = vmatprep.subr.bf16.mxu0 0
      %5205 = vmatpush1.bf16.msra.mxu0 0
      %5206 = vmatprep.mubr.bf16.mxu0 0
      %5207 = vmatmul.mubr.bf16.gmra.mrb[0].mxu0 %v3710
      %v5208 = vpop.f32.mrb[0].mxu0
      %v5209 = vadd.f32 %v5148, %v5208
      %v5210 = vpop.f32.mrb[0].mxu0
      %v5211 = vpop.f32.mrb[0].mxu0
      %v5212 = vpop.f32.mrb[0].mxu0
      %5213 = vdwg.mxu0
      %v5215 = vsel %vm1780, %v5047, 0
      %v5218 = vsel %vm1780, %v5128, 0
      %5220 = vmatprep.subr.mxu0 0.0
      %5221 = vmatpush1.xpose.msra.mxu0 %v5218
      %5222 = vmatprep.subr.mxu0 0.0
      %5223 = vmatpush1.xpose.msra.mxu0 0.0
      %5224 = vmatprep.subr.mxu0 0.0
      %5225 = vmatpush1.xpose.msra.mxu0 0.0
      %5226 = vmatprep.subr.mxu0 0.0
      %5227 = vmatpush1.xpose.msra.mxu0 0.0
      %5228 = vmatprep.subr.mxu0 0.0
      %5229 = vmatpush1.xpose.msra.mxu0 0.0
      %5230 = vmatprep.subr.mxu0 0.0
      %5231 = vmatpush1.xpose.msra.mxu0 0.0
      %5232 = vmatprep.subr.mxu0 0.0
      %5233 = vmatpush1.xpose.msra.mxu0 0.0
      %5234 = vmatprep.subr.mxu0 0.0
      %5235 = vmatpush1.xpose.msra.mxu0 0.0
      %5236 = vmatprep.subr.mxu0 0.0
      %5237 = vmatpush1.xpose.msra.mxu0 0.0
      %5238 = vmatprep.subr.mxu0 0.0
      %5239 = vmatpush1.xpose.msra.mxu0 0.0
      %5240 = vmatprep.subr.mxu0 0.0
      %5241 = vmatpush1.xpose.msra.mxu0 0.0
      %5242 = vmatprep.subr.mxu0 0.0
      %5243 = vmatpush1.xpose.msra.mxu0 0.0
      %5244 = vmatprep.subr.mxu0 0.0
      %5245 = vmatpush1.xpose.msra.mxu0 0.0
      %5246 = vmatprep.subr.mxu0 0.0
      %5247 = vmatpush1.xpose.msra.mxu0 0.0
      %5248 = vmatprep.subr.mxu0 0.0
      %5249 = vmatpush1.xpose.msra.mxu0 0.0
      %5250 = vmatprep.subr.mxu0 0.0
      %5251 = vmatpush1.xpose.msra.mxu0 0.0
      %5252 = vmatprep.subr.mxu0 0.0
      %5253 = vmatpush1.xpose.msra.mxu0 0.0
      %5254 = vmatprep.subr.mxu0 0.0
      %5255 = vmatpush1.xpose.msra.mxu0 0.0
      %5256 = vmatprep.subr.mxu0 0.0
      %5257 = vmatpush1.xpose.msra.mxu0 0.0
      %5258 = vmatprep.subr.mxu0 0.0
      %5259 = vmatpush1.xpose.msra.mxu0 0.0
      %5260 = vmatprep.subr.mxu0 0.0
      %5261 = vmatpush1.xpose.msra.mxu0 0.0
      %5262 = vmatprep.subr.mxu0 0.0
      %5263 = vmatpush1.xpose.msra.mxu0 0.0
      %5264 = vmatprep.subr.mxu0 0.0
      %5265 = vmatpush1.xpose.msra.mxu0 0.0
      %5266 = vmatprep.subr.mxu0 0.0
      %5267 = vmatpush1.xpose.msra.mxu0 0.0
      %5268 = vmatprep.subr.mxu0 0.0
      %5269 = vmatpush1.xpose.msra.mxu0 0.0
      %5270 = vmatprep.subr.mxu0 0.0
      %5271 = vmatpush1.xpose.msra.mxu0 0.0
      %5272 = vmatprep.subr.mxu0 0.0
      %5273 = vmatpush1.xpose.msra.mxu0 0.0
      %5274 = vmatprep.subr.mxu0 0.0
      %5275 = vmatpush1.xpose.msra.mxu0 0.0
      %5276 = vmatprep.subr.mxu0 0.0
      %5277 = vmatpush1.xpose.msra.mxu0 0.0
      %5278 = vmatprep.subr.mxu0 0.0
      %5279 = vmatpush1.xpose.msra.mxu0 0.0
      %5280 = vmatprep.subr.mxu0 0.0
      %5281 = vmatpush1.xpose.msra.mxu0 0.0
      %5282 = vmatprep.subr.mxu0 0.0
      %5283 = vmatpush1.xpose.msra.mxu0 0.0
      %5284 = vmatprep.mubr.f32.mxu0 0.0
      %5285 = vmatmul.mubr.f32.gmra.mrb[0].mxu0 %v5215
      %v5286 = vpop.f32.mrb[0].mxu0
      %v5287 = vadd.f32 0.0, %v5286
      %v5288 = vpop.f32.mrb[0].mxu0
      %5289 = vdwg.mxu0
      %v5290 = vmul.f32 %v5287, 0.25
      %v5291 = vsel %vm1858, %v5290, -inf
      %5292 = vmax.xlane.f32.xlu0 %v5291
      %v5293 = vpop.xlane.xlu0 %5292
      %v5294 = vsub.f32 %v5290, %v5293
      %v5295 = vmul.f32 %v5294, 1.442695
      %v5296 = vpow.pop %v5295
      %v5297 = vsel %vm1858, %v5296, 0.0
      %5298 = vadd.xlane.f32.xlu0 %v5297
      %v5299 = vpop.xlane.xlu0 %5298
      %v5300 = vrcp.pop %v5299
      %v5301 = vmul.f32 %v5296, %v5300
      %v5302 = vpack.c.bf16 %v5301, %v5301
      %v5303 = vpack.c.bf16 %v5209, %v5209
      %v5305 = vsel %vm1858, %v5302, 0
      %v5308 = vsel %vm1875, %v5303, 0
      %5310 = vmatprep.subr.bf16.mxu0 0
      %5311 = vmatpush1.bf16.msra.mxu0 %v5308
      %5312 = vmatprep.subr.bf16.mxu0 0
      %5313 = vmatpush1.bf16.msra.mxu0 0
      %5314 = vmatprep.subr.bf16.mxu0 0
      %5315 = vmatpush1.bf16.msra.mxu0 0
      %5316 = vmatprep.subr.bf16.mxu0 0
      %5317 = vmatpush1.bf16.msra.mxu0 0
      %5318 = vmatprep.subr.bf16.mxu0 0
      %5319 = vmatpush1.bf16.msra.mxu0 0
      %5320 = vmatprep.subr.bf16.mxu0 0
      %5321 = vmatpush1.bf16.msra.mxu0 0
      %5322 = vmatprep.subr.bf16.mxu0 0
      %5323 = vmatpush1.bf16.msra.mxu0 0
      %5324 = vmatprep.subr.bf16.mxu0 0
      %5325 = vmatpush1.bf16.msra.mxu0 0
      %5326 = vmatprep.subr.bf16.mxu0 0
      %5327 = vmatpush1.bf16.msra.mxu0 0
      %5328 = vmatprep.subr.bf16.mxu0 0
      %5329 = vmatpush1.bf16.msra.mxu0 0
      %5330 = vmatprep.subr.bf16.mxu0 0
      %5331 = vmatpush1.bf16.msra.mxu0 0
      %5332 = vmatprep.subr.bf16.mxu0 0
      %5333 = vmatpush1.bf16.msra.mxu0 0
      %5334 = vmatprep.subr.bf16.mxu0 0
      %5335 = vmatpush1.bf16.msra.mxu0 0
      %5336 = vmatprep.subr.bf16.mxu0 0
      %5337 = vmatpush1.bf16.msra.mxu0 0
      %5338 = vmatprep.subr.bf16.mxu0 0
      %5339 = vmatpush1.bf16.msra.mxu0 0
      %5340 = vmatprep.subr.bf16.mxu0 0
      %5341 = vmatpush1.bf16.msra.mxu0 0
      %5342 = vmatprep.mubr.bf16.mxu0 0
      %5343 = vmatmul.mubr.bf16.gmra.mrb[0].mxu0 %v5305
      %v5344 = vpop.f32.mrb[0].mxu0
      %v5345 = vadd.f32 0.0, %v5344
      %v5346 = vpop.f32.mrb[0].mxu0
      %v5347 = vpop.f32.mrb[0].mxu0
      %v5348 = vpop.f32.mrb[0].mxu0
      %5349 = vdwg.mxu0
      %v5350 = vpack.c.bf16 %v5345, %v5345
      %s5351 = scalar_lea.vmem %s55, 24
      %v5352 = vld [vmem:[%s5351] sm:$0xf]
      %v5353 = vld [vmem:[%s5351 + $0x4] sm:$0xf]
      %v5356 = vunpack.c.l.b16 %v5352
      %v5357 = vunpack.c.l.b16 %v5353
      %v5358 = vpack.c.b16 %v5357, %v5356
      %v5361 = vsel %vm1780, %v5350, 0
      %5363 = vmatprep.subr.bf16.mxu0 0
      %5364 = vmatpush1.bf16.msra.mxu0 %v5358
      %5365 = vmatprep.subr.bf16.mxu0 0
      %5366 = vmatpush1.bf16.msra.mxu0 0
      %5367 = vmatprep.subr.bf16.mxu0 0
      %5368 = vmatpush1.bf16.msra.mxu0 0
      %5369 = vmatprep.subr.bf16.mxu0 0
      %5370 = vmatpush1.bf16.msra.mxu0 0
      %5371 = vmatprep.subr.bf16.mxu0 0
      %5372 = vmatpush1.bf16.msra.mxu0 0
      %5373 = vmatprep.subr.bf16.mxu0 0
      %5374 = vmatpush1.bf16.msra.mxu0 0
      %5375 = vmatprep.subr.bf16.mxu0 0
      %5376 = vmatpush1.bf16.msra.mxu0 0
      %5377 = vmatprep.subr.bf16.mxu0 0
      %5378 = vmatpush1.bf16.msra.mxu0 0
      %5379 = vmatprep.subr.bf16.mxu0 0
      %5380 = vmatpush1.bf16.msra.mxu0 0
      %5381 = vmatprep.subr.bf16.mxu0 0
      %5382 = vmatpush1.bf16.msra.mxu0 0
      %5383 = vmatprep.subr.bf16.mxu0 0
      %5384 = vmatpush1.bf16.msra.mxu0 0
      %5385 = vmatprep.subr.bf16.mxu0 0
      %5386 = vmatpush1.bf16.msra.mxu0 0
      %5387 = vmatprep.subr.bf16.mxu0 0
      %5388 = vmatpush1.bf16.msra.mxu0 0
      %5389 = vmatprep.subr.bf16.mxu0 0
      %5390 = vmatpush1.bf16.msra.mxu0 0
      %5391 = vmatprep.subr.bf16.mxu0 0
      %5392 = vmatpush1.bf16.msra.mxu0 0
      %5393 = vmatprep.subr.bf16.mxu0 0
      %5394 = vmatpush1.bf16.msra.mxu0 0
      %5395 = vmatprep.mubr.bf16.mxu0 0
      %5396 = vmatmul.mubr.bf16.gmra.mrb[0].mxu0 %v5361
      %v5397 = vpop.f32.mrb[0].mxu0
      %v5398 = vadd.f32 0.0, %v5397
      %v5399 = vpop.f32.mrb[0].mxu0
      %v5400 = vpop.f32.mrb[0].mxu0
      %v5401 = vpop.f32.mrb[0].mxu0
      %5402 = vdwg.mxu0
      %v5403 = vadd.f32 %v4970, %v5398
      %v5404 = vadd.f32 %v3663, %v5403
      %v5405 = vsel %vm1578, %v5404, 0.0
      %5406 = vadd.xlane.f32.xlu0 %v5405
      %v5407 = vpop.xlane.xlu0 %5406
      %v5408 = vmul.f32 %v5407, %v3281
      %v5409 = vsub.f32 %v5404, %v5408
      %v5410 = vmul.f32 %v5409, %v5409
      %v5411 = vsel %vm1578, %v5410, 0.0
      %5412 = vadd.xlane.f32.xlu0 %v5411
      %v5413 = vpop.xlane.xlu0 %5412
      %v5414 = vmul.f32 %v5413, %v3281
      %v5415 = vadd.f32 %v5414, 1e-05
      %v5416 = vrsqrt.pop %v5415
      %v5417 = vmul.f32 %v5409, %v5416
      %v5418 = vld [vmem:[%s59] sm:$0x1]
      %v5420 = vlaneseq
      %v5421 = vshrl.u32 %v5420, 7
      %v5422 = vsub.s32 0, %v5421
      %v5423 = vrot.slane %v5418, %v5422
      %v5425 = vmul.f32 %v5417, %v5423
      %v5426 = vld [vmem:[%s61] sm:$0x1]
      %v5428 = vlaneseq
      %v5429 = vshrl.u32 %v5428, 7
      %v5430 = vsub.s32 0, %v5429
      %v5431 = vrot.slane %v5426, %v5430
      %v5433 = vadd.f32 %v5425, %v5431
      %v5434 = vpack.c.bf16 %v5433, %v5433
      %v5435 = vpack.c.bf16 %v3621, %v3621
      %v5436 = vld [vmem:[%s77] sm:$0x1]
      %v5437 = vld [vmem:[%s63] sm:$0xf]
      %v5438 = vld [vmem:[%s63 + $0x4] sm:$0xf]
      %v5439 = vld [vmem:[%s63 + $0x8] sm:$0xf]
      %v5440 = vld [vmem:[%s63 + $0xc] sm:$0xf]
      %v5441 = vld [vmem:[%s63 + $0x10] sm:$0xf]
      %v5442 = vld [vmem:[%s63 + $0x14] sm:$0xf]
      %v5443 = vld [vmem:[%s63 + $0x18] sm:$0xf]
      %v5444 = vld [vmem:[%s63 + $0x1c] sm:$0xf]
      %v5445 = vld [vmem:[%s65] sm:$0x1]
      %v5447 = vlaneseq
      %v5448 = vshrl.u32 %v5447, 7
      %v5449 = vsub.s32 0, %v5448
      %v5450 = vrot.slane %v5445, %v5449
      %v5460 = vunpack.c.l.b16 %v5437
      %v5461 = vunpack.c.l.b16 %v5438
      %v5462 = vunpack.c.l.b16 %v5439
      %v5463 = vunpack.c.l.b16 %v5440
      %v5464 = vunpack.c.l.b16 %v5441
      %v5465 = vunpack.c.l.b16 %v5442
      %v5466 = vunpack.c.l.b16 %v5443
      %v5467 = vunpack.c.l.b16 %v5444
      %v5468 = vpack.c.b16 %v5461, %v5460
      %v5469 = vpack.c.b16 %v5463, %v5462
      %v5470 = vpack.c.b16 %v5465, %v5464
      %v5471 = vpack.c.b16 %v5467, %v5466
      %v5477 = vsel %vm1578, %v5434, 0
      %5479 = vmatprep.subr.bf16.mxu0 0
      %5480 = vmatpush1.bf16.msra.mxu0 %v5468
      %5481 = vmatprep.subr.bf16.mxu0 0
      %5482 = vmatpush1.bf16.msra.mxu0 %v5469
      %5483 = vmatprep.subr.bf16.mxu0 0
      %5484 = vmatpush1.bf16.msra.mxu0 %v5470
      %5485 = vmatprep.subr.bf16.mxu0 0
      %5486 = vmatpush1.bf16.msra.mxu0 %v5471
      %5487 = vmatprep.subr.bf16.mxu0 0
      %5488 = vmatpush1.bf16.msra.mxu0 0
      %5489 = vmatprep.subr.bf16.mxu0 0
      %5490 = vmatpush1.bf16.msra.mxu0 0
      %5491 = vmatprep.subr.bf16.mxu0 0
      %5492 = vmatpush1.bf16.msra.mxu0 0
      %5493 = vmatprep.subr.bf16.mxu0 0
      %5494 = vmatpush1.bf16.msra.mxu0 0
      %5495 = vmatprep.subr.bf16.mxu0 0
      %5496 = vmatpush1.bf16.msra.mxu0 0
      %5497 = vmatprep.subr.bf16.mxu0 0
      %5498 = vmatpush1.bf16.msra.mxu0 0
      %5499 = vmatprep.subr.bf16.mxu0 0
      %5500 = vmatpush1.bf16.msra.mxu0 0
      %5501 = vmatprep.subr.bf16.mxu0 0
      %5502 = vmatpush1.bf16.msra.mxu0 0
      %5503 = vmatprep.subr.bf16.mxu0 0
      %5504 = vmatpush1.bf16.msra.mxu0 0
      %5505 = vmatprep.subr.bf16.mxu0 0
      %5506 = vmatpush1.bf16.msra.mxu0 0
      %5507 = vmatprep.subr.bf16.mxu0 0
      %5508 = vmatpush1.bf16.msra.mxu0 0
      %5509 = vmatprep.subr.bf16.mxu0 0
      %5510 = vmatpush1.bf16.msra.mxu0 0
      %5511 = vmatprep.mubr.bf16.mxu0 0
      %5512 = vmatmul.mubr.bf16.gmra.mrb[0].mxu0 %v5477
      %v5513 = vpop.f32.mrb[0].mxu0
      %v5514 = vadd.f32 %v5450, %v5513
      %v5515 = vpop.f32.mrb[0].mxu0
      %v5516 = vpop.f32.mrb[0].mxu0
      %v5517 = vpop.f32.mrb[0].mxu0
      %5518 = vdwg.mxu0
      %v5519 = vld [vmem:[%s67] sm:$0xf]
      %v5520 = vld [vmem:[%s67 + $0x4] sm:$0xf]
      %v5521 = vld [vmem:[%s67 + $0x8] sm:$0xf]
      %v5522 = vld [vmem:[%s67 + $0xc] sm:$0xf]
      %v5523 = vld [vmem:[%s67 + $0x10] sm:$0xf]
      %v5524 = vld [vmem:[%s67 + $0x14] sm:$0xf]
      %v5525 = vld [vmem:[%s67 + $0x18] sm:$0xf]
      %v5526 = vld [vmem:[%s67 + $0x1c] sm:$0xf]
      %v5527 = vld [vmem:[%s69] sm:$0x1]
      %v5529 = vlaneseq
      %v5530 = vshrl.u32 %v5529, 7
      %v5531 = vsub.s32 0, %v5530
      %v5532 = vrot.slane %v5527, %v5531
      %v5542 = vunpack.c.l.b16 %v5519
      %v5543 = vunpack.c.l.b16 %v5520
      %v5544 = vunpack.c.l.b16 %v5521
      %v5545 = vunpack.c.l.b16 %v5522
      %v5546 = vunpack.c.l.b16 %v5523
      %v5547 = vunpack.c.l.b16 %v5524
      %v5548 = vunpack.c.l.b16 %v5525
      %v5549 = vunpack.c.l.b16 %v5526
      %v5550 = vpack.c.b16 %v5543, %v5542
      %v5551 = vpack.c.b16 %v5545, %v5544
      %v5552 = vpack.c.b16 %v5547, %v5546
      %v5553 = vpack.c.b16 %v5549, %v5548
      %v5559 = vsel %vm1578, %v5435, 0
      %5561 = vmatprep.subr.bf16.mxu0 0
      %5562 = vmatpush1.bf16.msra.mxu0 %v5550
      %5563 = vmatprep.subr.bf16.mxu0 0
      %5564 = vmatpush1.bf16.msra.mxu0 %v5551
      %5565 = vmatprep.subr.bf16.mxu0 0
      %5566 = vmatpush1.bf16.msra.mxu0 %v5552
      %5567 = vmatprep.subr.bf16.mxu0 0
      %5568 = vmatpush1.bf16.msra.mxu0 %v5553
      %5569 = vmatprep.subr.bf16.mxu0 0
      %5570 = vmatpush1.bf16.msra.mxu0 0
      %5571 = vmatprep.subr.bf16.mxu0 0
      %5572 = vmatpush1.bf16.msra.mxu0 0
      %5573 = vmatprep.subr.bf16.mxu0 0
      %5574 = vmatpush1.bf16.msra.mxu0 0
      %5575 = vmatprep.subr.bf16.mxu0 0
      %5576 = vmatpush1.bf16.msra.mxu0 0
      %5577 = vmatprep.subr.bf16.mxu0 0
      %5578 = vmatpush1.bf16.msra.mxu0 0
      %5579 = vmatprep.subr.bf16.mxu0 0
      %5580 = vmatpush1.bf16.msra.mxu0 0
      %5581 = vmatprep.subr.bf16.mxu0 0
      %5582 = vmatpush1.bf16.msra.mxu0 0
      %5583 = vmatprep.subr.bf16.mxu0 0
      %5584 = vmatpush1.bf16.msra.mxu0 0
      %5585 = vmatprep.subr.bf16.mxu0 0
      %5586 = vmatpush1.bf16.msra.mxu0 0
      %5587 = vmatprep.subr.bf16.mxu0 0
      %5588 = vmatpush1.bf16.msra.mxu0 0
      %5589 = vmatprep.subr.bf16.mxu0 0
      %5590 = vmatpush1.bf16.msra.mxu0 0
      %5591 = vmatprep.subr.bf16.mxu0 0
      %5592 = vmatpush1.bf16.msra.mxu0 0
      %5593 = vmatprep.mubr.bf16.mxu0 0
      %5594 = vmatmul.mubr.bf16.gmra.mrb[0].mxu0 %v5559
      %v5595 = vpop.f32.mrb[0].mxu0
      %v5596 = vadd.f32 %v5532, %v5595
      %v5597 = vpop.f32.mrb[0].mxu0
      %v5598 = vpop.f32.mrb[0].mxu0
      %v5599 = vpop.f32.mrb[0].mxu0
      %5600 = vdwg.mxu0
      %v5601 = vld [vmem:[%s71] sm:$0xf]
      %v5602 = vld [vmem:[%s71 + $0x4] sm:$0xf]
      %v5603 = vld [vmem:[%s71 + $0x8] sm:$0xf]
      %v5604 = vld [vmem:[%s71 + $0xc] sm:$0xf]
      %v5605 = vld [vmem:[%s71 + $0x10] sm:$0xf]
      %v5606 = vld [vmem:[%s71 + $0x14] sm:$0xf]
      %v5607 = vld [vmem:[%s71 + $0x18] sm:$0xf]
      %v5608 = vld [vmem:[%s71 + $0x1c] sm:$0xf]
      %v5609 = vld [vmem:[%s73] sm:$0x1]
      %v5611 = vlaneseq
      %v5612 = vshrl.u32 %v5611, 7
      %v5613 = vsub.s32 0, %v5612
      %v5614 = vrot.slane %v5609, %v5613
      %v5624 = vunpack.c.l.b16 %v5601
      %v5625 = vunpack.c.l.b16 %v5602
      %v5626 = vunpack.c.l.b16 %v5603
      %v5627 = vunpack.c.l.b16 %v5604
      %v5628 = vunpack.c.l.b16 %v5605
      %v5629 = vunpack.c.l.b16 %v5606
      %v5630 = vunpack.c.l.b16 %v5607
      %v5631 = vunpack.c.l.b16 %v5608
      %v5632 = vpack.c.b16 %v5625, %v5624
      %v5633 = vpack.c.b16 %v5627, %v5626
      %v5634 = vpack.c.b16 %v5629, %v5628
      %v5635 = vpack.c.b16 %v5631, %v5630
      %5640 = vmatprep.subr.bf16.mxu0 0
      %5641 = vmatpush1.bf16.msra.mxu0 %v5632
      %5642 = vmatprep.subr.bf16.mxu0 0
      %5643 = vmatpush1.bf16.msra.mxu0 %v5633
      %5644 = vmatprep.subr.bf16.mxu0 0
      %5645 = vmatpush1.bf16.msra.mxu0 %v5634
      %5646 = vmatprep.subr.bf16.mxu0 0
      %5647 = vmatpush1.bf16.msra.mxu0 %v5635
      %5648 = vmatprep.subr.bf16.mxu0 0
      %5649 = vmatpush1.bf16.msra.mxu0 0
      %5650 = vmatprep.subr.bf16.mxu0 0
      %5651 = vmatpush1.bf16.msra.mxu0 0
      %5652 = vmatprep.subr.bf16.mxu0 0
      %5653 = vmatpush1.bf16.msra.mxu0 0
      %5654 = vmatprep.subr.bf16.mxu0 0
      %5655 = vmatpush1.bf16.msra.mxu0 0
      %5656 = vmatprep.subr.bf16.mxu0 0
      %5657 = vmatpush1.bf16.msra.mxu0 0
      %5658 = vmatprep.subr.bf16.mxu0 0
      %5659 = vmatpush1.bf16.msra.mxu0 0
      %5660 = vmatprep.subr.bf16.mxu0 0
      %5661 = vmatpush1.bf16.msra.mxu0 0
      %5662 = vmatprep.subr.bf16.mxu0 0
      %5663 = vmatpush1.bf16.msra.mxu0 0
      %5664 = vmatprep.subr.bf16.mxu0 0
      %5665 = vmatpush1.bf16.msra.mxu0 0
      %5666 = vmatprep.subr.bf16.mxu0 0
      %5667 = vmatpush1.bf16.msra.mxu0 0
      %5668 = vmatprep.subr.bf16.mxu0 0
      %5669 = vmatpush1.bf16.msra.mxu0 0
      %5670 = vmatprep.subr.bf16.mxu0 0
      %5671 = vmatpush1.bf16.msra.mxu0 0
      %5672 = vmatprep.mubr.bf16.mxu0 0
      %5673 = vmatmul.mubr.bf16.gmra.mrb[0].mxu0 %v5559
      %v5674 = vpop.f32.mrb[0].mxu0
      %v5675 = vadd.f32 %v5614, %v5674
      %v5676 = vpop.f32.mrb[0].mxu0
      %v5677 = vpop.f32.mrb[0].mxu0
      %v5678 = vpop.f32.mrb[0].mxu0
      %5679 = vdwg.mxu0
      %v5681 = vsel %vm1780, %v5514, 0
      %v5684 = vsel %vm1780, %v5596, 0
      %5686 = vmatprep.subr.mxu0 0.0
      %5687 = vmatpush1.xpose.msra.mxu0 %v5684
      %5688 = vmatprep.subr.mxu0 0.0
      %5689 = vmatpush1.xpose.msra.mxu0 0.0
      %5690 = vmatprep.subr.mxu0 0.0
      %5691 = vmatpush1.xpose.msra.mxu0 0.0
      %5692 = vmatprep.subr.mxu0 0.0
      %5693 = vmatpush1.xpose.msra.mxu0 0.0
      %5694 = vmatprep.subr.mxu0 0.0
      %5695 = vmatpush1.xpose.msra.mxu0 0.0
      %5696 = vmatprep.subr.mxu0 0.0
      %5697 = vmatpush1.xpose.msra.mxu0 0.0
      %5698 = vmatprep.subr.mxu0 0.0
      %5699 = vmatpush1.xpose.msra.mxu0 0.0
      %5700 = vmatprep.subr.mxu0 0.0
      %5701 = vmatpush1.xpose.msra.mxu0 0.0
      %5702 = vmatprep.subr.mxu0 0.0
      %5703 = vmatpush1.xpose.msra.mxu0 0.0
      %5704 = vmatprep.subr.mxu0 0.0
      %5705 = vmatpush1.xpose.msra.mxu0 0.0
      %5706 = vmatprep.subr.mxu0 0.0
      %5707 = vmatpush1.xpose.msra.mxu0 0.0
      %5708 = vmatprep.subr.mxu0 0.0
      %5709 = vmatpush1.xpose.msra.mxu0 0.0
      %5710 = vmatprep.subr.mxu0 0.0
      %5711 = vmatpush1.xpose.msra.mxu0 0.0
      %5712 = vmatprep.subr.mxu0 0.0
      %5713 = vmatpush1.xpose.msra.mxu0 0.0
      %5714 = vmatprep.subr.mxu0 0.0
      %5715 = vmatpush1.xpose.msra.mxu0 0.0
      %5716 = vmatprep.subr.mxu0 0.0
      %5717 = vmatpush1.xpose.msra.mxu0 0.0
      %5718 = vmatprep.subr.mxu0 0.0
      %5719 = vmatpush1.xpose.msra.mxu0 0.0
      %5720 = vmatprep.subr.mxu0 0.0
      %5721 = vmatpush1.xpose.msra.mxu0 0.0
      %5722 = vmatprep.subr.mxu0 0.0
      %5723 = vmatpush1.xpose.msra.mxu0 0.0
      %5724 = vmatprep.subr.mxu0 0.0
      %5725 = vmatpush1.xpose.msra.mxu0 0.0
      %5726 = vmatprep.subr.mxu0 0.0
      %5727 = vmatpush1.xpose.msra.mxu0 0.0
      %5728 = vmatprep.subr.mxu0 0.0
      %5729 = vmatpush1.xpose.msra.mxu0 0.0
      %5730 = vmatprep.subr.mxu0 0.0
      %5731 = vmatpush1.xpose.msra.mxu0 0.0
      %5732 = vmatprep.subr.mxu0 0.0
      %5733 = vmatpush1.xpose.msra.mxu0 0.0
      %5734 = vmatprep.subr.mxu0 0.0
      %5735 = vmatpush1.xpose.msra.mxu0 0.0
      %5736 = vmatprep.subr.mxu0 0.0
      %5737 = vmatpush1.xpose.msra.mxu0 0.0
      %5738 = vmatprep.subr.mxu0 0.0
      %5739 = vmatpush1.xpose.msra.mxu0 0.0
      %5740 = vmatprep.subr.mxu0 0.0
      %5741 = vmatpush1.xpose.msra.mxu0 0.0
      %5742 = vmatprep.subr.mxu0 0.0
      %5743 = vmatpush1.xpose.msra.mxu0 0.0
      %5744 = vmatprep.subr.mxu0 0.0
      %5745 = vmatpush1.xpose.msra.mxu0 0.0
      %5746 = vmatprep.subr.mxu0 0.0
      %5747 = vmatpush1.xpose.msra.mxu0 0.0
      %5748 = vmatprep.subr.mxu0 0.0
      %5749 = vmatpush1.xpose.msra.mxu0 0.0
      %5750 = vmatprep.mubr.f32.mxu0 0.0
      %5751 = vmatmul.mubr.f32.gmra.mrb[0].mxu0 %v5681
      %v5752 = vpop.f32.mrb[0].mxu0
      %v5753 = vadd.f32 0.0, %v5752
      %v5754 = vpop.f32.mrb[0].mxu0
      %5755 = vdwg.mxu0
      %v5756 = vmul.f32 %v5753, 0.25
      %v5757 = vsel %vm1858, %v5756, -inf
      %5758 = vmax.xlane.f32.xlu0 %v5757
      %v5759 = vpop.xlane.xlu0 %5758
      %v5760 = vsub.f32 %v5756, %v5759
      %v5761 = vmul.f32 %v5760, 1.442695
      %v5762 = vpow.pop %v5761
      %v5763 = vsel %vm1858, %v5762, 0.0
      %5764 = vadd.xlane.f32.xlu0 %v5763
      %v5765 = vpop.xlane.xlu0 %5764
      %v5766 = vrcp.pop %v5765
      %v5767 = vmul.f32 %v5762, %v5766
      %v5768 = vpack.c.bf16 %v5767, %v5767
      %v5769 = vpack.c.bf16 %v5675, %v5675
      %v5771 = vsel %vm1858, %v5768, 0
      %v5774 = vsel %vm1875, %v5769, 0
      %5776 = vmatprep.subr.bf16.mxu0 0
      %5777 = vmatpush1.bf16.msra.mxu0 %v5774
      %5778 = vmatprep.subr.bf16.mxu0 0
      %5779 = vmatpush1.bf16.msra.mxu0 0
      %5780 = vmatprep.subr.bf16.mxu0 0
      %5781 = vmatpush1.bf16.msra.mxu0 0
      %5782 = vmatprep.subr.bf16.mxu0 0
      %5783 = vmatpush1.bf16.msra.mxu0 0
      %5784 = vmatprep.subr.bf16.mxu0 0
      %5785 = vmatpush1.bf16.msra.mxu0 0
      %5786 = vmatprep.subr.bf16.mxu0 0
      %5787 = vmatpush1.bf16.msra.mxu0 0
      %5788 = vmatprep.subr.bf16.mxu0 0
      %5789 = vmatpush1.bf16.msra.mxu0 0
      %5790 = vmatprep.subr.bf16.mxu0 0
      %5791 = vmatpush1.bf16.msra.mxu0 0
      %5792 = vmatprep.subr.bf16.mxu0 0
      %5793 = vmatpush1.bf16.msra.mxu0 0
      %5794 = vmatprep.subr.bf16.mxu0 0
      %5795 = vmatpush1.bf16.msra.mxu0 0
      %5796 = vmatprep.subr.bf16.mxu0 0
      %5797 = vmatpush1.bf16.msra.mxu0 0
      %5798 = vmatprep.subr.bf16.mxu0 0
      %5799 = vmatpush1.bf16.msra.mxu0 0
      %5800 = vmatprep.subr.bf16.mxu0 0
      %5801 = vmatpush1.bf16.msra.mxu0 0
      %5802 = vmatprep.subr.bf16.mxu0 0
      %5803 = vmatpush1.bf16.msra.mxu0 0
      %5804 = vmatprep.subr.bf16.mxu0 0
      %5805 = vmatpush1.bf16.msra.mxu0 0
      %5806 = vmatprep.subr.bf16.mxu0 0
      %5807 = vmatpush1.bf16.msra.mxu0 0
      %5808 = vmatprep.mubr.bf16.mxu0 0
      %5809 = vmatmul.mubr.bf16.gmra.mrb[0].mxu0 %v5771
      %v5810 = vpop.f32.mrb[0].mxu0
      %v5811 = vadd.f32 0.0, %v5810
      %v5812 = vpop.f32.mrb[0].mxu0
      %v5813 = vpop.f32.mrb[0].mxu0
      %v5814 = vpop.f32.mrb[0].mxu0
      %5815 = vdwg.mxu0
      %v5816 = vpack.c.bf16 %v5811, %v5811
      %v5817 = vld [vmem:[%s75] sm:$0xf]
      %v5818 = vld [vmem:[%s75 + $0x4] sm:$0xf]
      %v5821 = vunpack.c.l.b16 %v5817
      %v5822 = vunpack.c.l.b16 %v5818
      %v5823 = vpack.c.b16 %v5822, %v5821
      %v5826 = vsel %vm1780, %v5816, 0
      %5828 = vmatprep.subr.bf16.mxu0 0
      %5829 = vmatpush1.bf16.msra.mxu0 %v5823
      %5830 = vmatprep.subr.bf16.mxu0 0
      %5831 = vmatpush1.bf16.msra.mxu0 0
      %5832 = vmatprep.subr.bf16.mxu0 0
      %5833 = vmatpush1.bf16.msra.mxu0 0
      %5834 = vmatprep.subr.bf16.mxu0 0
      %5835 = vmatpush1.bf16.msra.mxu0 0
      %5836 = vmatprep.subr.bf16.mxu0 0
      %5837 = vmatpush1.bf16.msra.mxu0 0
      %5838 = vmatprep.subr.bf16.mxu0 0
      %5839 = vmatpush1.bf16.msra.mxu0 0
      %5840 = vmatprep.subr.bf16.mxu0 0
      %5841 = vmatpush1.bf16.msra.mxu0 0
      %5842 = vmatprep.subr.bf16.mxu0 0
      %5843 = vmatpush1.bf16.msra.mxu0 0
      %5844 = vmatprep.subr.bf16.mxu0 0
      %5845 = vmatpush1.bf16.msra.mxu0 0
      %5846 = vmatprep.subr.bf16.mxu0 0
      %5847 = vmatpush1.bf16.msra.mxu0 0
      %5848 = vmatprep.subr.bf16.mxu0 0
      %5849 = vmatpush1.bf16.msra.mxu0 0
      %5850 = vmatprep.subr.bf16.mxu0 0
      %5851 = vmatpush1.bf16.msra.mxu0 0
      %5852 = vmatprep.subr.bf16.mxu0 0
      %5853 = vmatpush1.bf16.msra.mxu0 0
      %5854 = vmatprep.subr.bf16.mxu0 0
      %5855 = vmatpush1.bf16.msra.mxu0 0
      %5856 = vmatprep.subr.bf16.mxu0 0
      %5857 = vmatpush1.bf16.msra.mxu0 0
      %5858 = vmatprep.subr.bf16.mxu0 0
      %5859 = vmatpush1.bf16.msra.mxu0 0
      %5860 = vmatprep.mubr.bf16.mxu0 0
      %5861 = vmatmul.mubr.bf16.gmra.mrb[0].mxu0 %v5826
      %v5862 = vpop.f32.mrb[0].mxu0
      %v5863 = vadd.f32 0.0, %v5862
      %v5864 = vpop.f32.mrb[0].mxu0
      %v5865 = vpop.f32.mrb[0].mxu0
      %v5866 = vpop.f32.mrb[0].mxu0
      %5867 = vdwg.mxu0
      %v5869 = vlaneseq
      %v5870 = vshrl.u32 %v5869, 7
      %v5871 = vsub.s32 0, %v5870
      %v5872 = vrot.slane %v5436, %v5871
      %v5874 = vadd.f32 %v5872, %v5863
      %s5875 = scalar_lea.vmem %s63, 32
      %v5876 = vld [vmem:[%s5875] sm:$0xf]
      %v5877 = vld [vmem:[%s5875 + $0x4] sm:$0xf]
      %v5878 = vld [vmem:[%s5875 + $0x8] sm:$0xf]
      %v5879 = vld [vmem:[%s5875 + $0xc] sm:$0xf]
      %v5880 = vld [vmem:[%s5875 + $0x10] sm:$0xf]
      %v5881 = vld [vmem:[%s5875 + $0x14] sm:$0xf]
      %v5882 = vld [vmem:[%s5875 + $0x18] sm:$0xf]
      %v5883 = vld [vmem:[%s5875 + $0x1c] sm:$0xf]
      %s5884 = scalar_lea.vmem %s65, 1
      %v5885 = vld [vmem:[%s5884] sm:$0x1]
      %v5887 = vlaneseq
      %v5888 = vshrl.u32 %v5887, 7
      %v5889 = vsub.s32 0, %v5888
      %v5890 = vrot.slane %v5885, %v5889
      %v5900 = vunpack.c.l.b16 %v5876
      %v5901 = vunpack.c.l.b16 %v5877
      %v5902 = vunpack.c.l.b16 %v5878
      %v5903 = vunpack.c.l.b16 %v5879
      %v5904 = vunpack.c.l.b16 %v5880
      %v5905 = vunpack.c.l.b16 %v5881
      %v5906 = vunpack.c.l.b16 %v5882
      %v5907 = vunpack.c.l.b16 %v5883
      %v5908 = vpack.c.b16 %v5901, %v5900
      %v5909 = vpack.c.b16 %v5903, %v5902
      %v5910 = vpack.c.b16 %v5905, %v5904
      %v5911 = vpack.c.b16 %v5907, %v5906
      %5916 = vmatprep.subr.bf16.mxu0 0
      %5917 = vmatpush1.bf16.msra.mxu0 %v5908
      %5918 = vmatprep.subr.bf16.mxu0 0
      %5919 = vmatpush1.bf16.msra.mxu0 %v5909
      %5920 = vmatprep.subr.bf16.mxu0 0
      %5921 = vmatpush1.bf16.msra.mxu0 %v5910
      %5922 = vmatprep.subr.bf16.mxu0 0
      %5923 = vmatpush1.bf16.msra.mxu0 %v5911
      %5924 = vmatprep.subr.bf16.mxu0 0
      %5925 = vmatpush1.bf16.msra.mxu0 0
      %5926 = vmatprep.subr.bf16.mxu0 0
      %5927 = vmatpush1.bf16.msra.mxu0 0
      %5928 = vmatprep.subr.bf16.mxu0 0
      %5929 = vmatpush1.bf16.msra.mxu0 0
      %5930 = vmatprep.subr.bf16.mxu0 0
      %5931 = vmatpush1.bf16.msra.mxu0 0
      %5932 = vmatprep.subr.bf16.mxu0 0
      %5933 = vmatpush1.bf16.msra.mxu0 0
      %5934 = vmatprep.subr.bf16.mxu0 0
      %5935 = vmatpush1.bf16.msra.mxu0 0
      %5936 = vmatprep.subr.bf16.mxu0 0
      %5937 = vmatpush1.bf16.msra.mxu0 0
      %5938 = vmatprep.subr.bf16.mxu0 0
      %5939 = vmatpush1.bf16.msra.mxu0 0
      %5940 = vmatprep.subr.bf16.mxu0 0
      %5941 = vmatpush1.bf16.msra.mxu0 0
      %5942 = vmatprep.subr.bf16.mxu0 0
      %5943 = vmatpush1.bf16.msra.mxu0 0
      %5944 = vmatprep.subr.bf16.mxu0 0
      %5945 = vmatpush1.bf16.msra.mxu0 0
      %5946 = vmatprep.subr.bf16.mxu0 0
      %5947 = vmatpush1.bf16.msra.mxu0 0
      %5948 = vmatprep.mubr.bf16.mxu0 0
      %5949 = vmatmul.mubr.bf16.gmra.mrb[0].mxu0 %v5477
      %v5950 = vpop.f32.mrb[0].mxu0
      %v5951 = vadd.f32 %v5890, %v5950
      %v5952 = vpop.f32.mrb[0].mxu0
      %v5953 = vpop.f32.mrb[0].mxu0
      %v5954 = vpop.f32.mrb[0].mxu0
      %5955 = vdwg.mxu0
      %s5956 = scalar_lea.vmem %s67, 32
      %v5957 = vld [vmem:[%s5956] sm:$0xf]
      %v5958 = vld [vmem:[%s5956 + $0x4] sm:$0xf]
      %v5959 = vld [vmem:[%s5956 + $0x8] sm:$0xf]
      %v5960 = vld [vmem:[%s5956 + $0xc] sm:$0xf]
      %v5961 = vld [vmem:[%s5956 + $0x10] sm:$0xf]
      %v5962 = vld [vmem:[%s5956 + $0x14] sm:$0xf]
      %v5963 = vld [vmem:[%s5956 + $0x18] sm:$0xf]
      %v5964 = vld [vmem:[%s5956 + $0x1c] sm:$0xf]
      %s5965 = scalar_lea.vmem %s69, 1
      %v5966 = vld [vmem:[%s5965] sm:$0x1]
      %v5968 = vlaneseq
      %v5969 = vshrl.u32 %v5968, 7
      %v5970 = vsub.s32 0, %v5969
      %v5971 = vrot.slane %v5966, %v5970
      %v5981 = vunpack.c.l.b16 %v5957
      %v5982 = vunpack.c.l.b16 %v5958
      %v5983 = vunpack.c.l.b16 %v5959
      %v5984 = vunpack.c.l.b16 %v5960
      %v5985 = vunpack.c.l.b16 %v5961
      %v5986 = vunpack.c.l.b16 %v5962
      %v5987 = vunpack.c.l.b16 %v5963
      %v5988 = vunpack.c.l.b16 %v5964
      %v5989 = vpack.c.b16 %v5982, %v5981
      %v5990 = vpack.c.b16 %v5984, %v5983
      %v5991 = vpack.c.b16 %v5986, %v5985
      %v5992 = vpack.c.b16 %v5988, %v5987
      %5997 = vmatprep.subr.bf16.mxu0 0
      %5998 = vmatpush1.bf16.msra.mxu0 %v5989
      %5999 = vmatprep.subr.bf16.mxu0 0
      %6000 = vmatpush1.bf16.msra.mxu0 %v5990
      %6001 = vmatprep.subr.bf16.mxu0 0
      %6002 = vmatpush1.bf16.msra.mxu0 %v5991
      %6003 = vmatprep.subr.bf16.mxu0 0
      %6004 = vmatpush1.bf16.msra.mxu0 %v5992
      %6005 = vmatprep.subr.bf16.mxu0 0
      %6006 = vmatpush1.bf16.msra.mxu0 0
      %6007 = vmatprep.subr.bf16.mxu0 0
      %6008 = vmatpush1.bf16.msra.mxu0 0
      %6009 = vmatprep.subr.bf16.mxu0 0
      %6010 = vmatpush1.bf16.msra.mxu0 0
      %6011 = vmatprep.subr.bf16.mxu0 0
      %6012 = vmatpush1.bf16.msra.mxu0 0
      %6013 = vmatprep.subr.bf16.mxu0 0
      %6014 = vmatpush1.bf16.msra.mxu0 0
      %6015 = vmatprep.subr.bf16.mxu0 0
      %6016 = vmatpush1.bf16.msra.mxu0 0
      %6017 = vmatprep.subr.bf16.mxu0 0
      %6018 = vmatpush1.bf16.msra.mxu0 0
      %6019 = vmatprep.subr.bf16.mxu0 0
      %6020 = vmatpush1.bf16.msra.mxu0 0
      %6021 = vmatprep.subr.bf16.mxu0 0
      %6022 = vmatpush1.bf16.msra.mxu0 0
      %6023 = vmatprep.subr.bf16.mxu0 0
      %6024 = vmatpush1.bf16.msra.mxu0 0
      %6025 = vmatprep.subr.bf16.mxu0 0
      %6026 = vmatpush1.bf16.msra.mxu0 0
      %6027 = vmatprep.subr.bf16.mxu0 0
      %6028 = vmatpush1.bf16.msra.mxu0 0
      %6029 = vmatprep.mubr.bf16.mxu0 0
      %6030 = vmatmul.mubr.bf16.gmra.mrb[0].mxu0 %v5559
      %v6031 = vpop.f32.mrb[0].mxu0
      %v6032 = vadd.f32 %v5971, %v6031
      %v6033 = vpop.f32.mrb[0].mxu0
      %v6034 = vpop.f32.mrb[0].mxu0
      %v6035 = vpop.f32.mrb[0].mxu0
      %6036 = vdwg.mxu0
      %s6037 = scalar_lea.vmem %s71, 32
      %v6038 = vld [vmem:[%s6037] sm:$0xf]
      %v6039 = vld [vmem:[%s6037 + $0x4] sm:$0xf]
      %v6040 = vld [vmem:[%s6037 + $0x8] sm:$0xf]
      %v6041 = vld [vmem:[%s6037 + $0xc] sm:$0xf]
      %v6042 = vld [vmem:[%s6037 + $0x10] sm:$0xf]
      %v6043 = vld [vmem:[%s6037 + $0x14] sm:$0xf]
      %v6044 = vld [vmem:[%s6037 + $0x18] sm:$0xf]
      %v6045 = vld [vmem:[%s6037 + $0x1c] sm:$0xf]
      %s6046 = scalar_lea.vmem %s73, 1
      %v6047 = vld [vmem:[%s6046] sm:$0x1]
      %v6049 = vlaneseq
      %v6050 = vshrl.u32 %v6049, 7
      %v6051 = vsub.s32 0, %v6050
      %v6052 = vrot.slane %v6047, %v6051
      %v6062 = vunpack.c.l.b16 %v6038
      %v6063 = vunpack.c.l.b16 %v6039
      %v6064 = vunpack.c.l.b16 %v6040
      %v6065 = vunpack.c.l.b16 %v6041
      %v6066 = vunpack.c.l.b16 %v6042
      %v6067 = vunpack.c.l.b16 %v6043
      %v6068 = vunpack.c.l.b16 %v6044
      %v6069 = vunpack.c.l.b16 %v6045
      %v6070 = vpack.c.b16 %v6063, %v6062
      %v6071 = vpack.c.b16 %v6065, %v6064
      %v6072 = vpack.c.b16 %v6067, %v6066
      %v6073 = vpack.c.b16 %v6069, %v6068
      %6078 = vmatprep.subr.bf16.mxu0 0
      %6079 = vmatpush1.bf16.msra.mxu0 %v6070
      %6080 = vmatprep.subr.bf16.mxu0 0
      %6081 = vmatpush1.bf16.msra.mxu0 %v6071
      %6082 = vmatprep.subr.bf16.mxu0 0
      %6083 = vmatpush1.bf16.msra.mxu0 %v6072
      %6084 = vmatprep.subr.bf16.mxu0 0
      %6085 = vmatpush1.bf16.msra.mxu0 %v6073
      %6086 = vmatprep.subr.bf16.mxu0 0
      %6087 = vmatpush1.bf16.msra.mxu0 0
      %6088 = vmatprep.subr.bf16.mxu0 0
      %6089 = vmatpush1.bf16.msra.mxu0 0
      %6090 = vmatprep.subr.bf16.mxu0 0
      %6091 = vmatpush1.bf16.msra.mxu0 0
      %6092 = vmatprep.subr.bf16.mxu0 0
      %6093 = vmatpush1.bf16.msra.mxu0 0
      %6094 = vmatprep.subr.bf16.mxu0 0
      %6095 = vmatpush1.bf16.msra.mxu0 0
      %6096 = vmatprep.subr.bf16.mxu0 0
      %6097 = vmatpush1.bf16.msra.mxu0 0
      %6098 = vmatprep.subr.bf16.mxu0 0
      %6099 = vmatpush1.bf16.msra.mxu0 0
      %6100 = vmatprep.subr.bf16.mxu0 0
      %6101 = vmatpush1.bf16.msra.mxu0 0
      %6102 = vmatprep.subr.bf16.mxu0 0
      %6103 = vmatpush1.bf16.msra.mxu0 0
      %6104 = vmatprep.subr.bf16.mxu0 0
      %6105 = vmatpush1.bf16.msra.mxu0 0
      %6106 = vmatprep.subr.bf16.mxu0 0
      %6107 = vmatpush1.bf16.msra.mxu0 0
      %6108 = vmatprep.subr.bf16.mxu0 0
      %6109 = vmatpush1.bf16.msra.mxu0 0
      %6110 = vmatprep.mubr.bf16.mxu0 0
      %6111 = vmatmul.mubr.bf16.gmra.mrb[0].mxu0 %v5559
      %v6112 = vpop.f32.mrb[0].mxu0
      %v6113 = vadd.f32 %v6052, %v6112
      %v6114 = vpop.f32.mrb[0].mxu0
      %v6115 = vpop.f32.mrb[0].mxu0
      %v6116 = vpop.f32.mrb[0].mxu0
      %6117 = vdwg.mxu0
      %v6119 = vsel %vm1780, %v5951, 0
      %v6122 = vsel %vm1780, %v6032, 0
      %6124 = vmatprep.subr.mxu0 0.0
      %6125 = vmatpush1.xpose.msra.mxu0 %v6122
      %6126 = vmatprep.subr.mxu0 0.0
      %6127 = vmatpush1.xpose.msra.mxu0 0.0
      %6128 = vmatprep.subr.mxu0 0.0
      %6129 = vmatpush1.xpose.msra.mxu0 0.0
      %6130 = vmatprep.subr.mxu0 0.0
      %6131 = vmatpush1.xpose.msra.mxu0 0.0
      %6132 = vmatprep.subr.mxu0 0.0
      %6133 = vmatpush1.xpose.msra.mxu0 0.0
      %6134 = vmatprep.subr.mxu0 0.0
      %6135 = vmatpush1.xpose.msra.mxu0 0.0
      %6136 = vmatprep.subr.mxu0 0.0
      %6137 = vmatpush1.xpose.msra.mxu0 0.0
      %6138 = vmatprep.subr.mxu0 0.0
      %6139 = vmatpush1.xpose.msra.mxu0 0.0
      %6140 = vmatprep.subr.mxu0 0.0
      %6141 = vmatpush1.xpose.msra.mxu0 0.0
      %6142 = vmatprep.subr.mxu0 0.0
      %6143 = vmatpush1.xpose.msra.mxu0 0.0
      %6144 = vmatprep.subr.mxu0 0.0
      %6145 = vmatpush1.xpose.msra.mxu0 0.0
      %6146 = vmatprep.subr.mxu0 0.0
      %6147 = vmatpush1.xpose.msra.mxu0 0.0
      %6148 = vmatprep.subr.mxu0 0.0
      %6149 = vmatpush1.xpose.msra.mxu0 0.0
      %6150 = vmatprep.subr.mxu0 0.0
      %6151 = vmatpush1.xpose.msra.mxu0 0.0
      %6152 = vmatprep.subr.mxu0 0.0
      %6153 = vmatpush1.xpose.msra.mxu0 0.0
      %6154 = vmatprep.subr.mxu0 0.0
      %6155 = vmatpush1.xpose.msra.mxu0 0.0
      %6156 = vmatprep.subr.mxu0 0.0
      %6157 = vmatpush1.xpose.msra.mxu0 0.0
      %6158 = vmatprep.subr.mxu0 0.0
      %6159 = vmatpush1.xpose.msra.mxu0 0.0
      %6160 = vmatprep.subr.mxu0 0.0
      %6161 = vmatpush1.xpose.msra.mxu0 0.0
      %6162 = vmatprep.subr.mxu0 0.0
      %6163 = vmatpush1.xpose.msra.mxu0 0.0
      %6164 = vmatprep.subr.mxu0 0.0
      %6165 = vmatpush1.xpose.msra.mxu0 0.0
      %6166 = vmatprep.subr.mxu0 0.0
      %6167 = vmatpush1.xpose.msra.mxu0 0.0
      %6168 = vmatprep.subr.mxu0 0.0
      %6169 = vmatpush1.xpose.msra.mxu0 0.0
      %6170 = vmatprep.subr.mxu0 0.0
      %6171 = vmatpush1.xpose.msra.mxu0 0.0
      %6172 = vmatprep.subr.mxu0 0.0
      %6173 = vmatpush1.xpose.msra.mxu0 0.0
      %6174 = vmatprep.subr.mxu0 0.0
      %6175 = vmatpush1.xpose.msra.mxu0 0.0
      %6176 = vmatprep.subr.mxu0 0.0
      %6177 = vmatpush1.xpose.msra.mxu0 0.0
      %6178 = vmatprep.subr.mxu0 0.0
      %6179 = vmatpush1.xpose.msra.mxu0 0.0
      %6180 = vmatprep.subr.mxu0 0.0
      %6181 = vmatpush1.xpose.msra.mxu0 0.0
      %6182 = vmatprep.subr.mxu0 0.0
      %6183 = vmatpush1.xpose.msra.mxu0 0.0
      %6184 = vmatprep.subr.mxu0 0.0
      %6185 = vmatpush1.xpose.msra.mxu0 0.0
      %6186 = vmatprep.subr.mxu0 0.0
      %6187 = vmatpush1.xpose.msra.mxu0 0.0
      %6188 = vmatprep.mubr.f32.mxu0 0.0
      %6189 = vmatmul.mubr.f32.gmra.mrb[0].mxu0 %v6119
      %v6190 = vpop.f32.mrb[0].mxu0
      %v6191 = vadd.f32 0.0, %v6190
      %v6192 = vpop.f32.mrb[0].mxu0
      %6193 = vdwg.mxu0
      %v6194 = vmul.f32 %v6191, 0.25
      %v6195 = vsel %vm1858, %v6194, -inf
      %6196 = vmax.xlane.f32.xlu0 %v6195
      %v6197 = vpop.xlane.xlu0 %6196
      %v6198 = vsub.f32 %v6194, %v6197
      %v6199 = vmul.f32 %v6198, 1.442695
      %v6200 = vpow.pop %v6199
      %v6201 = vsel %vm1858, %v6200, 0.0
      %6202 = vadd.xlane.f32.xlu0 %v6201
      %v6203 = vpop.xlane.xlu0 %6202
      %v6204 = vrcp.pop %v6203
      %v6205 = vmul.f32 %v6200, %v6204
      %v6206 = vpack.c.bf16 %v6205, %v6205
      %v6207 = vpack.c.bf16 %v6113, %v6113
      %v6209 = vsel %vm1858, %v6206, 0
      %v6212 = vsel %vm1875, %v6207, 0
      %6214 = vmatprep.subr.bf16.mxu0 0
      %6215 = vmatpush1.bf16.msra.mxu0 %v6212
      %6216 = vmatprep.subr.bf16.mxu0 0
      %6217 = vmatpush1.bf16.msra.mxu0 0
      %6218 = vmatprep.subr.bf16.mxu0 0
      %6219 = vmatpush1.bf16.msra.mxu0 0
      %6220 = vmatprep.subr.bf16.mxu0 0
      %6221 = vmatpush1.bf16.msra.mxu0 0
      %6222 = vmatprep.subr.bf16.mxu0 0
      %6223 = vmatpush1.bf16.msra.mxu0 0
      %6224 = vmatprep.subr.bf16.mxu0 0
      %6225 = vmatpush1.bf16.msra.mxu0 0
      %6226 = vmatprep.subr.bf16.mxu0 0
      %6227 = vmatpush1.bf16.msra.mxu0 0
      %6228 = vmatprep.subr.bf16.mxu0 0
      %6229 = vmatpush1.bf16.msra.mxu0 0
      %6230 = vmatprep.subr.bf16.mxu0 0
      %6231 = vmatpush1.bf16.msra.mxu0 0
      %6232 = vmatprep.subr.bf16.mxu0 0
      %6233 = vmatpush1.bf16.msra.mxu0 0
      %6234 = vmatprep.subr.bf16.mxu0 0
      %6235 = vmatpush1.bf16.msra.mxu0 0
      %6236 = vmatprep.subr.bf16.mxu0 0
      %6237 = vmatpush1.bf16.msra.mxu0 0
      %6238 = vmatprep.subr.bf16.mxu0 0
      %6239 = vmatpush1.bf16.msra.mxu0 0
      %6240 = vmatprep.subr.bf16.mxu0 0
      %6241 = vmatpush1.bf16.msra.mxu0 0
      %6242 = vmatprep.subr.bf16.mxu0 0
      %6243 = vmatpush1.bf16.msra.mxu0 0
      %6244 = vmatprep.subr.bf16.mxu0 0
      %6245 = vmatpush1.bf16.msra.mxu0 0
      %6246 = vmatprep.mubr.bf16.mxu0 0
      %6247 = vmatmul.mubr.bf16.gmra.mrb[0].mxu0 %v6209
      %v6248 = vpop.f32.mrb[0].mxu0
      %v6249 = vadd.f32 0.0, %v6248
      %v6250 = vpop.f32.mrb[0].mxu0
      %v6251 = vpop.f32.mrb[0].mxu0
      %v6252 = vpop.f32.mrb[0].mxu0
      %6253 = vdwg.mxu0
      %v6254 = vpack.c.bf16 %v6249, %v6249
      %s6255 = scalar_lea.vmem %s75, 8
      %v6256 = vld [vmem:[%s6255] sm:$0xf]
      %v6257 = vld [vmem:[%s6255 + $0x4] sm:$0xf]
      %v6260 = vunpack.c.l.b16 %v6256
      %v6261 = vunpack.c.l.b16 %v6257
      %v6262 = vpack.c.b16 %v6261, %v6260
      %v6265 = vsel %vm1780, %v6254, 0
      %6267 = vmatprep.subr.bf16.mxu0 0
      %6268 = vmatpush1.bf16.msra.mxu0 %v6262
      %6269 = vmatprep.subr.bf16.mxu0 0
      %6270 = vmatpush1.bf16.msra.mxu0 0
      %6271 = vmatprep.subr.bf16.mxu0 0
      %6272 = vmatpush1.bf16.msra.mxu0 0
      %6273 = vmatprep.subr.bf16.mxu0 0
      %6274 = vmatpush1.bf16.msra.mxu0 0
      %6275 = vmatprep.subr.bf16.mxu0 0
      %6276 = vmatpush1.bf16.msra.mxu0 0
      %6277 = vmatprep.subr.bf16.mxu0 0
      %6278 = vmatpush1.bf16.msra.mxu0 0
      %6279 = vmatprep.subr.bf16.mxu0 0
      %6280 = vmatpush1.bf16.msra.mxu0 0
      %6281 = vmatprep.subr.bf16.mxu0 0
      %6282 = vmatpush1.bf16.msra.mxu0 0
      %6283 = vmatprep.subr.bf16.mxu0 0
      %6284 = vmatpush1.bf16.msra.mxu0 0
      %6285 = vmatprep.subr.bf16.mxu0 0
      %6286 = vmatpush1.bf16.msra.mxu0 0
      %6287 = vmatprep.subr.bf16.mxu0 0
      %6288 = vmatpush1.bf16.msra.mxu0 0
      %6289 = vmatprep.subr.bf16.mxu0 0
      %6290 = vmatpush1.bf16.msra.mxu0 0
      %6291 = vmatprep.subr.bf16.mxu0 0
      %6292 = vmatpush1.bf16.msra.mxu0 0
      %6293 = vmatprep.subr.bf16.mxu0 0
      %6294 = vmatpush1.bf16.msra.mxu0 0
      %6295 = vmatprep.subr.bf16.mxu0 0
      %6296 = vmatpush1.bf16.msra.mxu0 0
      %6297 = vmatprep.subr.bf16.mxu0 0
      %6298 = vmatpush1.bf16.msra.mxu0 0
      %6299 = vmatprep.mubr.bf16.mxu0 0
      %6300 = vmatmul.mubr.bf16.gmra.mrb[0].mxu0 %v6265
      %v6301 = vpop.f32.mrb[0].mxu0
      %v6302 = vadd.f32 0.0, %v6301
      %v6303 = vpop.f32.mrb[0].mxu0
      %v6304 = vpop.f32.mrb[0].mxu0
      %v6305 = vpop.f32.mrb[0].mxu0
      %6306 = vdwg.mxu0
      %v6307 = vadd.f32 %v5874, %v6302
      %s6308 = scalar_lea.vmem %s63, 64
      %v6309 = vld [vmem:[%s6308] sm:$0xf]
      %v6310 = vld [vmem:[%s6308 + $0x4] sm:$0xf]
      %v6311 = vld [vmem:[%s6308 + $0x8] sm:$0xf]
      %v6312 = vld [vmem:[%s6308 + $0xc] sm:$0xf]
      %v6313 = vld [vmem:[%s6308 + $0x10] sm:$0xf]
      %v6314 = vld [vmem:[%s6308 + $0x14] sm:$0xf]
      %v6315 = vld [vmem:[%s6308 + $0x18] sm:$0xf]
      %v6316 = vld [vmem:[%s6308 + $0x1c] sm:$0xf]
      %s6317 = scalar_lea.vmem %s65, 2
      %v6318 = vld [vmem:[%s6317] sm:$0x1]
      %v6320 = vlaneseq
      %v6321 = vshrl.u32 %v6320, 7
      %v6322 = vsub.s32 0, %v6321
      %v6323 = vrot.slane %v6318, %v6322
      %v6333 = vunpack.c.l.b16 %v6309
      %v6334 = vunpack.c.l.b16 %v6310
      %v6335 = vunpack.c.l.b16 %v6311
      %v6336 = vunpack.c.l.b16 %v6312
      %v6337 = vunpack.c.l.b16 %v6313
      %v6338 = vunpack.c.l.b16 %v6314
      %v6339 = vunpack.c.l.b16 %v6315
      %v6340 = vunpack.c.l.b16 %v6316
      %v6341 = vpack.c.b16 %v6334, %v6333
      %v6342 = vpack.c.b16 %v6336, %v6335
      %v6343 = vpack.c.b16 %v6338, %v6337
      %v6344 = vpack.c.b16 %v6340, %v6339
      %6349 = vmatprep.subr.bf16.mxu0 0
      %6350 = vmatpush1.bf16.msra.mxu0 %v6341
      %6351 = vmatprep.subr.bf16.mxu0 0
      %6352 = vmatpush1.bf16.msra.mxu0 %v6342
      %6353 = vmatprep.subr.bf16.mxu0 0
      %6354 = vmatpush1.bf16.msra.mxu0 %v6343
      %6355 = vmatprep.subr.bf16.mxu0 0
      %6356 = vmatpush1.bf16.msra.mxu0 %v6344
      %6357 = vmatprep.subr.bf16.mxu0 0
      %6358 = vmatpush1.bf16.msra.mxu0 0
      %6359 = vmatprep.subr.bf16.mxu0 0
      %6360 = vmatpush1.bf16.msra.mxu0 0
      %6361 = vmatprep.subr.bf16.mxu0 0
      %6362 = vmatpush1.bf16.msra.mxu0 0
      %6363 = vmatprep.subr.bf16.mxu0 0
      %6364 = vmatpush1.bf16.msra.mxu0 0
      %6365 = vmatprep.subr.bf16.mxu0 0
      %6366 = vmatpush1.bf16.msra.mxu0 0
      %6367 = vmatprep.subr.bf16.mxu0 0
      %6368 = vmatpush1.bf16.msra.mxu0 0
      %6369 = vmatprep.subr.bf16.mxu0 0
      %6370 = vmatpush1.bf16.msra.mxu0 0
      %6371 = vmatprep.subr.bf16.mxu0 0
      %6372 = vmatpush1.bf16.msra.mxu0 0
      %6373 = vmatprep.subr.bf16.mxu0 0
      %6374 = vmatpush1.bf16.msra.mxu0 0
      %6375 = vmatprep.subr.bf16.mxu0 0
      %6376 = vmatpush1.bf16.msra.mxu0 0
      %6377 = vmatprep.subr.bf16.mxu0 0
      %6378 = vmatpush1.bf16.msra.mxu0 0
      %6379 = vmatprep.subr.bf16.mxu0 0
      %6380 = vmatpush1.bf16.msra.mxu0 0
      %6381 = vmatprep.mubr.bf16.mxu0 0
      %6382 = vmatmul.mubr.bf16.gmra.mrb[0].mxu0 %v5477
      %v6383 = vpop.f32.mrb[0].mxu0
      %v6384 = vadd.f32 %v6323, %v6383
      %v6385 = vpop.f32.mrb[0].mxu0
      %v6386 = vpop.f32.mrb[0].mxu0
      %v6387 = vpop.f32.mrb[0].mxu0
      %6388 = vdwg.mxu0
      %s6389 = scalar_lea.vmem %s67, 64
      %v6390 = vld [vmem:[%s6389] sm:$0xf]
      %v6391 = vld [vmem:[%s6389 + $0x4] sm:$0xf]
      %v6392 = vld [vmem:[%s6389 + $0x8] sm:$0xf]
      %v6393 = vld [vmem:[%s6389 + $0xc] sm:$0xf]
      %v6394 = vld [vmem:[%s6389 + $0x10] sm:$0xf]
      %v6395 = vld [vmem:[%s6389 + $0x14] sm:$0xf]
      %v6396 = vld [vmem:[%s6389 + $0x18] sm:$0xf]
      %v6397 = vld [vmem:[%s6389 + $0x1c] sm:$0xf]
      %s6398 = scalar_lea.vmem %s69, 2
      %v6399 = vld [vmem:[%s6398] sm:$0x1]
      %v6401 = vlaneseq
      %v6402 = vshrl.u32 %v6401, 7
      %v6403 = vsub.s32 0, %v6402
      %v6404 = vrot.slane %v6399, %v6403
      %v6414 = vunpack.c.l.b16 %v6390
      %v6415 = vunpack.c.l.b16 %v6391
      %v6416 = vunpack.c.l.b16 %v6392
      %v6417 = vunpack.c.l.b16 %v6393
      %v6418 = vunpack.c.l.b16 %v6394
      %v6419 = vunpack.c.l.b16 %v6395
      %v6420 = vunpack.c.l.b16 %v6396
      %v6421 = vunpack.c.l.b16 %v6397
      %v6422 = vpack.c.b16 %v6415, %v6414
      %v6423 = vpack.c.b16 %v6417, %v6416
      %v6424 = vpack.c.b16 %v6419, %v6418
      %v6425 = vpack.c.b16 %v6421, %v6420
      %6430 = vmatprep.subr.bf16.mxu0 0
      %6431 = vmatpush1.bf16.msra.mxu0 %v6422
      %6432 = vmatprep.subr.bf16.mxu0 0
      %6433 = vmatpush1.bf16.msra.mxu0 %v6423
      %6434 = vmatprep.subr.bf16.mxu0 0
      %6435 = vmatpush1.bf16.msra.mxu0 %v6424
      %6436 = vmatprep.subr.bf16.mxu0 0
      %6437 = vmatpush1.bf16.msra.mxu0 %v6425
      %6438 = vmatprep.subr.bf16.mxu0 0
      %6439 = vmatpush1.bf16.msra.mxu0 0
      %6440 = vmatprep.subr.bf16.mxu0 0
      %6441 = vmatpush1.bf16.msra.mxu0 0
      %6442 = vmatprep.subr.bf16.mxu0 0
      %6443 = vmatpush1.bf16.msra.mxu0 0
      %6444 = vmatprep.subr.bf16.mxu0 0
      %6445 = vmatpush1.bf16.msra.mxu0 0
      %6446 = vmatprep.subr.bf16.mxu0 0
      %6447 = vmatpush1.bf16.msra.mxu0 0
      %6448 = vmatprep.subr.bf16.mxu0 0
      %6449 = vmatpush1.bf16.msra.mxu0 0
      %6450 = vmatprep.subr.bf16.mxu0 0
      %6451 = vmatpush1.bf16.msra.mxu0 0
      %6452 = vmatprep.subr.bf16.mxu0 0
      %6453 = vmatpush1.bf16.msra.mxu0 0
      %6454 = vmatprep.subr.bf16.mxu0 0
      %6455 = vmatpush1.bf16.msra.mxu0 0
      %6456 = vmatprep.subr.bf16.mxu0 0
      %6457 = vmatpush1.bf16.msra.mxu0 0
      %6458 = vmatprep.subr.bf16.mxu0 0
      %6459 = vmatpush1.bf16.msra.mxu0 0
      %6460 = vmatprep.subr.bf16.mxu0 0
      %6461 = vmatpush1.bf16.msra.mxu0 0
      %6462 = vmatprep.mubr.bf16.mxu0 0
      %6463 = vmatmul.mubr.bf16.gmra.mrb[0].mxu0 %v5559
      %v6464 = vpop.f32.mrb[0].mxu0
      %v6465 = vadd.f32 %v6404, %v6464
      %v6466 = vpop.f32.mrb[0].mxu0
      %v6467 = vpop.f32.mrb[0].mxu0
      %v6468 = vpop.f32.mrb[0].mxu0
      %6469 = vdwg.mxu0
      %s6470 = scalar_lea.vmem %s71, 64
      %v6471 = vld [vmem:[%s6470] sm:$0xf]
      %v6472 = vld [vmem:[%s6470 + $0x4] sm:$0xf]
      %v6473 = vld [vmem:[%s6470 + $0x8] sm:$0xf]
      %v6474 = vld [vmem:[%s6470 + $0xc] sm:$0xf]
      %v6475 = vld [vmem:[%s6470 + $0x10] sm:$0xf]
      %v6476 = vld [vmem:[%s6470 + $0x14] sm:$0xf]
      %v6477 = vld [vmem:[%s6470 + $0x18] sm:$0xf]
      %v6478 = vld [vmem:[%s6470 + $0x1c] sm:$0xf]
      %s6479 = scalar_lea.vmem %s73, 2
      %v6480 = vld [vmem:[%s6479] sm:$0x1]
      %v6482 = vlaneseq
      %v6483 = vshrl.u32 %v6482, 7
      %v6484 = vsub.s32 0, %v6483
      %v6485 = vrot.slane %v6480, %v6484
      %v6495 = vunpack.c.l.b16 %v6471
      %v6496 = vunpack.c.l.b16 %v6472
      %v6497 = vunpack.c.l.b16 %v6473
      %v6498 = vunpack.c.l.b16 %v6474
      %v6499 = vunpack.c.l.b16 %v6475
      %v6500 = vunpack.c.l.b16 %v6476
      %v6501 = vunpack.c.l.b16 %v6477
      %v6502 = vunpack.c.l.b16 %v6478
      %v6503 = vpack.c.b16 %v6496, %v6495
      %v6504 = vpack.c.b16 %v6498, %v6497
      %v6505 = vpack.c.b16 %v6500, %v6499
      %v6506 = vpack.c.b16 %v6502, %v6501
      %6511 = vmatprep.subr.bf16.mxu0 0
      %6512 = vmatpush1.bf16.msra.mxu0 %v6503
      %6513 = vmatprep.subr.bf16.mxu0 0
      %6514 = vmatpush1.bf16.msra.mxu0 %v6504
      %6515 = vmatprep.subr.bf16.mxu0 0
      %6516 = vmatpush1.bf16.msra.mxu0 %v6505
      %6517 = vmatprep.subr.bf16.mxu0 0
      %6518 = vmatpush1.bf16.msra.mxu0 %v6506
      %6519 = vmatprep.subr.bf16.mxu0 0
      %6520 = vmatpush1.bf16.msra.mxu0 0
      %6521 = vmatprep.subr.bf16.mxu0 0
      %6522 = vmatpush1.bf16.msra.mxu0 0
      %6523 = vmatprep.subr.bf16.mxu0 0
      %6524 = vmatpush1.bf16.msra.mxu0 0
      %6525 = vmatprep.subr.bf16.mxu0 0
      %6526 = vmatpush1.bf16.msra.mxu0 0
      %6527 = vmatprep.subr.bf16.mxu0 0
      %6528 = vmatpush1.bf16.msra.mxu0 0
      %6529 = vmatprep.subr.bf16.mxu0 0
      %6530 = vmatpush1.bf16.msra.mxu0 0
      %6531 = vmatprep.subr.bf16.mxu0 0
      %6532 = vmatpush1.bf16.msra.mxu0 0
      %6533 = vmatprep.subr.bf16.mxu0 0
      %6534 = vmatpush1.bf16.msra.mxu0 0
      %6535 = vmatprep.subr.bf16.mxu0 0
      %6536 = vmatpush1.bf16.msra.mxu0 0
      %6537 = vmatprep.subr.bf16.mxu0 0
      %6538 = vmatpush1.bf16.msra.mxu0 0
      %6539 = vmatprep.subr.bf16.mxu0 0
      %6540 = vmatpush1.bf16.msra.mxu0 0
      %6541 = vmatprep.subr.bf16.mxu0 0
      %6542 = vmatpush1.bf16.msra.mxu0 0
      %6543 = vmatprep.mubr.bf16.mxu0 0
      %6544 = vmatmul.mubr.bf16.gmra.mrb[0].mxu0 %v5559
      %v6545 = vpop.f32.mrb[0].mxu0
      %v6546 = vadd.f32 %v6485, %v6545
      %v6547 = vpop.f32.mrb[0].mxu0
      %v6548 = vpop.f32.mrb[0].mxu0
      %v6549 = vpop.f32.mrb[0].mxu0
      %6550 = vdwg.mxu0
      %v6552 = vsel %vm1780, %v6384, 0
      %v6555 = vsel %vm1780, %v6465, 0
      %6557 = vmatprep.subr.mxu0 0.0
      %6558 = vmatpush1.xpose.msra.mxu0 %v6555
      %6559 = vmatprep.subr.mxu0 0.0
      %6560 = vmatpush1.xpose.msra.mxu0 0.0
      %6561 = vmatprep.subr.mxu0 0.0
      %6562 = vmatpush1.xpose.msra.mxu0 0.0
      %6563 = vmatprep.subr.mxu0 0.0
      %6564 = vmatpush1.xpose.msra.mxu0 0.0
      %6565 = vmatprep.subr.mxu0 0.0
      %6566 = vmatpush1.xpose.msra.mxu0 0.0
      %6567 = vmatprep.subr.mxu0 0.0
      %6568 = vmatpush1.xpose.msra.mxu0 0.0
      %6569 = vmatprep.subr.mxu0 0.0
      %6570 = vmatpush1.xpose.msra.mxu0 0.0
      %6571 = vmatprep.subr.mxu0 0.0
      %6572 = vmatpush1.xpose.msra.mxu0 0.0
      %6573 = vmatprep.subr.mxu0 0.0
      %6574 = vmatpush1.xpose.msra.mxu0 0.0
      %6575 = vmatprep.subr.mxu0 0.0
      %6576 = vmatpush1.xpose.msra.mxu0 0.0
      %6577 = vmatprep.subr.mxu0 0.0
      %6578 = vmatpush1.xpose.msra.mxu0 0.0
      %6579 = vmatprep.subr.mxu0 0.0
      %6580 = vmatpush1.xpose.msra.mxu0 0.0
      %6581 = vmatprep.subr.mxu0 0.0
      %6582 = vmatpush1.xpose.msra.mxu0 0.0
      %6583 = vmatprep.subr.mxu0 0.0
      %6584 = vmatpush1.xpose.msra.mxu0 0.0
      %6585 = vmatprep.subr.mxu0 0.0
      %6586 = vmatpush1.xpose.msra.mxu0 0.0
      %6587 = vmatprep.subr.mxu0 0.0
      %6588 = vmatpush1.xpose.msra.mxu0 0.0
      %6589 = vmatprep.subr.mxu0 0.0
      %6590 = vmatpush1.xpose.msra.mxu0 0.0
      %6591 = vmatprep.subr.mxu0 0.0
      %6592 = vmatpush1.xpose.msra.mxu0 0.0
      %6593 = vmatprep.subr.mxu0 0.0
      %6594 = vmatpush1.xpose.msra.mxu0 0.0
      %6595 = vmatprep.subr.mxu0 0.0
      %6596 = vmatpush1.xpose.msra.mxu0 0.0
      %6597 = vmatprep.subr.mxu0 0.0
      %6598 = vmatpush1.xpose.msra.mxu0 0.0
      %6599 = vmatprep.subr.mxu0 0.0
      %6600 = vmatpush1.xpose.msra.mxu0 0.0
      %6601 = vmatprep.subr.mxu0 0.0
      %6602 = vmatpush1.xpose.msra.mxu0 0.0
      %6603 = vmatprep.subr.mxu0 0.0
      %6604 = vmatpush1.xpose.msra.mxu0 0.0
      %6605 = vmatprep.subr.mxu0 0.0
      %6606 = vmatpush1.xpose.msra.mxu0 0.0
      %6607 = vmatprep.subr.mxu0 0.0
      %6608 = vmatpush1.xpose.msra.mxu0 0.0
      %6609 = vmatprep.subr.mxu0 0.0
      %6610 = vmatpush1.xpose.msra.mxu0 0.0
      %6611 = vmatprep.subr.mxu0 0.0
      %6612 = vmatpush1.xpose.msra.mxu0 0.0
      %6613 = vmatprep.subr.mxu0 0.0
      %6614 = vmatpush1.xpose.msra.mxu0 0.0
      %6615 = vmatprep.subr.mxu0 0.0
      %6616 = vmatpush1.xpose.msra.mxu0 0.0
      %6617 = vmatprep.subr.mxu0 0.0
      %6618 = vmatpush1.xpose.msra.mxu0 0.0
      %6619 = vmatprep.subr.mxu0 0.0
      %6620 = vmatpush1.xpose.msra.mxu0 0.0
      %6621 = vmatprep.mubr.f32.mxu0 0.0
      %6622 = vmatmul.mubr.f32.gmra.mrb[0].mxu0 %v6552
      %v6623 = vpop.f32.mrb[0].mxu0
      %v6624 = vadd.f32 0.0, %v6623
      %v6625 = vpop.f32.mrb[0].mxu0
      %6626 = vdwg.mxu0
      %v6627 = vmul.f32 %v6624, 0.25
      %v6628 = vsel %vm1858, %v6627, -inf
      %6629 = vmax.xlane.f32.xlu0 %v6628
      %v6630 = vpop.xlane.xlu0 %6629
      %v6631 = vsub.f32 %v6627, %v6630
      %v6632 = vmul.f32 %v6631, 1.442695
      %v6633 = vpow.pop %v6632
      %v6634 = vsel %vm1858, %v6633, 0.0
      %6635 = vadd.xlane.f32.xlu0 %v6634
      %v6636 = vpop.xlane.xlu0 %6635
      %v6637 = vrcp.pop %v6636
      %v6638 = vmul.f32 %v6633, %v6637
      %v6639 = vpack.c.bf16 %v6638, %v6638
      %v6640 = vpack.c.bf16 %v6546, %v6546
      %v6642 = vsel %vm1858, %v6639, 0
      %v6645 = vsel %vm1875, %v6640, 0
      %6647 = vmatprep.subr.bf16.mxu0 0
      %6648 = vmatpush1.bf16.msra.mxu0 %v6645
      %6649 = vmatprep.subr.bf16.mxu0 0
      %6650 = vmatpush1.bf16.msra.mxu0 0
      %6651 = vmatprep.subr.bf16.mxu0 0
      %6652 = vmatpush1.bf16.msra.mxu0 0
      %6653 = vmatprep.subr.bf16.mxu0 0
      %6654 = vmatpush1.bf16.msra.mxu0 0
      %6655 = vmatprep.subr.bf16.mxu0 0
      %6656 = vmatpush1.bf16.msra.mxu0 0
      %6657 = vmatprep.subr.bf16.mxu0 0
      %6658 = vmatpush1.bf16.msra.mxu0 0
      %6659 = vmatprep.subr.bf16.mxu0 0
      %6660 = vmatpush1.bf16.msra.mxu0 0
      %6661 = vmatprep.subr.bf16.mxu0 0
      %6662 = vmatpush1.bf16.msra.mxu0 0
      %6663 = vmatprep.subr.bf16.mxu0 0
      %6664 = vmatpush1.bf16.msra.mxu0 0
      %6665 = vmatprep.subr.bf16.mxu0 0
      %6666 = vmatpush1.bf16.msra.mxu0 0
      %6667 = vmatprep.subr.bf16.mxu0 0
      %6668 = vmatpush1.bf16.msra.mxu0 0
      %6669 = vmatprep.subr.bf16.mxu0 0
      %6670 = vmatpush1.bf16.msra.mxu0 0
      %6671 = vmatprep.subr.bf16.mxu0 0
      %6672 = vmatpush1.bf16.msra.mxu0 0
      %6673 = vmatprep.subr.bf16.mxu0 0
      %6674 = vmatpush1.bf16.msra.mxu0 0
      %6675 = vmatprep.subr.bf16.mxu0 0
      %6676 = vmatpush1.bf16.msra.mxu0 0
      %6677 = vmatprep.subr.bf16.mxu0 0
      %6678 = vmatpush1.bf16.msra.mxu0 0
      %6679 = vmatprep.mubr.bf16.mxu0 0
      %6680 = vmatmul.mubr.bf16.gmra.mrb[0].mxu0 %v6642
      %v6681 = vpop.f32.mrb[0].mxu0
      %v6682 = vadd.f32 0.0, %v6681
      %v6683 = vpop.f32.mrb[0].mxu0
      %v6684 = vpop.f32.mrb[0].mxu0
      %v6685 = vpop.f32.mrb[0].mxu0
      %6686 = vdwg.mxu0
      %v6687 = vpack.c.bf16 %v6682, %v6682
      %s6688 = scalar_lea.vmem %s75, 16
      %v6689 = vld [vmem:[%s6688] sm:$0xf]
      %v6690 = vld [vmem:[%s6688 + $0x4] sm:$0xf]
      %v6693 = vunpack.c.l.b16 %v6689
      %v6694 = vunpack.c.l.b16 %v6690
      %v6695 = vpack.c.b16 %v6694, %v6693
      %v6698 = vsel %vm1780, %v6687, 0
      %6700 = vmatprep.subr.bf16.mxu0 0
      %6701 = vmatpush1.bf16.msra.mxu0 %v6695
      %6702 = vmatprep.subr.bf16.mxu0 0
      %6703 = vmatpush1.bf16.msra.mxu0 0
      %6704 = vmatprep.subr.bf16.mxu0 0
      %6705 = vmatpush1.bf16.msra.mxu0 0
      %6706 = vmatprep.subr.bf16.mxu0 0
      %6707 = vmatpush1.bf16.msra.mxu0 0
      %6708 = vmatprep.subr.bf16.mxu0 0
      %6709 = vmatpush1.bf16.msra.mxu0 0
      %6710 = vmatprep.subr.bf16.mxu0 0
      %6711 = vmatpush1.bf16.msra.mxu0 0
      %6712 = vmatprep.subr.bf16.mxu0 0
      %6713 = vmatpush1.bf16.msra.mxu0 0
      %6714 = vmatprep.subr.bf16.mxu0 0
      %6715 = vmatpush1.bf16.msra.mxu0 0
      %6716 = vmatprep.subr.bf16.mxu0 0
      %6717 = vmatpush1.bf16.msra.mxu0 0
      %6718 = vmatprep.subr.bf16.mxu0 0
      %6719 = vmatpush1.bf16.msra.mxu0 0
      %6720 = vmatprep.subr.bf16.mxu0 0
      %6721 = vmatpush1.bf16.msra.mxu0 0
      %6722 = vmatprep.subr.bf16.mxu0 0
      %6723 = vmatpush1.bf16.msra.mxu0 0
      %6724 = vmatprep.subr.bf16.mxu0 0
      %6725 = vmatpush1.bf16.msra.mxu0 0
      %6726 = vmatprep.subr.bf16.mxu0 0
      %6727 = vmatpush1.bf16.msra.mxu0 0
      %6728 = vmatprep.subr.bf16.mxu0 0
      %6729 = vmatpush1.bf16.msra.mxu0 0
      %6730 = vmatprep.subr.bf16.mxu0 0
      %6731 = vmatpush1.bf16.msra.mxu0 0
      %6732 = vmatprep.mubr.bf16.mxu0 0
      %6733 = vmatmul.mubr.bf16.gmra.mrb[0].mxu0 %v6698
      %v6734 = vpop.f32.mrb[0].mxu0
      %v6735 = vadd.f32 0.0, %v6734
      %v6736 = vpop.f32.mrb[0].mxu0
      %v6737 = vpop.f32.mrb[0].mxu0
      %v6738 = vpop.f32.mrb[0].mxu0
      %6739 = vdwg.mxu0
      %v6740 = vadd.f32 %v6307, %v6735
      %s6741 = scalar_lea.vmem %s63, 96
      %v6742 = vld [vmem:[%s6741] sm:$0xf]
      %v6743 = vld [vmem:[%s6741 + $0x4] sm:$0xf]
      %v6744 = vld [vmem:[%s6741 + $0x8] sm:$0xf]
      %v6745 = vld [vmem:[%s6741 + $0xc] sm:$0xf]
      %v6746 = vld [vmem:[%s6741 + $0x10] sm:$0xf]
      %v6747 = vld [vmem:[%s6741 + $0x14] sm:$0xf]
      %v6748 = vld [vmem:[%s6741 + $0x18] sm:$0xf]
      %v6749 = vld [vmem:[%s6741 + $0x1c] sm:$0xf]
      %s6750 = scalar_lea.vmem %s65, 3
      %v6751 = vld [vmem:[%s6750] sm:$0x1]
      %v6753 = vlaneseq
      %v6754 = vshrl.u32 %v6753, 7
      %v6755 = vsub.s32 0, %v6754
      %v6756 = vrot.slane %v6751, %v6755
      %v6766 = vunpack.c.l.b16 %v6742
      %v6767 = vunpack.c.l.b16 %v6743
      %v6768 = vunpack.c.l.b16 %v6744
      %v6769 = vunpack.c.l.b16 %v6745
      %v6770 = vunpack.c.l.b16 %v6746
      %v6771 = vunpack.c.l.b16 %v6747
      %v6772 = vunpack.c.l.b16 %v6748
      %v6773 = vunpack.c.l.b16 %v6749
      %v6774 = vpack.c.b16 %v6767, %v6766
      %v6775 = vpack.c.b16 %v6769, %v6768
      %v6776 = vpack.c.b16 %v6771, %v6770
      %v6777 = vpack.c.b16 %v6773, %v6772
      %6782 = vmatprep.subr.bf16.mxu0 0
      %6783 = vmatpush1.bf16.msra.mxu0 %v6774
      %6784 = vmatprep.subr.bf16.mxu0 0
      %6785 = vmatpush1.bf16.msra.mxu0 %v6775
      %6786 = vmatprep.subr.bf16.mxu0 0
      %6787 = vmatpush1.bf16.msra.mxu0 %v6776
      %6788 = vmatprep.subr.bf16.mxu0 0
      %6789 = vmatpush1.bf16.msra.mxu0 %v6777
      %6790 = vmatprep.subr.bf16.mxu0 0
      %6791 = vmatpush1.bf16.msra.mxu0 0
      %6792 = vmatprep.subr.bf16.mxu0 0
      %6793 = vmatpush1.bf16.msra.mxu0 0
      %6794 = vmatprep.subr.bf16.mxu0 0
      %6795 = vmatpush1.bf16.msra.mxu0 0
      %6796 = vmatprep.subr.bf16.mxu0 0
      %6797 = vmatpush1.bf16.msra.mxu0 0
      %6798 = vmatprep.subr.bf16.mxu0 0
      %6799 = vmatpush1.bf16.msra.mxu0 0
      %6800 = vmatprep.subr.bf16.mxu0 0
      %6801 = vmatpush1.bf16.msra.mxu0 0
      %6802 = vmatprep.subr.bf16.mxu0 0
      %6803 = vmatpush1.bf16.msra.mxu0 0
      %6804 = vmatprep.subr.bf16.mxu0 0
      %6805 = vmatpush1.bf16.msra.mxu0 0
      %6806 = vmatprep.subr.bf16.mxu0 0
      %6807 = vmatpush1.bf16.msra.mxu0 0
      %6808 = vmatprep.subr.bf16.mxu0 0
      %6809 = vmatpush1.bf16.msra.mxu0 0
      %6810 = vmatprep.subr.bf16.mxu0 0
      %6811 = vmatpush1.bf16.msra.mxu0 0
      %6812 = vmatprep.subr.bf16.mxu0 0
      %6813 = vmatpush1.bf16.msra.mxu0 0
      %6814 = vmatprep.mubr.bf16.mxu0 0
      %6815 = vmatmul.mubr.bf16.gmra.mrb[0].mxu0 %v5477
      %v6816 = vpop.f32.mrb[0].mxu0
      %v6817 = vadd.f32 %v6756, %v6816
      %v6818 = vpop.f32.mrb[0].mxu0
      %v6819 = vpop.f32.mrb[0].mxu0
      %v6820 = vpop.f32.mrb[0].mxu0
      %6821 = vdwg.mxu0
      %s6822 = scalar_lea.vmem %s67, 96
      %v6823 = vld [vmem:[%s6822] sm:$0xf]
      %v6824 = vld [vmem:[%s6822 + $0x4] sm:$0xf]
      %v6825 = vld [vmem:[%s6822 + $0x8] sm:$0xf]
      %v6826 = vld [vmem:[%s6822 + $0xc] sm:$0xf]
      %v6827 = vld [vmem:[%s6822 + $0x10] sm:$0xf]
      %v6828 = vld [vmem:[%s6822 + $0x14] sm:$0xf]
      %v6829 = vld [vmem:[%s6822 + $0x18] sm:$0xf]
      %v6830 = vld [vmem:[%s6822 + $0x1c] sm:$0xf]
      %s6831 = scalar_lea.vmem %s69, 3
      %v6832 = vld [vmem:[%s6831] sm:$0x1]
      %v6834 = vlaneseq
      %v6835 = vshrl.u32 %v6834, 7
      %v6836 = vsub.s32 0, %v6835
      %v6837 = vrot.slane %v6832, %v6836
      %v6847 = vunpack.c.l.b16 %v6823
      %v6848 = vunpack.c.l.b16 %v6824
      %v6849 = vunpack.c.l.b16 %v6825
      %v6850 = vunpack.c.l.b16 %v6826
      %v6851 = vunpack.c.l.b16 %v6827
      %v6852 = vunpack.c.l.b16 %v6828
      %v6853 = vunpack.c.l.b16 %v6829
      %v6854 = vunpack.c.l.b16 %v6830
      %v6855 = vpack.c.b16 %v6848, %v6847
      %v6856 = vpack.c.b16 %v6850, %v6849
      %v6857 = vpack.c.b16 %v6852, %v6851
      %v6858 = vpack.c.b16 %v6854, %v6853
      %6863 = vmatprep.subr.bf16.mxu0 0
      %6864 = vmatpush1.bf16.msra.mxu0 %v6855
      %6865 = vmatprep.subr.bf16.mxu0 0
      %6866 = vmatpush1.bf16.msra.mxu0 %v6856
      %6867 = vmatprep.subr.bf16.mxu0 0
      %6868 = vmatpush1.bf16.msra.mxu0 %v6857
      %6869 = vmatprep.subr.bf16.mxu0 0
      %6870 = vmatpush1.bf16.msra.mxu0 %v6858
      %6871 = vmatprep.subr.bf16.mxu0 0
      %6872 = vmatpush1.bf16.msra.mxu0 0
      %6873 = vmatprep.subr.bf16.mxu0 0
      %6874 = vmatpush1.bf16.msra.mxu0 0
      %6875 = vmatprep.subr.bf16.mxu0 0
      %6876 = vmatpush1.bf16.msra.mxu0 0
      %6877 = vmatprep.subr.bf16.mxu0 0
      %6878 = vmatpush1.bf16.msra.mxu0 0
      %6879 = vmatprep.subr.bf16.mxu0 0
      %6880 = vmatpush1.bf16.msra.mxu0 0
      %6881 = vmatprep.subr.bf16.mxu0 0
      %6882 = vmatpush1.bf16.msra.mxu0 0
      %6883 = vmatprep.subr.bf16.mxu0 0
      %6884 = vmatpush1.bf16.msra.mxu0 0
      %6885 = vmatprep.subr.bf16.mxu0 0
      %6886 = vmatpush1.bf16.msra.mxu0 0
      %6887 = vmatprep.subr.bf16.mxu0 0
      %6888 = vmatpush1.bf16.msra.mxu0 0
      %6889 = vmatprep.subr.bf16.mxu0 0
      %6890 = vmatpush1.bf16.msra.mxu0 0
      %6891 = vmatprep.subr.bf16.mxu0 0
      %6892 = vmatpush1.bf16.msra.mxu0 0
      %6893 = vmatprep.subr.bf16.mxu0 0
      %6894 = vmatpush1.bf16.msra.mxu0 0
      %6895 = vmatprep.mubr.bf16.mxu0 0
      %6896 = vmatmul.mubr.bf16.gmra.mrb[0].mxu0 %v5559
      %v6897 = vpop.f32.mrb[0].mxu0
      %v6898 = vadd.f32 %v6837, %v6897
      %v6899 = vpop.f32.mrb[0].mxu0
      %v6900 = vpop.f32.mrb[0].mxu0
      %v6901 = vpop.f32.mrb[0].mxu0
      %6902 = vdwg.mxu0
      %s6903 = scalar_lea.vmem %s71, 96
      %v6904 = vld [vmem:[%s6903] sm:$0xf]
      %v6905 = vld [vmem:[%s6903 + $0x4] sm:$0xf]
      %v6906 = vld [vmem:[%s6903 + $0x8] sm:$0xf]
      %v6907 = vld [vmem:[%s6903 + $0xc] sm:$0xf]
      %v6908 = vld [vmem:[%s6903 + $0x10] sm:$0xf]
      %v6909 = vld [vmem:[%s6903 + $0x14] sm:$0xf]
      %v6910 = vld [vmem:[%s6903 + $0x18] sm:$0xf]
      %v6911 = vld [vmem:[%s6903 + $0x1c] sm:$0xf]
      %s6912 = scalar_lea.vmem %s73, 3
      %v6913 = vld [vmem:[%s6912] sm:$0x1]
      %v6915 = vlaneseq
      %v6916 = vshrl.u32 %v6915, 7
      %v6917 = vsub.s32 0, %v6916
      %v6918 = vrot.slane %v6913, %v6917
      %v6928 = vunpack.c.l.b16 %v6904
      %v6929 = vunpack.c.l.b16 %v6905
      %v6930 = vunpack.c.l.b16 %v6906
      %v6931 = vunpack.c.l.b16 %v6907
      %v6932 = vunpack.c.l.b16 %v6908
      %v6933 = vunpack.c.l.b16 %v6909
      %v6934 = vunpack.c.l.b16 %v6910
      %v6935 = vunpack.c.l.b16 %v6911
      %v6936 = vpack.c.b16 %v6929, %v6928
      %v6937 = vpack.c.b16 %v6931, %v6930
      %v6938 = vpack.c.b16 %v6933, %v6932
      %v6939 = vpack.c.b16 %v6935, %v6934
      %6944 = vmatprep.subr.bf16.mxu0 0
      %6945 = vmatpush1.bf16.msra.mxu0 %v6936
      %6946 = vmatprep.subr.bf16.mxu0 0
      %6947 = vmatpush1.bf16.msra.mxu0 %v6937
      %6948 = vmatprep.subr.bf16.mxu0 0
      %6949 = vmatpush1.bf16.msra.mxu0 %v6938
      %6950 = vmatprep.subr.bf16.mxu0 0
      %6951 = vmatpush1.bf16.msra.mxu0 %v6939
      %6952 = vmatprep.subr.bf16.mxu0 0
      %6953 = vmatpush1.bf16.msra.mxu0 0
      %6954 = vmatprep.subr.bf16.mxu0 0
      %6955 = vmatpush1.bf16.msra.mxu0 0
      %6956 = vmatprep.subr.bf16.mxu0 0
      %6957 = vmatpush1.bf16.msra.mxu0 0
      %6958 = vmatprep.subr.bf16.mxu0 0
      %6959 = vmatpush1.bf16.msra.mxu0 0
      %6960 = vmatprep.subr.bf16.mxu0 0
      %6961 = vmatpush1.bf16.msra.mxu0 0
      %6962 = vmatprep.subr.bf16.mxu0 0
      %6963 = vmatpush1.bf16.msra.mxu0 0
      %6964 = vmatprep.subr.bf16.mxu0 0
      %6965 = vmatpush1.bf16.msra.mxu0 0
      %6966 = vmatprep.subr.bf16.mxu0 0
      %6967 = vmatpush1.bf16.msra.mxu0 0
      %6968 = vmatprep.subr.bf16.mxu0 0
      %6969 = vmatpush1.bf16.msra.mxu0 0
      %6970 = vmatprep.subr.bf16.mxu0 0
      %6971 = vmatpush1.bf16.msra.mxu0 0
      %6972 = vmatprep.subr.bf16.mxu0 0
      %6973 = vmatpush1.bf16.msra.mxu0 0
      %6974 = vmatprep.subr.bf16.mxu0 0
      %6975 = vmatpush1.bf16.msra.mxu0 0
      %6976 = vmatprep.mubr.bf16.mxu0 0
      %6977 = vmatmul.mubr.bf16.gmra.mrb[0].mxu0 %v5559
      %v6978 = vpop.f32.mrb[0].mxu0
      %v6979 = vadd.f32 %v6918, %v6978
      %v6980 = vpop.f32.mrb[0].mxu0
      %v6981 = vpop.f32.mrb[0].mxu0
      %v6982 = vpop.f32.mrb[0].mxu0
      %6983 = vdwg.mxu0
      %v6985 = vsel %vm1780, %v6817, 0
      %v6988 = vsel %vm1780, %v6898, 0
      %6990 = vmatprep.subr.mxu0 0.0
      %6991 = vmatpush1.xpose.msra.mxu0 %v6988
      %6992 = vmatprep.subr.mxu0 0.0
      %6993 = vmatpush1.xpose.msra.mxu0 0.0
      %6994 = vmatprep.subr.mxu0 0.0
      %6995 = vmatpush1.xpose.msra.mxu0 0.0
      %6996 = vmatprep.subr.mxu0 0.0
      %6997 = vmatpush1.xpose.msra.mxu0 0.0
      %6998 = vmatprep.subr.mxu0 0.0
      %6999 = vmatpush1.xpose.msra.mxu0 0.0
      %7000 = vmatprep.subr.mxu0 0.0
      %7001 = vmatpush1.xpose.msra.mxu0 0.0
      %7002 = vmatprep.subr.mxu0 0.0
      %7003 = vmatpush1.xpose.msra.mxu0 0.0
      %7004 = vmatprep.subr.mxu0 0.0
      %7005 = vmatpush1.xpose.msra.mxu0 0.0
      %7006 = vmatprep.subr.mxu0 0.0
      %7007 = vmatpush1.xpose.msra.mxu0 0.0
      %7008 = vmatprep.subr.mxu0 0.0
      %7009 = vmatpush1.xpose.msra.mxu0 0.0
      %7010 = vmatprep.subr.mxu0 0.0
      %7011 = vmatpush1.xpose.msra.mxu0 0.0
      %7012 = vmatprep.subr.mxu0 0.0
      %7013 = vmatpush1.xpose.msra.mxu0 0.0
      %7014 = vmatprep.subr.mxu0 0.0
      %7015 = vmatpush1.xpose.msra.mxu0 0.0
      %7016 = vmatprep.subr.mxu0 0.0
      %7017 = vmatpush1.xpose.msra.mxu0 0.0
      %7018 = vmatprep.subr.mxu0 0.0
      %7019 = vmatpush1.xpose.msra.mxu0 0.0
      %7020 = vmatprep.subr.mxu0 0.0
      %7021 = vmatpush1.xpose.msra.mxu0 0.0
      %7022 = vmatprep.subr.mxu0 0.0
      %7023 = vmatpush1.xpose.msra.mxu0 0.0
      %7024 = vmatprep.subr.mxu0 0.0
      %7025 = vmatpush1.xpose.msra.mxu0 0.0
      %7026 = vmatprep.subr.mxu0 0.0
      %7027 = vmatpush1.xpose.msra.mxu0 0.0
      %7028 = vmatprep.subr.mxu0 0.0
      %7029 = vmatpush1.xpose.msra.mxu0 0.0
      %7030 = vmatprep.subr.mxu0 0.0
      %7031 = vmatpush1.xpose.msra.mxu0 0.0
      %7032 = vmatprep.subr.mxu0 0.0
      %7033 = vmatpush1.xpose.msra.mxu0 0.0
      %7034 = vmatprep.subr.mxu0 0.0
      %7035 = vmatpush1.xpose.msra.mxu0 0.0
      %7036 = vmatprep.subr.mxu0 0.0
      %7037 = vmatpush1.xpose.msra.mxu0 0.0
      %7038 = vmatprep.subr.mxu0 0.0
      %7039 = vmatpush1.xpose.msra.mxu0 0.0
      %7040 = vmatprep.subr.mxu0 0.0
      %7041 = vmatpush1.xpose.msra.mxu0 0.0
      %7042 = vmatprep.subr.mxu0 0.0
      %7043 = vmatpush1.xpose.msra.mxu0 0.0
      %7044 = vmatprep.subr.mxu0 0.0
      %7045 = vmatpush1.xpose.msra.mxu0 0.0
      %7046 = vmatprep.subr.mxu0 0.0
      %7047 = vmatpush1.xpose.msra.mxu0 0.0
      %7048 = vmatprep.subr.mxu0 0.0
      %7049 = vmatpush1.xpose.msra.mxu0 0.0
      %7050 = vmatprep.subr.mxu0 0.0
      %7051 = vmatpush1.xpose.msra.mxu0 0.0
      %7052 = vmatprep.subr.mxu0 0.0
      %7053 = vmatpush1.xpose.msra.mxu0 0.0
      %7054 = vmatprep.mubr.f32.mxu0 0.0
      %7055 = vmatmul.mubr.f32.gmra.mrb[0].mxu0 %v6985
      %v7056 = vpop.f32.mrb[0].mxu0
      %v7057 = vadd.f32 0.0, %v7056
      %v7058 = vpop.f32.mrb[0].mxu0
      %7059 = vdwg.mxu0
      %v7060 = vmul.f32 %v7057, 0.25
      %v7061 = vsel %vm1858, %v7060, -inf
      %7062 = vmax.xlane.f32.xlu0 %v7061
      %v7063 = vpop.xlane.xlu0 %7062
      %v7064 = vsub.f32 %v7060, %v7063
      %v7065 = vmul.f32 %v7064, 1.442695
      %v7066 = vpow.pop %v7065
      %v7067 = vsel %vm1858, %v7066, 0.0
      %7068 = vadd.xlane.f32.xlu0 %v7067
      %v7069 = vpop.xlane.xlu0 %7068
      %v7070 = vrcp.pop %v7069
      %v7071 = vmul.f32 %v7066, %v7070
      %v7072 = vpack.c.bf16 %v7071, %v7071
      %v7073 = vpack.c.bf16 %v6979, %v6979
      %v7075 = vsel %vm1858, %v7072, 0
      %v7078 = vsel %vm1875, %v7073, 0
      %7080 = vmatprep.subr.bf16.mxu0 0
      %7081 = vmatpush1.bf16.msra.mxu0 %v7078
      %7082 = vmatprep.subr.bf16.mxu0 0
      %7083 = vmatpush1.bf16.msra.mxu0 0
      %7084 = vmatprep.subr.bf16.mxu0 0
      %7085 = vmatpush1.bf16.msra.mxu0 0
      %7086 = vmatprep.subr.bf16.mxu0 0
      %7087 = vmatpush1.bf16.msra.mxu0 0
      %7088 = vmatprep.subr.bf16.mxu0 0
      %7089 = vmatpush1.bf16.msra.mxu0 0
      %7090 = vmatprep.subr.bf16.mxu0 0
      %7091 = vmatpush1.bf16.msra.mxu0 0
      %7092 = vmatprep.subr.bf16.mxu0 0
      %7093 = vmatpush1.bf16.msra.mxu0 0
      %7094 = vmatprep.subr.bf16.mxu0 0
      %7095 = vmatpush1.bf16.msra.mxu0 0
      %7096 = vmatprep.subr.bf16.mxu0 0
      %7097 = vmatpush1.bf16.msra.mxu0 0
      %7098 = vmatprep.subr.bf16.mxu0 0
      %7099 = vmatpush1.bf16.msra.mxu0 0
      %7100 = vmatprep.subr.bf16.mxu0 0
      %7101 = vmatpush1.bf16.msra.mxu0 0
      %7102 = vmatprep.subr.bf16.mxu0 0
      %7103 = vmatpush1.bf16.msra.mxu0 0
      %7104 = vmatprep.subr.bf16.mxu0 0
      %7105 = vmatpush1.bf16.msra.mxu0 0
      %7106 = vmatprep.subr.bf16.mxu0 0
      %7107 = vmatpush1.bf16.msra.mxu0 0
      %7108 = vmatprep.subr.bf16.mxu0 0
      %7109 = vmatpush1.bf16.msra.mxu0 0
      %7110 = vmatprep.subr.bf16.mxu0 0
      %7111 = vmatpush1.bf16.msra.mxu0 0
      %7112 = vmatprep.mubr.bf16.mxu0 0
      %7113 = vmatmul.mubr.bf16.gmra.mrb[0].mxu0 %v7075
      %v7114 = vpop.f32.mrb[0].mxu0
      %v7115 = vadd.f32 0.0, %v7114
      %v7116 = vpop.f32.mrb[0].mxu0
      %v7117 = vpop.f32.mrb[0].mxu0
      %v7118 = vpop.f32.mrb[0].mxu0
      %7119 = vdwg.mxu0
      %v7120 = vpack.c.bf16 %v7115, %v7115
      %s7121 = scalar_lea.vmem %s75, 24
      %v7122 = vld [vmem:[%s7121] sm:$0xf]
      %v7123 = vld [vmem:[%s7121 + $0x4] sm:$0xf]
      %v7126 = vunpack.c.l.b16 %v7122
      %v7127 = vunpack.c.l.b16 %v7123
      %v7128 = vpack.c.b16 %v7127, %v7126
      %v7131 = vsel %vm1780, %v7120, 0
      %7133 = vmatprep.subr.bf16.mxu0 0
      %7134 = vmatpush1.bf16.msra.mxu0 %v7128
      %7135 = vmatprep.subr.bf16.mxu0 0
      %7136 = vmatpush1.bf16.msra.mxu0 0
      %7137 = vmatprep.subr.bf16.mxu0 0
      %7138 = vmatpush1.bf16.msra.mxu0 0
      %7139 = vmatprep.subr.bf16.mxu0 0
      %7140 = vmatpush1.bf16.msra.mxu0 0
      %7141 = vmatprep.subr.bf16.mxu0 0
      %7142 = vmatpush1.bf16.msra.mxu0 0
      %7143 = vmatprep.subr.bf16.mxu0 0
      %7144 = vmatpush1.bf16.msra.mxu0 0
      %7145 = vmatprep.subr.bf16.mxu0 0
      %7146 = vmatpush1.bf16.msra.mxu0 0
      %7147 = vmatprep.subr.bf16.mxu0 0
      %7148 = vmatpush1.bf16.msra.mxu0 0
      %7149 = vmatprep.subr.bf16.mxu0 0
      %7150 = vmatpush1.bf16.msra.mxu0 0
      %7151 = vmatprep.subr.bf16.mxu0 0
      %7152 = vmatpush1.bf16.msra.mxu0 0
      %7153 = vmatprep.subr.bf16.mxu0 0
      %7154 = vmatpush1.bf16.msra.mxu0 0
      %7155 = vmatprep.subr.bf16.mxu0 0
      %7156 = vmatpush1.bf16.msra.mxu0 0
      %7157 = vmatprep.subr.bf16.mxu0 0
      %7158 = vmatpush1.bf16.msra.mxu0 0
      %7159 = vmatprep.subr.bf16.mxu0 0
      %7160 = vmatpush1.bf16.msra.mxu0 0
      %7161 = vmatprep.subr.bf16.mxu0 0
      %7162 = vmatpush1.bf16.msra.mxu0 0
      %7163 = vmatprep.subr.bf16.mxu0 0
      %7164 = vmatpush1.bf16.msra.mxu0 0
      %7165 = vmatprep.mubr.bf16.mxu0 0
      %7166 = vmatmul.mubr.bf16.gmra.mrb[0].mxu0 %v7131
      %v7167 = vpop.f32.mrb[0].mxu0
      %v7168 = vadd.f32 0.0, %v7167
      %v7169 = vpop.f32.mrb[0].mxu0
      %v7170 = vpop.f32.mrb[0].mxu0
      %v7171 = vpop.f32.mrb[0].mxu0
      %7172 = vdwg.mxu0
      %v7173 = vadd.f32 %v6740, %v7168
      %v7174 = vadd.f32 %v5433, %v7173
      %v7175 = vsel %vm1578, %v7174, 0.0
      %7176 = vadd.xlane.f32.xlu0 %v7175
      %v7177 = vpop.xlane.xlu0 %7176
      %v7178 = vmul.f32 %v7177, %v3281
      %v7179 = vsub.f32 %v7174, %v7178
      %v7180 = vmul.f32 %v7179, %v7179
      %v7181 = vsel %vm1578, %v7180, 0.0
      %7182 = vadd.xlane.f32.xlu0 %v7181
      %v7183 = vpop.xlane.xlu0 %7182
      %v7184 = vmul.f32 %v7183, %v3281
      %v7185 = vadd.f32 %v7184, 1e-05
      %v7186 = vrsqrt.pop %v7185
      %v7187 = vmul.f32 %v7179, %v7186
      %v7188 = vld [vmem:[%s79] sm:$0x1]
      %v7190 = vlaneseq
      %v7191 = vshrl.u32 %v7190, 7
      %v7192 = vsub.s32 0, %v7191
      %v7193 = vrot.slane %v7188, %v7192
      %v7195 = vmul.f32 %v7187, %v7193
      %v7196 = vld [vmem:[%s81] sm:$0x1]
      %v7198 = vlaneseq
      %v7199 = vshrl.u32 %v7198, 7
      %v7200 = vsub.s32 0, %v7199
      %v7201 = vrot.slane %v7196, %v7200
      %v7203 = vadd.f32 %v7195, %v7201
      %v7204 = vpack.c.bf16 %v7203, %v7203
      %v7205 = vld [vmem:[%s83] sm:$0xff]
      %v7206 = vld [vmem:[%s83 + $0x8] sm:$0xff]
      %v7207 = vld [vmem:[%s83 + $0x10] sm:$0xff]
      %v7208 = vld [vmem:[%s83 + $0x18] sm:$0xff]
      %v7209 = vld [vmem:[%s83 + $0x20] sm:$0xff]
      %v7210 = vld [vmem:[%s83 + $0x28] sm:$0xff]
      %v7211 = vld [vmem:[%s83 + $0x30] sm:$0xff]
      %v7212 = vld [vmem:[%s83 + $0x38] sm:$0xff]
      %v7213 = vld [vmem:[%s85] sm:$0x3]
      %v7215 = vlaneseq
      %v7216 = vshrl.u32 %v7215, 7
      %v7217 = vsub.s32 0, %v7216
      %v7218 = vrot.slane %v7213, %v7217
      %v7219 = vlaneseq
      %v7220 = vshrl.u32 %v7219, 7
      %v7221 = vsub.s32 1, %v7220
      %v7222 = vrot.slane %v7213, %v7221
      %v7233 = vunpack.c.l.b16 %v7205
      %v7234 = vunpack.c.h.b16 %v7205
      %v7235 = vunpack.c.l.b16 %v7206
      %v7236 = vunpack.c.h.b16 %v7206
      %v7237 = vunpack.c.l.b16 %v7207
      %v7238 = vunpack.c.h.b16 %v7207
      %v7239 = vunpack.c.l.b16 %v7208
      %v7240 = vunpack.c.h.b16 %v7208
      %v7241 = vunpack.c.l.b16 %v7209
      %v7242 = vunpack.c.h.b16 %v7209
      %v7243 = vunpack.c.l.b16 %v7210
      %v7244 = vunpack.c.h.b16 %v7210
      %v7245 = vunpack.c.l.b16 %v7211
      %v7246 = vunpack.c.h.b16 %v7211
      %v7247 = vunpack.c.l.b16 %v7212
      %v7248 = vunpack.c.h.b16 %v7212
      %v7249 = vpack.c.b16 %v7235, %v7233
      %v7250 = vpack.c.b16 %v7236, %v7234
      %v7251 = vpack.c.b16 %v7239, %v7237
      %v7252 = vpack.c.b16 %v7240, %v7238
      %v7253 = vpack.c.b16 %v7243, %v7241
      %v7254 = vpack.c.b16 %v7244, %v7242
      %v7255 = vpack.c.b16 %v7247, %v7245
      %v7256 = vpack.c.b16 %v7248, %v7246
      %v7266 = vsel %vm1578, %v7204, 0
      %7268 = vmatprep.subr.bf16.mxu0 %v7250
      %7269 = vmatpush1.bf16.msra.mxu0 %v7249
      %7270 = vmatprep.subr.bf16.mxu0 %v7252
      %7271 = vmatpush1.bf16.msra.mxu0 %v7251
      %7272 = vmatprep.subr.bf16.mxu0 %v7254
      %7273 = vmatpush1.bf16.msra.mxu0 %v7253
      %7274 = vmatprep.subr.bf16.mxu0 %v7256
      %7275 = vmatpush1.bf16.msra.mxu0 %v7255
      %7276 = vmatprep.subr.bf16.mxu0 0
      %7277 = vmatpush1.bf16.msra.mxu0 0
      %7278 = vmatprep.subr.bf16.mxu0 0
      %7279 = vmatpush1.bf16.msra.mxu0 0
      %7280 = vmatprep.subr.bf16.mxu0 0
      %7281 = vmatpush1.bf16.msra.mxu0 0
      %7282 = vmatprep.subr.bf16.mxu0 0
      %7283 = vmatpush1.bf16.msra.mxu0 0
      %7284 = vmatprep.subr.bf16.mxu0 0
      %7285 = vmatpush1.bf16.msra.mxu0 0
      %7286 = vmatprep.subr.bf16.mxu0 0
      %7287 = vmatpush1.bf16.msra.mxu0 0
      %7288 = vmatprep.subr.bf16.mxu0 0
      %7289 = vmatpush1.bf16.msra.mxu0 0
      %7290 = vmatprep.subr.bf16.mxu0 0
      %7291 = vmatpush1.bf16.msra.mxu0 0
      %7292 = vmatprep.subr.bf16.mxu0 0
      %7293 = vmatpush1.bf16.msra.mxu0 0
      %7294 = vmatprep.subr.bf16.mxu0 0
      %7295 = vmatpush1.bf16.msra.mxu0 0
      %7296 = vmatprep.subr.bf16.mxu0 0
      %7297 = vmatpush1.bf16.msra.mxu0 0
      %7298 = vmatprep.subr.bf16.mxu0 0
      %7299 = vmatpush1.bf16.msra.mxu0 0
      %7300 = vmatprep.mubr.bf16.mxu0 0
      %7301 = vmatmul.mubr.bf16.gmra.mrb[0].mxu0 %v7266
      %v7302 = vpop.f32.mrb[0].mxu0
      %v7303 = vadd.f32 %v7218, %v7302
      %v7304 = vpop.f32.mrb[0].mxu0
      %v7305 = vadd.f32 %v7222, %v7304
      %v7306 = vpop.f32.mrb[0].mxu0
      %v7307 = vpop.f32.mrb[0].mxu0
      %7308 = vdwg.mxu0
      %v7309 = vmax.f32 %v7303, 0.0
      %v7310 = vmax.f32 %v7305, 0.0
      %v7311 = vpack.c.bf16 %v7309, %v7309
      %v7312 = vpack.c.bf16 %v7310, %v7310
      %v7313 = vld [vmem:[%s87] sm:$0xf]
      %v7314 = vld [vmem:[%s87 + $0x4] sm:$0xf]
      %v7315 = vld [vmem:[%s87 + $0x8] sm:$0xf]
      %v7316 = vld [vmem:[%s87 + $0xc] sm:$0xf]
      %v7317 = vld [vmem:[%s87 + $0x10] sm:$0xf]
      %v7318 = vld [vmem:[%s87 + $0x14] sm:$0xf]
      %v7319 = vld [vmem:[%s87 + $0x18] sm:$0xf]
      %v7320 = vld [vmem:[%s87 + $0x1c] sm:$0xf]
      %v7321 = vld [vmem:[%s87 + $0x20] sm:$0xf]
      %v7322 = vld [vmem:[%s87 + $0x24] sm:$0xf]
      %v7323 = vld [vmem:[%s87 + $0x28] sm:$0xf]
      %v7324 = vld [vmem:[%s87 + $0x2c] sm:$0xf]
      %v7325 = vld [vmem:[%s87 + $0x30] sm:$0xf]
      %v7326 = vld [vmem:[%s87 + $0x34] sm:$0xf]
      %v7327 = vld [vmem:[%s87 + $0x38] sm:$0xf]
      %v7328 = vld [vmem:[%s87 + $0x3c] sm:$0xf]
      %v7329 = vld [vmem:[%s87 + $0x40] sm:$0xf]
      %v7330 = vld [vmem:[%s87 + $0x44] sm:$0xf]
      %v7331 = vld [vmem:[%s87 + $0x48] sm:$0xf]
      %v7332 = vld [vmem:[%s87 + $0x4c] sm:$0xf]
      %v7333 = vld [vmem:[%s87 + $0x50] sm:$0xf]
      %v7334 = vld [vmem:[%s87 + $0x54] sm:$0xf]
      %v7335 = vld [vmem:[%s87 + $0x58] sm:$0xf]
      %v7336 = vld [vmem:[%s87 + $0x5c] sm:$0xf]
      %v7337 = vld [vmem:[%s87 + $0x60] sm:$0xf]
      %v7338 = vld [vmem:[%s87 + $0x64] sm:$0xf]
      %v7339 = vld [vmem:[%s87 + $0x68] sm:$0xf]
      %v7340 = vld [vmem:[%s87 + $0x6c] sm:$0xf]
      %v7341 = vld [vmem:[%s87 + $0x70] sm:$0xf]
      %v7342 = vld [vmem:[%s87 + $0x74] sm:$0xf]
      %v7343 = vld [vmem:[%s87 + $0x78] sm:$0xf]
      %v7344 = vld [vmem:[%s87 + $0x7c] sm:$0xf]
      %v7345 = vld [vmem:[%s89] sm:$0x1]
      %v7347 = vlaneseq
      %v7348 = vshrl.u32 %v7347, 7
      %v7349 = vsub.s32 0, %v7348
      %v7350 = vrot.slane %v7345, %v7349
      %v7384 = vunpack.c.l.b16 %v7313
      %v7385 = vunpack.c.l.b16 %v7314
      %v7386 = vunpack.c.l.b16 %v7315
      %v7387 = vunpack.c.l.b16 %v7316
      %v7388 = vunpack.c.l.b16 %v7317
      %v7389 = vunpack.c.l.b16 %v7318
      %v7390 = vunpack.c.l.b16 %v7319
      %v7391 = vunpack.c.l.b16 %v7320
      %v7392 = vunpack.c.l.b16 %v7321
      %v7393 = vunpack.c.l.b16 %v7322
      %v7394 = vunpack.c.l.b16 %v7323
      %v7395 = vunpack.c.l.b16 %v7324
      %v7396 = vunpack.c.l.b16 %v7325
      %v7397 = vunpack.c.l.b16 %v7326
      %v7398 = vunpack.c.l.b16 %v7327
      %v7399 = vunpack.c.l.b16 %v7328
      %v7400 = vunpack.c.l.b16 %v7329
      %v7401 = vunpack.c.l.b16 %v7330
      %v7402 = vunpack.c.l.b16 %v7331
      %v7403 = vunpack.c.l.b16 %v7332
      %v7404 = vunpack.c.l.b16 %v7333
      %v7405 = vunpack.c.l.b16 %v7334
      %v7406 = vunpack.c.l.b16 %v7335
      %v7407 = vunpack.c.l.b16 %v7336
      %v7408 = vunpack.c.l.b16 %v7337
      %v7409 = vunpack.c.l.b16 %v7338
      %v7410 = vunpack.c.l.b16 %v7339
      %v7411 = vunpack.c.l.b16 %v7340
      %v7412 = vunpack.c.l.b16 %v7341
      %v7413 = vunpack.c.l.b16 %v7342
      %v7414 = vunpack.c.l.b16 %v7343
      %v7415 = vunpack.c.l.b16 %v7344
      %v7416 = vpack.c.b16 %v7385, %v7384
      %v7417 = vpack.c.b16 %v7387, %v7386
      %v7418 = vpack.c.b16 %v7389, %v7388
      %v7419 = vpack.c.b16 %v7391, %v7390
      %v7420 = vpack.c.b16 %v7393, %v7392
      %v7421 = vpack.c.b16 %v7395, %v7394
      %v7422 = vpack.c.b16 %v7397, %v7396
      %v7423 = vpack.c.b16 %v7399, %v7398
      %v7424 = vpack.c.b16 %v7401, %v7400
      %v7425 = vpack.c.b16 %v7403, %v7402
      %v7426 = vpack.c.b16 %v7405, %v7404
      %v7427 = vpack.c.b16 %v7407, %v7406
      %v7428 = vpack.c.b16 %v7409, %v7408
      %v7429 = vpack.c.b16 %v7411, %v7410
      %v7430 = vpack.c.b16 %v7413, %v7412
      %v7431 = vpack.c.b16 %v7415, %v7414
      %7448 = vmatprep.subr.bf16.mxu0 0
      %7449 = vmatpush1.bf16.msra.mxu0 %v7416
      %7450 = vmatprep.subr.bf16.mxu0 0
      %7451 = vmatpush1.bf16.msra.mxu0 %v7417
      %7452 = vmatprep.subr.bf16.mxu0 0
      %7453 = vmatpush1.bf16.msra.mxu0 %v7418
      %7454 = vmatprep.subr.bf16.mxu0 0
      %7455 = vmatpush1.bf16.msra.mxu0 %v7419
      %7456 = vmatprep.subr.bf16.mxu0 0
      %7457 = vmatpush1.bf16.msra.mxu0 %v7420
      %7458 = vmatprep.subr.bf16.mxu0 0
      %7459 = vmatpush1.bf16.msra.mxu0 %v7421
      %7460 = vmatprep.subr.bf16.mxu0 0
      %7461 = vmatpush1.bf16.msra.mxu0 %v7422
      %7462 = vmatprep.subr.bf16.mxu0 0
      %7463 = vmatpush1.bf16.msra.mxu0 %v7423
      %7464 = vmatprep.subr.bf16.mxu0 0
      %7465 = vmatpush1.bf16.msra.mxu0 %v7424
      %7466 = vmatprep.subr.bf16.mxu0 0
      %7467 = vmatpush1.bf16.msra.mxu0 %v7425
      %7468 = vmatprep.subr.bf16.mxu0 0
      %7469 = vmatpush1.bf16.msra.mxu0 %v7426
      %7470 = vmatprep.subr.bf16.mxu0 0
      %7471 = vmatpush1.bf16.msra.mxu0 %v7427
      %7472 = vmatprep.subr.bf16.mxu0 0
      %7473 = vmatpush1.bf16.msra.mxu0 %v7428
      %7474 = vmatprep.subr.bf16.mxu0 0
      %7475 = vmatpush1.bf16.msra.mxu0 %v7429
      %7476 = vmatprep.subr.bf16.mxu0 0
      %7477 = vmatpush1.bf16.msra.mxu0 %v7430
      %7478 = vmatprep.subr.bf16.mxu0 0
      %7479 = vmatpush1.bf16.msra.mxu0 %v7431
      %7480 = vmatprep.mubr.bf16.mxu0 %v7312
      %7481 = vmatmul.mubr.bf16.gmra.mrb[0].mxu0 %v7311
      %v7482 = vpop.f32.mrb[0].mxu0
      %v7483 = vadd.f32 %v7350, %v7482
      %v7484 = vpop.f32.mrb[0].mxu0
      %v7485 = vpop.f32.mrb[0].mxu0
      %v7486 = vpop.f32.mrb[0].mxu0
      %7487 = vdwg.mxu0
      %v7488 = vadd.f32 %v7203, %v7483
      %v7489 = vsel %vm1578, %v7488, 0.0
      %7490 = vadd.xlane.f32.xlu0 %v7489
      %v7491 = vpop.xlane.xlu0 %7490
      %v7492 = vmul.f32 %v7491, %v3281
      %v7493 = vsub.f32 %v7488, %v7492
      %v7494 = vmul.f32 %v7493, %v7493
      %v7495 = vsel %vm1578, %v7494, 0.0
      %7496 = vadd.xlane.f32.xlu0 %v7495
      %v7497 = vpop.xlane.xlu0 %7496
      %v7498 = vmul.f32 %v7497, %v3281
      %v7499 = vadd.f32 %v7498, 1e-05
      %v7500 = vrsqrt.pop %v7499
      %v7501 = vmul.f32 %v7493, %v7500
      %v7502 = vld [vmem:[%s91] sm:$0x1]
      %v7504 = vlaneseq
      %v7505 = vshrl.u32 %v7504, 7
      %v7506 = vsub.s32 0, %v7505
      %v7507 = vrot.slane %v7502, %v7506
      %v7509 = vmul.f32 %v7501, %v7507
      %v7510 = vld [vmem:[%s93] sm:$0x1]
      %v7512 = vlaneseq
      %v7513 = vshrl.u32 %v7512, 7
      %v7514 = vsub.s32 0, %v7513
      %v7515 = vrot.slane %v7510, %v7514
      %v7517 = vadd.f32 %v7509, %v7515
      %v7518 = vpack.c.bf16 %v7517, %v7517
      %v7519 = vld [vmem:[%s95] sm:$0xf]
      %v7520 = vld [vmem:[%s95 + $0x4] sm:$0xf]
      %v7521 = vld [vmem:[%s95 + $0x8] sm:$0xf]
      %v7522 = vld [vmem:[%s95 + $0xc] sm:$0xf]
      %v7523 = vld [vmem:[%s95 + $0x10] sm:$0xf]
      %v7524 = vld [vmem:[%s95 + $0x14] sm:$0xf]
      %v7525 = vld [vmem:[%s95 + $0x18] sm:$0xf]
      %v7526 = vld [vmem:[%s95 + $0x1c] sm:$0xf]
      %v7527 = vld [vmem:[%s97] sm:$0x1]
      %v7529 = vlaneseq
      %v7530 = vshrl.u32 %v7529, 7
      %v7531 = vsub.s32 0, %v7530
      %v7532 = vrot.slane %v7527, %v7531
      %v7542 = vunpack.c.l.b16 %v7519
      %v7543 = vunpack.c.l.b16 %v7520
      %v7544 = vunpack.c.l.b16 %v7521
      %v7545 = vunpack.c.l.b16 %v7522
      %v7546 = vunpack.c.l.b16 %v7523
      %v7547 = vunpack.c.l.b16 %v7524
      %v7548 = vunpack.c.l.b16 %v7525
      %v7549 = vunpack.c.l.b16 %v7526
      %v7550 = vpack.c.b16 %v7543, %v7542
      %v7551 = vpack.c.b16 %v7545, %v7544
      %v7552 = vpack.c.b16 %v7547, %v7546
      %v7553 = vpack.c.b16 %v7549, %v7548
      %v7559 = vsel %vm1578, %v7518, 0
      %7561 = vmatprep.subr.bf16.mxu0 0
      %7562 = vmatpush1.bf16.msra.mxu0 %v7550
      %7563 = vmatprep.subr.bf16.mxu0 0
      %7564 = vmatpush1.bf16.msra.mxu0 %v7551
      %7565 = vmatprep.subr.bf16.mxu0 0
      %7566 = vmatpush1.bf16.msra.mxu0 %v7552
      %7567 = vmatprep.subr.bf16.mxu0 0
      %7568 = vmatpush1.bf16.msra.mxu0 %v7553
      %7569 = vmatprep.subr.bf16.mxu0 0
      %7570 = vmatpush1.bf16.msra.mxu0 0
      %7571 = vmatprep.subr.bf16.mxu0 0
      %7572 = vmatpush1.bf16.msra.mxu0 0
      %7573 = vmatprep.subr.bf16.mxu0 0
      %7574 = vmatpush1.bf16.msra.mxu0 0
      %7575 = vmatprep.subr.bf16.mxu0 0
      %7576 = vmatpush1.bf16.msra.mxu0 0
      %7577 = vmatprep.subr.bf16.mxu0 0
      %7578 = vmatpush1.bf16.msra.mxu0 0
      %7579 = vmatprep.subr.bf16.mxu0 0
      %7580 = vmatpush1.bf16.msra.mxu0 0
      %7581 = vmatprep.subr.bf16.mxu0 0
      %7582 = vmatpush1.bf16.msra.mxu0 0
      %7583 = vmatprep.subr.bf16.mxu0 0
      %7584 = vmatpush1.bf16.msra.mxu0 0
      %7585 = vmatprep.subr.bf16.mxu0 0
      %7586 = vmatpush1.bf16.msra.mxu0 0
      %7587 = vmatprep.subr.bf16.mxu0 0
      %7588 = vmatpush1.bf16.msra.mxu0 0
      %7589 = vmatprep.subr.bf16.mxu0 0
      %7590 = vmatpush1.bf16.msra.mxu0 0
      %7591 = vmatprep.subr.bf16.mxu0 0
      %7592 = vmatpush1.bf16.msra.mxu0 0
      %7593 = vmatprep.mubr.bf16.mxu0 0
      %7594 = vmatmul.mubr.bf16.gmra.mrb[0].mxu0 %v7559
      %v7595 = vpop.f32.mrb[0].mxu0
      %v7596 = vadd.f32 %v7532, %v7595
      %v7597 = vpop.f32.mrb[0].mxu0
      %v7598 = vpop.f32.mrb[0].mxu0
      %v7599 = vpop.f32.mrb[0].mxu0
      %7600 = vdwg.mxu0
      %v7601 = vmul.f32 %v7596, 0.5
      %v7602 = vtanh.pop %v7601
      %v7603 = vadd.f32 %v7602, 1.0
      %v7604 = vmul.f32 %v7603, 0.5
      %7605 = vst.msk [vmem:[%s1474] sm:$0xff] %vm1487, %v7604
      %p7606 = scmp.lt.s32.totalorder %s110, 1
      %s7607 = scalar_select %p7606, %s110, 1
      %s7608 = smul.addr %s7607, 8
      %s7609 = scalar_lea.vmem %s99, %s7608
      // Predicated region
      $region217: #{tpu_custom_call.1} parent=215 // pred_check
        %p7610 = pneg %p1167
      $region218: #{tpu_custom_call.1} parent=215 // pred_check_branch
        %7612 = sbr.rel (%p7610) target = $region220
      $region219: #{tpu_custom_call.1} parent=215 // pred_region
        _
      $region220: #{tpu_custom_call.1} parent=215 // pred_fallthru
        _
    $region216: #{tpu_custom_call.1} parent=5 // pred_fallthru
      _
    %p7613 = scmp.le.s32.totalorder 2, %s105
    // Predicated region
    $region221: #{tpu_custom_call.1} parent=5 // pred_check
      %p7614 = pneg %p7613
    $region222: #{tpu_custom_call.1} parent=5 // pred_check_branch
      %7616 = sbr.rel (%p7614) target = $region224
    $region223: #{tpu_custom_call.1} parent=5 // pred_region
      %s7617 = ssub.s32 %s105, 2
      // Predicated region
      $region225: #{tpu_custom_call.1} parent=223 // pred_check
        %p7618 = pneg %p1173
      $region226: #{tpu_custom_call.1} parent=223 // pred_check_branch
        %7620 = sbr.rel (%p7618) target = $region228
      $region227: #{tpu_custom_call.1} parent=223 // pred_region
        %p7621 = scmp.lt.s32.totalorder %s111, 1
        %s7622 = scalar_select %p7621, %s111, 1
        %s7623 = smul.addr %s7622, 8
        %s7624 = scalar_lea.vmem %s99, %s7623
      $region228: #{tpu_custom_call.1} parent=223 // pred_fallthru
        _
    $region224: #{tpu_custom_call.1} parent=5 // pred_fallthru
      _
  $region6: #{tpu_custom_call.1} parent=0 // loop_footer
    %s109 = sadd.s32 1, %s105
  $region7: #{tpu_custom_call.1} parent=0 // loop_footer_branch
    %104 = sbr.rel target = $region3
  $region8: #{tpu_custom_call.1} parent=0 // loop_exit
    _

</llo_original>
